<compile_context>
chip_gen: v6e
topology: v6e:2x2x1
jax: 0.10.0
libtpu: 0.0.40
codegen_flags: <defaults>
</compile_context>

<pallas_src>
import numpy as np

import jax
import jax.numpy as jnp
from jax import lax
from jax.experimental import pallas as pl
from jax.experimental.pallas import tpu as pltpu

BN_EPS = 1e-5
NUM_CLASSES = 21


# ----------------------------------------------------------------------------
# Host-side parameter preparation (hoisted out of the jitted forward)
# ----------------------------------------------------------------------------
def _bilinear_matrix(in_size, out_size):
    """align_corners=True interpolation matrix (out_size, in_size), like UpsamplingBilinear2d."""
    if in_size == 1:
        return np.ones((out_size, 1), np.float32)
    src = np.arange(out_size, dtype=np.float64) * (in_size - 1) / (out_size - 1)
    lo = np.clip(np.floor(src).astype(np.int64), 0, in_size - 2)
    frac = src - lo
    m = np.zeros((out_size, in_size), np.float64)
    m[np.arange(out_size), lo] += 1.0 - frac
    m[np.arange(out_size), lo + 1] += frac
    return m.astype(np.float32)


def _tap_select(hi, wi, stride):
    """Per-tap 0/1 spatial selection S (9, hi*wi, ho*wo) for a 3x3 conv, pad 1."""
    ho = (hi - 1) // stride + 1
    wo = (wi - 1) // stride + 1
    s = np.zeros((9, hi * wi, ho * wo), np.float32)
    for ky in range(3):
        for kx in range(3):
            t = ky * 3 + kx
            for oy in range(ho):
                iy = stride * oy + ky - 1
                if not 0 <= iy < hi:
                    continue
                for ox in range(wo):
                    ix = stride * ox + kx - 1
                    if 0 <= ix < wi:
                        s[t, iy * wi + ix, oy * wo + ox] = 1.0
    return s, ho, wo


def _bn_fold(b, bn, cout):
    """Per-channel (scale, bias) folding conv bias + eval-mode BatchNorm."""
    b64 = np.asarray(b, np.float64)
    if bn is None:
        return np.ones((cout,), np.float64), b64
    gamma, beta, mean, var = (np.asarray(t, np.float64) for t in bn)
    scale = gamma / np.sqrt(var + BN_EPS)
    return scale, beta - mean * scale + b64 * scale


def _fold_taps(layer, to_hwc):
    """Folded 3x3 weights per tap: (9, cout, cin) for (C,HW) layers,
    (9, cin, cout) for (HW,C) layers.  Tap index t = ky*3 + kx."""
    w = np.asarray(layer["w"], np.float64)          # (3, 3, cin, cout)
    cin, cout = w.shape[2], w.shape[3]
    scale, bias = _bn_fold(layer["b"], layer.get("bn"), cout)
    taps = (w * scale).reshape(9, cin, cout)
    if not to_hwc:
        taps = taps.transpose(0, 2, 1)              # (9, cout, cin)
    return taps.astype(np.float32), bias.astype(np.float32)


def _fold_flat(layer):
    """Folded stem weight (cout, 9*cin); columns ordered tap-major / cin-minor."""
    w = np.asarray(layer["w"], np.float64)          # (3, 3, cin, cout)
    cin, cout = w.shape[2], w.shape[3]
    scale, bias = _bn_fold(layer["b"], layer.get("bn"), cout)
    wf = (w * scale).transpose(3, 0, 1, 2).reshape(cout, 9 * cin)
    return wf.astype(np.float32), bias.astype(np.float32)


def prepare_model(params, in_hw):
    """Fold BN, build per-tap selection / weight constants in kernel layout."""
    bf16, f32 = jnp.bfloat16, jnp.float32
    h, w = in_hw
    assert h % 16 == 0 and w % 16 == 0, "input H/W must be divisible by 16"
    consts = []

    # stem (layer 1): im2col is done in the wrapper; single folded matmul in-kernel
    w1, b1 = _fold_flat(params["backbone"][0])
    consts += [jnp.asarray(w1, bf16), jnp.asarray(b1.reshape(-1, 1), f32)]
    h, w = (h - 1) // 2 + 1, (w - 1) // 2 + 1

    # layers 2-3: (C, HW) layout (spatial axis still wide -> keep it on lanes)
    for layer in params["backbone"][1:3]:
        sel, ho, wo = _tap_select(h, w, 2)
        wt, bias = _fold_taps(layer, to_hwc=False)
        consts += [jnp.asarray(sel, bf16),                      # (9, hw_in, hw_out)
                   jnp.asarray(wt, bf16),                       # (9, cout, cin)
                   jnp.asarray(bias.reshape(-1, 1), f32)]
        h, w = ho, wo

    # layer 4 + ASPP + head conv: (HW, C) layout (channels 96/256 on lanes)
    for layer, stride in [(params["backbone"][3], 2), (params["aspp"], 1),
                          (params["head1"], 1)]:
        sel, ho, wo = _tap_select(h, w, stride)
        wt, bias = _fold_taps(layer, to_hwc=True)
        consts += [jnp.asarray(sel.transpose(0, 2, 1), bf16),   # (9, hw_out, hw_in)
                   jnp.asarray(wt, bf16),                       # (9, cin, cout)
                   jnp.asarray(bias.reshape(1, -1), f32)]
        h, w = ho, wo

    # head classifier (1x1 conv, no BN / no ReLU), weight as (nc, cin)
    w2 = np.asarray(params["head2"]["w"], np.float64)           # (1,1,cin,nc)
    b2 = np.asarray(params["head2"]["b"], np.float32)
    cin2, nc = w2.shape[2], w2.shape[3]
    consts += [jnp.asarray(w2.reshape(cin2, nc).T, bf16),       # (nc, cin)
               jnp.asarray(b2.reshape(nc, 1), f32)]

    # x16 bilinear upsample (align_corners=True) as a flattened-spatial matmul.
    # TODO(synk): use the separable rows-then-cols form if the pre-upsample
    # feature map ever grows beyond a few pixels (kron is O((h*w)^2)).
    oh, ow = 16 * h, 16 * w
    u = np.kron(_bilinear_matrix(h, oh), _bilinear_matrix(w, ow))   # (oh*ow, h*w)
    consts.append(jnp.asarray(u.T, bf16))                            # (h*w, oh*ow)

    dims = dict(cin0=params["backbone"][0]["w"].shape[2],
                in_h=in_hw[0], in_w=in_hw[1],
                hw1=((in_hw[0] - 1) // 2 + 1) * ((in_hw[1] - 1) // 2 + 1),
                num_classes=nc, out_h=oh, out_w=ow, hw_out=oh * ow)
    return consts, dims


# ----------------------------------------------------------------------------
# Fused whole-network Pallas kernel
# ----------------------------------------------------------------------------
def _seg_kernel(p1_ref,
                w1_ref, b1_ref,
                s2_ref, w2_ref, b2_ref,
                s3_ref, w3_ref, b3_ref,
                s4_ref, w4_ref, b4_ref,
                sa_ref, wa_ref, ba_ref,
                sh_ref, wh_ref, bh_ref,
                wc_ref, bc_ref, u_ref,
                o_ref):
    f32, bf16 = jnp.float32, jnp.bfloat16

    def conv_chw(a, s_ref, w_ref, b_ref):
        # 3x3 conv + bias + ReLU in (C, HW) layout: a (cin, hw_in) -> (cout, hw_out)
        cout, hw_out = w_ref.shape[1], s_ref.shape[2]
        y = jnp.zeros((cout, hw_out), f32)
        for t in range(9):                              # static unroll; per-tap ref
            tap = jnp.dot(a, s_ref[t],                  # reads, no lane slicing/concat
                          preferred_element_type=f32)                # (cin, hw_out)
            y = y + jnp.dot(w_ref[t], tap.astype(bf16),
                            preferred_element_type=f32)              # (cout, hw_out)
        return jnp.maximum(y + b_ref[...], 0.0).astype(bf16)         # f32 epilogue

    def conv_hwc(a, s_ref, w_ref, b_ref, from_chw=False):
        # 3x3 conv + bias + ReLU in (HW, C) layout -> (hw_out, cout); channels on lanes
        hw_out, cout = s_ref.shape[1], w_ref.shape[2]
        y = jnp.zeros((hw_out, cout), f32)
        for t in range(9):
            if from_chw:
                # layout switch: contract spatial axes of sel (hw_out, hw_in) and
                # a (cin, hw_in)  ->  (hw_out, cin)   ("q @ k.T"-style dot)
                tap = lax.dot_general(s_ref[t], a, (((1,), (1,)), ((), ())),
                                      preferred_element_type=f32)
            else:
                tap = jnp.dot(s_ref[t], a, preferred_element_type=f32)  # (hw_out, cin)
            y = y + jnp.dot(tap.astype(bf16), w_ref[t],
                            preferred_element_type=f32)                 # (hw_out, cout)
        return jnp.maximum(y + b_ref[...], 0.0).astype(bf16)

    # stem: patches were im2col'd in the wrapper -> one (cout, 27) @ (27, 256) dot
    a = jnp.dot(w1_ref[...], p1_ref[...], preferred_element_type=f32)
    a = jnp.maximum(a + b1_ref[...], 0.0).astype(bf16)               # (16, 256)

    a = conv_chw(a, s2_ref, w2_ref, b2_ref)                          # (24, 64)
    a = conv_chw(a, s3_ref, w3_ref, b3_ref)                          # (40, 16)

    a = conv_hwc(a, s4_ref, w4_ref, b4_ref, from_chw=True)           # (4, 96)
    a = conv_hwc(a, sa_ref, wa_ref, ba_ref)                          # (4, 256)  ASPP
    # TODO(synk): Dropout(0.5)/Dropout(0.1) are eval-mode identities here.
    a = conv_hwc(a, sh_ref, wh_ref, bh_ref)                          # (4, 256)  head conv

    # 1x1 classifier directly in (nc, hw) orientation (contract channel axes)
    logits = lax.dot_general(wc_ref[...], a, (((1,), (1,)), ((), ())),
                             preferred_element_type=f32) + bc_ref[...]    # (nc, 4)
    # fused bilinear x16 upsample; lane-dense (nc, 1024) output tile
    o_ref[...] = jnp.dot(logits.astype(bf16), u_ref[...],
                         preferred_element_type=f32)


# ----------------------------------------------------------------------------
# Wrapper
# ----------------------------------------------------------------------------
def _const_spec(shape):
    index_map = lambda n: (0,) * len(shape)
    try:
        # constants never change block index across the batch grid -> single buffer
        return pl.BlockSpec(shape, index_map,
                            pipeline_mode=pl.Buffered(buffer_count=1))
    except (TypeError, AttributeError):
        return pl.BlockSpec(shape, index_map)


def build_forward(params, in_hw=(32, 32)):
    consts, dims = prepare_model(params, in_hw)
    cin0, hw1 = dims["cin0"], dims["hw1"]
    nc, hw_out = dims["num_classes"], dims["hw_out"]
    in_h, in_w = dims["in_h"], dims["in_w"]

    in_specs = [pl.BlockSpec((None, 9 * cin0, hw1), lambda n: (n, 0, 0))]
    in_specs += [_const_spec(c.shape) for c in consts]
    out_spec = pl.BlockSpec((None, nc, hw_out), lambda n: (n, 0, 0))

    def forward(x_nchw):
        n = x_nchw.shape[0]
        # Stride-2 3x3 im2col of the tiny raw input in the wrapper (layout plumbing
        # on ~12 KB/image); rows ordered tap-major / channel-minor to match the
        # folded stem weight.  Replaces the 4.7 MB layer-1 selection-matrix matmul.
        xp = jnp.pad(x_nchw, ((0, 0), (0, 0), (1, 1), (1, 1)))
        taps = [xp[:, :, ky:ky + in_h:2, kx:kx + in_w:2]
                for ky in range(3) for kx in range(3)]
        patches = jnp.stack(taps, axis=1).reshape(n, 9 * cin0, hw1)
        patches = patches.astype(jnp.bfloat16)

        out = pl.pallas_call(
            _seg_kernel,
            out_shape=jax.ShapeDtypeStruct((n, nc, hw_out), jnp.float32),
            grid=(n,),                         # one image per step; batch across TCs
            in_specs=in_specs,
            out_specs=out_spec,
            compiler_params=pltpu.CompilerParams(
                dimension_semantics=("parallel",),
                vmem_limit_bytes=32 * 1024 * 1024),   # v7x-safe (< 64 MiB/TC)
        )(patches, *consts)
        return out.reshape(n, nc, dims["out_h"], dims["out_w"])

    return jax.jit(forward)


# ----------------------------------------------------------------------------
# Deterministic parameters (matching the PyTorch module structure)
# ----------------------------------------------------------------------------
def _conv_init(key, kh, kw, cin, cout):
    k1, k2 = jax.random.split(key)
    fan_in = kh * kw * cin
    w = jax.random.normal(k1, (kh, kw, cin, cout), jnp.float32) / jnp.sqrt(fan_in)
    b = 0.05 * jax.random.normal(k2, (cout,), jnp.float32)
    return w, b


def _bn_init(key, c):
    k1, k2, k3, k4 = jax.random.split(key, 4)
    gamma = 1.0 + 0.1 * jax.random.normal(k1, (c,), jnp.float32)
    beta = 0.1 * jax.random.normal(k2, (c,), jnp.float32)
    mean = 0.1 * jax.random.normal(k3, (c,), jnp.float32)
    var = 1.0 + 0.1 * jnp.abs(jax.random.normal(k4, (c,), jnp.float32))
    return gamma, beta, mean, var


def init_params(key, num_classes=21):
    keys = jax.random.split(key, 13)
    ki = 0
    backbone = []
    for cin, cout in [(3, 16), (16, 24), (24, 40), (40, 96)]:
        w, b = _conv_init(keys[ki], 3, 3, cin, cout); ki += 1
        bn = _bn_init(keys[ki], cout); ki += 1
        backbone.append({"w": w, "b": b, "bn": bn})
    w, b = _conv_init(keys[ki], 3, 3, 96, 256); ki += 1
    aspp = {"w": w, "b": b, "bn": _bn_init(keys[ki], 256)}; ki += 1
    w, b = _conv_init(keys[ki], 3, 3, 256, 256); ki += 1
    head1 = {"w": w, "b": b, "bn": _bn_init(keys[ki], 256)}; ki += 1
    w, b = _conv_init(keys[ki], 1, 1, 256, num_classes); ki += 1
    head2 = {"w": w, "b": b}
    return {"backbone": backbone, "aspp": aspp, "head1": head1, "head2": head2}


# ----------------------------------------------------------------------------
# Pure-JAX f32 reference (loose numerical sanity check vs bf16 kernel)
# ----------------------------------------------------------------------------
def _ref_conv_bn_relu(x, w, b, bn, stride, pad, relu):
    wo = jnp.transpose(w, (3, 2, 0, 1))  # (kh,kw,ci,co) -> OIHW
    y = lax.conv_general_dilated(x, wo, (stride, stride), [(pad, pad), (pad, pad)],
                                 dimension_numbers=("NCHW", "OIHW", "NCHW"))
    y = y + b[None, :, None, None]
    if bn is not None:
        gamma, beta, mean, var = bn
        y = (y - mean[None, :, None, None]) / jnp.sqrt(var[None, :, None, None] + BN_EPS)
        y = y * gamma[None, :, None, None] + beta[None, :, None, None]
    if relu:
        y = jnp.maximum(y, 0.0)
    return y


def reference_forward(params, x):
    y = x.astype(jnp.float32)
    for layer in params["backbone"]:
        y = _ref_conv_bn_relu(y, layer["w"], layer["b"], layer["bn"], 2, 1, True)
    a = params["aspp"]
    y = _ref_conv_bn_relu(y, a["w"], a["b"], a["bn"], 1, 1, True)
    h1 = params["head1"]
    y = _ref_conv_bn_relu(y, h1["w"], h1["b"], h1["bn"], 1, 1, True)
    h2 = params["head2"]
    y = _ref_conv_bn_relu(y, h2["w"], h2["b"], None, 1, 0, False)
    n, c, h, w = y.shape
    bh = jnp.asarray(_bilinear_matrix(h, 16 * h))
    bw = jnp.asarray(_bilinear_matrix(w, 16 * w))
    return jnp.einsum("yh,nchw,xw->ncyx", bh, y, bw)


if __name__ == "__main__":
    key = jax.random.PRNGKey(0)
    pkey, xkey = jax.random.split(key)
    params = init_params(pkey, num_classes=NUM_CLASSES)
    x = jax.random.normal(xkey, (2, 3, 32, 32), jnp.float32)  # NCHW, like PyTorch

    forward = build_forward(params, in_hw=(32, 32))
    out = jax.block_until_ready(forward(x))

    assert out.shape == (2, NUM_CLASSES, 32, 32), out.shape
    assert bool(jnp.all(jnp.isfinite(out)))

    # loose check vs f32 reference (kernel uses bf16 MXU operands)
    ref = reference_forward(params, x)
    err = float(jnp.max(jnp.abs(out - ref)))
    assert err < 0.2, f"max abs error vs f32 reference: {err}"

    print("KERNEL_OK")
</pallas_src>

<mosaic_0001>
module attributes {stable_mosaic.version = 11 : i64} {
  func.func @_seg_kernel(%arg0: i32, %arg1: memref<1x27x256xbf16, #tpu.memory_space<vmem>>, %arg2: memref<16x27xbf16, #tpu.memory_space<vmem>>, %arg3: memref<16x1xf32, #tpu.memory_space<vmem>>, %arg4: memref<9x256x64xbf16, #tpu.memory_space<vmem>>, %arg5: memref<9x24x16xbf16, #tpu.memory_space<vmem>>, %arg6: memref<24x1xf32, #tpu.memory_space<vmem>>, %arg7: memref<9x64x16xbf16, #tpu.memory_space<vmem>>, %arg8: memref<9x40x24xbf16, #tpu.memory_space<vmem>>, %arg9: memref<40x1xf32, #tpu.memory_space<vmem>>, %arg10: memref<9x4x16xbf16, #tpu.memory_space<vmem>>, %arg11: memref<9x40x96xbf16, #tpu.memory_space<vmem>>, %arg12: memref<1x96xf32, #tpu.memory_space<vmem>>, %arg13: memref<9x4x4xbf16, #tpu.memory_space<vmem>>, %arg14: memref<9x96x256xbf16, #tpu.memory_space<vmem>>, %arg15: memref<1x256xf32, #tpu.memory_space<vmem>>, %arg16: memref<9x4x4xbf16, #tpu.memory_space<vmem>>, %arg17: memref<9x256x256xbf16, #tpu.memory_space<vmem>>, %arg18: memref<1x256xf32, #tpu.memory_space<vmem>>, %arg19: memref<21x256xbf16, #tpu.memory_space<vmem>>, %arg20: memref<21x1xf32, #tpu.memory_space<vmem>>, %arg21: memref<4x1024xbf16, #tpu.memory_space<vmem>>, %arg22: memref<1x21x1024xf32, #tpu.memory_space<vmem>>) attributes {dimension_semantics = [#tpu.dimension_semantics<parallel>], iteration_bounds = array<i64: 2>, scalar_prefetch = 0 : i64, scratch_operands = 0 : i64, tpu.core_type = #tpu.core_type<tc>, window_params = [{transform_indices = @transform_0, window_bounds = array<i64: 1, 27, 256>}, {pipeline_mode = #tpu.pipeline_mode<synchronous>, transform_indices = @transform_1, window_bounds = array<i64: 16, 27>}, {pipeline_mode = #tpu.pipeline_mode<synchronous>, transform_indices = @transform_2, window_bounds = array<i64: 16, 1>}, {pipeline_mode = #tpu.pipeline_mode<synchronous>, transform_indices = @transform_3, window_bounds = array<i64: 9, 256, 64>}, {pipeline_mode = #tpu.pipeline_mode<synchronous>, transform_indices = @transform_4, window_bounds = array<i64: 9, 24, 16>}, {pipeline_mode = #tpu.pipeline_mode<synchronous>, transform_indices = @transform_5, window_bounds = array<i64: 24, 1>}, {pipeline_mode = #tpu.pipeline_mode<synchronous>, transform_indices = @transform_6, window_bounds = array<i64: 9, 64, 16>}, {pipeline_mode = #tpu.pipeline_mode<synchronous>, transform_indices = @transform_7, window_bounds = array<i64: 9, 40, 24>}, {pipeline_mode = #tpu.pipeline_mode<synchronous>, transform_indices = @transform_8, window_bounds = array<i64: 40, 1>}, {pipeline_mode = #tpu.pipeline_mode<synchronous>, transform_indices = @transform_9, window_bounds = array<i64: 9, 4, 16>}, {pipeline_mode = #tpu.pipeline_mode<synchronous>, transform_indices = @transform_10, window_bounds = array<i64: 9, 40, 96>}, {pipeline_mode = #tpu.pipeline_mode<synchronous>, transform_indices = @transform_11, window_bounds = array<i64: 1, 96>}, {pipeline_mode = #tpu.pipeline_mode<synchronous>, transform_indices = @transform_12, window_bounds = array<i64: 9, 4, 4>}, {pipeline_mode = #tpu.pipeline_mode<synchronous>, transform_indices = @transform_13, window_bounds = array<i64: 9, 96, 256>}, {pipeline_mode = #tpu.pipeline_mode<synchronous>, transform_indices = @transform_14, window_bounds = array<i64: 1, 256>}, {pipeline_mode = #tpu.pipeline_mode<synchronous>, transform_indices = @transform_15, window_bounds = array<i64: 9, 4, 4>}, {pipeline_mode = #tpu.pipeline_mode<synchronous>, transform_indices = @transform_16, window_bounds = array<i64: 9, 256, 256>}, {pipeline_mode = #tpu.pipeline_mode<synchronous>, transform_indices = @transform_17, window_bounds = array<i64: 1, 256>}, {pipeline_mode = #tpu.pipeline_mode<synchronous>, transform_indices = @transform_18, window_bounds = array<i64: 21, 256>}, {pipeline_mode = #tpu.pipeline_mode<synchronous>, transform_indices = @transform_19, window_bounds = array<i64: 21, 1>}, {pipeline_mode = #tpu.pipeline_mode<synchronous>, transform_indices = @transform_20, window_bounds = array<i64: 4, 1024>}, {transform_indices = @transform_21, window_bounds = array<i64: 1, 21, 1024>}]} {
    %c0 = arith.constant 0 : index
    %c0_0 = arith.constant 0 : index
    %0 = vector.load %arg2[%c0, %c0_0] : memref<16x27xbf16, #tpu.memory_space<vmem>>, vector<16x27xbf16>
    %c0_1 = arith.constant 0 : index
    %c0_2 = arith.constant 0 : index
    %c0_3 = arith.constant 0 : index
    %1 = vector.load %arg1[%c0_1, %c0_2, %c0_3] : memref<1x27x256xbf16, #tpu.memory_space<vmem>>, vector<1x27x256xbf16>
    %2 = vector.shape_cast %1 : vector<1x27x256xbf16> to vector<27x256xbf16>
    %cst = arith.constant dense<0.000000e+00> : vector<16x256xf32>
    %3 = tpu.matmul %0, %2, %cst {dimension_numbers = #tpu.dot_dimension_numbers<[1], [0], [0], [1], [0, 0, 1, 1], [], []>} : vector<16x27xbf16>, vector<27x256xbf16>, vector<16x256xf32> -> vector<16x256xf32>
    %c0_4 = arith.constant 0 : index
    %c0_5 = arith.constant 0 : index
    %4 = vector.load %arg3[%c0_4, %c0_5] : memref<16x1xf32, #tpu.memory_space<vmem>>, vector<16x1xf32>
    %5 = vector.broadcast %4 : vector<16x1xf32> to vector<16x256xf32>
    %6 = arith.addf %3, %5 : vector<16x256xf32>
    %cst_6 = arith.constant 0.000000e+00 : f32
    %7 = vector.broadcast %cst_6 : f32 to vector<16x256xf32>
    %8 = arith.maximumf %6, %7 : vector<16x256xf32>
    %9 = arith.truncf %8 : vector<16x256xf32> to vector<16x256xbf16>
    %cst_7 = arith.constant 0.000000e+00 : f32
    %10 = vector.broadcast %cst_7 : f32 to vector<24x64xf32>
    %c0_8 = arith.constant 0 : index
    %c0_9 = arith.constant 0 : index
    %c0_10 = arith.constant 0 : index
    %11 = vector.load %arg4[%c0_8, %c0_9, %c0_10] : memref<9x256x64xbf16, #tpu.memory_space<vmem>>, vector<1x256x64xbf16>
    %12 = vector.shape_cast %11 : vector<1x256x64xbf16> to vector<256x64xbf16>
    %cst_11 = arith.constant dense<0.000000e+00> : vector<16x64xf32>
    %13 = tpu.matmul %9, %12, %cst_11 {dimension_numbers = #tpu.dot_dimension_numbers<[1], [0], [0], [1], [0, 0, 1, 1], [], []>} : vector<16x256xbf16>, vector<256x64xbf16>, vector<16x64xf32> -> vector<16x64xf32>
    %c0_12 = arith.constant 0 : index
    %c0_13 = arith.constant 0 : index
    %c0_14 = arith.constant 0 : index
    %14 = vector.load %arg5[%c0_12, %c0_13, %c0_14] : memref<9x24x16xbf16, #tpu.memory_space<vmem>>, vector<1x24x16xbf16>
    %15 = vector.shape_cast %14 : vector<1x24x16xbf16> to vector<24x16xbf16>
    %16 = arith.truncf %13 : vector<16x64xf32> to vector<16x64xbf16>
    %cst_15 = arith.constant dense<0.000000e+00> : vector<24x64xf32>
    %17 = tpu.matmul %15, %16, %cst_15 {dimension_numbers = #tpu.dot_dimension_numbers<[1], [0], [0], [1], [0, 0, 1, 1], [], []>} : vector<24x16xbf16>, vector<16x64xbf16>, vector<24x64xf32> -> vector<24x64xf32>
    %18 = arith.addf %10, %17 : vector<24x64xf32>
    %c1 = arith.constant 1 : index
    %c0_16 = arith.constant 0 : index
    %c0_17 = arith.constant 0 : index
    %19 = vector.load %arg4[%c1, %c0_16, %c0_17] : memref<9x256x64xbf16, #tpu.memory_space<vmem>>, vector<1x256x64xbf16>
    %20 = vector.shape_cast %19 : vector<1x256x64xbf16> to vector<256x64xbf16>
    %cst_18 = arith.constant dense<0.000000e+00> : vector<16x64xf32>
    %21 = tpu.matmul %9, %20, %cst_18 {dimension_numbers = #tpu.dot_dimension_numbers<[1], [0], [0], [1], [0, 0, 1, 1], [], []>} : vector<16x256xbf16>, vector<256x64xbf16>, vector<16x64xf32> -> vector<16x64xf32>
    %c1_19 = arith.constant 1 : index
    %c0_20 = arith.constant 0 : index
    %c0_21 = arith.constant 0 : index
    %22 = vector.load %arg5[%c1_19, %c0_20, %c0_21] : memref<9x24x16xbf16, #tpu.memory_space<vmem>>, vector<1x24x16xbf16>
    %23 = vector.shape_cast %22 : vector<1x24x16xbf16> to vector<24x16xbf16>
    %24 = arith.truncf %21 : vector<16x64xf32> to vector<16x64xbf16>
    %cst_22 = arith.constant dense<0.000000e+00> : vector<24x64xf32>
    %25 = tpu.matmul %23, %24, %cst_22 {dimension_numbers = #tpu.dot_dimension_numbers<[1], [0], [0], [1], [0, 0, 1, 1], [], []>} : vector<24x16xbf16>, vector<16x64xbf16>, vector<24x64xf32> -> vector<24x64xf32>
    %26 = arith.addf %18, %25 : vector<24x64xf32>
    %c2 = arith.constant 2 : index
    %c0_23 = arith.constant 0 : index
    %c0_24 = arith.constant 0 : index
    %27 = vector.load %arg4[%c2, %c0_23, %c0_24] : memref<9x256x64xbf16, #tpu.memory_space<vmem>>, vector<1x256x64xbf16>
    %28 = vector.shape_cast %27 : vector<1x256x64xbf16> to vector<256x64xbf16>
    %cst_25 = arith.constant dense<0.000000e+00> : vector<16x64xf32>
    %29 = tpu.matmul %9, %28, %cst_25 {dimension_numbers = #tpu.dot_dimension_numbers<[1], [0], [0], [1], [0, 0, 1, 1], [], []>} : vector<16x256xbf16>, vector<256x64xbf16>, vector<16x64xf32> -> vector<16x64xf32>
    %c2_26 = arith.constant 2 : index
    %c0_27 = arith.constant 0 : index
    %c0_28 = arith.constant 0 : index
    %30 = vector.load %arg5[%c2_26, %c0_27, %c0_28] : memref<9x24x16xbf16, #tpu.memory_space<vmem>>, vector<1x24x16xbf16>
    %31 = vector.shape_cast %30 : vector<1x24x16xbf16> to vector<24x16xbf16>
    %32 = arith.truncf %29 : vector<16x64xf32> to vector<16x64xbf16>
    %cst_29 = arith.constant dense<0.000000e+00> : vector<24x64xf32>
    %33 = tpu.matmul %31, %32, %cst_29 {dimension_numbers = #tpu.dot_dimension_numbers<[1], [0], [0], [1], [0, 0, 1, 1], [], []>} : vector<24x16xbf16>, vector<16x64xbf16>, vector<24x64xf32> -> vector<24x64xf32>
    %34 = arith.addf %26, %33 : vector<24x64xf32>
    %c3 = arith.constant 3 : index
    %c0_30 = arith.constant 0 : index
    %c0_31 = arith.constant 0 : index
    %35 = vector.load %arg4[%c3, %c0_30, %c0_31] : memref<9x256x64xbf16, #tpu.memory_space<vmem>>, vector<1x256x64xbf16>
    %36 = vector.shape_cast %35 : vector<1x256x64xbf16> to vector<256x64xbf16>
    %cst_32 = arith.constant dense<0.000000e+00> : vector<16x64xf32>
    %37 = tpu.matmul %9, %36, %cst_32 {dimension_numbers = #tpu.dot_dimension_numbers<[1], [0], [0], [1], [0, 0, 1, 1], [], []>} : vector<16x256xbf16>, vector<256x64xbf16>, vector<16x64xf32> -> vector<16x64xf32>
    %c3_33 = arith.constant 3 : index
    %c0_34 = arith.constant 0 : index
    %c0_35 = arith.constant 0 : index
    %38 = vector.load %arg5[%c3_33, %c0_34, %c0_35] : memref<9x24x16xbf16, #tpu.memory_space<vmem>>, vector<1x24x16xbf16>
    %39 = vector.shape_cast %38 : vector<1x24x16xbf16> to vector<24x16xbf16>
    %40 = arith.truncf %37 : vector<16x64xf32> to vector<16x64xbf16>
    %cst_36 = arith.constant dense<0.000000e+00> : vector<24x64xf32>
    %41 = tpu.matmul %39, %40, %cst_36 {dimension_numbers = #tpu.dot_dimension_numbers<[1], [0], [0], [1], [0, 0, 1, 1], [], []>} : vector<24x16xbf16>, vector<16x64xbf16>, vector<24x64xf32> -> vector<24x64xf32>
    %42 = arith.addf %34, %41 : vector<24x64xf32>
    %c4 = arith.constant 4 : index
    %c0_37 = arith.constant 0 : index
    %c0_38 = arith.constant 0 : index
    %43 = vector.load %arg4[%c4, %c0_37, %c0_38] : memref<9x256x64xbf16, #tpu.memory_space<vmem>>, vector<1x256x64xbf16>
    %44 = vector.shape_cast %43 : vector<1x256x64xbf16> to vector<256x64xbf16>
    %cst_39 = arith.constant dense<0.000000e+00> : vector<16x64xf32>
    %45 = tpu.matmul %9, %44, %cst_39 {dimension_numbers = #tpu.dot_dimension_numbers<[1], [0], [0], [1], [0, 0, 1, 1], [], []>} : vector<16x256xbf16>, vector<256x64xbf16>, vector<16x64xf32> -> vector<16x64xf32>
    %c4_40 = arith.constant 4 : index
    %c0_41 = arith.constant 0 : index
    %c0_42 = arith.constant 0 : index
    %46 = vector.load %arg5[%c4_40, %c0_41, %c0_42] : memref<9x24x16xbf16, #tpu.memory_space<vmem>>, vector<1x24x16xbf16>
    %47 = vector.shape_cast %46 : vector<1x24x16xbf16> to vector<24x16xbf16>
    %48 = arith.truncf %45 : vector<16x64xf32> to vector<16x64xbf16>
    %cst_43 = arith.constant dense<0.000000e+00> : vector<24x64xf32>
    %49 = tpu.matmul %47, %48, %cst_43 {dimension_numbers = #tpu.dot_dimension_numbers<[1], [0], [0], [1], [0, 0, 1, 1], [], []>} : vector<24x16xbf16>, vector<16x64xbf16>, vector<24x64xf32> -> vector<24x64xf32>
    %50 = arith.addf %42, %49 : vector<24x64xf32>
    %c5 = arith.constant 5 : index
    %c0_44 = arith.constant 0 : index
    %c0_45 = arith.constant 0 : index
    %51 = vector.load %arg4[%c5, %c0_44, %c0_45] : memref<9x256x64xbf16, #tpu.memory_space<vmem>>, vector<1x256x64xbf16>
    %52 = vector.shape_cast %51 : vector<1x256x64xbf16> to vector<256x64xbf16>
    %cst_46 = arith.constant dense<0.000000e+00> : vector<16x64xf32>
    %53 = tpu.matmul %9, %52, %cst_46 {dimension_numbers = #tpu.dot_dimension_numbers<[1], [0], [0], [1], [0, 0, 1, 1], [], []>} : vector<16x256xbf16>, vector<256x64xbf16>, vector<16x64xf32> -> vector<16x64xf32>
    %c5_47 = arith.constant 5 : index
    %c0_48 = arith.constant 0 : index
    %c0_49 = arith.constant 0 : index
    %54 = vector.load %arg5[%c5_47, %c0_48, %c0_49] : memref<9x24x16xbf16, #tpu.memory_space<vmem>>, vector<1x24x16xbf16>
    %55 = vector.shape_cast %54 : vector<1x24x16xbf16> to vector<24x16xbf16>
    %56 = arith.truncf %53 : vector<16x64xf32> to vector<16x64xbf16>
    %cst_50 = arith.constant dense<0.000000e+00> : vector<24x64xf32>
    %57 = tpu.matmul %55, %56, %cst_50 {dimension_numbers = #tpu.dot_dimension_numbers<[1], [0], [0], [1], [0, 0, 1, 1], [], []>} : vector<24x16xbf16>, vector<16x64xbf16>, vector<24x64xf32> -> vector<24x64xf32>
    %58 = arith.addf %50, %57 : vector<24x64xf32>
    %c6 = arith.constant 6 : index
    %c0_51 = arith.constant 0 : index
    %c0_52 = arith.constant 0 : index
    %59 = vector.load %arg4[%c6, %c0_51, %c0_52] : memref<9x256x64xbf16, #tpu.memory_space<vmem>>, vector<1x256x64xbf16>
    %60 = vector.shape_cast %59 : vector<1x256x64xbf16> to vector<256x64xbf16>
    %cst_53 = arith.constant dense<0.000000e+00> : vector<16x64xf32>
    %61 = tpu.matmul %9, %60, %cst_53 {dimension_numbers = #tpu.dot_dimension_numbers<[1], [0], [0], [1], [0, 0, 1, 1], [], []>} : vector<16x256xbf16>, vector<256x64xbf16>, vector<16x64xf32> -> vector<16x64xf32>
    %c6_54 = arith.constant 6 : index
    %c0_55 = arith.constant 0 : index
    %c0_56 = arith.constant 0 : index
    %62 = vector.load %arg5[%c6_54, %c0_55, %c0_56] : memref<9x24x16xbf16, #tpu.memory_space<vmem>>, vector<1x24x16xbf16>
    %63 = vector.shape_cast %62 : vector<1x24x16xbf16> to vector<24x16xbf16>
    %64 = arith.truncf %61 : vector<16x64xf32> to vector<16x64xbf16>
    %cst_57 = arith.constant dense<0.000000e+00> : vector<24x64xf32>
    %65 = tpu.matmul %63, %64, %cst_57 {dimension_numbers = #tpu.dot_dimension_numbers<[1], [0], [0], [1], [0, 0, 1, 1], [], []>} : vector<24x16xbf16>, vector<16x64xbf16>, vector<24x64xf32> -> vector<24x64xf32>
    %66 = arith.addf %58, %65 : vector<24x64xf32>
    %c7 = arith.constant 7 : index
    %c0_58 = arith.constant 0 : index
    %c0_59 = arith.constant 0 : index
    %67 = vector.load %arg4[%c7, %c0_58, %c0_59] : memref<9x256x64xbf16, #tpu.memory_space<vmem>>, vector<1x256x64xbf16>
    %68 = vector.shape_cast %67 : vector<1x256x64xbf16> to vector<256x64xbf16>
    %cst_60 = arith.constant dense<0.000000e+00> : vector<16x64xf32>
    %69 = tpu.matmul %9, %68, %cst_60 {dimension_numbers = #tpu.dot_dimension_numbers<[1], [0], [0], [1], [0, 0, 1, 1], [], []>} : vector<16x256xbf16>, vector<256x64xbf16>, vector<16x64xf32> -> vector<16x64xf32>
    %c7_61 = arith.constant 7 : index
    %c0_62 = arith.constant 0 : index
    %c0_63 = arith.constant 0 : index
    %70 = vector.load %arg5[%c7_61, %c0_62, %c0_63] : memref<9x24x16xbf16, #tpu.memory_space<vmem>>, vector<1x24x16xbf16>
    %71 = vector.shape_cast %70 : vector<1x24x16xbf16> to vector<24x16xbf16>
    %72 = arith.truncf %69 : vector<16x64xf32> to vector<16x64xbf16>
    %cst_64 = arith.constant dense<0.000000e+00> : vector<24x64xf32>
    %73 = tpu.matmul %71, %72, %cst_64 {dimension_numbers = #tpu.dot_dimension_numbers<[1], [0], [0], [1], [0, 0, 1, 1], [], []>} : vector<24x16xbf16>, vector<16x64xbf16>, vector<24x64xf32> -> vector<24x64xf32>
    %74 = arith.addf %66, %73 : vector<24x64xf32>
    %c8 = arith.constant 8 : index
    %c0_65 = arith.constant 0 : index
    %c0_66 = arith.constant 0 : index
    %75 = vector.load %arg4[%c8, %c0_65, %c0_66] : memref<9x256x64xbf16, #tpu.memory_space<vmem>>, vector<1x256x64xbf16>
    %76 = vector.shape_cast %75 : vector<1x256x64xbf16> to vector<256x64xbf16>
    %cst_67 = arith.constant dense<0.000000e+00> : vector<16x64xf32>
    %77 = tpu.matmul %9, %76, %cst_67 {dimension_numbers = #tpu.dot_dimension_numbers<[1], [0], [0], [1], [0, 0, 1, 1], [], []>} : vector<16x256xbf16>, vector<256x64xbf16>, vector<16x64xf32> -> vector<16x64xf32>
    %c8_68 = arith.constant 8 : index
    %c0_69 = arith.constant 0 : index
    %c0_70 = arith.constant 0 : index
    %78 = vector.load %arg5[%c8_68, %c0_69, %c0_70] : memref<9x24x16xbf16, #tpu.memory_space<vmem>>, vector<1x24x16xbf16>
    %79 = vector.shape_cast %78 : vector<1x24x16xbf16> to vector<24x16xbf16>
    %80 = arith.truncf %77 : vector<16x64xf32> to vector<16x64xbf16>
    %cst_71 = arith.constant dense<0.000000e+00> : vector<24x64xf32>
    %81 = tpu.matmul %79, %80, %cst_71 {dimension_numbers = #tpu.dot_dimension_numbers<[1], [0], [0], [1], [0, 0, 1, 1], [], []>} : vector<24x16xbf16>, vector<16x64xbf16>, vector<24x64xf32> -> vector<24x64xf32>
    %82 = arith.addf %74, %81 : vector<24x64xf32>
    %c0_72 = arith.constant 0 : index
    %c0_73 = arith.constant 0 : index
    %83 = vector.load %arg6[%c0_72, %c0_73] : memref<24x1xf32, #tpu.memory_space<vmem>>, vector<24x1xf32>
    %84 = vector.broadcast %83 : vector<24x1xf32> to vector<24x64xf32>
    %85 = arith.addf %82, %84 : vector<24x64xf32>
    %cst_74 = arith.constant 0.000000e+00 : f32
    %86 = vector.broadcast %cst_74 : f32 to vector<24x64xf32>
    %87 = arith.maximumf %85, %86 : vector<24x64xf32>
    %88 = arith.truncf %87 : vector<24x64xf32> to vector<24x64xbf16>
    %cst_75 = arith.constant 0.000000e+00 : f32
    %89 = vector.broadcast %cst_75 : f32 to vector<40x16xf32>
    %c0_76 = arith.constant 0 : index
    %c0_77 = arith.constant 0 : index
    %c0_78 = arith.constant 0 : index
    %90 = vector.load %arg7[%c0_76, %c0_77, %c0_78] : memref<9x64x16xbf16, #tpu.memory_space<vmem>>, vector<1x64x16xbf16>
    %91 = vector.shape_cast %90 : vector<1x64x16xbf16> to vector<64x16xbf16>
    %cst_79 = arith.constant dense<0.000000e+00> : vector<24x16xf32>
    %92 = tpu.matmul %88, %91, %cst_79 {dimension_numbers = #tpu.dot_dimension_numbers<[1], [0], [0], [1], [0, 0, 1, 1], [], []>} : vector<24x64xbf16>, vector<64x16xbf16>, vector<24x16xf32> -> vector<24x16xf32>
    %c0_80 = arith.constant 0 : index
    %c0_81 = arith.constant 0 : index
    %c0_82 = arith.constant 0 : index
    %93 = vector.load %arg8[%c0_80, %c0_81, %c0_82] : memref<9x40x24xbf16, #tpu.memory_space<vmem>>, vector<1x40x24xbf16>
    %94 = vector.shape_cast %93 : vector<1x40x24xbf16> to vector<40x24xbf16>
    %95 = arith.truncf %92 : vector<24x16xf32> to vector<24x16xbf16>
    %cst_83 = arith.constant dense<0.000000e+00> : vector<40x16xf32>
    %96 = tpu.matmul %94, %95, %cst_83 {dimension_numbers = #tpu.dot_dimension_numbers<[1], [0], [0], [1], [0, 0, 1, 1], [], []>} : vector<40x24xbf16>, vector<24x16xbf16>, vector<40x16xf32> -> vector<40x16xf32>
    %97 = arith.addf %89, %96 : vector<40x16xf32>
    %c1_84 = arith.constant 1 : index
    %c0_85 = arith.constant 0 : index
    %c0_86 = arith.constant 0 : index
    %98 = vector.load %arg7[%c1_84, %c0_85, %c0_86] : memref<9x64x16xbf16, #tpu.memory_space<vmem>>, vector<1x64x16xbf16>
    %99 = vector.shape_cast %98 : vector<1x64x16xbf16> to vector<64x16xbf16>
    %cst_87 = arith.constant dense<0.000000e+00> : vector<24x16xf32>
    %100 = tpu.matmul %88, %99, %cst_87 {dimension_numbers = #tpu.dot_dimension_numbers<[1], [0], [0], [1], [0, 0, 1, 1], [], []>} : vector<24x64xbf16>, vector<64x16xbf16>, vector<24x16xf32> -> vector<24x16xf32>
    %c1_88 = arith.constant 1 : index
    %c0_89 = arith.constant 0 : index
    %c0_90 = arith.constant 0 : index
    %101 = vector.load %arg8[%c1_88, %c0_89, %c0_90] : memref<9x40x24xbf16, #tpu.memory_space<vmem>>, vector<1x40x24xbf16>
    %102 = vector.shape_cast %101 : vector<1x40x24xbf16> to vector<40x24xbf16>
    %103 = arith.truncf %100 : vector<24x16xf32> to vector<24x16xbf16>
    %cst_91 = arith.constant dense<0.000000e+00> : vector<40x16xf32>
    %104 = tpu.matmul %102, %103, %cst_91 {dimension_numbers = #tpu.dot_dimension_numbers<[1], [0], [0], [1], [0, 0, 1, 1], [], []>} : vector<40x24xbf16>, vector<24x16xbf16>, vector<40x16xf32> -> vector<40x16xf32>
    %105 = arith.addf %97, %104 : vector<40x16xf32>
    %c2_92 = arith.constant 2 : index
    %c0_93 = arith.constant 0 : index
    %c0_94 = arith.constant 0 : index
    %106 = vector.load %arg7[%c2_92, %c0_93, %c0_94] : memref<9x64x16xbf16, #tpu.memory_space<vmem>>, vector<1x64x16xbf16>
    %107 = vector.shape_cast %106 : vector<1x64x16xbf16> to vector<64x16xbf16>
    %cst_95 = arith.constant dense<0.000000e+00> : vector<24x16xf32>
    %108 = tpu.matmul %88, %107, %cst_95 {dimension_numbers = #tpu.dot_dimension_numbers<[1], [0], [0], [1], [0, 0, 1, 1], [], []>} : vector<24x64xbf16>, vector<64x16xbf16>, vector<24x16xf32> -> vector<24x16xf32>
    %c2_96 = arith.constant 2 : index
    %c0_97 = arith.constant 0 : index
    %c0_98 = arith.constant 0 : index
    %109 = vector.load %arg8[%c2_96, %c0_97, %c0_98] : memref<9x40x24xbf16, #tpu.memory_space<vmem>>, vector<1x40x24xbf16>
    %110 = vector.shape_cast %109 : vector<1x40x24xbf16> to vector<40x24xbf16>
    %111 = arith.truncf %108 : vector<24x16xf32> to vector<24x16xbf16>
    %cst_99 = arith.constant dense<0.000000e+00> : vector<40x16xf32>
    %112 = tpu.matmul %110, %111, %cst_99 {dimension_numbers = #tpu.dot_dimension_numbers<[1], [0], [0], [1], [0, 0, 1, 1], [], []>} : vector<40x24xbf16>, vector<24x16xbf16>, vector<40x16xf32> -> vector<40x16xf32>
    %113 = arith.addf %105, %112 : vector<40x16xf32>
    %c3_100 = arith.constant 3 : index
    %c0_101 = arith.constant 0 : index
    %c0_102 = arith.constant 0 : index
    %114 = vector.load %arg7[%c3_100, %c0_101, %c0_102] : memref<9x64x16xbf16, #tpu.memory_space<vmem>>, vector<1x64x16xbf16>
    %115 = vector.shape_cast %114 : vector<1x64x16xbf16> to vector<64x16xbf16>
    %cst_103 = arith.constant dense<0.000000e+00> : vector<24x16xf32>
    %116 = tpu.matmul %88, %115, %cst_103 {dimension_numbers = #tpu.dot_dimension_numbers<[1], [0], [0], [1], [0, 0, 1, 1], [], []>} : vector<24x64xbf16>, vector<64x16xbf16>, vector<24x16xf32> -> vector<24x16xf32>
    %c3_104 = arith.constant 3 : index
    %c0_105 = arith.constant 0 : index
    %c0_106 = arith.constant 0 : index
    %117 = vector.load %arg8[%c3_104, %c0_105, %c0_106] : memref<9x40x24xbf16, #tpu.memory_space<vmem>>, vector<1x40x24xbf16>
    %118 = vector.shape_cast %117 : vector<1x40x24xbf16> to vector<40x24xbf16>
    %119 = arith.truncf %116 : vector<24x16xf32> to vector<24x16xbf16>
    %cst_107 = arith.constant dense<0.000000e+00> : vector<40x16xf32>
    %120 = tpu.matmul %118, %119, %cst_107 {dimension_numbers = #tpu.dot_dimension_numbers<[1], [0], [0], [1], [0, 0, 1, 1], [], []>} : vector<40x24xbf16>, vector<24x16xbf16>, vector<40x16xf32> -> vector<40x16xf32>
    %121 = arith.addf %113, %120 : vector<40x16xf32>
    %c4_108 = arith.constant 4 : index
    %c0_109 = arith.constant 0 : index
    %c0_110 = arith.constant 0 : index
    %122 = vector.load %arg7[%c4_108, %c0_109, %c0_110] : memref<9x64x16xbf16, #tpu.memory_space<vmem>>, vector<1x64x16xbf16>
    %123 = vector.shape_cast %122 : vector<1x64x16xbf16> to vector<64x16xbf16>
    %cst_111 = arith.constant dense<0.000000e+00> : vector<24x16xf32>
    %124 = tpu.matmul %88, %123, %cst_111 {dimension_numbers = #tpu.dot_dimension_numbers<[1], [0], [0], [1], [0, 0, 1, 1], [], []>} : vector<24x64xbf16>, vector<64x16xbf16>, vector<24x16xf32> -> vector<24x16xf32>
    %c4_112 = arith.constant 4 : index
    %c0_113 = arith.constant 0 : index
    %c0_114 = arith.constant 0 : index
    %125 = vector.load %arg8[%c4_112, %c0_113, %c0_114] : memref<9x40x24xbf16, #tpu.memory_space<vmem>>, vector<1x40x24xbf16>
    %126 = vector.shape_cast %125 : vector<1x40x24xbf16> to vector<40x24xbf16>
    %127 = arith.truncf %124 : vector<24x16xf32> to vector<24x16xbf16>
    %cst_115 = arith.constant dense<0.000000e+00> : vector<40x16xf32>
    %128 = tpu.matmul %126, %127, %cst_115 {dimension_numbers = #tpu.dot_dimension_numbers<[1], [0], [0], [1], [0, 0, 1, 1], [], []>} : vector<40x24xbf16>, vector<24x16xbf16>, vector<40x16xf32> -> vector<40x16xf32>
    %129 = arith.addf %121, %128 : vector<40x16xf32>
    %c5_116 = arith.constant 5 : index
    %c0_117 = arith.constant 0 : index
    %c0_118 = arith.constant 0 : index
    %130 = vector.load %arg7[%c5_116, %c0_117, %c0_118] : memref<9x64x16xbf16, #tpu.memory_space<vmem>>, vector<1x64x16xbf16>
    %131 = vector.shape_cast %130 : vector<1x64x16xbf16> to vector<64x16xbf16>
    %cst_119 = arith.constant dense<0.000000e+00> : vector<24x16xf32>
    %132 = tpu.matmul %88, %131, %cst_119 {dimension_numbers = #tpu.dot_dimension_numbers<[1], [0], [0], [1], [0, 0, 1, 1], [], []>} : vector<24x64xbf16>, vector<64x16xbf16>, vector<24x16xf32> -> vector<24x16xf32>
    %c5_120 = arith.constant 5 : index
    %c0_121 = arith.constant 0 : index
    %c0_122 = arith.constant 0 : index
    %133 = vector.load %arg8[%c5_120, %c0_121, %c0_122] : memref<9x40x24xbf16, #tpu.memory_space<vmem>>, vector<1x40x24xbf16>
    %134 = vector.shape_cast %133 : vector<1x40x24xbf16> to vector<40x24xbf16>
    %135 = arith.truncf %132 : vector<24x16xf32> to vector<24x16xbf16>
    %cst_123 = arith.constant dense<0.000000e+00> : vector<40x16xf32>
    %136 = tpu.matmul %134, %135, %cst_123 {dimension_numbers = #tpu.dot_dimension_numbers<[1], [0], [0], [1], [0, 0, 1, 1], [], []>} : vector<40x24xbf16>, vector<24x16xbf16>, vector<40x16xf32> -> vector<40x16xf32>
    %137 = arith.addf %129, %136 : vector<40x16xf32>
    %c6_124 = arith.constant 6 : index
    %c0_125 = arith.constant 0 : index
    %c0_126 = arith.constant 0 : index
    %138 = vector.load %arg7[%c6_124, %c0_125, %c0_126] : memref<9x64x16xbf16, #tpu.memory_space<vmem>>, vector<1x64x16xbf16>
    %139 = vector.shape_cast %138 : vector<1x64x16xbf16> to vector<64x16xbf16>
    %cst_127 = arith.constant dense<0.000000e+00> : vector<24x16xf32>
    %140 = tpu.matmul %88, %139, %cst_127 {dimension_numbers = #tpu.dot_dimension_numbers<[1], [0], [0], [1], [0, 0, 1, 1], [], []>} : vector<24x64xbf16>, vector<64x16xbf16>, vector<24x16xf32> -> vector<24x16xf32>
    %c6_128 = arith.constant 6 : index
    %c0_129 = arith.constant 0 : index
    %c0_130 = arith.constant 0 : index
    %141 = vector.load %arg8[%c6_128, %c0_129, %c0_130] : memref<9x40x24xbf16, #tpu.memory_space<vmem>>, vector<1x40x24xbf16>
    %142 = vector.shape_cast %141 : vector<1x40x24xbf16> to vector<40x24xbf16>
    %143 = arith.truncf %140 : vector<24x16xf32> to vector<24x16xbf16>
    %cst_131 = arith.constant dense<0.000000e+00> : vector<40x16xf32>
    %144 = tpu.matmul %142, %143, %cst_131 {dimension_numbers = #tpu.dot_dimension_numbers<[1], [0], [0], [1], [0, 0, 1, 1], [], []>} : vector<40x24xbf16>, vector<24x16xbf16>, vector<40x16xf32> -> vector<40x16xf32>
    %145 = arith.addf %137, %144 : vector<40x16xf32>
    %c7_132 = arith.constant 7 : index
    %c0_133 = arith.constant 0 : index
    %c0_134 = arith.constant 0 : index
    %146 = vector.load %arg7[%c7_132, %c0_133, %c0_134] : memref<9x64x16xbf16, #tpu.memory_space<vmem>>, vector<1x64x16xbf16>
    %147 = vector.shape_cast %146 : vector<1x64x16xbf16> to vector<64x16xbf16>
    %cst_135 = arith.constant dense<0.000000e+00> : vector<24x16xf32>
    %148 = tpu.matmul %88, %147, %cst_135 {dimension_numbers = #tpu.dot_dimension_numbers<[1], [0], [0], [1], [0, 0, 1, 1], [], []>} : vector<24x64xbf16>, vector<64x16xbf16>, vector<24x16xf32> -> vector<24x16xf32>
    %c7_136 = arith.constant 7 : index
    %c0_137 = arith.constant 0 : index
    %c0_138 = arith.constant 0 : index
    %149 = vector.load %arg8[%c7_136, %c0_137, %c0_138] : memref<9x40x24xbf16, #tpu.memory_space<vmem>>, vector<1x40x24xbf16>
    %150 = vector.shape_cast %149 : vector<1x40x24xbf16> to vector<40x24xbf16>
    %151 = arith.truncf %148 : vector<24x16xf32> to vector<24x16xbf16>
    %cst_139 = arith.constant dense<0.000000e+00> : vector<40x16xf32>
    %152 = tpu.matmul %150, %151, %cst_139 {dimension_numbers = #tpu.dot_dimension_numbers<[1], [0], [0], [1], [0, 0, 1, 1], [], []>} : vector<40x24xbf16>, vector<24x16xbf16>, vector<40x16xf32> -> vector<40x16xf32>
    %153 = arith.addf %145, %152 : vector<40x16xf32>
    %c8_140 = arith.constant 8 : index
    %c0_141 = arith.constant 0 : index
    %c0_142 = arith.constant 0 : index
    %154 = vector.load %arg7[%c8_140, %c0_141, %c0_142] : memref<9x64x16xbf16, #tpu.memory_space<vmem>>, vector<1x64x16xbf16>
    %155 = vector.shape_cast %154 : vector<1x64x16xbf16> to vector<64x16xbf16>
    %cst_143 = arith.constant dense<0.000000e+00> : vector<24x16xf32>
    %156 = tpu.matmul %88, %155, %cst_143 {dimension_numbers = #tpu.dot_dimension_numbers<[1], [0], [0], [1], [0, 0, 1, 1], [], []>} : vector<24x64xbf16>, vector<64x16xbf16>, vector<24x16xf32> -> vector<24x16xf32>
    %c8_144 = arith.constant 8 : index
    %c0_145 = arith.constant 0 : index
    %c0_146 = arith.constant 0 : index
    %157 = vector.load %arg8[%c8_144, %c0_145, %c0_146] : memref<9x40x24xbf16, #tpu.memory_space<vmem>>, vector<1x40x24xbf16>
    %158 = vector.shape_cast %157 : vector<1x40x24xbf16> to vector<40x24xbf16>
    %159 = arith.truncf %156 : vector<24x16xf32> to vector<24x16xbf16>
    %cst_147 = arith.constant dense<0.000000e+00> : vector<40x16xf32>
    %160 = tpu.matmul %158, %159, %cst_147 {dimension_numbers = #tpu.dot_dimension_numbers<[1], [0], [0], [1], [0, 0, 1, 1], [], []>} : vector<40x24xbf16>, vector<24x16xbf16>, vector<40x16xf32> -> vector<40x16xf32>
    %161 = arith.addf %153, %160 : vector<40x16xf32>
    %c0_148 = arith.constant 0 : index
    %c0_149 = arith.constant 0 : index
    %162 = vector.load %arg9[%c0_148, %c0_149] : memref<40x1xf32, #tpu.memory_space<vmem>>, vector<40x1xf32>
    %163 = vector.broadcast %162 : vector<40x1xf32> to vector<40x16xf32>
    %164 = arith.addf %161, %163 : vector<40x16xf32>
    %cst_150 = arith.constant 0.000000e+00 : f32
    %165 = vector.broadcast %cst_150 : f32 to vector<40x16xf32>
    %166 = arith.maximumf %164, %165 : vector<40x16xf32>
    %167 = arith.truncf %166 : vector<40x16xf32> to vector<40x16xbf16>
    %cst_151 = arith.constant 0.000000e+00 : f32
    %168 = vector.broadcast %cst_151 : f32 to vector<4x96xf32>
    %c0_152 = arith.constant 0 : index
    %c0_153 = arith.constant 0 : index
    %c0_154 = arith.constant 0 : index
    %169 = vector.load %arg10[%c0_152, %c0_153, %c0_154] : memref<9x4x16xbf16, #tpu.memory_space<vmem>>, vector<1x4x16xbf16>
    %170 = vector.shape_cast %169 : vector<1x4x16xbf16> to vector<4x16xbf16>
    %cst_155 = arith.constant dense<0.000000e+00> : vector<4x40xf32>
    %171 = tpu.matmul %170, %167, %cst_155 {dimension_numbers = #tpu.dot_dimension_numbers<[1], [1], [0], [0], [0, 0, 1, 0], [], []>} : vector<4x16xbf16>, vector<40x16xbf16>, vector<4x40xf32> -> vector<4x40xf32>
    %172 = arith.truncf %171 : vector<4x40xf32> to vector<4x40xbf16>
    %c0_156 = arith.constant 0 : index
    %c0_157 = arith.constant 0 : index
    %c0_158 = arith.constant 0 : index
    %173 = vector.load %arg11[%c0_156, %c0_157, %c0_158] : memref<9x40x96xbf16, #tpu.memory_space<vmem>>, vector<1x40x96xbf16>
    %174 = vector.shape_cast %173 : vector<1x40x96xbf16> to vector<40x96xbf16>
    %cst_159 = arith.constant dense<0.000000e+00> : vector<4x96xf32>
    %175 = tpu.matmul %172, %174, %cst_159 {dimension_numbers = #tpu.dot_dimension_numbers<[1], [0], [0], [1], [0, 0, 1, 1], [], []>} : vector<4x40xbf16>, vector<40x96xbf16>, vector<4x96xf32> -> vector<4x96xf32>
    %176 = arith.addf %168, %175 : vector<4x96xf32>
    %c1_160 = arith.constant 1 : index
    %c0_161 = arith.constant 0 : index
    %c0_162 = arith.constant 0 : index
    %177 = vector.load %arg10[%c1_160, %c0_161, %c0_162] : memref<9x4x16xbf16, #tpu.memory_space<vmem>>, vector<1x4x16xbf16>
    %178 = vector.shape_cast %177 : vector<1x4x16xbf16> to vector<4x16xbf16>
    %cst_163 = arith.constant dense<0.000000e+00> : vector<4x40xf32>
    %179 = tpu.matmul %178, %167, %cst_163 {dimension_numbers = #tpu.dot_dimension_numbers<[1], [1], [0], [0], [0, 0, 1, 0], [], []>} : vector<4x16xbf16>, vector<40x16xbf16>, vector<4x40xf32> -> vector<4x40xf32>
    %180 = arith.truncf %179 : vector<4x40xf32> to vector<4x40xbf16>
    %c1_164 = arith.constant 1 : index
    %c0_165 = arith.constant 0 : index
    %c0_166 = arith.constant 0 : index
    %181 = vector.load %arg11[%c1_164, %c0_165, %c0_166] : memref<9x40x96xbf16, #tpu.memory_space<vmem>>, vector<1x40x96xbf16>
    %182 = vector.shape_cast %181 : vector<1x40x96xbf16> to vector<40x96xbf16>
    %cst_167 = arith.constant dense<0.000000e+00> : vector<4x96xf32>
    %183 = tpu.matmul %180, %182, %cst_167 {dimension_numbers = #tpu.dot_dimension_numbers<[1], [0], [0], [1], [0, 0, 1, 1], [], []>} : vector<4x40xbf16>, vector<40x96xbf16>, vector<4x96xf32> -> vector<4x96xf32>
    %184 = arith.addf %176, %183 : vector<4x96xf32>
    %c2_168 = arith.constant 2 : index
    %c0_169 = arith.constant 0 : index
    %c0_170 = arith.constant 0 : index
    %185 = vector.load %arg10[%c2_168, %c0_169, %c0_170] : memref<9x4x16xbf16, #tpu.memory_space<vmem>>, vector<1x4x16xbf16>
    %186 = vector.shape_cast %185 : vector<1x4x16xbf16> to vector<4x16xbf16>
    %cst_171 = arith.constant dense<0.000000e+00> : vector<4x40xf32>
    %187 = tpu.matmul %186, %167, %cst_171 {dimension_numbers = #tpu.dot_dimension_numbers<[1], [1], [0], [0], [0, 0, 1, 0], [], []>} : vector<4x16xbf16>, vector<40x16xbf16>, vector<4x40xf32> -> vector<4x40xf32>
    %188 = arith.truncf %187 : vector<4x40xf32> to vector<4x40xbf16>
    %c2_172 = arith.constant 2 : index
    %c0_173 = arith.constant 0 : index
    %c0_174 = arith.constant 0 : index
    %189 = vector.load %arg11[%c2_172, %c0_173, %c0_174] : memref<9x40x96xbf16, #tpu.memory_space<vmem>>, vector<1x40x96xbf16>
    %190 = vector.shape_cast %189 : vector<1x40x96xbf16> to vector<40x96xbf16>
    %cst_175 = arith.constant dense<0.000000e+00> : vector<4x96xf32>
    %191 = tpu.matmul %188, %190, %cst_175 {dimension_numbers = #tpu.dot_dimension_numbers<[1], [0], [0], [1], [0, 0, 1, 1], [], []>} : vector<4x40xbf16>, vector<40x96xbf16>, vector<4x96xf32> -> vector<4x96xf32>
    %192 = arith.addf %184, %191 : vector<4x96xf32>
    %c3_176 = arith.constant 3 : index
    %c0_177 = arith.constant 0 : index
    %c0_178 = arith.constant 0 : index
    %193 = vector.load %arg10[%c3_176, %c0_177, %c0_178] : memref<9x4x16xbf16, #tpu.memory_space<vmem>>, vector<1x4x16xbf16>
    %194 = vector.shape_cast %193 : vector<1x4x16xbf16> to vector<4x16xbf16>
    %cst_179 = arith.constant dense<0.000000e+00> : vector<4x40xf32>
    %195 = tpu.matmul %194, %167, %cst_179 {dimension_numbers = #tpu.dot_dimension_numbers<[1], [1], [0], [0], [0, 0, 1, 0], [], []>} : vector<4x16xbf16>, vector<40x16xbf16>, vector<4x40xf32> -> vector<4x40xf32>
    %196 = arith.truncf %195 : vector<4x40xf32> to vector<4x40xbf16>
    %c3_180 = arith.constant 3 : index
    %c0_181 = arith.constant 0 : index
    %c0_182 = arith.constant 0 : index
    %197 = vector.load %arg11[%c3_180, %c0_181, %c0_182] : memref<9x40x96xbf16, #tpu.memory_space<vmem>>, vector<1x40x96xbf16>
    %198 = vector.shape_cast %197 : vector<1x40x96xbf16> to vector<40x96xbf16>
    %cst_183 = arith.constant dense<0.000000e+00> : vector<4x96xf32>
    %199 = tpu.matmul %196, %198, %cst_183 {dimension_numbers = #tpu.dot_dimension_numbers<[1], [0], [0], [1], [0, 0, 1, 1], [], []>} : vector<4x40xbf16>, vector<40x96xbf16>, vector<4x96xf32> -> vector<4x96xf32>
    %200 = arith.addf %192, %199 : vector<4x96xf32>
    %c4_184 = arith.constant 4 : index
    %c0_185 = arith.constant 0 : index
    %c0_186 = arith.constant 0 : index
    %201 = vector.load %arg10[%c4_184, %c0_185, %c0_186] : memref<9x4x16xbf16, #tpu.memory_space<vmem>>, vector<1x4x16xbf16>
    %202 = vector.shape_cast %201 : vector<1x4x16xbf16> to vector<4x16xbf16>
    %cst_187 = arith.constant dense<0.000000e+00> : vector<4x40xf32>
    %203 = tpu.matmul %202, %167, %cst_187 {dimension_numbers = #tpu.dot_dimension_numbers<[1], [1], [0], [0], [0, 0, 1, 0], [], []>} : vector<4x16xbf16>, vector<40x16xbf16>, vector<4x40xf32> -> vector<4x40xf32>
    %204 = arith.truncf %203 : vector<4x40xf32> to vector<4x40xbf16>
    %c4_188 = arith.constant 4 : index
    %c0_189 = arith.constant 0 : index
    %c0_190 = arith.constant 0 : index
    %205 = vector.load %arg11[%c4_188, %c0_189, %c0_190] : memref<9x40x96xbf16, #tpu.memory_space<vmem>>, vector<1x40x96xbf16>
    %206 = vector.shape_cast %205 : vector<1x40x96xbf16> to vector<40x96xbf16>
    %cst_191 = arith.constant dense<0.000000e+00> : vector<4x96xf32>
    %207 = tpu.matmul %204, %206, %cst_191 {dimension_numbers = #tpu.dot_dimension_numbers<[1], [0], [0], [1], [0, 0, 1, 1], [], []>} : vector<4x40xbf16>, vector<40x96xbf16>, vector<4x96xf32> -> vector<4x96xf32>
    %208 = arith.addf %200, %207 : vector<4x96xf32>
    %c5_192 = arith.constant 5 : index
    %c0_193 = arith.constant 0 : index
    %c0_194 = arith.constant 0 : index
    %209 = vector.load %arg10[%c5_192, %c0_193, %c0_194] : memref<9x4x16xbf16, #tpu.memory_space<vmem>>, vector<1x4x16xbf16>
    %210 = vector.shape_cast %209 : vector<1x4x16xbf16> to vector<4x16xbf16>
    %cst_195 = arith.constant dense<0.000000e+00> : vector<4x40xf32>
    %211 = tpu.matmul %210, %167, %cst_195 {dimension_numbers = #tpu.dot_dimension_numbers<[1], [1], [0], [0], [0, 0, 1, 0], [], []>} : vector<4x16xbf16>, vector<40x16xbf16>, vector<4x40xf32> -> vector<4x40xf32>
    %212 = arith.truncf %211 : vector<4x40xf32> to vector<4x40xbf16>
    %c5_196 = arith.constant 5 : index
    %c0_197 = arith.constant 0 : index
    %c0_198 = arith.constant 0 : index
    %213 = vector.load %arg11[%c5_196, %c0_197, %c0_198] : memref<9x40x96xbf16, #tpu.memory_space<vmem>>, vector<1x40x96xbf16>
    %214 = vector.shape_cast %213 : vector<1x40x96xbf16> to vector<40x96xbf16>
    %cst_199 = arith.constant dense<0.000000e+00> : vector<4x96xf32>
    %215 = tpu.matmul %212, %214, %cst_199 {dimension_numbers = #tpu.dot_dimension_numbers<[1], [0], [0], [1], [0, 0, 1, 1], [], []>} : vector<4x40xbf16>, vector<40x96xbf16>, vector<4x96xf32> -> vector<4x96xf32>
    %216 = arith.addf %208, %215 : vector<4x96xf32>
    %c6_200 = arith.constant 6 : index
    %c0_201 = arith.constant 0 : index
    %c0_202 = arith.constant 0 : index
    %217 = vector.load %arg10[%c6_200, %c0_201, %c0_202] : memref<9x4x16xbf16, #tpu.memory_space<vmem>>, vector<1x4x16xbf16>
    %218 = vector.shape_cast %217 : vector<1x4x16xbf16> to vector<4x16xbf16>
    %cst_203 = arith.constant dense<0.000000e+00> : vector<4x40xf32>
    %219 = tpu.matmul %218, %167, %cst_203 {dimension_numbers = #tpu.dot_dimension_numbers<[1], [1], [0], [0], [0, 0, 1, 0], [], []>} : vector<4x16xbf16>, vector<40x16xbf16>, vector<4x40xf32> -> vector<4x40xf32>
    %220 = arith.truncf %219 : vector<4x40xf32> to vector<4x40xbf16>
    %c6_204 = arith.constant 6 : index
    %c0_205 = arith.constant 0 : index
    %c0_206 = arith.constant 0 : index
    %221 = vector.load %arg11[%c6_204, %c0_205, %c0_206] : memref<9x40x96xbf16, #tpu.memory_space<vmem>>, vector<1x40x96xbf16>
    %222 = vector.shape_cast %221 : vector<1x40x96xbf16> to vector<40x96xbf16>
    %cst_207 = arith.constant dense<0.000000e+00> : vector<4x96xf32>
    %223 = tpu.matmul %220, %222, %cst_207 {dimension_numbers = #tpu.dot_dimension_numbers<[1], [0], [0], [1], [0, 0, 1, 1], [], []>} : vector<4x40xbf16>, vector<40x96xbf16>, vector<4x96xf32> -> vector<4x96xf32>
    %224 = arith.addf %216, %223 : vector<4x96xf32>
    %c7_208 = arith.constant 7 : index
    %c0_209 = arith.constant 0 : index
    %c0_210 = arith.constant 0 : index
    %225 = vector.load %arg10[%c7_208, %c0_209, %c0_210] : memref<9x4x16xbf16, #tpu.memory_space<vmem>>, vector<1x4x16xbf16>
    %226 = vector.shape_cast %225 : vector<1x4x16xbf16> to vector<4x16xbf16>
    %cst_211 = arith.constant dense<0.000000e+00> : vector<4x40xf32>
    %227 = tpu.matmul %226, %167, %cst_211 {dimension_numbers = #tpu.dot_dimension_numbers<[1], [1], [0], [0], [0, 0, 1, 0], [], []>} : vector<4x16xbf16>, vector<40x16xbf16>, vector<4x40xf32> -> vector<4x40xf32>
    %228 = arith.truncf %227 : vector<4x40xf32> to vector<4x40xbf16>
    %c7_212 = arith.constant 7 : index
    %c0_213 = arith.constant 0 : index
    %c0_214 = arith.constant 0 : index
    %229 = vector.load %arg11[%c7_212, %c0_213, %c0_214] : memref<9x40x96xbf16, #tpu.memory_space<vmem>>, vector<1x40x96xbf16>
    %230 = vector.shape_cast %229 : vector<1x40x96xbf16> to vector<40x96xbf16>
    %cst_215 = arith.constant dense<0.000000e+00> : vector<4x96xf32>
    %231 = tpu.matmul %228, %230, %cst_215 {dimension_numbers = #tpu.dot_dimension_numbers<[1], [0], [0], [1], [0, 0, 1, 1], [], []>} : vector<4x40xbf16>, vector<40x96xbf16>, vector<4x96xf32> -> vector<4x96xf32>
    %232 = arith.addf %224, %231 : vector<4x96xf32>
    %c8_216 = arith.constant 8 : index
    %c0_217 = arith.constant 0 : index
    %c0_218 = arith.constant 0 : index
    %233 = vector.load %arg10[%c8_216, %c0_217, %c0_218] : memref<9x4x16xbf16, #tpu.memory_space<vmem>>, vector<1x4x16xbf16>
    %234 = vector.shape_cast %233 : vector<1x4x16xbf16> to vector<4x16xbf16>
    %cst_219 = arith.constant dense<0.000000e+00> : vector<4x40xf32>
    %235 = tpu.matmul %234, %167, %cst_219 {dimension_numbers = #tpu.dot_dimension_numbers<[1], [1], [0], [0], [0, 0, 1, 0], [], []>} : vector<4x16xbf16>, vector<40x16xbf16>, vector<4x40xf32> -> vector<4x40xf32>
    %236 = arith.truncf %235 : vector<4x40xf32> to vector<4x40xbf16>
    %c8_220 = arith.constant 8 : index
    %c0_221 = arith.constant 0 : index
    %c0_222 = arith.constant 0 : index
    %237 = vector.load %arg11[%c8_220, %c0_221, %c0_222] : memref<9x40x96xbf16, #tpu.memory_space<vmem>>, vector<1x40x96xbf16>
    %238 = vector.shape_cast %237 : vector<1x40x96xbf16> to vector<40x96xbf16>
    %cst_223 = arith.constant dense<0.000000e+00> : vector<4x96xf32>
    %239 = tpu.matmul %236, %238, %cst_223 {dimension_numbers = #tpu.dot_dimension_numbers<[1], [0], [0], [1], [0, 0, 1, 1], [], []>} : vector<4x40xbf16>, vector<40x96xbf16>, vector<4x96xf32> -> vector<4x96xf32>
    %240 = arith.addf %232, %239 : vector<4x96xf32>
    %c0_224 = arith.constant 0 : index
    %c0_225 = arith.constant 0 : index
    %241 = vector.load %arg12[%c0_224, %c0_225] : memref<1x96xf32, #tpu.memory_space<vmem>>, vector<1x96xf32>
    %242 = vector.broadcast %241 : vector<1x96xf32> to vector<4x96xf32>
    %243 = arith.addf %240, %242 : vector<4x96xf32>
    %cst_226 = arith.constant 0.000000e+00 : f32
    %244 = vector.broadcast %cst_226 : f32 to vector<4x96xf32>
    %245 = arith.maximumf %243, %244 : vector<4x96xf32>
    %246 = arith.truncf %245 : vector<4x96xf32> to vector<4x96xbf16>
    %cst_227 = arith.constant 0.000000e+00 : f32
    %247 = vector.broadcast %cst_227 : f32 to vector<4x256xf32>
    %c0_228 = arith.constant 0 : index
    %c0_229 = arith.constant 0 : index
    %c0_230 = arith.constant 0 : index
    %248 = vector.load %arg13[%c0_228, %c0_229, %c0_230] : memref<9x4x4xbf16, #tpu.memory_space<vmem>>, vector<1x4x4xbf16>
    %249 = vector.shape_cast %248 : vector<1x4x4xbf16> to vector<4x4xbf16>
    %cst_231 = arith.constant dense<0.000000e+00> : vector<4x96xf32>
    %250 = tpu.matmul %249, %246, %cst_231 {dimension_numbers = #tpu.dot_dimension_numbers<[1], [0], [0], [1], [0, 0, 1, 1], [], []>} : vector<4x4xbf16>, vector<4x96xbf16>, vector<4x96xf32> -> vector<4x96xf32>
    %251 = arith.truncf %250 : vector<4x96xf32> to vector<4x96xbf16>
    %c0_232 = arith.constant 0 : index
    %c0_233 = arith.constant 0 : index
    %c0_234 = arith.constant 0 : index
    %252 = vector.load %arg14[%c0_232, %c0_233, %c0_234] : memref<9x96x256xbf16, #tpu.memory_space<vmem>>, vector<1x96x256xbf16>
    %253 = vector.shape_cast %252 : vector<1x96x256xbf16> to vector<96x256xbf16>
    %cst_235 = arith.constant dense<0.000000e+00> : vector<4x256xf32>
    %254 = tpu.matmul %251, %253, %cst_235 {dimension_numbers = #tpu.dot_dimension_numbers<[1], [0], [0], [1], [0, 0, 1, 1], [], []>} : vector<4x96xbf16>, vector<96x256xbf16>, vector<4x256xf32> -> vector<4x256xf32>
    %255 = arith.addf %247, %254 : vector<4x256xf32>
    %c1_236 = arith.constant 1 : index
    %c0_237 = arith.constant 0 : index
    %c0_238 = arith.constant 0 : index
    %256 = vector.load %arg13[%c1_236, %c0_237, %c0_238] : memref<9x4x4xbf16, #tpu.memory_space<vmem>>, vector<1x4x4xbf16>
    %257 = vector.shape_cast %256 : vector<1x4x4xbf16> to vector<4x4xbf16>
    %cst_239 = arith.constant dense<0.000000e+00> : vector<4x96xf32>
    %258 = tpu.matmul %257, %246, %cst_239 {dimension_numbers = #tpu.dot_dimension_numbers<[1], [0], [0], [1], [0, 0, 1, 1], [], []>} : vector<4x4xbf16>, vector<4x96xbf16>, vector<4x96xf32> -> vector<4x96xf32>
    %259 = arith.truncf %258 : vector<4x96xf32> to vector<4x96xbf16>
    %c1_240 = arith.constant 1 : index
    %c0_241 = arith.constant 0 : index
    %c0_242 = arith.constant 0 : index
    %260 = vector.load %arg14[%c1_240, %c0_241, %c0_242] : memref<9x96x256xbf16, #tpu.memory_space<vmem>>, vector<1x96x256xbf16>
    %261 = vector.shape_cast %260 : vector<1x96x256xbf16> to vector<96x256xbf16>
    %cst_243 = arith.constant dense<0.000000e+00> : vector<4x256xf32>
    %262 = tpu.matmul %259, %261, %cst_243 {dimension_numbers = #tpu.dot_dimension_numbers<[1], [0], [0], [1], [0, 0, 1, 1], [], []>} : vector<4x96xbf16>, vector<96x256xbf16>, vector<4x256xf32> -> vector<4x256xf32>
    %263 = arith.addf %255, %262 : vector<4x256xf32>
    %c2_244 = arith.constant 2 : index
    %c0_245 = arith.constant 0 : index
    %c0_246 = arith.constant 0 : index
    %264 = vector.load %arg13[%c2_244, %c0_245, %c0_246] : memref<9x4x4xbf16, #tpu.memory_space<vmem>>, vector<1x4x4xbf16>
    %265 = vector.shape_cast %264 : vector<1x4x4xbf16> to vector<4x4xbf16>
    %cst_247 = arith.constant dense<0.000000e+00> : vector<4x96xf32>
    %266 = tpu.matmul %265, %246, %cst_247 {dimension_numbers = #tpu.dot_dimension_numbers<[1], [0], [0], [1], [0, 0, 1, 1], [], []>} : vector<4x4xbf16>, vector<4x96xbf16>, vector<4x96xf32> -> vector<4x96xf32>
    %267 = arith.truncf %266 : vector<4x96xf32> to vector<4x96xbf16>
    %c2_248 = arith.constant 2 : index
    %c0_249 = arith.constant 0 : index
    %c0_250 = arith.constant 0 : index
    %268 = vector.load %arg14[%c2_248, %c0_249, %c0_250] : memref<9x96x256xbf16, #tpu.memory_space<vmem>>, vector<1x96x256xbf16>
    %269 = vector.shape_cast %268 : vector<1x96x256xbf16> to vector<96x256xbf16>
    %cst_251 = arith.constant dense<0.000000e+00> : vector<4x256xf32>
    %270 = tpu.matmul %267, %269, %cst_251 {dimension_numbers = #tpu.dot_dimension_numbers<[1], [0], [0], [1], [0, 0, 1, 1], [], []>} : vector<4x96xbf16>, vector<96x256xbf16>, vector<4x256xf32> -> vector<4x256xf32>
    %271 = arith.addf %263, %270 : vector<4x256xf32>
    %c3_252 = arith.constant 3 : index
    %c0_253 = arith.constant 0 : index
    %c0_254 = arith.constant 0 : index
    %272 = vector.load %arg13[%c3_252, %c0_253, %c0_254] : memref<9x4x4xbf16, #tpu.memory_space<vmem>>, vector<1x4x4xbf16>
    %273 = vector.shape_cast %272 : vector<1x4x4xbf16> to vector<4x4xbf16>
    %cst_255 = arith.constant dense<0.000000e+00> : vector<4x96xf32>
    %274 = tpu.matmul %273, %246, %cst_255 {dimension_numbers = #tpu.dot_dimension_numbers<[1], [0], [0], [1], [0, 0, 1, 1], [], []>} : vector<4x4xbf16>, vector<4x96xbf16>, vector<4x96xf32> -> vector<4x96xf32>
    %275 = arith.truncf %274 : vector<4x96xf32> to vector<4x96xbf16>
    %c3_256 = arith.constant 3 : index
    %c0_257 = arith.constant 0 : index
    %c0_258 = arith.constant 0 : index
    %276 = vector.load %arg14[%c3_256, %c0_257, %c0_258] : memref<9x96x256xbf16, #tpu.memory_space<vmem>>, vector<1x96x256xbf16>
    %277 = vector.shape_cast %276 : vector<1x96x256xbf16> to vector<96x256xbf16>
    %cst_259 = arith.constant dense<0.000000e+00> : vector<4x256xf32>
    %278 = tpu.matmul %275, %277, %cst_259 {dimension_numbers = #tpu.dot_dimension_numbers<[1], [0], [0], [1], [0, 0, 1, 1], [], []>} : vector<4x96xbf16>, vector<96x256xbf16>, vector<4x256xf32> -> vector<4x256xf32>
    %279 = arith.addf %271, %278 : vector<4x256xf32>
    %c4_260 = arith.constant 4 : index
    %c0_261 = arith.constant 0 : index
    %c0_262 = arith.constant 0 : index
    %280 = vector.load %arg13[%c4_260, %c0_261, %c0_262] : memref<9x4x4xbf16, #tpu.memory_space<vmem>>, vector<1x4x4xbf16>
    %281 = vector.shape_cast %280 : vector<1x4x4xbf16> to vector<4x4xbf16>
    %cst_263 = arith.constant dense<0.000000e+00> : vector<4x96xf32>
    %282 = tpu.matmul %281, %246, %cst_263 {dimension_numbers = #tpu.dot_dimension_numbers<[1], [0], [0], [1], [0, 0, 1, 1], [], []>} : vector<4x4xbf16>, vector<4x96xbf16>, vector<4x96xf32> -> vector<4x96xf32>
    %283 = arith.truncf %282 : vector<4x96xf32> to vector<4x96xbf16>
    %c4_264 = arith.constant 4 : index
    %c0_265 = arith.constant 0 : index
    %c0_266 = arith.constant 0 : index
    %284 = vector.load %arg14[%c4_264, %c0_265, %c0_266] : memref<9x96x256xbf16, #tpu.memory_space<vmem>>, vector<1x96x256xbf16>
    %285 = vector.shape_cast %284 : vector<1x96x256xbf16> to vector<96x256xbf16>
    %cst_267 = arith.constant dense<0.000000e+00> : vector<4x256xf32>
    %286 = tpu.matmul %283, %285, %cst_267 {dimension_numbers = #tpu.dot_dimension_numbers<[1], [0], [0], [1], [0, 0, 1, 1], [], []>} : vector<4x96xbf16>, vector<96x256xbf16>, vector<4x256xf32> -> vector<4x256xf32>
    %287 = arith.addf %279, %286 : vector<4x256xf32>
    %c5_268 = arith.constant 5 : index
    %c0_269 = arith.constant 0 : index
    %c0_270 = arith.constant 0 : index
    %288 = vector.load %arg13[%c5_268, %c0_269, %c0_270] : memref<9x4x4xbf16, #tpu.memory_space<vmem>>, vector<1x4x4xbf16>
    %289 = vector.shape_cast %288 : vector<1x4x4xbf16> to vector<4x4xbf16>
    %cst_271 = arith.constant dense<0.000000e+00> : vector<4x96xf32>
    %290 = tpu.matmul %289, %246, %cst_271 {dimension_numbers = #tpu.dot_dimension_numbers<[1], [0], [0], [1], [0, 0, 1, 1], [], []>} : vector<4x4xbf16>, vector<4x96xbf16>, vector<4x96xf32> -> vector<4x96xf32>
    %291 = arith.truncf %290 : vector<4x96xf32> to vector<4x96xbf16>
    %c5_272 = arith.constant 5 : index
    %c0_273 = arith.constant 0 : index
    %c0_274 = arith.constant 0 : index
    %292 = vector.load %arg14[%c5_272, %c0_273, %c0_274] : memref<9x96x256xbf16, #tpu.memory_space<vmem>>, vector<1x96x256xbf16>
    %293 = vector.shape_cast %292 : vector<1x96x256xbf16> to vector<96x256xbf16>
    %cst_275 = arith.constant dense<0.000000e+00> : vector<4x256xf32>
    %294 = tpu.matmul %291, %293, %cst_275 {dimension_numbers = #tpu.dot_dimension_numbers<[1], [0], [0], [1], [0, 0, 1, 1], [], []>} : vector<4x96xbf16>, vector<96x256xbf16>, vector<4x256xf32> -> vector<4x256xf32>
    %295 = arith.addf %287, %294 : vector<4x256xf32>
    %c6_276 = arith.constant 6 : index
    %c0_277 = arith.constant 0 : index
    %c0_278 = arith.constant 0 : index
    %296 = vector.load %arg13[%c6_276, %c0_277, %c0_278] : memref<9x4x4xbf16, #tpu.memory_space<vmem>>, vector<1x4x4xbf16>
    %297 = vector.shape_cast %296 : vector<1x4x4xbf16> to vector<4x4xbf16>
    %cst_279 = arith.constant dense<0.000000e+00> : vector<4x96xf32>
    %298 = tpu.matmul %297, %246, %cst_279 {dimension_numbers = #tpu.dot_dimension_numbers<[1], [0], [0], [1], [0, 0, 1, 1], [], []>} : vector<4x4xbf16>, vector<4x96xbf16>, vector<4x96xf32> -> vector<4x96xf32>
    %299 = arith.truncf %298 : vector<4x96xf32> to vector<4x96xbf16>
    %c6_280 = arith.constant 6 : index
    %c0_281 = arith.constant 0 : index
    %c0_282 = arith.constant 0 : index
    %300 = vector.load %arg14[%c6_280, %c0_281, %c0_282] : memref<9x96x256xbf16, #tpu.memory_space<vmem>>, vector<1x96x256xbf16>
    %301 = vector.shape_cast %300 : vector<1x96x256xbf16> to vector<96x256xbf16>
    %cst_283 = arith.constant dense<0.000000e+00> : vector<4x256xf32>
    %302 = tpu.matmul %299, %301, %cst_283 {dimension_numbers = #tpu.dot_dimension_numbers<[1], [0], [0], [1], [0, 0, 1, 1], [], []>} : vector<4x96xbf16>, vector<96x256xbf16>, vector<4x256xf32> -> vector<4x256xf32>
    %303 = arith.addf %295, %302 : vector<4x256xf32>
    %c7_284 = arith.constant 7 : index
    %c0_285 = arith.constant 0 : index
    %c0_286 = arith.constant 0 : index
    %304 = vector.load %arg13[%c7_284, %c0_285, %c0_286] : memref<9x4x4xbf16, #tpu.memory_space<vmem>>, vector<1x4x4xbf16>
    %305 = vector.shape_cast %304 : vector<1x4x4xbf16> to vector<4x4xbf16>
    %cst_287 = arith.constant dense<0.000000e+00> : vector<4x96xf32>
    %306 = tpu.matmul %305, %246, %cst_287 {dimension_numbers = #tpu.dot_dimension_numbers<[1], [0], [0], [1], [0, 0, 1, 1], [], []>} : vector<4x4xbf16>, vector<4x96xbf16>, vector<4x96xf32> -> vector<4x96xf32>
    %307 = arith.truncf %306 : vector<4x96xf32> to vector<4x96xbf16>
    %c7_288 = arith.constant 7 : index
    %c0_289 = arith.constant 0 : index
    %c0_290 = arith.constant 0 : index
    %308 = vector.load %arg14[%c7_288, %c0_289, %c0_290] : memref<9x96x256xbf16, #tpu.memory_space<vmem>>, vector<1x96x256xbf16>
    %309 = vector.shape_cast %308 : vector<1x96x256xbf16> to vector<96x256xbf16>
    %cst_291 = arith.constant dense<0.000000e+00> : vector<4x256xf32>
    %310 = tpu.matmul %307, %309, %cst_291 {dimension_numbers = #tpu.dot_dimension_numbers<[1], [0], [0], [1], [0, 0, 1, 1], [], []>} : vector<4x96xbf16>, vector<96x256xbf16>, vector<4x256xf32> -> vector<4x256xf32>
    %311 = arith.addf %303, %310 : vector<4x256xf32>
    %c8_292 = arith.constant 8 : index
    %c0_293 = arith.constant 0 : index
    %c0_294 = arith.constant 0 : index
    %312 = vector.load %arg13[%c8_292, %c0_293, %c0_294] : memref<9x4x4xbf16, #tpu.memory_space<vmem>>, vector<1x4x4xbf16>
    %313 = vector.shape_cast %312 : vector<1x4x4xbf16> to vector<4x4xbf16>
    %cst_295 = arith.constant dense<0.000000e+00> : vector<4x96xf32>
    %314 = tpu.matmul %313, %246, %cst_295 {dimension_numbers = #tpu.dot_dimension_numbers<[1], [0], [0], [1], [0, 0, 1, 1], [], []>} : vector<4x4xbf16>, vector<4x96xbf16>, vector<4x96xf32> -> vector<4x96xf32>
    %315 = arith.truncf %314 : vector<4x96xf32> to vector<4x96xbf16>
    %c8_296 = arith.constant 8 : index
    %c0_297 = arith.constant 0 : index
    %c0_298 = arith.constant 0 : index
    %316 = vector.load %arg14[%c8_296, %c0_297, %c0_298] : memref<9x96x256xbf16, #tpu.memory_space<vmem>>, vector<1x96x256xbf16>
    %317 = vector.shape_cast %316 : vector<1x96x256xbf16> to vector<96x256xbf16>
    %cst_299 = arith.constant dense<0.000000e+00> : vector<4x256xf32>
    %318 = tpu.matmul %315, %317, %cst_299 {dimension_numbers = #tpu.dot_dimension_numbers<[1], [0], [0], [1], [0, 0, 1, 1], [], []>} : vector<4x96xbf16>, vector<96x256xbf16>, vector<4x256xf32> -> vector<4x256xf32>
    %319 = arith.addf %311, %318 : vector<4x256xf32>
    %c0_300 = arith.constant 0 : index
    %c0_301 = arith.constant 0 : index
    %320 = vector.load %arg15[%c0_300, %c0_301] : memref<1x256xf32, #tpu.memory_space<vmem>>, vector<1x256xf32>
    %321 = vector.broadcast %320 : vector<1x256xf32> to vector<4x256xf32>
    %322 = arith.addf %319, %321 : vector<4x256xf32>
    %cst_302 = arith.constant 0.000000e+00 : f32
    %323 = vector.broadcast %cst_302 : f32 to vector<4x256xf32>
    %324 = arith.maximumf %322, %323 : vector<4x256xf32>
    %325 = arith.truncf %324 : vector<4x256xf32> to vector<4x256xbf16>
    %cst_303 = arith.constant 0.000000e+00 : f32
    %326 = vector.broadcast %cst_303 : f32 to vector<4x256xf32>
    %c0_304 = arith.constant 0 : index
    %c0_305 = arith.constant 0 : index
    %c0_306 = arith.constant 0 : index
    %327 = vector.load %arg16[%c0_304, %c0_305, %c0_306] : memref<9x4x4xbf16, #tpu.memory_space<vmem>>, vector<1x4x4xbf16>
    %328 = vector.shape_cast %327 : vector<1x4x4xbf16> to vector<4x4xbf16>
    %cst_307 = arith.constant dense<0.000000e+00> : vector<4x256xf32>
    %329 = tpu.matmul %328, %325, %cst_307 {dimension_numbers = #tpu.dot_dimension_numbers<[1], [0], [0], [1], [0, 0, 1, 1], [], []>} : vector<4x4xbf16>, vector<4x256xbf16>, vector<4x256xf32> -> vector<4x256xf32>
    %330 = arith.truncf %329 : vector<4x256xf32> to vector<4x256xbf16>
    %c0_308 = arith.constant 0 : index
    %c0_309 = arith.constant 0 : index
    %c0_310 = arith.constant 0 : index
    %331 = vector.load %arg17[%c0_308, %c0_309, %c0_310] : memref<9x256x256xbf16, #tpu.memory_space<vmem>>, vector<1x256x256xbf16>
    %332 = vector.shape_cast %331 : vector<1x256x256xbf16> to vector<256x256xbf16>
    %cst_311 = arith.constant dense<0.000000e+00> : vector<4x256xf32>
    %333 = tpu.matmul %330, %332, %cst_311 {dimension_numbers = #tpu.dot_dimension_numbers<[1], [0], [0], [1], [0, 0, 1, 1], [], []>} : vector<4x256xbf16>, vector<256x256xbf16>, vector<4x256xf32> -> vector<4x256xf32>
    %334 = arith.addf %326, %333 : vector<4x256xf32>
    %c1_312 = arith.constant 1 : index
    %c0_313 = arith.constant 0 : index
    %c0_314 = arith.constant 0 : index
    %335 = vector.load %arg16[%c1_312, %c0_313, %c0_314] : memref<9x4x4xbf16, #tpu.memory_space<vmem>>, vector<1x4x4xbf16>
    %336 = vector.shape_cast %335 : vector<1x4x4xbf16> to vector<4x4xbf16>
    %cst_315 = arith.constant dense<0.000000e+00> : vector<4x256xf32>
    %337 = tpu.matmul %336, %325, %cst_315 {dimension_numbers = #tpu.dot_dimension_numbers<[1], [0], [0], [1], [0, 0, 1, 1], [], []>} : vector<4x4xbf16>, vector<4x256xbf16>, vector<4x256xf32> -> vector<4x256xf32>
    %338 = arith.truncf %337 : vector<4x256xf32> to vector<4x256xbf16>
    %c1_316 = arith.constant 1 : index
    %c0_317 = arith.constant 0 : index
    %c0_318 = arith.constant 0 : index
    %339 = vector.load %arg17[%c1_316, %c0_317, %c0_318] : memref<9x256x256xbf16, #tpu.memory_space<vmem>>, vector<1x256x256xbf16>
    %340 = vector.shape_cast %339 : vector<1x256x256xbf16> to vector<256x256xbf16>
    %cst_319 = arith.constant dense<0.000000e+00> : vector<4x256xf32>
    %341 = tpu.matmul %338, %340, %cst_319 {dimension_numbers = #tpu.dot_dimension_numbers<[1], [0], [0], [1], [0, 0, 1, 1], [], []>} : vector<4x256xbf16>, vector<256x256xbf16>, vector<4x256xf32> -> vector<4x256xf32>
    %342 = arith.addf %334, %341 : vector<4x256xf32>
    %c2_320 = arith.constant 2 : index
    %c0_321 = arith.constant 0 : index
    %c0_322 = arith.constant 0 : index
    %343 = vector.load %arg16[%c2_320, %c0_321, %c0_322] : memref<9x4x4xbf16, #tpu.memory_space<vmem>>, vector<1x4x4xbf16>
    %344 = vector.shape_cast %343 : vector<1x4x4xbf16> to vector<4x4xbf16>
    %cst_323 = arith.constant dense<0.000000e+00> : vector<4x256xf32>
    %345 = tpu.matmul %344, %325, %cst_323 {dimension_numbers = #tpu.dot_dimension_numbers<[1], [0], [0], [1], [0, 0, 1, 1], [], []>} : vector<4x4xbf16>, vector<4x256xbf16>, vector<4x256xf32> -> vector<4x256xf32>
    %346 = arith.truncf %345 : vector<4x256xf32> to vector<4x256xbf16>
    %c2_324 = arith.constant 2 : index
    %c0_325 = arith.constant 0 : index
    %c0_326 = arith.constant 0 : index
    %347 = vector.load %arg17[%c2_324, %c0_325, %c0_326] : memref<9x256x256xbf16, #tpu.memory_space<vmem>>, vector<1x256x256xbf16>
    %348 = vector.shape_cast %347 : vector<1x256x256xbf16> to vector<256x256xbf16>
    %cst_327 = arith.constant dense<0.000000e+00> : vector<4x256xf32>
    %349 = tpu.matmul %346, %348, %cst_327 {dimension_numbers = #tpu.dot_dimension_numbers<[1], [0], [0], [1], [0, 0, 1, 1], [], []>} : vector<4x256xbf16>, vector<256x256xbf16>, vector<4x256xf32> -> vector<4x256xf32>
    %350 = arith.addf %342, %349 : vector<4x256xf32>
    %c3_328 = arith.constant 3 : index
    %c0_329 = arith.constant 0 : index
    %c0_330 = arith.constant 0 : index
    %351 = vector.load %arg16[%c3_328, %c0_329, %c0_330] : memref<9x4x4xbf16, #tpu.memory_space<vmem>>, vector<1x4x4xbf16>
    %352 = vector.shape_cast %351 : vector<1x4x4xbf16> to vector<4x4xbf16>
    %cst_331 = arith.constant dense<0.000000e+00> : vector<4x256xf32>
    %353 = tpu.matmul %352, %325, %cst_331 {dimension_numbers = #tpu.dot_dimension_numbers<[1], [0], [0], [1], [0, 0, 1, 1], [], []>} : vector<4x4xbf16>, vector<4x256xbf16>, vector<4x256xf32> -> vector<4x256xf32>
    %354 = arith.truncf %353 : vector<4x256xf32> to vector<4x256xbf16>
    %c3_332 = arith.constant 3 : index
    %c0_333 = arith.constant 0 : index
    %c0_334 = arith.constant 0 : index
    %355 = vector.load %arg17[%c3_332, %c0_333, %c0_334] : memref<9x256x256xbf16, #tpu.memory_space<vmem>>, vector<1x256x256xbf16>
    %356 = vector.shape_cast %355 : vector<1x256x256xbf16> to vector<256x256xbf16>
    %cst_335 = arith.constant dense<0.000000e+00> : vector<4x256xf32>
    %357 = tpu.matmul %354, %356, %cst_335 {dimension_numbers = #tpu.dot_dimension_numbers<[1], [0], [0], [1], [0, 0, 1, 1], [], []>} : vector<4x256xbf16>, vector<256x256xbf16>, vector<4x256xf32> -> vector<4x256xf32>
    %358 = arith.addf %350, %357 : vector<4x256xf32>
    %c4_336 = arith.constant 4 : index
    %c0_337 = arith.constant 0 : index
    %c0_338 = arith.constant 0 : index
    %359 = vector.load %arg16[%c4_336, %c0_337, %c0_338] : memref<9x4x4xbf16, #tpu.memory_space<vmem>>, vector<1x4x4xbf16>
    %360 = vector.shape_cast %359 : vector<1x4x4xbf16> to vector<4x4xbf16>
    %cst_339 = arith.constant dense<0.000000e+00> : vector<4x256xf32>
    %361 = tpu.matmul %360, %325, %cst_339 {dimension_numbers = #tpu.dot_dimension_numbers<[1], [0], [0], [1], [0, 0, 1, 1], [], []>} : vector<4x4xbf16>, vector<4x256xbf16>, vector<4x256xf32> -> vector<4x256xf32>
    %362 = arith.truncf %361 : vector<4x256xf32> to vector<4x256xbf16>
    %c4_340 = arith.constant 4 : index
    %c0_341 = arith.constant 0 : index
    %c0_342 = arith.constant 0 : index
    %363 = vector.load %arg17[%c4_340, %c0_341, %c0_342] : memref<9x256x256xbf16, #tpu.memory_space<vmem>>, vector<1x256x256xbf16>
    %364 = vector.shape_cast %363 : vector<1x256x256xbf16> to vector<256x256xbf16>
    %cst_343 = arith.constant dense<0.000000e+00> : vector<4x256xf32>
    %365 = tpu.matmul %362, %364, %cst_343 {dimension_numbers = #tpu.dot_dimension_numbers<[1], [0], [0], [1], [0, 0, 1, 1], [], []>} : vector<4x256xbf16>, vector<256x256xbf16>, vector<4x256xf32> -> vector<4x256xf32>
    %366 = arith.addf %358, %365 : vector<4x256xf32>
    %c5_344 = arith.constant 5 : index
    %c0_345 = arith.constant 0 : index
    %c0_346 = arith.constant 0 : index
    %367 = vector.load %arg16[%c5_344, %c0_345, %c0_346] : memref<9x4x4xbf16, #tpu.memory_space<vmem>>, vector<1x4x4xbf16>
    %368 = vector.shape_cast %367 : vector<1x4x4xbf16> to vector<4x4xbf16>
    %cst_347 = arith.constant dense<0.000000e+00> : vector<4x256xf32>
    %369 = tpu.matmul %368, %325, %cst_347 {dimension_numbers = #tpu.dot_dimension_numbers<[1], [0], [0], [1], [0, 0, 1, 1], [], []>} : vector<4x4xbf16>, vector<4x256xbf16>, vector<4x256xf32> -> vector<4x256xf32>
    %370 = arith.truncf %369 : vector<4x256xf32> to vector<4x256xbf16>
    %c5_348 = arith.constant 5 : index
    %c0_349 = arith.constant 0 : index
    %c0_350 = arith.constant 0 : index
    %371 = vector.load %arg17[%c5_348, %c0_349, %c0_350] : memref<9x256x256xbf16, #tpu.memory_space<vmem>>, vector<1x256x256xbf16>
    %372 = vector.shape_cast %371 : vector<1x256x256xbf16> to vector<256x256xbf16>
    %cst_351 = arith.constant dense<0.000000e+00> : vector<4x256xf32>
    %373 = tpu.matmul %370, %372, %cst_351 {dimension_numbers = #tpu.dot_dimension_numbers<[1], [0], [0], [1], [0, 0, 1, 1], [], []>} : vector<4x256xbf16>, vector<256x256xbf16>, vector<4x256xf32> -> vector<4x256xf32>
    %374 = arith.addf %366, %373 : vector<4x256xf32>
    %c6_352 = arith.constant 6 : index
    %c0_353 = arith.constant 0 : index
    %c0_354 = arith.constant 0 : index
    %375 = vector.load %arg16[%c6_352, %c0_353, %c0_354] : memref<9x4x4xbf16, #tpu.memory_space<vmem>>, vector<1x4x4xbf16>
    %376 = vector.shape_cast %375 : vector<1x4x4xbf16> to vector<4x4xbf16>
    %cst_355 = arith.constant dense<0.000000e+00> : vector<4x256xf32>
    %377 = tpu.matmul %376, %325, %cst_355 {dimension_numbers = #tpu.dot_dimension_numbers<[1], [0], [0], [1], [0, 0, 1, 1], [], []>} : vector<4x4xbf16>, vector<4x256xbf16>, vector<4x256xf32> -> vector<4x256xf32>
    %378 = arith.truncf %377 : vector<4x256xf32> to vector<4x256xbf16>
    %c6_356 = arith.constant 6 : index
    %c0_357 = arith.constant 0 : index
    %c0_358 = arith.constant 0 : index
    %379 = vector.load %arg17[%c6_356, %c0_357, %c0_358] : memref<9x256x256xbf16, #tpu.memory_space<vmem>>, vector<1x256x256xbf16>
    %380 = vector.shape_cast %379 : vector<1x256x256xbf16> to vector<256x256xbf16>
    %cst_359 = arith.constant dense<0.000000e+00> : vector<4x256xf32>
    %381 = tpu.matmul %378, %380, %cst_359 {dimension_numbers = #tpu.dot_dimension_numbers<[1], [0], [0], [1], [0, 0, 1, 1], [], []>} : vector<4x256xbf16>, vector<256x256xbf16>, vector<4x256xf32> -> vector<4x256xf32>
    %382 = arith.addf %374, %381 : vector<4x256xf32>
    %c7_360 = arith.constant 7 : index
    %c0_361 = arith.constant 0 : index
    %c0_362 = arith.constant 0 : index
    %383 = vector.load %arg16[%c7_360, %c0_361, %c0_362] : memref<9x4x4xbf16, #tpu.memory_space<vmem>>, vector<1x4x4xbf16>
    %384 = vector.shape_cast %383 : vector<1x4x4xbf16> to vector<4x4xbf16>
    %cst_363 = arith.constant dense<0.000000e+00> : vector<4x256xf32>
    %385 = tpu.matmul %384, %325, %cst_363 {dimension_numbers = #tpu.dot_dimension_numbers<[1], [0], [0], [1], [0, 0, 1, 1], [], []>} : vector<4x4xbf16>, vector<4x256xbf16>, vector<4x256xf32> -> vector<4x256xf32>
    %386 = arith.truncf %385 : vector<4x256xf32> to vector<4x256xbf16>
    %c7_364 = arith.constant 7 : index
    %c0_365 = arith.constant 0 : index
    %c0_366 = arith.constant 0 : index
    %387 = vector.load %arg17[%c7_364, %c0_365, %c0_366] : memref<9x256x256xbf16, #tpu.memory_space<vmem>>, vector<1x256x256xbf16>
    %388 = vector.shape_cast %387 : vector<1x256x256xbf16> to vector<256x256xbf16>
    %cst_367 = arith.constant dense<0.000000e+00> : vector<4x256xf32>
    %389 = tpu.matmul %386, %388, %cst_367 {dimension_numbers = #tpu.dot_dimension_numbers<[1], [0], [0], [1], [0, 0, 1, 1], [], []>} : vector<4x256xbf16>, vector<256x256xbf16>, vector<4x256xf32> -> vector<4x256xf32>
    %390 = arith.addf %382, %389 : vector<4x256xf32>
    %c8_368 = arith.constant 8 : index
    %c0_369 = arith.constant 0 : index
    %c0_370 = arith.constant 0 : index
    %391 = vector.load %arg16[%c8_368, %c0_369, %c0_370] : memref<9x4x4xbf16, #tpu.memory_space<vmem>>, vector<1x4x4xbf16>
    %392 = vector.shape_cast %391 : vector<1x4x4xbf16> to vector<4x4xbf16>
    %cst_371 = arith.constant dense<0.000000e+00> : vector<4x256xf32>
    %393 = tpu.matmul %392, %325, %cst_371 {dimension_numbers = #tpu.dot_dimension_numbers<[1], [0], [0], [1], [0, 0, 1, 1], [], []>} : vector<4x4xbf16>, vector<4x256xbf16>, vector<4x256xf32> -> vector<4x256xf32>
    %394 = arith.truncf %393 : vector<4x256xf32> to vector<4x256xbf16>
    %c8_372 = arith.constant 8 : index
    %c0_373 = arith.constant 0 : index
    %c0_374 = arith.constant 0 : index
    %395 = vector.load %arg17[%c8_372, %c0_373, %c0_374] : memref<9x256x256xbf16, #tpu.memory_space<vmem>>, vector<1x256x256xbf16>
    %396 = vector.shape_cast %395 : vector<1x256x256xbf16> to vector<256x256xbf16>
    %cst_375 = arith.constant dense<0.000000e+00> : vector<4x256xf32>
    %397 = tpu.matmul %394, %396, %cst_375 {dimension_numbers = #tpu.dot_dimension_numbers<[1], [0], [0], [1], [0, 0, 1, 1], [], []>} : vector<4x256xbf16>, vector<256x256xbf16>, vector<4x256xf32> -> vector<4x256xf32>
    %398 = arith.addf %390, %397 : vector<4x256xf32>
    %c0_376 = arith.constant 0 : index
    %c0_377 = arith.constant 0 : index
    %399 = vector.load %arg18[%c0_376, %c0_377] : memref<1x256xf32, #tpu.memory_space<vmem>>, vector<1x256xf32>
    %400 = vector.broadcast %399 : vector<1x256xf32> to vector<4x256xf32>
    %401 = arith.addf %398, %400 : vector<4x256xf32>
    %cst_378 = arith.constant 0.000000e+00 : f32
    %402 = vector.broadcast %cst_378 : f32 to vector<4x256xf32>
    %403 = arith.maximumf %401, %402 : vector<4x256xf32>
    %404 = arith.truncf %403 : vector<4x256xf32> to vector<4x256xbf16>
    %c0_379 = arith.constant 0 : index
    %c0_380 = arith.constant 0 : index
    %405 = vector.load %arg19[%c0_379, %c0_380] : memref<21x256xbf16, #tpu.memory_space<vmem>>, vector<21x256xbf16>
    %cst_381 = arith.constant dense<0.000000e+00> : vector<21x4xf32>
    %406 = tpu.matmul %405, %404, %cst_381 {dimension_numbers = #tpu.dot_dimension_numbers<[1], [1], [0], [0], [0, 0, 1, 0], [], []>} : vector<21x256xbf16>, vector<4x256xbf16>, vector<21x4xf32> -> vector<21x4xf32>
    %c0_382 = arith.constant 0 : index
    %c0_383 = arith.constant 0 : index
    %407 = vector.load %arg20[%c0_382, %c0_383] : memref<21x1xf32, #tpu.memory_space<vmem>>, vector<21x1xf32>
    %408 = vector.broadcast %407 : vector<21x1xf32> to vector<21x4xf32>
    %409 = arith.addf %406, %408 : vector<21x4xf32>
    %410 = arith.truncf %409 : vector<21x4xf32> to vector<21x4xbf16>
    %c0_384 = arith.constant 0 : index
    %c0_385 = arith.constant 0 : index
    %411 = vector.load %arg21[%c0_384, %c0_385] : memref<4x1024xbf16, #tpu.memory_space<vmem>>, vector<4x1024xbf16>
    %cst_386 = arith.constant dense<0.000000e+00> : vector<21x1024xf32>
    %412 = tpu.matmul %410, %411, %cst_386 {dimension_numbers = #tpu.dot_dimension_numbers<[1], [0], [0], [1], [0, 0, 1, 1], [], []>} : vector<21x4xbf16>, vector<4x1024xbf16>, vector<21x1024xf32> -> vector<21x1024xf32>
    %c0_387 = arith.constant 0 : index
    %c0_388 = arith.constant 0 : index
    %c0_389 = arith.constant 0 : index
    %413 = vector.load %arg22[%c0_387, %c0_388, %c0_389] : memref<1x21x1024xf32, #tpu.memory_space<vmem>>, vector<1x21x1024xf32>
    %414 = vector.shape_cast %413 : vector<1x21x1024xf32> to vector<21x1024xf32>
    %415 = vector.shape_cast %412 : vector<21x1024xf32> to vector<1x21x1024xf32>
    tpu.vector_store %arg22[%c0_387, %c0_388, %c0_389], %415 {strides = array<i32>} : memref<1x21x1024xf32, #tpu.memory_space<vmem>>, vector<1x21x1024xf32>,
    return
  }
  func.func @transform_0(%arg0: i32) -> (i32, i32, i32) {
    %c0_i32 = arith.constant 0 : i32
    %c0_i32_0 = arith.constant 0 : i32
    %c0_i32_1 = arith.constant 0 : i32
    return %arg0, %c0_i32, %c0_i32_0 : i32, i32, i32
  }
  func.func @transform_1(%arg0: i32) -> (i32, i32) {
    %c0_i32 = arith.constant 0 : i32
    %c0_i32_0 = arith.constant 0 : i32
    %c0_i32_1 = arith.constant 0 : i32
    return %c0_i32, %c0_i32_0 : i32, i32
  }
  func.func @transform_2(%arg0: i32) -> (i32, i32) {
    %c0_i32 = arith.constant 0 : i32
    %c0_i32_0 = arith.constant 0 : i32
    %c0_i32_1 = arith.constant 0 : i32
    return %c0_i32, %c0_i32_0 : i32, i32
  }
  func.func @transform_3(%arg0: i32) -> (i32, i32, i32) {
    %c0_i32 = arith.constant 0 : i32
    %c0_i32_0 = arith.constant 0 : i32
    %c0_i32_1 = arith.constant 0 : i32
    %c0_i32_2 = arith.constant 0 : i32
    return %c0_i32, %c0_i32_0, %c0_i32_1 : i32, i32, i32
  }
  func.func @transform_4(%arg0: i32) -> (i32, i32, i32) {
    %c0_i32 = arith.constant 0 : i32
    %c0_i32_0 = arith.constant 0 : i32
    %c0_i32_1 = arith.constant 0 : i32
    %c0_i32_2 = arith.constant 0 : i32
    return %c0_i32, %c0_i32_0, %c0_i32_1 : i32, i32, i32
  }
  func.func @transform_5(%arg0: i32) -> (i32, i32) {
    %c0_i32 = arith.constant 0 : i32
    %c0_i32_0 = arith.constant 0 : i32
    %c0_i32_1 = arith.constant 0 : i32
    return %c0_i32, %c0_i32_0 : i32, i32
  }
  func.func @transform_6(%arg0: i32) -> (i32, i32, i32) {
    %c0_i32 = arith.constant 0 : i32
    %c0_i32_0 = arith.constant 0 : i32
    %c0_i32_1 = arith.constant 0 : i32
    %c0_i32_2 = arith.constant 0 : i32
    return %c0_i32, %c0_i32_0, %c0_i32_1 : i32, i32, i32
  }
  func.func @transform_7(%arg0: i32) -> (i32, i32, i32) {
    %c0_i32 = arith.constant 0 : i32
    %c0_i32_0 = arith.constant 0 : i32
    %c0_i32_1 = arith.constant 0 : i32
    %c0_i32_2 = arith.constant 0 : i32
    return %c0_i32, %c0_i32_0, %c0_i32_1 : i32, i32, i32
  }
  func.func @transform_8(%arg0: i32) -> (i32, i32) {
    %c0_i32 = arith.constant 0 : i32
    %c0_i32_0 = arith.constant 0 : i32
    %c0_i32_1 = arith.constant 0 : i32
    return %c0_i32, %c0_i32_0 : i32, i32
  }
  func.func @transform_9(%arg0: i32) -> (i32, i32, i32) {
    %c0_i32 = arith.constant 0 : i32
    %c0_i32_0 = arith.constant 0 : i32
    %c0_i32_1 = arith.constant 0 : i32
    %c0_i32_2 = arith.constant 0 : i32
    return %c0_i32, %c0_i32_0, %c0_i32_1 : i32, i32, i32
  }
  func.func @transform_10(%arg0: i32) -> (i32, i32, i32) {
    %c0_i32 = arith.constant 0 : i32
    %c0_i32_0 = arith.constant 0 : i32
    %c0_i32_1 = arith.constant 0 : i32
    %c0_i32_2 = arith.constant 0 : i32
    return %c0_i32, %c0_i32_0, %c0_i32_1 : i32, i32, i32
  }
  func.func @transform_11(%arg0: i32) -> (i32, i32) {
    %c0_i32 = arith.constant 0 : i32
    %c0_i32_0 = arith.constant 0 : i32
    %c0_i32_1 = arith.constant 0 : i32
    return %c0_i32, %c0_i32_0 : i32, i32
  }
  func.func @transform_12(%arg0: i32) -> (i32, i32, i32) {
    %c0_i32 = arith.constant 0 : i32
    %c0_i32_0 = arith.constant 0 : i32
    %c0_i32_1 = arith.constant 0 : i32
    %c0_i32_2 = arith.constant 0 : i32
    return %c0_i32, %c0_i32_0, %c0_i32_1 : i32, i32, i32
  }
  func.func @transform_13(%arg0: i32) -> (i32, i32, i32) {
    %c0_i32 = arith.constant 0 : i32
    %c0_i32_0 = arith.constant 0 : i32
    %c0_i32_1 = arith.constant 0 : i32
    %c0_i32_2 = arith.constant 0 : i32
    return %c0_i32, %c0_i32_0, %c0_i32_1 : i32, i32, i32
  }
  func.func @transform_14(%arg0: i32) -> (i32, i32) {
    %c0_i32 = arith.constant 0 : i32
    %c0_i32_0 = arith.constant 0 : i32
    %c0_i32_1 = arith.constant 0 : i32
    return %c0_i32, %c0_i32_0 : i32, i32
  }
  func.func @transform_15(%arg0: i32) -> (i32, i32, i32) {
    %c0_i32 = arith.constant 0 : i32
    %c0_i32_0 = arith.constant 0 : i32
    %c0_i32_1 = arith.constant 0 : i32
    %c0_i32_2 = arith.constant 0 : i32
    return %c0_i32, %c0_i32_0, %c0_i32_1 : i32, i32, i32
  }
  func.func @transform_16(%arg0: i32) -> (i32, i32, i32) {
    %c0_i32 = arith.constant 0 : i32
    %c0_i32_0 = arith.constant 0 : i32
    %c0_i32_1 = arith.constant 0 : i32
    %c0_i32_2 = arith.constant 0 : i32
    return %c0_i32, %c0_i32_0, %c0_i32_1 : i32, i32, i32
  }
  func.func @transform_17(%arg0: i32) -> (i32, i32) {
    %c0_i32 = arith.constant 0 : i32
    %c0_i32_0 = arith.constant 0 : i32
    %c0_i32_1 = arith.constant 0 : i32
    return %c0_i32, %c0_i32_0 : i32, i32
  }
  func.func @transform_18(%arg0: i32) -> (i32, i32) {
    %c0_i32 = arith.constant 0 : i32
    %c0_i32_0 = arith.constant 0 : i32
    %c0_i32_1 = arith.constant 0 : i32
    return %c0_i32, %c0_i32_0 : i32, i32
  }
  func.func @transform_19(%arg0: i32) -> (i32, i32) {
    %c0_i32 = arith.constant 0 : i32
    %c0_i32_0 = arith.constant 0 : i32
    %c0_i32_1 = arith.constant 0 : i32
    return %c0_i32, %c0_i32_0 : i32, i32
  }
  func.func @transform_20(%arg0: i32) -> (i32, i32) {
    %c0_i32 = arith.constant 0 : i32
    %c0_i32_0 = arith.constant 0 : i32
    %c0_i32_1 = arith.constant 0 : i32
    return %c0_i32, %c0_i32_0 : i32, i32
  }
  func.func @transform_21(%arg0: i32) -> (i32, i32, i32) {
    %c0_i32 = arith.constant 0 : i32
    %c0_i32_0 = arith.constant 0 : i32
    %c0_i32_1 = arith.constant 0 : i32
    return %arg0, %c0_i32, %c0_i32_0 : i32, i32, i32
  }
}

</mosaic_0001>

<llo_original>
// kernel: forward.1
$region0: #{forward.1}
  #allocation0 [shape = 'u32[]', space=smem, size = 0x4, offset = 0x4, fixed_abs, tag = 'smem constant byte address 0x4 - core index']
  #allocation1 [shape = 'u32[144,128]{1,0:T(1,128)}', space=vmem, size = 0x12000, scoped, tag = 'internal scratch']
  %s0 = inlined_call_operand.vmem [shape: bf16[2,27,256], index: 0, kind: input, shape index: {}]
  %s1 = inlined_call_operand.hbm [shape: bf16[16,27], index: 1, kind: input, shape index: {}]
  %s2 = inlined_call_operand.hbm [shape: f32[16,1], index: 2, kind: input, shape index: {}]
  %s3 = inlined_call_operand.hbm [shape: bf16[9,256,64], index: 3, kind: input, shape index: {}]
  %s4 = inlined_call_operand.hbm [shape: bf16[9,24,16], index: 4, kind: input, shape index: {}]
  %s5 = inlined_call_operand.hbm [shape: f32[24,1], index: 5, kind: input, shape index: {}]
  %s6 = inlined_call_operand.hbm [shape: bf16[9,64,16], index: 6, kind: input, shape index: {}]
  %s7 = inlined_call_operand.hbm [shape: bf16[9,40,24], index: 7, kind: input, shape index: {}]
  %s8 = inlined_call_operand.vmem [shape: f32[40,1], index: 8, kind: input, shape index: {}]
  %s9 = inlined_call_operand.hbm [shape: bf16[9,4,16], index: 9, kind: input, shape index: {}]
  %s10 = inlined_call_operand.vmem [shape: bf16[9,40,96], index: 10, kind: input, shape index: {}]
  %s11 = inlined_call_operand.hbm [shape: f32[1,96], index: 11, kind: input, shape index: {}]
  %s12 = inlined_call_operand.vmem [shape: bf16[9,4,4], index: 12, kind: input, shape index: {}, may-alias: {12,15}]
  %s13 = inlined_call_operand.vmem [shape: bf16[9,96,256], index: 13, kind: input, shape index: {}]
  %s14 = inlined_call_operand.hbm [shape: f32[1,256], index: 14, kind: input, shape index: {}]
  %s15 = inlined_call_operand.vmem [shape: bf16[9,4,4], index: 15, kind: input, shape index: {}, may-alias: {12,15}]
  %s16 = inlined_call_operand.vmem [shape: bf16[9,256,256], index: 16, kind: input, shape index: {}]
  %s17 = inlined_call_operand.vmem [shape: f32[1,256], index: 17, kind: input, shape index: {}]
  %s18 = inlined_call_operand.hbm [shape: bf16[21,256], index: 18, kind: input, shape index: {}]
  %s19 = inlined_call_operand.vmem [shape: f32[21,1], index: 19, kind: input, shape index: {}]
  %s20 = inlined_call_operand.hbm [shape: bf16[4,1024], index: 20, kind: input, shape index: {}]
  %s21 = inlined_call_operand.vmem [shape: f32[2,21,1024], index: 21, kind: output, shape index: {}]
  %s22 = sld [smem:[#allocation0]]
  $region165: #{forward.1} parent=0
    _
  %s24 = ssub.s32 1, %s22
  %s25 = scalar_select 0, %s24, %s22
  $region1: #{forward.1} parent=0
    #allocation2 [shape = 'u8[4096]{0}', space=vmem, size = 0x1000, scoped, tag = 'input window, operand 1, single buffered']
    #allocation3 [shape = 's32[2]{0}', space=sflag, size = 0x8, scoped, tag = 'scoped memory for forward.1']
    #allocation4 [shape = 'u8[8192]{0}', space=vmem, size = 0x2000, scoped, tag = 'input window, operand 2, single buffered']
    #allocation5 [shape = 's32[1]{0}', space=sflag, size = 0x4, scoped, tag = 'scoped memory for forward.1']
    #allocation6 [shape = 'u8[589824]{0}', space=vmem, size = 0x90000, scoped, tag = 'input window, operand 3, single buffered']
    #allocation7 [shape = 'u8[55296]{0}', space=vmem, size = 0xd800, scoped, tag = 'input window, operand 4, single buffered']
    #allocation8 [shape = 's32[1]{0}', space=sflag, size = 0x4, scoped, tag = 'scoped memory for forward.1']
    #allocation9 [shape = 'u8[12288]{0}', space=vmem, size = 0x3000, scoped, tag = 'input window, operand 5, single buffered']
    #allocation10 [shape = 'u8[147456]{0}', space=vmem, size = 0x24000, scoped, tag = 'input window, operand 6, single buffered']
    #allocation11 [shape = 's32[1]{0}', space=sflag, size = 0x4, scoped, tag = 'scoped memory for forward.1']
    #allocation12 [shape = 'u8[92160]{0}', space=vmem, size = 0x16800, scoped, tag = 'input window, operand 7, single buffered']
    #allocation13 [shape = 'u8[9216]{0}', space=vmem, size = 0x2400, scoped, tag = 'input window, operand 9, single buffered']
    #allocation14 [shape = 's32[1]{0}', space=sflag, size = 0x4, scoped, tag = 'scoped memory for forward.1']
    #allocation15 [shape = 'u8[512]{0}', space=vmem, size = 0x400, scoped, tag = 'input window, operand 11, single buffered']
    #allocation16 [shape = 'u8[1024]{0}', space=vmem, size = 0x400, scoped, tag = 'input window, operand 14, single buffered']
    #allocation17 [shape = 's32[1]{0}', space=sflag, size = 0x4, scoped, tag = 'scoped memory for forward.1']
    #allocation18 [shape = 'u8[12288]{0}', space=vmem, size = 0x3000, scoped, tag = 'input window, operand 18, single buffered']
    #allocation19 [shape = 'u8[8192]{0}', space=vmem, size = 0x2000, scoped, tag = 'input window, operand 20, single buffered']
    #allocation20 [shape = 's32[1]{0}', space=sflag, size = 0x4, scoped, tag = 'scoped memory for forward.1']
    %26 = vsyncpa [#allocation3], 0
    %27 = vsyncpa [#allocation5], 0
    %28 = vsyncpa [#allocation8], 0
    %29 = vsyncpa [#allocation11], 0
    %30 = vsyncpa [#allocation14], 0
    %31 = vsyncpa [#allocation17], 0
    %32 = vsyncpa [#allocation20], 0
    loop: start=0, step=1, limit=4
    $region2: #{forward.1} parent=1 // loop_pre_header
      _
    $region3: #{forward.1} parent=1 // loop_header
      %s34 = sphi 0, %s38
      %p35 = scmp.ge.s32.totalorder %s34, 4
      %s44 = sphi 0, %s46
      %s47 = sphi 0, %s44
      %s48 = sphi 0, %s47
      %s64 = sphi 0, %s48
      %s68 = sphi 0, %s68
      %s70 = sphi 0, %s68
      %s71 = sphi 0, %s70
      %s85 = sphi 0, %s71
      %s89 = sphi 0, %s89
      %s91 = sphi 0, %s89
      %s92 = sphi 0, %s91
      %s106 = sphi 0, %s92
      %s110 = sphi 0, %s110
      %s112 = sphi 0, %s110
      %s113 = sphi 0, %s112
      %s127 = sphi 0, %s113
      %s131 = sphi 0, %s131
      %s133 = sphi 0, %s131
      %s134 = sphi 0, %s133
      %s148 = sphi 0, %s134
      %s152 = sphi 0, %s152
      %s154 = sphi 0, %s152
      %s155 = sphi 0, %s154
      %s169 = sphi 0, %s155
      %s173 = sphi 0, %s173
      %s175 = sphi 0, %s173
      %s176 = sphi 0, %s175
      %s190 = sphi 0, %s176
      %s194 = sphi 0, %s194
      %s196 = sphi 0, %s194
      %s197 = sphi 0, %s196
      %s211 = sphi 0, %s197
      %s215 = sphi 0, %s215
      %s217 = sphi 0, %s215
      %s218 = sphi 0, %s217
      %s232 = sphi 0, %s218
      %s236 = sphi 0, %s236
      %s238 = sphi 0, %s236
      %s239 = sphi 0, %s238
      %s253 = sphi 0, %s239
      %s257 = sphi 0, %s257
      %s259 = sphi 0, %s257
      %s260 = sphi 0, %s259
      %s274 = sphi 0, %s260
      %s278 = sphi 0, %s278
      %s280 = sphi 0, %s278
      %s281 = sphi 0, %s280
      %s295 = sphi 0, %s281
      %s299 = sphi 0, %s299
      %s301 = sphi 0, %s299
      %s302 = sphi 0, %s301
      %s316 = sphi 0, %s302
      %s320 = sphi 0, %s320
      %s322 = sphi 0, %s320
      %s323 = sphi 0, %s322
      %s337 = sphi 0, %s323
      %s341 = sphi 0, %s341
      %s343 = sphi 0, %s341
      %s344 = sphi 0, %s343
      %s358 = sphi 0, %s344
      %s362 = sphi 0, %s362
      %s364 = sphi 0, %s362
      %s365 = sphi 0, %s364
      %s379 = sphi 0, %s365
      %s383 = sphi 0, %s383
      %s385 = sphi 0, %s383
      %s386 = sphi 0, %s385
      %s400 = sphi 0, %s386
      %s404 = sphi 0, %s404
      %s406 = sphi 0, %s404
      %s407 = sphi 0, %s406
      %s421 = sphi 0, %s407
      %s425 = sphi 0, %s425
      %s427 = sphi 0, %s425
      %s428 = sphi 0, %s427
      %s442 = sphi 0, %s428
      %s446 = sphi 0, %s446
      %s448 = sphi 0, %s446
      %s449 = sphi 0, %s448
      %s463 = sphi 0, %s449
      %s467 = sphi 0, %s467
      %s469 = sphi 0, %s467
      %s470 = sphi 0, %s469
      %s484 = sphi 0, %s470
      %s490 = sphi 0, %s492
      %s493 = sphi 0, %s490
      %s494 = sphi 0, %s493
      %s510 = sphi 0, %s494
    $region4: #{forward.1} parent=1 // loop_header_branch
      %37 = sbr.rel (%p35) target = $region8
    $region5: #{forward.1} parent=1 // loop_body
      %s39 = ssub.s32 %s34, 1
      %s40 = ssub.s32 %s34, 2
      %s41 = sadd.s32 %s34, 1
      %s42 = ssub.s32 %s34, %s41
      %p43 = scmp.eq.s32.totalorder %s42, 0
      %s45 = sadd.s32 %s44, 1
      %s46 = scalar_select %p43, %s44, %s45
      %p49 = pneg %p43
      %p50 = scmp.eq.s32.totalorder %s34, 1
      %p51 = por %p49, %p50
      %p52 = scmp.ne.s32.totalorder %s44, %s47
      %p53 = scmp.eq.s32.totalorder %s34, 0
      %p54 = por %p52, %p53
      %p55 = scmp.ne.s32.totalorder %s44, %s47
      %p56 = scmp.eq.s32.totalorder %s39, 1
      %p57 = por %p55, %p56
      %p58 = scmp.ne.s32.totalorder %s47, %s48
      %p59 = scmp.eq.s32.totalorder %s39, 0
      %p60 = por %p58, %p59
      %p61 = scmp.ne.s32.totalorder %s47, %s48
      %p62 = scmp.eq.s32.totalorder %s40, 1
      %p63 = por %p61, %p62
      %p65 = scmp.ne.s32.totalorder %s48, %s64
      %p66 = scmp.eq.s32.totalorder %s40, 0
      %p67 = por %p65, %p66
      %s69 = sadd.s32 %s68, 1
      %p72 = scmp.eq.s32.totalorder %s34, 1
      %p73 = scmp.ne.s32.totalorder %s68, %s70
      %p74 = scmp.eq.s32.totalorder %s34, 0
      %p75 = por %p73, %p74
      %p76 = scmp.ne.s32.totalorder %s68, %s70
      %p77 = scmp.eq.s32.totalorder %s39, 1
      %p78 = por %p76, %p77
      %p79 = scmp.ne.s32.totalorder %s70, %s71
      %p80 = scmp.eq.s32.totalorder %s39, 0
      %p81 = por %p79, %p80
      %p82 = scmp.ne.s32.totalorder %s70, %s71
      %p83 = scmp.eq.s32.totalorder %s40, 1
      %p84 = por %p82, %p83
      %p86 = scmp.ne.s32.totalorder %s71, %s85
      %p87 = scmp.eq.s32.totalorder %s40, 0
      %p88 = por %p86, %p87
      %s90 = sadd.s32 %s89, 1
      %p93 = scmp.eq.s32.totalorder %s34, 1
      %p94 = scmp.ne.s32.totalorder %s89, %s91
      %p95 = scmp.eq.s32.totalorder %s34, 0
      %p96 = por %p94, %p95
      %p97 = scmp.ne.s32.totalorder %s89, %s91
      %p98 = scmp.eq.s32.totalorder %s39, 1
      %p99 = por %p97, %p98
      %p100 = scmp.ne.s32.totalorder %s91, %s92
      %p101 = scmp.eq.s32.totalorder %s39, 0
      %p102 = por %p100, %p101
      %p103 = scmp.ne.s32.totalorder %s91, %s92
      %p104 = scmp.eq.s32.totalorder %s40, 1
      %p105 = por %p103, %p104
      %p107 = scmp.ne.s32.totalorder %s92, %s106
      %p108 = scmp.eq.s32.totalorder %s40, 0
      %p109 = por %p107, %p108
      %s111 = sadd.s32 %s110, 1
      %p114 = scmp.eq.s32.totalorder %s34, 1
      %p115 = scmp.ne.s32.totalorder %s110, %s112
      %p116 = scmp.eq.s32.totalorder %s34, 0
      %p117 = por %p115, %p116
      %p118 = scmp.ne.s32.totalorder %s110, %s112
      %p119 = scmp.eq.s32.totalorder %s39, 1
      %p120 = por %p118, %p119
      %p121 = scmp.ne.s32.totalorder %s112, %s113
      %p122 = scmp.eq.s32.totalorder %s39, 0
      %p123 = por %p121, %p122
      %p124 = scmp.ne.s32.totalorder %s112, %s113
      %p125 = scmp.eq.s32.totalorder %s40, 1
      %p126 = por %p124, %p125
      %p128 = scmp.ne.s32.totalorder %s113, %s127
      %p129 = scmp.eq.s32.totalorder %s40, 0
      %p130 = por %p128, %p129
      %s132 = sadd.s32 %s131, 1
      %p135 = scmp.eq.s32.totalorder %s34, 1
      %p136 = scmp.ne.s32.totalorder %s131, %s133
      %p137 = scmp.eq.s32.totalorder %s34, 0
      %p138 = por %p136, %p137
      %p139 = scmp.ne.s32.totalorder %s131, %s133
      %p140 = scmp.eq.s32.totalorder %s39, 1
      %p141 = por %p139, %p140
      %p142 = scmp.ne.s32.totalorder %s133, %s134
      %p143 = scmp.eq.s32.totalorder %s39, 0
      %p144 = por %p142, %p143
      %p145 = scmp.ne.s32.totalorder %s133, %s134
      %p146 = scmp.eq.s32.totalorder %s40, 1
      %p147 = por %p145, %p146
      %p149 = scmp.ne.s32.totalorder %s134, %s148
      %p150 = scmp.eq.s32.totalorder %s40, 0
      %p151 = por %p149, %p150
      %s153 = sadd.s32 %s152, 1
      %p156 = scmp.eq.s32.totalorder %s34, 1
      %p157 = scmp.ne.s32.totalorder %s152, %s154
      %p158 = scmp.eq.s32.totalorder %s34, 0
      %p159 = por %p157, %p158
      %p160 = scmp.ne.s32.totalorder %s152, %s154
      %p161 = scmp.eq.s32.totalorder %s39, 1
      %p162 = por %p160, %p161
      %p163 = scmp.ne.s32.totalorder %s154, %s155
      %p164 = scmp.eq.s32.totalorder %s39, 0
      %p165 = por %p163, %p164
      %p166 = scmp.ne.s32.totalorder %s154, %s155
      %p167 = scmp.eq.s32.totalorder %s40, 1
      %p168 = por %p166, %p167
      %p170 = scmp.ne.s32.totalorder %s155, %s169
      %p171 = scmp.eq.s32.totalorder %s40, 0
      %p172 = por %p170, %p171
      %s174 = sadd.s32 %s173, 1
      %p177 = scmp.eq.s32.totalorder %s34, 1
      %p178 = scmp.ne.s32.totalorder %s173, %s175
      %p179 = scmp.eq.s32.totalorder %s34, 0
      %p180 = por %p178, %p179
      %p181 = scmp.ne.s32.totalorder %s173, %s175
      %p182 = scmp.eq.s32.totalorder %s39, 1
      %p183 = por %p181, %p182
      %p184 = scmp.ne.s32.totalorder %s175, %s176
      %p185 = scmp.eq.s32.totalorder %s39, 0
      %p186 = por %p184, %p185
      %p187 = scmp.ne.s32.totalorder %s175, %s176
      %p188 = scmp.eq.s32.totalorder %s40, 1
      %p189 = por %p187, %p188
      %p191 = scmp.ne.s32.totalorder %s176, %s190
      %p192 = scmp.eq.s32.totalorder %s40, 0
      %p193 = por %p191, %p192
      %s195 = sadd.s32 %s194, 1
      %p198 = scmp.eq.s32.totalorder %s34, 1
      %p199 = scmp.ne.s32.totalorder %s194, %s196
      %p200 = scmp.eq.s32.totalorder %s34, 0
      %p201 = por %p199, %p200
      %p202 = scmp.ne.s32.totalorder %s194, %s196
      %p203 = scmp.eq.s32.totalorder %s39, 1
      %p204 = por %p202, %p203
      %p205 = scmp.ne.s32.totalorder %s196, %s197
      %p206 = scmp.eq.s32.totalorder %s39, 0
      %p207 = por %p205, %p206
      %p208 = scmp.ne.s32.totalorder %s196, %s197
      %p209 = scmp.eq.s32.totalorder %s40, 1
      %p210 = por %p208, %p209
      %p212 = scmp.ne.s32.totalorder %s197, %s211
      %p213 = scmp.eq.s32.totalorder %s40, 0
      %p214 = por %p212, %p213
      %s216 = sadd.s32 %s215, 1
      %p219 = scmp.eq.s32.totalorder %s34, 1
      %p220 = scmp.ne.s32.totalorder %s215, %s217
      %p221 = scmp.eq.s32.totalorder %s34, 0
      %p222 = por %p220, %p221
      %p223 = scmp.ne.s32.totalorder %s215, %s217
      %p224 = scmp.eq.s32.totalorder %s39, 1
      %p225 = por %p223, %p224
      %p226 = scmp.ne.s32.totalorder %s217, %s218
      %p227 = scmp.eq.s32.totalorder %s39, 0
      %p228 = por %p226, %p227
      %p229 = scmp.ne.s32.totalorder %s217, %s218
      %p230 = scmp.eq.s32.totalorder %s40, 1
      %p231 = por %p229, %p230
      %p233 = scmp.ne.s32.totalorder %s218, %s232
      %p234 = scmp.eq.s32.totalorder %s40, 0
      %p235 = por %p233, %p234
      %s237 = sadd.s32 %s236, 1
      %p240 = scmp.eq.s32.totalorder %s34, 1
      %p241 = scmp.ne.s32.totalorder %s236, %s238
      %p242 = scmp.eq.s32.totalorder %s34, 0
      %p243 = por %p241, %p242
      %p244 = scmp.ne.s32.totalorder %s236, %s238
      %p245 = scmp.eq.s32.totalorder %s39, 1
      %p246 = por %p244, %p245
      %p247 = scmp.ne.s32.totalorder %s238, %s239
      %p248 = scmp.eq.s32.totalorder %s39, 0
      %p249 = por %p247, %p248
      %p250 = scmp.ne.s32.totalorder %s238, %s239
      %p251 = scmp.eq.s32.totalorder %s40, 1
      %p252 = por %p250, %p251
      %p254 = scmp.ne.s32.totalorder %s239, %s253
      %p255 = scmp.eq.s32.totalorder %s40, 0
      %p256 = por %p254, %p255
      %s258 = sadd.s32 %s257, 1
      %p261 = scmp.eq.s32.totalorder %s34, 1
      %p262 = scmp.ne.s32.totalorder %s257, %s259
      %p263 = scmp.eq.s32.totalorder %s34, 0
      %p264 = por %p262, %p263
      %p265 = scmp.ne.s32.totalorder %s257, %s259
      %p266 = scmp.eq.s32.totalorder %s39, 1
      %p267 = por %p265, %p266
      %p268 = scmp.ne.s32.totalorder %s259, %s260
      %p269 = scmp.eq.s32.totalorder %s39, 0
      %p270 = por %p268, %p269
      %p271 = scmp.ne.s32.totalorder %s259, %s260
      %p272 = scmp.eq.s32.totalorder %s40, 1
      %p273 = por %p271, %p272
      %p275 = scmp.ne.s32.totalorder %s260, %s274
      %p276 = scmp.eq.s32.totalorder %s40, 0
      %p277 = por %p275, %p276
      %s279 = sadd.s32 %s278, 1
      %p282 = scmp.eq.s32.totalorder %s34, 1
      %p283 = scmp.ne.s32.totalorder %s278, %s280
      %p284 = scmp.eq.s32.totalorder %s34, 0
      %p285 = por %p283, %p284
      %p286 = scmp.ne.s32.totalorder %s278, %s280
      %p287 = scmp.eq.s32.totalorder %s39, 1
      %p288 = por %p286, %p287
      %p289 = scmp.ne.s32.totalorder %s280, %s281
      %p290 = scmp.eq.s32.totalorder %s39, 0
      %p291 = por %p289, %p290
      %p292 = scmp.ne.s32.totalorder %s280, %s281
      %p293 = scmp.eq.s32.totalorder %s40, 1
      %p294 = por %p292, %p293
      %p296 = scmp.ne.s32.totalorder %s281, %s295
      %p297 = scmp.eq.s32.totalorder %s40, 0
      %p298 = por %p296, %p297
      %s300 = sadd.s32 %s299, 1
      %p303 = scmp.eq.s32.totalorder %s34, 1
      %p304 = scmp.ne.s32.totalorder %s299, %s301
      %p305 = scmp.eq.s32.totalorder %s34, 0
      %p306 = por %p304, %p305
      %p307 = scmp.ne.s32.totalorder %s299, %s301
      %p308 = scmp.eq.s32.totalorder %s39, 1
      %p309 = por %p307, %p308
      %p310 = scmp.ne.s32.totalorder %s301, %s302
      %p311 = scmp.eq.s32.totalorder %s39, 0
      %p312 = por %p310, %p311
      %p313 = scmp.ne.s32.totalorder %s301, %s302
      %p314 = scmp.eq.s32.totalorder %s40, 1
      %p315 = por %p313, %p314
      %p317 = scmp.ne.s32.totalorder %s302, %s316
      %p318 = scmp.eq.s32.totalorder %s40, 0
      %p319 = por %p317, %p318
      %s321 = sadd.s32 %s320, 1
      %p324 = scmp.eq.s32.totalorder %s34, 1
      %p325 = scmp.ne.s32.totalorder %s320, %s322
      %p326 = scmp.eq.s32.totalorder %s34, 0
      %p327 = por %p325, %p326
      %p328 = scmp.ne.s32.totalorder %s320, %s322
      %p329 = scmp.eq.s32.totalorder %s39, 1
      %p330 = por %p328, %p329
      %p331 = scmp.ne.s32.totalorder %s322, %s323
      %p332 = scmp.eq.s32.totalorder %s39, 0
      %p333 = por %p331, %p332
      %p334 = scmp.ne.s32.totalorder %s322, %s323
      %p335 = scmp.eq.s32.totalorder %s40, 1
      %p336 = por %p334, %p335
      %p338 = scmp.ne.s32.totalorder %s323, %s337
      %p339 = scmp.eq.s32.totalorder %s40, 0
      %p340 = por %p338, %p339
      %s342 = sadd.s32 %s341, 1
      %p345 = scmp.eq.s32.totalorder %s34, 1
      %p346 = scmp.ne.s32.totalorder %s341, %s343
      %p347 = scmp.eq.s32.totalorder %s34, 0
      %p348 = por %p346, %p347
      %p349 = scmp.ne.s32.totalorder %s341, %s343
      %p350 = scmp.eq.s32.totalorder %s39, 1
      %p351 = por %p349, %p350
      %p352 = scmp.ne.s32.totalorder %s343, %s344
      %p353 = scmp.eq.s32.totalorder %s39, 0
      %p354 = por %p352, %p353
      %p355 = scmp.ne.s32.totalorder %s343, %s344
      %p356 = scmp.eq.s32.totalorder %s40, 1
      %p357 = por %p355, %p356
      %p359 = scmp.ne.s32.totalorder %s344, %s358
      %p360 = scmp.eq.s32.totalorder %s40, 0
      %p361 = por %p359, %p360
      %s363 = sadd.s32 %s362, 1
      %p366 = scmp.eq.s32.totalorder %s34, 1
      %p367 = scmp.ne.s32.totalorder %s362, %s364
      %p368 = scmp.eq.s32.totalorder %s34, 0
      %p369 = por %p367, %p368
      %p370 = scmp.ne.s32.totalorder %s362, %s364
      %p371 = scmp.eq.s32.totalorder %s39, 1
      %p372 = por %p370, %p371
      %p373 = scmp.ne.s32.totalorder %s364, %s365
      %p374 = scmp.eq.s32.totalorder %s39, 0
      %p375 = por %p373, %p374
      %p376 = scmp.ne.s32.totalorder %s364, %s365
      %p377 = scmp.eq.s32.totalorder %s40, 1
      %p378 = por %p376, %p377
      %p380 = scmp.ne.s32.totalorder %s365, %s379
      %p381 = scmp.eq.s32.totalorder %s40, 0
      %p382 = por %p380, %p381
      %s384 = sadd.s32 %s383, 1
      %p387 = scmp.eq.s32.totalorder %s34, 1
      %p388 = scmp.ne.s32.totalorder %s383, %s385
      %p389 = scmp.eq.s32.totalorder %s34, 0
      %p390 = por %p388, %p389
      %p391 = scmp.ne.s32.totalorder %s383, %s385
      %p392 = scmp.eq.s32.totalorder %s39, 1
      %p393 = por %p391, %p392
      %p394 = scmp.ne.s32.totalorder %s385, %s386
      %p395 = scmp.eq.s32.totalorder %s39, 0
      %p396 = por %p394, %p395
      %p397 = scmp.ne.s32.totalorder %s385, %s386
      %p398 = scmp.eq.s32.totalorder %s40, 1
      %p399 = por %p397, %p398
      %p401 = scmp.ne.s32.totalorder %s386, %s400
      %p402 = scmp.eq.s32.totalorder %s40, 0
      %p403 = por %p401, %p402
      %s405 = sadd.s32 %s404, 1
      %p408 = scmp.eq.s32.totalorder %s34, 1
      %p409 = scmp.ne.s32.totalorder %s404, %s406
      %p410 = scmp.eq.s32.totalorder %s34, 0
      %p411 = por %p409, %p410
      %p412 = scmp.ne.s32.totalorder %s404, %s406
      %p413 = scmp.eq.s32.totalorder %s39, 1
      %p414 = por %p412, %p413
      %p415 = scmp.ne.s32.totalorder %s406, %s407
      %p416 = scmp.eq.s32.totalorder %s39, 0
      %p417 = por %p415, %p416
      %p418 = scmp.ne.s32.totalorder %s406, %s407
      %p419 = scmp.eq.s32.totalorder %s40, 1
      %p420 = por %p418, %p419
      %p422 = scmp.ne.s32.totalorder %s407, %s421
      %p423 = scmp.eq.s32.totalorder %s40, 0
      %p424 = por %p422, %p423
      %s426 = sadd.s32 %s425, 1
      %p429 = scmp.eq.s32.totalorder %s34, 1
      %p430 = scmp.ne.s32.totalorder %s425, %s427
      %p431 = scmp.eq.s32.totalorder %s34, 0
      %p432 = por %p430, %p431
      %p433 = scmp.ne.s32.totalorder %s425, %s427
      %p434 = scmp.eq.s32.totalorder %s39, 1
      %p435 = por %p433, %p434
      %p436 = scmp.ne.s32.totalorder %s427, %s428
      %p437 = scmp.eq.s32.totalorder %s39, 0
      %p438 = por %p436, %p437
      %p439 = scmp.ne.s32.totalorder %s427, %s428
      %p440 = scmp.eq.s32.totalorder %s40, 1
      %p441 = por %p439, %p440
      %p443 = scmp.ne.s32.totalorder %s428, %s442
      %p444 = scmp.eq.s32.totalorder %s40, 0
      %p445 = por %p443, %p444
      %s447 = sadd.s32 %s446, 1
      %p450 = scmp.eq.s32.totalorder %s34, 1
      %p451 = scmp.ne.s32.totalorder %s446, %s448
      %p452 = scmp.eq.s32.totalorder %s34, 0
      %p453 = por %p451, %p452
      %p454 = scmp.ne.s32.totalorder %s446, %s448
      %p455 = scmp.eq.s32.totalorder %s39, 1
      %p456 = por %p454, %p455
      %p457 = scmp.ne.s32.totalorder %s448, %s449
      %p458 = scmp.eq.s32.totalorder %s39, 0
      %p459 = por %p457, %p458
      %p460 = scmp.ne.s32.totalorder %s448, %s449
      %p461 = scmp.eq.s32.totalorder %s40, 1
      %p462 = por %p460, %p461
      %p464 = scmp.ne.s32.totalorder %s449, %s463
      %p465 = scmp.eq.s32.totalorder %s40, 0
      %p466 = por %p464, %p465
      %s468 = sadd.s32 %s467, 1
      %p471 = scmp.eq.s32.totalorder %s34, 1
      %p472 = scmp.ne.s32.totalorder %s467, %s469
      %p473 = scmp.eq.s32.totalorder %s34, 0
      %p474 = por %p472, %p473
      %p475 = scmp.ne.s32.totalorder %s467, %s469
      %p476 = scmp.eq.s32.totalorder %s39, 1
      %p477 = por %p475, %p476
      %p478 = scmp.ne.s32.totalorder %s469, %s470
      %p479 = scmp.eq.s32.totalorder %s39, 0
      %p480 = por %p478, %p479
      %p481 = scmp.ne.s32.totalorder %s469, %s470
      %p482 = scmp.eq.s32.totalorder %s40, 1
      %p483 = por %p481, %p482
      %p485 = scmp.ne.s32.totalorder %s470, %s484
      %p486 = scmp.eq.s32.totalorder %s40, 0
      %p487 = por %p485, %p486
      %s488 = ssub.s32 %s34, %s41
      %p489 = scmp.eq.s32.totalorder %s488, 0
      %s491 = sadd.s32 %s490, 1
      %s492 = scalar_select %p489, %s490, %s491
      %p495 = pneg %p489
      %p496 = scmp.eq.s32.totalorder %s34, 1
      %p497 = por %p495, %p496
      %p498 = scmp.ne.s32.totalorder %s490, %s493
      %p499 = scmp.eq.s32.totalorder %s34, 0
      %p500 = por %p498, %p499
      %p501 = scmp.ne.s32.totalorder %s490, %s493
      %p502 = scmp.eq.s32.totalorder %s39, 1
      %p503 = por %p501, %p502
      %p504 = scmp.ne.s32.totalorder %s493, %s494
      %p505 = scmp.eq.s32.totalorder %s39, 0
      %p506 = por %p504, %p505
      %p507 = scmp.ne.s32.totalorder %s493, %s494
      %p508 = scmp.eq.s32.totalorder %s40, 1
      %p509 = por %p507, %p508
      %p511 = scmp.ne.s32.totalorder %s494, %s510
      %p512 = scmp.eq.s32.totalorder %s40, 0
      %p513 = por %p511, %p512
      %p514 = scmp.le.s32.totalorder 1, %s34
      %p515 = scmp.lt.s32.totalorder %s34, 3
      %p516 = pnand %p514, %p515
      %p517 = pneg %p516
      // Predicated region
      $region9: #{forward.1} parent=5 // pred_check
        _
      $region10: #{forward.1} parent=5 // pred_check_branch
        %519 = sbr.rel (%p516) target = $region12
      $region11: #{forward.1} parent=5 // pred_region
        %s520 = ssub.s32 %s34, 1
        // Predicated region
        $region13: #{forward.1} parent=11 // pred_check
          %p521 = pneg %p81
        $region14: #{forward.1} parent=11 // pred_check_branch
          %523 = sbr.rel (%p521) target = $region16
        $region15: #{forward.1} parent=11 // pred_region
          %s525 = ssub.s32 128, 128
          %526 = vsyncadd [#allocation3], %s525
          %s527 = sshll.u32 [#allocation2], 4
          %s528 = int_to_ptr.vmem [resolvable:$true] %s527
          %533 = dma.hbm_to_vmem [thread:$0]  %s1, 128, %s528, [#allocation3], 64, 64, 4
        $region16: #{forward.1} parent=11 // pred_fallthru
          _
        // Predicated region
        $region17: #{forward.1} parent=11 // pred_check
          %p534 = pneg %p102
        $region18: #{forward.1} parent=11 // pred_check_branch
          %536 = sbr.rel (%p534) target = $region20
        $region19: #{forward.1} parent=11 // pred_region
          %s538 = ssub.s32 256, 256
          %539 = vsyncadd [#allocation5], %s538
          %s540 = sshll.u32 [#allocation4], 4
          %s541 = int_to_ptr.vmem [resolvable:$true] %s540
          %546 = dma.hbm_to_vmem [thread:$0]  %s2, 256, %s541, [#allocation5], 128, 128, 8
        $region20: #{forward.1} parent=11 // pred_fallthru
          _
        // Predicated region
        $region21: #{forward.1} parent=11 // pred_check
          %p547 = pneg %p123
        $region22: #{forward.1} parent=11 // pred_check_branch
          %549 = sbr.rel (%p547) target = $region24
        $region23: #{forward.1} parent=11 // pred_region
          %s551 = ssub.s32 18432, 18432
          %552 = vsyncadd [#allocation5], %s551
          %s553 = sshll.u32 [#allocation6], 4
          %s554 = int_to_ptr.vmem [resolvable:$true] %s553
          %559 = dma.hbm_to_vmem [thread:$0]  %s3, 18432, %s554, [#allocation5], 64, 64, 4
        $region24: #{forward.1} parent=11 // pred_fallthru
          _
        // Predicated region
        $region25: #{forward.1} parent=11 // pred_check
          %p560 = pneg %p144
        $region26: #{forward.1} parent=11 // pred_check_branch
          %562 = sbr.rel (%p560) target = $region28
        $region27: #{forward.1} parent=11 // pred_region
          %s564 = ssub.s32 1728, 1728
          %565 = vsyncadd [#allocation8], %s564
          %s566 = sshll.u32 [#allocation7], 4
          %s567 = int_to_ptr.vmem [resolvable:$true] %s566
          %572 = dma.hbm_to_vmem [thread:$0]  %s4, 1728, %s567, [#allocation8], 64, 64, 4
        $region28: #{forward.1} parent=11 // pred_fallthru
          _
        // Predicated region
        $region29: #{forward.1} parent=11 // pred_check
          %p573 = pneg %p165
        $region30: #{forward.1} parent=11 // pred_check_branch
          %575 = sbr.rel (%p573) target = $region32
        $region31: #{forward.1} parent=11 // pred_region
          %s577 = ssub.s32 384, 384
          %578 = vsyncadd [#allocation8], %s577
          %s579 = sshll.u32 [#allocation9], 4
          %s580 = int_to_ptr.vmem [resolvable:$true] %s579
          %585 = dma.hbm_to_vmem [thread:$0]  %s5, 384, %s580, [#allocation8], 128, 128, 8
        $region32: #{forward.1} parent=11 // pred_fallthru
          _
        // Predicated region
        $region33: #{forward.1} parent=11 // pred_check
          %p586 = pneg %p186
        $region34: #{forward.1} parent=11 // pred_check_branch
          %588 = sbr.rel (%p586) target = $region36
        $region35: #{forward.1} parent=11 // pred_region
          %s590 = ssub.s32 4608, 4608
          %591 = vsyncadd [#allocation11], %s590
          %s592 = sshll.u32 [#allocation10], 4
          %s593 = int_to_ptr.vmem [resolvable:$true] %s592
          %598 = dma.hbm_to_vmem [thread:$0]  %s6, 4608, %s593, [#allocation11], 64, 64, 4
        $region36: #{forward.1} parent=11 // pred_fallthru
          _
        // Predicated region
        $region37: #{forward.1} parent=11 // pred_check
          %p599 = pneg %p207
        $region38: #{forward.1} parent=11 // pred_check_branch
          %601 = sbr.rel (%p599) target = $region40
        $region39: #{forward.1} parent=11 // pred_region
          %s603 = ssub.s32 2880, 2880
          %604 = vsyncadd [#allocation11], %s603
          %s605 = sshll.u32 [#allocation12], 4
          %s606 = int_to_ptr.vmem [resolvable:$true] %s605
          %611 = dma.hbm_to_vmem [thread:$0]  %s7, 2880, %s606, [#allocation11], 64, 64, 4
        $region40: #{forward.1} parent=11 // pred_fallthru
          _
        // Predicated region
        $region41: #{forward.1} parent=11 // pred_check
          %p612 = pneg %p228
        $region42: #{forward.1} parent=11 // pred_check_branch
          %614 = sbr.rel (%p612) target = $region44
        $region43: #{forward.1} parent=11 // pred_region
          _
        $region44: #{forward.1} parent=11 // pred_fallthru
          _
        // Predicated region
        $region45: #{forward.1} parent=11 // pred_check
          %p615 = pneg %p249
        $region46: #{forward.1} parent=11 // pred_check_branch
          %617 = sbr.rel (%p615) target = $region48
        $region47: #{forward.1} parent=11 // pred_region
          %s619 = ssub.s32 288, 288
          %620 = vsyncadd [#allocation14], %s619
          %s621 = sshll.u32 [#allocation13], 4
          %s622 = int_to_ptr.vmem [resolvable:$true] %s621
          %627 = dma.hbm_to_vmem [thread:$0]  %s9, 288, %s622, [#allocation14], 32, 32, 2
        $region48: #{forward.1} parent=11 // pred_fallthru
          _
        // Predicated region
        $region49: #{forward.1} parent=11 // pred_check
          %p628 = pneg %p270
        $region50: #{forward.1} parent=11 // pred_check_branch
          %630 = sbr.rel (%p628) target = $region52
        $region51: #{forward.1} parent=11 // pred_region
          _
        $region52: #{forward.1} parent=11 // pred_fallthru
          _
        // Predicated region
        $region53: #{forward.1} parent=11 // pred_check
          %p631 = pneg %p291
        $region54: #{forward.1} parent=11 // pred_check_branch
          %633 = sbr.rel (%p631) target = $region56
        $region55: #{forward.1} parent=11 // pred_region
          %s635 = ssub.s32 16, 16
          %636 = vsyncadd [#allocation14], %s635
          %s638 = sshll.u32 [#allocation15], 4
          %s639 = int_to_ptr.vmem [resolvable:$true] %s638
          %641 = dma.hbm_to_vmem [thread:$0]  %s11, 16, %s639, [#allocation14]
        $region56: #{forward.1} parent=11 // pred_fallthru
          _
        // Predicated region
        $region57: #{forward.1} parent=11 // pred_check
          %p642 = pneg %p312
        $region58: #{forward.1} parent=11 // pred_check_branch
          %644 = sbr.rel (%p642) target = $region60
        $region59: #{forward.1} parent=11 // pred_region
          _
        $region60: #{forward.1} parent=11 // pred_fallthru
          _
        // Predicated region
        $region61: #{forward.1} parent=11 // pred_check
          %p645 = pneg %p333
        $region62: #{forward.1} parent=11 // pred_check_branch
          %647 = sbr.rel (%p645) target = $region64
        $region63: #{forward.1} parent=11 // pred_region
          _
        $region64: #{forward.1} parent=11 // pred_fallthru
          _
        // Predicated region
        $region65: #{forward.1} parent=11 // pred_check
          %p648 = pneg %p354
        $region66: #{forward.1} parent=11 // pred_check_branch
          %650 = sbr.rel (%p648) target = $region68
        $region67: #{forward.1} parent=11 // pred_region
          %s652 = ssub.s32 32, 32
          %653 = vsyncadd [#allocation17], %s652
          %s655 = sshll.u32 [#allocation16], 4
          %s656 = int_to_ptr.vmem [resolvable:$true] %s655
          %658 = dma.hbm_to_vmem [thread:$0]  %s14, 32, %s656, [#allocation17]
        $region68: #{forward.1} parent=11 // pred_fallthru
          _
        // Predicated region
        $region69: #{forward.1} parent=11 // pred_check
          %p659 = pneg %p375
        $region70: #{forward.1} parent=11 // pred_check_branch
          %661 = sbr.rel (%p659) target = $region72
        $region71: #{forward.1} parent=11 // pred_region
          _
        $region72: #{forward.1} parent=11 // pred_fallthru
          _
        // Predicated region
        $region73: #{forward.1} parent=11 // pred_check
          %p662 = pneg %p396
        $region74: #{forward.1} parent=11 // pred_check_branch
          %664 = sbr.rel (%p662) target = $region76
        $region75: #{forward.1} parent=11 // pred_region
          _
        $region76: #{forward.1} parent=11 // pred_fallthru
          _
        // Predicated region
        $region77: #{forward.1} parent=11 // pred_check
          %p665 = pneg %p417
        $region78: #{forward.1} parent=11 // pred_check_branch
          %667 = sbr.rel (%p665) target = $region80
        $region79: #{forward.1} parent=11 // pred_region
          _
        $region80: #{forward.1} parent=11 // pred_fallthru
          _
        // Predicated region
        $region81: #{forward.1} parent=11 // pred_check
          %p668 = pneg %p438
        $region82: #{forward.1} parent=11 // pred_check_branch
          %670 = sbr.rel (%p668) target = $region84
        $region83: #{forward.1} parent=11 // pred_region
          %s672 = ssub.s32 384, 384
          %673 = vsyncadd [#allocation17], %s672
          %s674 = sshll.u32 [#allocation18], 4
          %s675 = int_to_ptr.vmem [resolvable:$true] %s674
          %680 = dma.hbm_to_vmem [thread:$0]  %s18, 384, %s675, [#allocation17], 128, 128, 8
        $region84: #{forward.1} parent=11 // pred_fallthru
          _
        // Predicated region
        $region85: #{forward.1} parent=11 // pred_check
          %p681 = pneg %p459
        $region86: #{forward.1} parent=11 // pred_check_branch
          %683 = sbr.rel (%p681) target = $region88
        $region87: #{forward.1} parent=11 // pred_region
          _
        $region88: #{forward.1} parent=11 // pred_fallthru
          _
        // Predicated region
        $region89: #{forward.1} parent=11 // pred_check
          %p684 = pneg %p480
        $region90: #{forward.1} parent=11 // pred_check_branch
          %686 = sbr.rel (%p684) target = $region92
        $region91: #{forward.1} parent=11 // pred_region
          %s688 = ssub.s32 256, 256
          %689 = vsyncadd [#allocation20], %s688
          %s691 = sshll.u32 [#allocation19], 4
          %s692 = int_to_ptr.vmem [resolvable:$true] %s691
          %694 = dma.hbm_to_vmem [thread:$0]  %s20, 256, %s692, [#allocation20]
        $region92: #{forward.1} parent=11 // pred_fallthru
          _
      $region12: #{forward.1} parent=5 // pred_fallthru
        _
      %p695 = scmp.lt.s32.totalorder %s34, 2
      // Predicated region
      $region93: #{forward.1} parent=5 // pred_check
        %p696 = pneg %p695
      $region94: #{forward.1} parent=5 // pred_check_branch
        %698 = sbr.rel (%p696) target = $region96
      $region95: #{forward.1} parent=5 // pred_region
        // Predicated region
        $region97: #{forward.1} parent=95 // pred_check
          %p699 = pneg %p54
        $region98: #{forward.1} parent=95 // pred_check_branch
          %701 = sbr.rel (%p699) target = $region100
        $region99: #{forward.1} parent=95 // pred_region
          %p702 = scmp.lt.s32.totalorder %s34, 1
          %s703 = scalar_select %p702, %s34, 1
          %s704 = smul.addr %s703, 8
          %s705 = smul.addr %s704, 4
          %s706 = scalar_lea.vmem %s0, %s705
        $region100: #{forward.1} parent=95 // pred_fallthru
          _
      $region96: #{forward.1} parent=5 // pred_fallthru
        _
      %p707 = scmp.le.s32.totalorder 1, %s34
      %p708 = scmp.lt.s32.totalorder %s34, 3
      %p709 = pnand %p707, %p708
      %p710 = pneg %p709
      // Predicated region
      $region101: #{forward.1} parent=5 // pred_check
        _
      $region102: #{forward.1} parent=5 // pred_check_branch
        %712 = sbr.rel (%p709) target = $region104
      $region103: #{forward.1} parent=5 // pred_region
        %s713 = ssub.s32 %s34, 1
        // Predicated region
        $region105: #{forward.1} parent=103 // pred_check
          %p714 = pneg %p81
        $region106: #{forward.1} parent=103 // pred_check_branch
          %716 = sbr.rel (%p714) target = $region108
        $region107: #{forward.1} parent=103 // pred_region
          %717 = dma.done [#allocation3], 128
        $region108: #{forward.1} parent=103 // pred_fallthru
          _
        // Predicated region
        $region109: #{forward.1} parent=103 // pred_check
          %p718 = pneg %p102
        $region110: #{forward.1} parent=103 // pred_check_branch
          %720 = sbr.rel (%p718) target = $region112
        $region111: #{forward.1} parent=103 // pred_region
          %721 = dma.done [#allocation5], 256
        $region112: #{forward.1} parent=103 // pred_fallthru
          _
        // Predicated region
        $region113: #{forward.1} parent=103 // pred_check
          %p722 = pneg %p123
        $region114: #{forward.1} parent=103 // pred_check_branch
          %724 = sbr.rel (%p722) target = $region116
        $region115: #{forward.1} parent=103 // pred_region
          %725 = dma.done [#allocation5], 18432
        $region116: #{forward.1} parent=103 // pred_fallthru
          _
        // Predicated region
        $region117: #{forward.1} parent=103 // pred_check
          %p726 = pneg %p144
        $region118: #{forward.1} parent=103 // pred_check_branch
          %728 = sbr.rel (%p726) target = $region120
        $region119: #{forward.1} parent=103 // pred_region
          %729 = dma.done [#allocation8], 1728
        $region120: #{forward.1} parent=103 // pred_fallthru
          _
        // Predicated region
        $region121: #{forward.1} parent=103 // pred_check
          %p730 = pneg %p165
        $region122: #{forward.1} parent=103 // pred_check_branch
          %732 = sbr.rel (%p730) target = $region124
        $region123: #{forward.1} parent=103 // pred_region
          %733 = dma.done [#allocation8], 384
        $region124: #{forward.1} parent=103 // pred_fallthru
          _
        // Predicated region
        $region125: #{forward.1} parent=103 // pred_check
          %p734 = pneg %p186
        $region126: #{forward.1} parent=103 // pred_check_branch
          %736 = sbr.rel (%p734) target = $region128
        $region127: #{forward.1} parent=103 // pred_region
          %737 = dma.done [#allocation11], 4608
        $region128: #{forward.1} parent=103 // pred_fallthru
          _
        // Predicated region
        $region129: #{forward.1} parent=103 // pred_check
          %p738 = pneg %p207
        $region130: #{forward.1} parent=103 // pred_check_branch
          %740 = sbr.rel (%p738) target = $region132
        $region131: #{forward.1} parent=103 // pred_region
          %741 = dma.done [#allocation11], 2880
        $region132: #{forward.1} parent=103 // pred_fallthru
          _
        // Predicated region
        $region133: #{forward.1} parent=103 // pred_check
          %p742 = pneg %p249
        $region134: #{forward.1} parent=103 // pred_check_branch
          %744 = sbr.rel (%p742) target = $region136
        $region135: #{forward.1} parent=103 // pred_region
          %745 = dma.done [#allocation14], 288
        $region136: #{forward.1} parent=103 // pred_fallthru
          _
        // Predicated region
        $region137: #{forward.1} parent=103 // pred_check
          %p746 = pneg %p291
        $region138: #{forward.1} parent=103 // pred_check_branch
          %748 = sbr.rel (%p746) target = $region140
        $region139: #{forward.1} parent=103 // pred_region
          %749 = dma.done [#allocation14], 16
        $region140: #{forward.1} parent=103 // pred_fallthru
          _
        // Predicated region
        $region141: #{forward.1} parent=103 // pred_check
          %p750 = pneg %p354
        $region142: #{forward.1} parent=103 // pred_check_branch
          %752 = sbr.rel (%p750) target = $region144
        $region143: #{forward.1} parent=103 // pred_region
          %753 = dma.done [#allocation17], 32
        $region144: #{forward.1} parent=103 // pred_fallthru
          _
        // Predicated region
        $region145: #{forward.1} parent=103 // pred_check
          %p754 = pneg %p438
        $region146: #{forward.1} parent=103 // pred_check_branch
          %756 = sbr.rel (%p754) target = $region148
        $region147: #{forward.1} parent=103 // pred_region
          %757 = dma.done [#allocation17], 384
        $region148: #{forward.1} parent=103 // pred_fallthru
          _
        // Predicated region
        $region149: #{forward.1} parent=103 // pred_check
          %p758 = pneg %p480
        $region150: #{forward.1} parent=103 // pred_check_branch
          %760 = sbr.rel (%p758) target = $region152
        $region151: #{forward.1} parent=103 // pred_region
          %761 = dma.done [#allocation20], 256
        $region152: #{forward.1} parent=103 // pred_fallthru
          _
        %p762 = scmp.lt.s32.totalorder %s39, 1
        %s763 = scalar_select %p762, %s39, 1
        %s764 = smul.addr %s763, 8
        %s765 = smul.addr %s764, 4
        %s766 = scalar_lea.vmem %s0, %s765
        %p767 = pneg %p60
        %p768 = pneg %p57
        %p769 = pneg %p81
        %p770 = pneg %p78
        %p771 = pneg %p102
        %p772 = pneg %p99
        %p773 = pneg %p123
        %p774 = pneg %p120
        %p775 = pneg %p144
        %p776 = pneg %p141
        %p777 = pneg %p165
        %p778 = pneg %p162
        %p779 = pneg %p186
        %p780 = pneg %p183
        %p781 = pneg %p207
        %p782 = pneg %p204
        %p783 = pneg %p228
        %p784 = pneg %p225
        %p785 = pneg %p249
        %p786 = pneg %p246
        %p787 = pneg %p270
        %p788 = pneg %p267
        %p789 = pneg %p291
        %p790 = pneg %p288
        %p791 = pneg %p312
        %p792 = pneg %p309
        %p793 = pneg %p333
        %p794 = pneg %p330
        %p795 = pneg %p354
        %p796 = pneg %p351
        %p797 = pneg %p375
        %p798 = pneg %p372
        %p799 = pneg %p396
        %p800 = pneg %p393
        %p801 = pneg %p417
        %p802 = pneg %p414
        %p803 = pneg %p438
        %p804 = pneg %p435
        %p805 = pneg %p459
        %p806 = pneg %p456
        %p807 = pneg %p480
        %p808 = pneg %p477
        %p809 = pneg %p506
        %p810 = pneg %p503
        %p811 = scmp.lt.s32.totalorder %s39, 1
        %s812 = scalar_select %p811, %s39, 1
        %s813 = smul.addr %s812, 24
        %s814 = smul.addr %s813, 8
        %s815 = scalar_lea.vmem %s21, %s814
        %p816 = scmp.lt.s32.totalorder %s39, 1
        %s817 = scalar_select %p816, %s39, 1
        %s818 = smul.addr %s817, 8
        %s819 = smul.addr %s818, 4
        %s820 = scalar_lea.vmem %s0, %s819
        %p821 = scmp.lt.s32.totalorder %s39, 1
        %s822 = scalar_select %p821, %s39, 1
        %s823 = smul.addr %s822, 24
        %s824 = smul.addr %s823, 8
        %s825 = scalar_lea.vmem %s21, %s824
        %v827 = vld [vmem:[#allocation2] sm:$0xf]
        %v828 = vld [vmem:[#allocation2 + $0x4] sm:$0xf]
        %v829 = vld [vmem:[%s820] sm:$0xff]
        %v830 = vld [vmem:[%s820 + $0x8] sm:$0xff]
        %v831 = vld [vmem:[%s820 + $0x10] sm:$0xff]
        %v832 = vld [vmem:[%s820 + $0x18] sm:$0x33]
        %v833 = vld [vmem:[#allocation4] sm:$0xff]
        %v834 = vld [vmem:[#allocation4 + $0x8] sm:$0xff]
        %836 = vset.pattern.permute.xlu0 0
        %837 = vperm.xlu0 %836, %v833
        %v838 = vpop.permute.xlu0 %837
        %841 = vset.pattern.permute.xlu0 0
        %842 = vperm.xlu0 %841, %v834
        %v843 = vpop.permute.xlu0 %842
        %v847 = vunpack.c.l.b16 %v827
        %v848 = vunpack.c.l.b16 %v828
        %v849 = vpack.c.b16 %v848, %v847
        %v854 = vunpack.c.l.b16 %v829
        %v855 = vunpack.c.h.b16 %v829
        %v856 = vunpack.c.l.b16 %v830
        %v857 = vunpack.c.h.b16 %v830
        %v858 = vunpack.c.l.b16 %v831
        %v859 = vunpack.c.h.b16 %v831
        %v860 = vunpack.c.l.b16 %v832
        %v861 = vunpack.c.h.b16 %v832
        %v862 = vpack.c.b16 %v856, %v854
        %v863 = vpack.c.b16 %v857, %v855
        %v864 = vpack.c.b16 %v860, %v858
        %v865 = vpack.c.b16 %v861, %v859
        %vm868 = vcmask 220160
        %v870 = vsel %vm868, %v849, 0
        %vm872 = vcmask 1044480
        %vm873 = vcmask 1045504
        %v874 = vsel %vm872, 4294967295, 65535
        %v875 = vsel %vm873, %v874, 0
        %v877 = vand.u32 %v864, %v875
        %v880 = vand.u32 %v865, %v875
        %882 = vmatprep.subr.bf16.mxu0 0
        %883 = vmatpush1.bf16.msra.mxu0 0
        %884 = vmatprep.subr.bf16.mxu0 0
        %885 = vmatpush1.bf16.msra.mxu0 0
        %886 = vmatprep.subr.bf16.mxu0 0
        %887 = vmatpush1.bf16.msra.mxu0 0
        %888 = vmatprep.subr.bf16.mxu0 0
        %889 = vmatpush1.bf16.msra.mxu0 0
        %890 = vmatprep.subr.bf16.mxu0 0
        %891 = vmatpush1.bf16.msra.mxu0 0
        %892 = vmatprep.subr.bf16.mxu0 0
        %893 = vmatpush1.bf16.msra.mxu0 0
        %894 = vmatprep.subr.bf16.mxu0 %v880
        %895 = vmatpush1.bf16.msra.mxu0 %v877
        %896 = vmatprep.subr.bf16.mxu0 %v863
        %897 = vmatpush1.bf16.msra.mxu0 %v862
        %898 = vmatprep.subr.bf16.mxu0 0
        %899 = vmatpush2.bf16.msra.mxu0 0
        %900 = vmatprep.subr.bf16.mxu0 0
        %901 = vmatpush2.bf16.msra.mxu0 0
        %902 = vmatprep.subr.bf16.mxu0 0
        %903 = vmatpush2.bf16.msra.mxu0 0
        %904 = vmatprep.subr.bf16.mxu0 0
        %905 = vmatpush2.bf16.msra.mxu0 0
        %906 = vmatprep.subr.bf16.mxu0 0
        %907 = vmatpush2.bf16.msra.mxu0 0
        %908 = vmatprep.subr.bf16.mxu0 0
        %909 = vmatpush2.bf16.msra.mxu0 0
        %910 = vmatprep.subr.bf16.mxu0 0
        %911 = vmatpush2.bf16.msra.mxu0 0
        %912 = vmatprep.subr.bf16.mxu0 0
        %913 = vmatpush2.bf16.msra.mxu0 0
        %914 = vmatprep.mubr.bf16.mxu0 0
        %915 = vmatmul.mubr.bf16.gmra.mxu0 %v870
        %v916 = vpop.f32.mrf.mxu0
        %v917 = vadd.f32 %v838, %v916
        %v918 = vpop.f32.mrf.mxu0
        %v919 = vadd.f32 %v838, %v918
        %v920 = vpop.f32.mrf.mxu0
        %v921 = vadd.f32 %v843, %v920
        %v922 = vpop.f32.mrf.mxu0
        %v923 = vadd.f32 %v843, %v922
        %924 = vdwg.mxu0
        %v925 = vmax.f32 %v917, 0.0
        %v926 = vmax.f32 %v919, 0.0
        %v927 = vmax.f32 %v921, 0.0
        %v928 = vmax.f32 %v923, 0.0
        %v929 = vpack.c.bf16 %v927, %v925
        %v930 = vpack.c.bf16 %v928, %v926
        %v931 = vld [vmem:[#allocation6] sm:$0xf]
        %v932 = vld [vmem:[#allocation6 + $0x4] sm:$0xf]
        %v933 = vld [vmem:[#allocation6 + $0x8] sm:$0xf]
        %v934 = vld [vmem:[#allocation6 + $0xc] sm:$0xf]
        %v935 = vld [vmem:[#allocation6 + $0x10] sm:$0xf]
        %v936 = vld [vmem:[#allocation6 + $0x14] sm:$0xf]
        %v937 = vld [vmem:[#allocation6 + $0x18] sm:$0xf]
        %v938 = vld [vmem:[#allocation6 + $0x1c] sm:$0xf]
        %v939 = vld [vmem:[#allocation6 + $0x20] sm:$0xf]
        %v940 = vld [vmem:[#allocation6 + $0x24] sm:$0xf]
        %v941 = vld [vmem:[#allocation6 + $0x28] sm:$0xf]
        %v942 = vld [vmem:[#allocation6 + $0x2c] sm:$0xf]
        %v943 = vld [vmem:[#allocation6 + $0x30] sm:$0xf]
        %v944 = vld [vmem:[#allocation6 + $0x34] sm:$0xf]
        %v945 = vld [vmem:[#allocation6 + $0x38] sm:$0xf]
        %v946 = vld [vmem:[#allocation6 + $0x3c] sm:$0xf]
        %v947 = vld [vmem:[#allocation6 + $0x40] sm:$0xf]
        %v948 = vld [vmem:[#allocation6 + $0x44] sm:$0xf]
        %v949 = vld [vmem:[#allocation6 + $0x48] sm:$0xf]
        %v950 = vld [vmem:[#allocation6 + $0x4c] sm:$0xf]
        %v951 = vld [vmem:[#allocation6 + $0x50] sm:$0xf]
        %v952 = vld [vmem:[#allocation6 + $0x54] sm:$0xf]
        %v953 = vld [vmem:[#allocation6 + $0x58] sm:$0xf]
        %v954 = vld [vmem:[#allocation6 + $0x5c] sm:$0xf]
        %v955 = vld [vmem:[#allocation6 + $0x60] sm:$0xf]
        %v956 = vld [vmem:[#allocation6 + $0x64] sm:$0xf]
        %v957 = vld [vmem:[#allocation6 + $0x68] sm:$0xf]
        %v958 = vld [vmem:[#allocation6 + $0x6c] sm:$0xf]
        %v959 = vld [vmem:[#allocation6 + $0x70] sm:$0xf]
        %v960 = vld [vmem:[#allocation6 + $0x74] sm:$0xf]
        %v961 = vld [vmem:[#allocation6 + $0x78] sm:$0xf]
        %v962 = vld [vmem:[#allocation6 + $0x7c] sm:$0xf]
        %v995 = vunpack.c.l.b16 %v931
        %v996 = vunpack.c.l.b16 %v932
        %v997 = vunpack.c.l.b16 %v933
        %v998 = vunpack.c.l.b16 %v934
        %v999 = vunpack.c.l.b16 %v935
        %v1000 = vunpack.c.l.b16 %v936
        %v1001 = vunpack.c.l.b16 %v937
        %v1002 = vunpack.c.l.b16 %v938
        %v1003 = vunpack.c.l.b16 %v939
        %v1004 = vunpack.c.l.b16 %v940
        %v1005 = vunpack.c.l.b16 %v941
        %v1006 = vunpack.c.l.b16 %v942
        %v1007 = vunpack.c.l.b16 %v943
        %v1008 = vunpack.c.l.b16 %v944
        %v1009 = vunpack.c.l.b16 %v945
        %v1010 = vunpack.c.l.b16 %v946
        %v1011 = vunpack.c.l.b16 %v947
        %v1012 = vunpack.c.l.b16 %v948
        %v1013 = vunpack.c.l.b16 %v949
        %v1014 = vunpack.c.l.b16 %v950
        %v1015 = vunpack.c.l.b16 %v951
        %v1016 = vunpack.c.l.b16 %v952
        %v1017 = vunpack.c.l.b16 %v953
        %v1018 = vunpack.c.l.b16 %v954
        %v1019 = vunpack.c.l.b16 %v955
        %v1020 = vunpack.c.l.b16 %v956
        %v1021 = vunpack.c.l.b16 %v957
        %v1022 = vunpack.c.l.b16 %v958
        %v1023 = vunpack.c.l.b16 %v959
        %v1024 = vunpack.c.l.b16 %v960
        %v1025 = vunpack.c.l.b16 %v961
        %v1026 = vunpack.c.l.b16 %v962
        %v1027 = vpack.c.b16 %v996, %v995
        %v1028 = vpack.c.b16 %v998, %v997
        %v1029 = vpack.c.b16 %v1000, %v999
        %v1030 = vpack.c.b16 %v1002, %v1001
        %v1031 = vpack.c.b16 %v1004, %v1003
        %v1032 = vpack.c.b16 %v1006, %v1005
        %v1033 = vpack.c.b16 %v1008, %v1007
        %v1034 = vpack.c.b16 %v1010, %v1009
        %v1035 = vpack.c.b16 %v1012, %v1011
        %v1036 = vpack.c.b16 %v1014, %v1013
        %v1037 = vpack.c.b16 %v1016, %v1015
        %v1038 = vpack.c.b16 %v1018, %v1017
        %v1039 = vpack.c.b16 %v1020, %v1019
        %v1040 = vpack.c.b16 %v1022, %v1021
        %v1041 = vpack.c.b16 %v1024, %v1023
        %v1042 = vpack.c.b16 %v1026, %v1025
        %1059 = vmatprep.subr.bf16.mxu0 0
        %1060 = vmatpush1.bf16.msra.mxu0 %v1034
        %1061 = vmatprep.subr.bf16.mxu0 0
        %1062 = vmatpush1.bf16.msra.mxu0 %v1033
        %1063 = vmatprep.subr.bf16.mxu0 0
        %1064 = vmatpush1.bf16.msra.mxu0 %v1032
        %1065 = vmatprep.subr.bf16.mxu0 0
        %1066 = vmatpush1.bf16.msra.mxu0 %v1031
        %1067 = vmatprep.subr.bf16.mxu0 0
        %1068 = vmatpush1.bf16.msra.mxu0 %v1030
        %1069 = vmatprep.subr.bf16.mxu0 0
        %1070 = vmatpush1.bf16.msra.mxu0 %v1029
        %1071 = vmatprep.subr.bf16.mxu0 0
        %1072 = vmatpush1.bf16.msra.mxu0 %v1028
        %1073 = vmatprep.subr.bf16.mxu0 0
        %1074 = vmatpush1.bf16.msra.mxu0 %v1027
        %1075 = vmatprep.subr.bf16.mxu0 0
        %1076 = vmatpush2.bf16.msra.mxu0 %v1042
        %1077 = vmatprep.subr.bf16.mxu0 0
        %1078 = vmatpush2.bf16.msra.mxu0 %v1041
        %1079 = vmatprep.subr.bf16.mxu0 0
        %1080 = vmatpush2.bf16.msra.mxu0 %v1040
        %1081 = vmatprep.subr.bf16.mxu0 0
        %1082 = vmatpush2.bf16.msra.mxu0 %v1039
        %1083 = vmatprep.subr.bf16.mxu0 0
        %1084 = vmatpush2.bf16.msra.mxu0 %v1038
        %1085 = vmatprep.subr.bf16.mxu0 0
        %1086 = vmatpush2.bf16.msra.mxu0 %v1037
        %1087 = vmatprep.subr.bf16.mxu0 0
        %1088 = vmatpush2.bf16.msra.mxu0 %v1036
        %1089 = vmatprep.subr.bf16.mxu0 0
        %1090 = vmatpush2.bf16.msra.mxu0 %v1035
        %1091 = vmatprep.mubr.bf16.mxu0 %v930
        %1092 = vmatmul.mubr.bf16.gmra.mxu0 %v929
        %v1093 = vpop.f32.mrf.mxu0
        %v1094 = vadd.f32 0.0, %v1093
        %v1095 = vpop.f32.mrf.mxu0
        %v1096 = vpop.f32.mrf.mxu0
        %v1097 = vadd.f32 0.0, %v1096
        %v1098 = vpop.f32.mrf.mxu0
        %1099 = vdwg.mxu0
        %v1100 = vld [vmem:[#allocation7] sm:$0xf]
        %v1101 = vld [vmem:[#allocation7 + $0x4] sm:$0xf]
        %v1102 = vld [vmem:[#allocation7 + $0x8] sm:$0xf]
        %v1103 = vpack.c.bf16 %v1097, %v1094
        %s1104 = scalar_lea.vmem [#allocation6], 128
        %v1105 = vld [vmem:[%s1104] sm:$0xf]
        %v1106 = vld [vmem:[%s1104 + $0x4] sm:$0xf]
        %v1107 = vld [vmem:[%s1104 + $0x8] sm:$0xf]
        %v1108 = vld [vmem:[%s1104 + $0xc] sm:$0xf]
        %v1109 = vld [vmem:[%s1104 + $0x10] sm:$0xf]
        %v1110 = vld [vmem:[%s1104 + $0x14] sm:$0xf]
        %v1111 = vld [vmem:[%s1104 + $0x18] sm:$0xf]
        %v1112 = vld [vmem:[%s1104 + $0x1c] sm:$0xf]
        %v1113 = vld [vmem:[%s1104 + $0x20] sm:$0xf]
        %v1114 = vld [vmem:[%s1104 + $0x24] sm:$0xf]
        %v1115 = vld [vmem:[%s1104 + $0x28] sm:$0xf]
        %v1116 = vld [vmem:[%s1104 + $0x2c] sm:$0xf]
        %v1117 = vld [vmem:[%s1104 + $0x30] sm:$0xf]
        %v1118 = vld [vmem:[%s1104 + $0x34] sm:$0xf]
        %v1119 = vld [vmem:[%s1104 + $0x38] sm:$0xf]
        %v1120 = vld [vmem:[%s1104 + $0x3c] sm:$0xf]
        %v1121 = vld [vmem:[%s1104 + $0x40] sm:$0xf]
        %v1122 = vld [vmem:[%s1104 + $0x44] sm:$0xf]
        %v1123 = vld [vmem:[%s1104 + $0x48] sm:$0xf]
        %v1124 = vld [vmem:[%s1104 + $0x4c] sm:$0xf]
        %v1125 = vld [vmem:[%s1104 + $0x50] sm:$0xf]
        %v1126 = vld [vmem:[%s1104 + $0x54] sm:$0xf]
        %v1127 = vld [vmem:[%s1104 + $0x58] sm:$0xf]
        %v1128 = vld [vmem:[%s1104 + $0x5c] sm:$0xf]
        %v1129 = vld [vmem:[%s1104 + $0x60] sm:$0xf]
        %v1130 = vld [vmem:[%s1104 + $0x64] sm:$0xf]
        %v1131 = vld [vmem:[%s1104 + $0x68] sm:$0xf]
        %v1132 = vld [vmem:[%s1104 + $0x6c] sm:$0xf]
        %v1133 = vld [vmem:[%s1104 + $0x70] sm:$0xf]
        %v1134 = vld [vmem:[%s1104 + $0x74] sm:$0xf]
        %v1135 = vld [vmem:[%s1104 + $0x78] sm:$0xf]
        %v1136 = vld [vmem:[%s1104 + $0x7c] sm:$0xf]
        %v1169 = vunpack.c.l.b16 %v1105
        %v1170 = vunpack.c.l.b16 %v1106
        %v1171 = vunpack.c.l.b16 %v1107
        %v1172 = vunpack.c.l.b16 %v1108
        %v1173 = vunpack.c.l.b16 %v1109
        %v1174 = vunpack.c.l.b16 %v1110
        %v1175 = vunpack.c.l.b16 %v1111
        %v1176 = vunpack.c.l.b16 %v1112
        %v1177 = vunpack.c.l.b16 %v1113
        %v1178 = vunpack.c.l.b16 %v1114
        %v1179 = vunpack.c.l.b16 %v1115
        %v1180 = vunpack.c.l.b16 %v1116
        %v1181 = vunpack.c.l.b16 %v1117
        %v1182 = vunpack.c.l.b16 %v1118
        %v1183 = vunpack.c.l.b16 %v1119
        %v1184 = vunpack.c.l.b16 %v1120
        %v1185 = vunpack.c.l.b16 %v1121
        %v1186 = vunpack.c.l.b16 %v1122
        %v1187 = vunpack.c.l.b16 %v1123
        %v1188 = vunpack.c.l.b16 %v1124
        %v1189 = vunpack.c.l.b16 %v1125
        %v1190 = vunpack.c.l.b16 %v1126
        %v1191 = vunpack.c.l.b16 %v1127
        %v1192 = vunpack.c.l.b16 %v1128
        %v1193 = vunpack.c.l.b16 %v1129
        %v1194 = vunpack.c.l.b16 %v1130
        %v1195 = vunpack.c.l.b16 %v1131
        %v1196 = vunpack.c.l.b16 %v1132
        %v1197 = vunpack.c.l.b16 %v1133
        %v1198 = vunpack.c.l.b16 %v1134
        %v1199 = vunpack.c.l.b16 %v1135
        %v1200 = vunpack.c.l.b16 %v1136
        %v1201 = vpack.c.b16 %v1170, %v1169
        %v1202 = vpack.c.b16 %v1172, %v1171
        %v1203 = vpack.c.b16 %v1174, %v1173
        %v1204 = vpack.c.b16 %v1176, %v1175
        %v1205 = vpack.c.b16 %v1178, %v1177
        %v1206 = vpack.c.b16 %v1180, %v1179
        %v1207 = vpack.c.b16 %v1182, %v1181
        %v1208 = vpack.c.b16 %v1184, %v1183
        %v1209 = vpack.c.b16 %v1186, %v1185
        %v1210 = vpack.c.b16 %v1188, %v1187
        %v1211 = vpack.c.b16 %v1190, %v1189
        %v1212 = vpack.c.b16 %v1192, %v1191
        %v1213 = vpack.c.b16 %v1194, %v1193
        %v1214 = vpack.c.b16 %v1196, %v1195
        %v1215 = vpack.c.b16 %v1198, %v1197
        %v1216 = vpack.c.b16 %v1200, %v1199
        %1233 = vmatprep.subr.bf16.mxu0 0
        %1234 = vmatpush1.bf16.msra.mxu0 %v1208
        %1235 = vmatprep.subr.bf16.mxu0 0
        %1236 = vmatpush1.bf16.msra.mxu0 %v1207
        %1237 = vmatprep.subr.bf16.mxu0 0
        %1238 = vmatpush1.bf16.msra.mxu0 %v1206
        %1239 = vmatprep.subr.bf16.mxu0 0
        %1240 = vmatpush1.bf16.msra.mxu0 %v1205
        %1241 = vmatprep.subr.bf16.mxu0 0
        %1242 = vmatpush1.bf16.msra.mxu0 %v1204
        %1243 = vmatprep.subr.bf16.mxu0 0
        %1244 = vmatpush1.bf16.msra.mxu0 %v1203
        %1245 = vmatprep.subr.bf16.mxu0 0
        %1246 = vmatpush1.bf16.msra.mxu0 %v1202
        %1247 = vmatprep.subr.bf16.mxu0 0
        %1248 = vmatpush1.bf16.msra.mxu0 %v1201
        %1249 = vmatprep.subr.bf16.mxu0 0
        %1250 = vmatpush2.bf16.msra.mxu0 %v1216
        %1251 = vmatprep.subr.bf16.mxu0 0
        %1252 = vmatpush2.bf16.msra.mxu0 %v1215
        %1253 = vmatprep.subr.bf16.mxu0 0
        %1254 = vmatpush2.bf16.msra.mxu0 %v1214
        %1255 = vmatprep.subr.bf16.mxu0 0
        %1256 = vmatpush2.bf16.msra.mxu0 %v1213
        %1257 = vmatprep.subr.bf16.mxu0 0
        %1258 = vmatpush2.bf16.msra.mxu0 %v1212
        %1259 = vmatprep.subr.bf16.mxu0 0
        %1260 = vmatpush2.bf16.msra.mxu0 %v1211
        %1261 = vmatprep.subr.bf16.mxu0 0
        %1262 = vmatpush2.bf16.msra.mxu0 %v1210
        %1263 = vmatprep.subr.bf16.mxu0 0
        %1264 = vmatpush2.bf16.msra.mxu0 %v1209
        %1265 = vmatprep.mubr.bf16.mxu0 %v930
        %1266 = vmatmul.mubr.bf16.gmra.mxu0 %v929
        %v1267 = vpop.f32.mrf.mxu0
        %v1268 = vadd.f32 0.0, %v1267
        %v1269 = vpop.f32.mrf.mxu0
        %v1270 = vpop.f32.mrf.mxu0
        %v1271 = vadd.f32 0.0, %v1270
        %v1272 = vpop.f32.mrf.mxu0
        %1273 = vdwg.mxu0
        %s1274 = scalar_lea.vmem [#allocation7], 12
        %v1275 = vld [vmem:[%s1274] sm:$0xf]
        %v1276 = vld [vmem:[%s1274 + $0x4] sm:$0xf]
        %v1277 = vld [vmem:[%s1274 + $0x8] sm:$0xf]
        %v1278 = vpack.c.bf16 %v1271, %v1268
        %v1282 = vunpack.c.l.b16 %v1275
        %v1283 = vunpack.c.l.b16 %v1276
        %v1284 = vunpack.c.l.b16 %v1277
        %v1285 = vpack.c.b16 %v1283, %v1282
        %v1286 = vpack.c.b16 %v1284, %v1284
        %vm1287 = vcmask 130048
        %v1289 = vsel %vm1287, %v1285, 0
        %v1292 = vsel %vm1287, %v1286, 0
        %1294 = vmatprep.subr.bf16.mxu0 0
        %1295 = vmatpush1.bf16.msra.mxu0 0
        %1296 = vmatprep.subr.bf16.mxu0 0
        %1297 = vmatpush1.bf16.msra.mxu0 0
        %1298 = vmatprep.subr.bf16.mxu0 0
        %1299 = vmatpush1.bf16.msra.mxu0 0
        %1300 = vmatprep.subr.bf16.mxu0 0
        %1301 = vmatpush1.bf16.msra.mxu0 0
        %1302 = vmatprep.subr.bf16.mxu0 0
        %1303 = vmatpush1.bf16.msra.mxu0 0
        %1304 = vmatprep.subr.bf16.mxu0 0
        %1305 = vmatpush1.bf16.msra.mxu0 0
        %1306 = vmatprep.subr.bf16.mxu0 0
        %1307 = vmatpush1.bf16.msra.mxu0 0
        %1308 = vmatprep.subr.bf16.mxu0 0
        %1309 = vmatpush1.bf16.msra.mxu0 %v1278
        %1310 = vmatprep.subr.bf16.mxu0 0
        %1311 = vmatpush2.bf16.msra.mxu0 0
        %1312 = vmatprep.subr.bf16.mxu0 0
        %1313 = vmatpush2.bf16.msra.mxu0 0
        %1314 = vmatprep.subr.bf16.mxu0 0
        %1315 = vmatpush2.bf16.msra.mxu0 0
        %1316 = vmatprep.subr.bf16.mxu0 0
        %1317 = vmatpush2.bf16.msra.mxu0 0
        %1318 = vmatprep.subr.bf16.mxu0 0
        %1319 = vmatpush2.bf16.msra.mxu0 0
        %1320 = vmatprep.subr.bf16.mxu0 0
        %1321 = vmatpush2.bf16.msra.mxu0 0
        %1322 = vmatprep.subr.bf16.mxu0 0
        %1323 = vmatpush2.bf16.msra.mxu0 0
        %1324 = vmatprep.subr.bf16.mxu0 0
        %1325 = vmatpush2.bf16.msra.mxu0 0
        %1326 = vmatprep.mubr.bf16.mxu0 0
        %1327 = vmatmul.mubr.bf16.gmra.mxu0 %v1289
        %v1328 = vpop.f32.mrf.mxu0
        %v1329 = vadd.f32 0.0, %v1328
        %v1330 = vpop.f32.mrf.mxu0
        %v1331 = vpop.f32.mrf.mxu0
        %v1332 = vadd.f32 0.0, %v1331
        %v1333 = vpop.f32.mrf.mxu0
        %1334 = vmatprep.mubr.bf16.mxu0 0
        %1335 = vmatmul.mubr.bf16.gmra.mxu0 %v1292
        %v1336 = vpop.f32.mrf.mxu0
        %v1337 = vadd.f32 0.0, %v1336
        %v1338 = vpop.f32.mrf.mxu0
        %v1339 = vpop.f32.mrf.mxu0
        %v1340 = vpop.f32.mrf.mxu0
        %1341 = vdwg.mxu0
        %v1345 = vunpack.c.l.b16 %v1100
        %v1346 = vunpack.c.l.b16 %v1101
        %v1347 = vunpack.c.l.b16 %v1102
        %v1348 = vpack.c.b16 %v1346, %v1345
        %v1349 = vpack.c.b16 %v1347, %v1347
        %v1351 = vsel %vm1287, %v1348, 0
        %v1354 = vsel %vm1287, %v1349, 0
        %1356 = vmatprep.subr.bf16.mxu0 0
        %1357 = vmatpush1.bf16.msra.mxu0 0
        %1358 = vmatprep.subr.bf16.mxu0 0
        %1359 = vmatpush1.bf16.msra.mxu0 0
        %1360 = vmatprep.subr.bf16.mxu0 0
        %1361 = vmatpush1.bf16.msra.mxu0 0
        %1362 = vmatprep.subr.bf16.mxu0 0
        %1363 = vmatpush1.bf16.msra.mxu0 0
        %1364 = vmatprep.subr.bf16.mxu0 0
        %1365 = vmatpush1.bf16.msra.mxu0 0
        %1366 = vmatprep.subr.bf16.mxu0 0
        %1367 = vmatpush1.bf16.msra.mxu0 0
        %1368 = vmatprep.subr.bf16.mxu0 0
        %1369 = vmatpush1.bf16.msra.mxu0 0
        %1370 = vmatprep.subr.bf16.mxu0 0
        %1371 = vmatpush1.bf16.msra.mxu0 %v1103
        %1372 = vmatprep.subr.bf16.mxu0 0
        %1373 = vmatpush2.bf16.msra.mxu0 0
        %1374 = vmatprep.subr.bf16.mxu0 0
        %1375 = vmatpush2.bf16.msra.mxu0 0
        %1376 = vmatprep.subr.bf16.mxu0 0
        %1377 = vmatpush2.bf16.msra.mxu0 0
        %1378 = vmatprep.subr.bf16.mxu0 0
        %1379 = vmatpush2.bf16.msra.mxu0 0
        %1380 = vmatprep.subr.bf16.mxu0 0
        %1381 = vmatpush2.bf16.msra.mxu0 0
        %1382 = vmatprep.subr.bf16.mxu0 0
        %1383 = vmatpush2.bf16.msra.mxu0 0
        %1384 = vmatprep.subr.bf16.mxu0 0
        %1385 = vmatpush2.bf16.msra.mxu0 0
        %1386 = vmatprep.subr.bf16.mxu0 0
        %1387 = vmatpush2.bf16.msra.mxu0 0
        %1388 = vmatprep.mubr.bf16.mxu0 0
        %1389 = vmatmul.mubr.bf16.gmra.mxu0 %v1351
        %v1390 = vpop.f32.mrf.mxu0
        %v1391 = vadd.f32 %v1329, %v1390
        %v1392 = vpop.f32.mrf.mxu0
        %v1393 = vpop.f32.mrf.mxu0
        %v1394 = vadd.f32 %v1332, %v1393
        %v1395 = vpop.f32.mrf.mxu0
        %1396 = vmatprep.mubr.bf16.mxu0 0
        %1397 = vmatmul.mubr.bf16.gmra.mxu0 %v1354
        %v1398 = vpop.f32.mrf.mxu0
        %v1399 = vadd.f32 %v1337, %v1398
        %v1400 = vpop.f32.mrf.mxu0
        %v1401 = vpop.f32.mrf.mxu0
        %v1402 = vpop.f32.mrf.mxu0
        %1403 = vdwg.mxu0
        %s1404 = scalar_lea.vmem [#allocation6], 256
        %v1405 = vld [vmem:[%s1404] sm:$0xf]
        %v1406 = vld [vmem:[%s1404 + $0x4] sm:$0xf]
        %v1407 = vld [vmem:[%s1404 + $0x8] sm:$0xf]
        %v1408 = vld [vmem:[%s1404 + $0xc] sm:$0xf]
        %v1409 = vld [vmem:[%s1404 + $0x10] sm:$0xf]
        %v1410 = vld [vmem:[%s1404 + $0x14] sm:$0xf]
        %v1411 = vld [vmem:[%s1404 + $0x18] sm:$0xf]
        %v1412 = vld [vmem:[%s1404 + $0x1c] sm:$0xf]
        %v1413 = vld [vmem:[%s1404 + $0x20] sm:$0xf]
        %v1414 = vld [vmem:[%s1404 + $0x24] sm:$0xf]
        %v1415 = vld [vmem:[%s1404 + $0x28] sm:$0xf]
        %v1416 = vld [vmem:[%s1404 + $0x2c] sm:$0xf]
        %v1417 = vld [vmem:[%s1404 + $0x30] sm:$0xf]
        %v1418 = vld [vmem:[%s1404 + $0x34] sm:$0xf]
        %v1419 = vld [vmem:[%s1404 + $0x38] sm:$0xf]
        %v1420 = vld [vmem:[%s1404 + $0x3c] sm:$0xf]
        %v1421 = vld [vmem:[%s1404 + $0x40] sm:$0xf]
        %v1422 = vld [vmem:[%s1404 + $0x44] sm:$0xf]
        %v1423 = vld [vmem:[%s1404 + $0x48] sm:$0xf]
        %v1424 = vld [vmem:[%s1404 + $0x4c] sm:$0xf]
        %v1425 = vld [vmem:[%s1404 + $0x50] sm:$0xf]
        %v1426 = vld [vmem:[%s1404 + $0x54] sm:$0xf]
        %v1427 = vld [vmem:[%s1404 + $0x58] sm:$0xf]
        %v1428 = vld [vmem:[%s1404 + $0x5c] sm:$0xf]
        %v1429 = vld [vmem:[%s1404 + $0x60] sm:$0xf]
        %v1430 = vld [vmem:[%s1404 + $0x64] sm:$0xf]
        %v1431 = vld [vmem:[%s1404 + $0x68] sm:$0xf]
        %v1432 = vld [vmem:[%s1404 + $0x6c] sm:$0xf]
        %v1433 = vld [vmem:[%s1404 + $0x70] sm:$0xf]
        %v1434 = vld [vmem:[%s1404 + $0x74] sm:$0xf]
        %v1435 = vld [vmem:[%s1404 + $0x78] sm:$0xf]
        %v1436 = vld [vmem:[%s1404 + $0x7c] sm:$0xf]
        %v1469 = vunpack.c.l.b16 %v1405
        %v1470 = vunpack.c.l.b16 %v1406
        %v1471 = vunpack.c.l.b16 %v1407
        %v1472 = vunpack.c.l.b16 %v1408
        %v1473 = vunpack.c.l.b16 %v1409
        %v1474 = vunpack.c.l.b16 %v1410
        %v1475 = vunpack.c.l.b16 %v1411
        %v1476 = vunpack.c.l.b16 %v1412
        %v1477 = vunpack.c.l.b16 %v1413
        %v1478 = vunpack.c.l.b16 %v1414
        %v1479 = vunpack.c.l.b16 %v1415
        %v1480 = vunpack.c.l.b16 %v1416
        %v1481 = vunpack.c.l.b16 %v1417
        %v1482 = vunpack.c.l.b16 %v1418
        %v1483 = vunpack.c.l.b16 %v1419
        %v1484 = vunpack.c.l.b16 %v1420
        %v1485 = vunpack.c.l.b16 %v1421
        %v1486 = vunpack.c.l.b16 %v1422
        %v1487 = vunpack.c.l.b16 %v1423
        %v1488 = vunpack.c.l.b16 %v1424
        %v1489 = vunpack.c.l.b16 %v1425
        %v1490 = vunpack.c.l.b16 %v1426
        %v1491 = vunpack.c.l.b16 %v1427
        %v1492 = vunpack.c.l.b16 %v1428
        %v1493 = vunpack.c.l.b16 %v1429
        %v1494 = vunpack.c.l.b16 %v1430
        %v1495 = vunpack.c.l.b16 %v1431
        %v1496 = vunpack.c.l.b16 %v1432
        %v1497 = vunpack.c.l.b16 %v1433
        %v1498 = vunpack.c.l.b16 %v1434
        %v1499 = vunpack.c.l.b16 %v1435
        %v1500 = vunpack.c.l.b16 %v1436
        %v1501 = vpack.c.b16 %v1470, %v1469
        %v1502 = vpack.c.b16 %v1472, %v1471
        %v1503 = vpack.c.b16 %v1474, %v1473
        %v1504 = vpack.c.b16 %v1476, %v1475
        %v1505 = vpack.c.b16 %v1478, %v1477
        %v1506 = vpack.c.b16 %v1480, %v1479
        %v1507 = vpack.c.b16 %v1482, %v1481
        %v1508 = vpack.c.b16 %v1484, %v1483
        %v1509 = vpack.c.b16 %v1486, %v1485
        %v1510 = vpack.c.b16 %v1488, %v1487
        %v1511 = vpack.c.b16 %v1490, %v1489
        %v1512 = vpack.c.b16 %v1492, %v1491
        %v1513 = vpack.c.b16 %v1494, %v1493
        %v1514 = vpack.c.b16 %v1496, %v1495
        %v1515 = vpack.c.b16 %v1498, %v1497
        %v1516 = vpack.c.b16 %v1500, %v1499
        %1533 = vmatprep.subr.bf16.mxu0 0
        %1534 = vmatpush1.bf16.msra.mxu0 %v1508
        %1535 = vmatprep.subr.bf16.mxu0 0
        %1536 = vmatpush1.bf16.msra.mxu0 %v1507
        %1537 = vmatprep.subr.bf16.mxu0 0
        %1538 = vmatpush1.bf16.msra.mxu0 %v1506
        %1539 = vmatprep.subr.bf16.mxu0 0
        %1540 = vmatpush1.bf16.msra.mxu0 %v1505
        %1541 = vmatprep.subr.bf16.mxu0 0
        %1542 = vmatpush1.bf16.msra.mxu0 %v1504
        %1543 = vmatprep.subr.bf16.mxu0 0
        %1544 = vmatpush1.bf16.msra.mxu0 %v1503
        %1545 = vmatprep.subr.bf16.mxu0 0
        %1546 = vmatpush1.bf16.msra.mxu0 %v1502
        %1547 = vmatprep.subr.bf16.mxu0 0
        %1548 = vmatpush1.bf16.msra.mxu0 %v1501
        %1549 = vmatprep.subr.bf16.mxu0 0
        %1550 = vmatpush2.bf16.msra.mxu0 %v1516
        %1551 = vmatprep.subr.bf16.mxu0 0
        %1552 = vmatpush2.bf16.msra.mxu0 %v1515
        %1553 = vmatprep.subr.bf16.mxu0 0
        %1554 = vmatpush2.bf16.msra.mxu0 %v1514
        %1555 = vmatprep.subr.bf16.mxu0 0
        %1556 = vmatpush2.bf16.msra.mxu0 %v1513
        %1557 = vmatprep.subr.bf16.mxu0 0
        %1558 = vmatpush2.bf16.msra.mxu0 %v1512
        %1559 = vmatprep.subr.bf16.mxu0 0
        %1560 = vmatpush2.bf16.msra.mxu0 %v1511
        %1561 = vmatprep.subr.bf16.mxu0 0
        %1562 = vmatpush2.bf16.msra.mxu0 %v1510
        %1563 = vmatprep.subr.bf16.mxu0 0
        %1564 = vmatpush2.bf16.msra.mxu0 %v1509
        %1565 = vmatprep.mubr.bf16.mxu0 %v930
        %1566 = vmatmul.mubr.bf16.gmra.mxu0 %v929
        %v1567 = vpop.f32.mrf.mxu0
        %v1568 = vadd.f32 0.0, %v1567
        %v1569 = vpop.f32.mrf.mxu0
        %v1570 = vpop.f32.mrf.mxu0
        %v1571 = vadd.f32 0.0, %v1570
        %v1572 = vpop.f32.mrf.mxu0
        %1573 = vdwg.mxu0
        %s1574 = scalar_lea.vmem [#allocation7], 24
        %v1575 = vld [vmem:[%s1574] sm:$0xf]
        %v1576 = vld [vmem:[%s1574 + $0x4] sm:$0xf]
        %v1577 = vld [vmem:[%s1574 + $0x8] sm:$0xf]
        %v1578 = vpack.c.bf16 %v1571, %v1568
        %v1582 = vunpack.c.l.b16 %v1575
        %v1583 = vunpack.c.l.b16 %v1576
        %v1584 = vunpack.c.l.b16 %v1577
        %v1585 = vpack.c.b16 %v1583, %v1582
        %v1586 = vpack.c.b16 %v1584, %v1584
        %v1588 = vsel %vm1287, %v1585, 0
        %v1591 = vsel %vm1287, %v1586, 0
        %1593 = vmatprep.subr.bf16.mxu0 0
        %1594 = vmatpush1.bf16.msra.mxu0 0
        %1595 = vmatprep.subr.bf16.mxu0 0
        %1596 = vmatpush1.bf16.msra.mxu0 0
        %1597 = vmatprep.subr.bf16.mxu0 0
        %1598 = vmatpush1.bf16.msra.mxu0 0
        %1599 = vmatprep.subr.bf16.mxu0 0
        %1600 = vmatpush1.bf16.msra.mxu0 0
        %1601 = vmatprep.subr.bf16.mxu0 0
        %1602 = vmatpush1.bf16.msra.mxu0 0
        %1603 = vmatprep.subr.bf16.mxu0 0
        %1604 = vmatpush1.bf16.msra.mxu0 0
        %1605 = vmatprep.subr.bf16.mxu0 0
        %1606 = vmatpush1.bf16.msra.mxu0 0
        %1607 = vmatprep.subr.bf16.mxu0 0
        %1608 = vmatpush1.bf16.msra.mxu0 %v1578
        %1609 = vmatprep.subr.bf16.mxu0 0
        %1610 = vmatpush2.bf16.msra.mxu0 0
        %1611 = vmatprep.subr.bf16.mxu0 0
        %1612 = vmatpush2.bf16.msra.mxu0 0
        %1613 = vmatprep.subr.bf16.mxu0 0
        %1614 = vmatpush2.bf16.msra.mxu0 0
        %1615 = vmatprep.subr.bf16.mxu0 0
        %1616 = vmatpush2.bf16.msra.mxu0 0
        %1617 = vmatprep.subr.bf16.mxu0 0
        %1618 = vmatpush2.bf16.msra.mxu0 0
        %1619 = vmatprep.subr.bf16.mxu0 0
        %1620 = vmatpush2.bf16.msra.mxu0 0
        %1621 = vmatprep.subr.bf16.mxu0 0
        %1622 = vmatpush2.bf16.msra.mxu0 0
        %1623 = vmatprep.subr.bf16.mxu0 0
        %1624 = vmatpush2.bf16.msra.mxu0 0
        %1625 = vmatprep.mubr.bf16.mxu0 0
        %1626 = vmatmul.mubr.bf16.gmra.mxu0 %v1588
        %v1627 = vpop.f32.mrf.mxu0
        %v1628 = vadd.f32 0.0, %v1627
        %v1629 = vpop.f32.mrf.mxu0
        %v1630 = vpop.f32.mrf.mxu0
        %v1631 = vadd.f32 0.0, %v1630
        %v1632 = vpop.f32.mrf.mxu0
        %1633 = vmatprep.mubr.bf16.mxu0 0
        %1634 = vmatmul.mubr.bf16.gmra.mxu0 %v1591
        %v1635 = vpop.f32.mrf.mxu0
        %v1636 = vadd.f32 0.0, %v1635
        %v1637 = vpop.f32.mrf.mxu0
        %v1638 = vpop.f32.mrf.mxu0
        %v1639 = vpop.f32.mrf.mxu0
        %1640 = vdwg.mxu0
        %v1641 = vadd.f32 %v1391, %v1628
        %v1642 = vadd.f32 %v1394, %v1631
        %v1643 = vadd.f32 %v1399, %v1636
        %s1644 = scalar_lea.vmem [#allocation6], 384
        %v1645 = vld [vmem:[%s1644] sm:$0xf]
        %v1646 = vld [vmem:[%s1644 + $0x4] sm:$0xf]
        %v1647 = vld [vmem:[%s1644 + $0x8] sm:$0xf]
        %v1648 = vld [vmem:[%s1644 + $0xc] sm:$0xf]
        %v1649 = vld [vmem:[%s1644 + $0x10] sm:$0xf]
        %v1650 = vld [vmem:[%s1644 + $0x14] sm:$0xf]
        %v1651 = vld [vmem:[%s1644 + $0x18] sm:$0xf]
        %v1652 = vld [vmem:[%s1644 + $0x1c] sm:$0xf]
        %v1653 = vld [vmem:[%s1644 + $0x20] sm:$0xf]
        %v1654 = vld [vmem:[%s1644 + $0x24] sm:$0xf]
        %v1655 = vld [vmem:[%s1644 + $0x28] sm:$0xf]
        %v1656 = vld [vmem:[%s1644 + $0x2c] sm:$0xf]
        %v1657 = vld [vmem:[%s1644 + $0x30] sm:$0xf]
        %v1658 = vld [vmem:[%s1644 + $0x34] sm:$0xf]
        %v1659 = vld [vmem:[%s1644 + $0x38] sm:$0xf]
        %v1660 = vld [vmem:[%s1644 + $0x3c] sm:$0xf]
        %v1661 = vld [vmem:[%s1644 + $0x40] sm:$0xf]
        %v1662 = vld [vmem:[%s1644 + $0x44] sm:$0xf]
        %v1663 = vld [vmem:[%s1644 + $0x48] sm:$0xf]
        %v1664 = vld [vmem:[%s1644 + $0x4c] sm:$0xf]
        %v1665 = vld [vmem:[%s1644 + $0x50] sm:$0xf]
        %v1666 = vld [vmem:[%s1644 + $0x54] sm:$0xf]
        %v1667 = vld [vmem:[%s1644 + $0x58] sm:$0xf]
        %v1668 = vld [vmem:[%s1644 + $0x5c] sm:$0xf]
        %v1669 = vld [vmem:[%s1644 + $0x60] sm:$0xf]
        %v1670 = vld [vmem:[%s1644 + $0x64] sm:$0xf]
        %v1671 = vld [vmem:[%s1644 + $0x68] sm:$0xf]
        %v1672 = vld [vmem:[%s1644 + $0x6c] sm:$0xf]
        %v1673 = vld [vmem:[%s1644 + $0x70] sm:$0xf]
        %v1674 = vld [vmem:[%s1644 + $0x74] sm:$0xf]
        %v1675 = vld [vmem:[%s1644 + $0x78] sm:$0xf]
        %v1676 = vld [vmem:[%s1644 + $0x7c] sm:$0xf]
        %v1709 = vunpack.c.l.b16 %v1645
        %v1710 = vunpack.c.l.b16 %v1646
        %v1711 = vunpack.c.l.b16 %v1647
        %v1712 = vunpack.c.l.b16 %v1648
        %v1713 = vunpack.c.l.b16 %v1649
        %v1714 = vunpack.c.l.b16 %v1650
        %v1715 = vunpack.c.l.b16 %v1651
        %v1716 = vunpack.c.l.b16 %v1652
        %v1717 = vunpack.c.l.b16 %v1653
        %v1718 = vunpack.c.l.b16 %v1654
        %v1719 = vunpack.c.l.b16 %v1655
        %v1720 = vunpack.c.l.b16 %v1656
        %v1721 = vunpack.c.l.b16 %v1657
        %v1722 = vunpack.c.l.b16 %v1658
        %v1723 = vunpack.c.l.b16 %v1659
        %v1724 = vunpack.c.l.b16 %v1660
        %v1725 = vunpack.c.l.b16 %v1661
        %v1726 = vunpack.c.l.b16 %v1662
        %v1727 = vunpack.c.l.b16 %v1663
        %v1728 = vunpack.c.l.b16 %v1664
        %v1729 = vunpack.c.l.b16 %v1665
        %v1730 = vunpack.c.l.b16 %v1666
        %v1731 = vunpack.c.l.b16 %v1667
        %v1732 = vunpack.c.l.b16 %v1668
        %v1733 = vunpack.c.l.b16 %v1669
        %v1734 = vunpack.c.l.b16 %v1670
        %v1735 = vunpack.c.l.b16 %v1671
        %v1736 = vunpack.c.l.b16 %v1672
        %v1737 = vunpack.c.l.b16 %v1673
        %v1738 = vunpack.c.l.b16 %v1674
        %v1739 = vunpack.c.l.b16 %v1675
        %v1740 = vunpack.c.l.b16 %v1676
        %v1741 = vpack.c.b16 %v1710, %v1709
        %v1742 = vpack.c.b16 %v1712, %v1711
        %v1743 = vpack.c.b16 %v1714, %v1713
        %v1744 = vpack.c.b16 %v1716, %v1715
        %v1745 = vpack.c.b16 %v1718, %v1717
        %v1746 = vpack.c.b16 %v1720, %v1719
        %v1747 = vpack.c.b16 %v1722, %v1721
        %v1748 = vpack.c.b16 %v1724, %v1723
        %v1749 = vpack.c.b16 %v1726, %v1725
        %v1750 = vpack.c.b16 %v1728, %v1727
        %v1751 = vpack.c.b16 %v1730, %v1729
        %v1752 = vpack.c.b16 %v1732, %v1731
        %v1753 = vpack.c.b16 %v1734, %v1733
        %v1754 = vpack.c.b16 %v1736, %v1735
        %v1755 = vpack.c.b16 %v1738, %v1737
        %v1756 = vpack.c.b16 %v1740, %v1739
        %1773 = vmatprep.subr.bf16.mxu0 0
        %1774 = vmatpush1.bf16.msra.mxu0 %v1748
        %1775 = vmatprep.subr.bf16.mxu0 0
        %1776 = vmatpush1.bf16.msra.mxu0 %v1747
        %1777 = vmatprep.subr.bf16.mxu0 0
        %1778 = vmatpush1.bf16.msra.mxu0 %v1746
        %1779 = vmatprep.subr.bf16.mxu0 0
        %1780 = vmatpush1.bf16.msra.mxu0 %v1745
        %1781 = vmatprep.subr.bf16.mxu0 0
        %1782 = vmatpush1.bf16.msra.mxu0 %v1744
        %1783 = vmatprep.subr.bf16.mxu0 0
        %1784 = vmatpush1.bf16.msra.mxu0 %v1743
        %1785 = vmatprep.subr.bf16.mxu0 0
        %1786 = vmatpush1.bf16.msra.mxu0 %v1742
        %1787 = vmatprep.subr.bf16.mxu0 0
        %1788 = vmatpush1.bf16.msra.mxu0 %v1741
        %1789 = vmatprep.subr.bf16.mxu0 0
        %1790 = vmatpush2.bf16.msra.mxu0 %v1756
        %1791 = vmatprep.subr.bf16.mxu0 0
        %1792 = vmatpush2.bf16.msra.mxu0 %v1755
        %1793 = vmatprep.subr.bf16.mxu0 0
        %1794 = vmatpush2.bf16.msra.mxu0 %v1754
        %1795 = vmatprep.subr.bf16.mxu0 0
        %1796 = vmatpush2.bf16.msra.mxu0 %v1753
        %1797 = vmatprep.subr.bf16.mxu0 0
        %1798 = vmatpush2.bf16.msra.mxu0 %v1752
        %1799 = vmatprep.subr.bf16.mxu0 0
        %1800 = vmatpush2.bf16.msra.mxu0 %v1751
        %1801 = vmatprep.subr.bf16.mxu0 0
        %1802 = vmatpush2.bf16.msra.mxu0 %v1750
        %1803 = vmatprep.subr.bf16.mxu0 0
        %1804 = vmatpush2.bf16.msra.mxu0 %v1749
        %1805 = vmatprep.mubr.bf16.mxu0 %v930
        %1806 = vmatmul.mubr.bf16.gmra.mxu0 %v929
        %v1807 = vpop.f32.mrf.mxu0
        %v1808 = vadd.f32 0.0, %v1807
        %v1809 = vpop.f32.mrf.mxu0
        %v1810 = vpop.f32.mrf.mxu0
        %v1811 = vadd.f32 0.0, %v1810
        %v1812 = vpop.f32.mrf.mxu0
        %1813 = vdwg.mxu0
        %s1814 = scalar_lea.vmem [#allocation7], 36
        %v1815 = vld [vmem:[%s1814] sm:$0xf]
        %v1816 = vld [vmem:[%s1814 + $0x4] sm:$0xf]
        %v1817 = vld [vmem:[%s1814 + $0x8] sm:$0xf]
        %v1818 = vpack.c.bf16 %v1811, %v1808
        %v1822 = vunpack.c.l.b16 %v1815
        %v1823 = vunpack.c.l.b16 %v1816
        %v1824 = vunpack.c.l.b16 %v1817
        %v1825 = vpack.c.b16 %v1823, %v1822
        %v1826 = vpack.c.b16 %v1824, %v1824
        %v1828 = vsel %vm1287, %v1825, 0
        %v1831 = vsel %vm1287, %v1826, 0
        %1833 = vmatprep.subr.bf16.mxu0 0
        %1834 = vmatpush1.bf16.msra.mxu0 0
        %1835 = vmatprep.subr.bf16.mxu0 0
        %1836 = vmatpush1.bf16.msra.mxu0 0
        %1837 = vmatprep.subr.bf16.mxu0 0
        %1838 = vmatpush1.bf16.msra.mxu0 0
        %1839 = vmatprep.subr.bf16.mxu0 0
        %1840 = vmatpush1.bf16.msra.mxu0 0
        %1841 = vmatprep.subr.bf16.mxu0 0
        %1842 = vmatpush1.bf16.msra.mxu0 0
        %1843 = vmatprep.subr.bf16.mxu0 0
        %1844 = vmatpush1.bf16.msra.mxu0 0
        %1845 = vmatprep.subr.bf16.mxu0 0
        %1846 = vmatpush1.bf16.msra.mxu0 0
        %1847 = vmatprep.subr.bf16.mxu0 0
        %1848 = vmatpush1.bf16.msra.mxu0 %v1818
        %1849 = vmatprep.subr.bf16.mxu0 0
        %1850 = vmatpush2.bf16.msra.mxu0 0
        %1851 = vmatprep.subr.bf16.mxu0 0
        %1852 = vmatpush2.bf16.msra.mxu0 0
        %1853 = vmatprep.subr.bf16.mxu0 0
        %1854 = vmatpush2.bf16.msra.mxu0 0
        %1855 = vmatprep.subr.bf16.mxu0 0
        %1856 = vmatpush2.bf16.msra.mxu0 0
        %1857 = vmatprep.subr.bf16.mxu0 0
        %1858 = vmatpush2.bf16.msra.mxu0 0
        %1859 = vmatprep.subr.bf16.mxu0 0
        %1860 = vmatpush2.bf16.msra.mxu0 0
        %1861 = vmatprep.subr.bf16.mxu0 0
        %1862 = vmatpush2.bf16.msra.mxu0 0
        %1863 = vmatprep.subr.bf16.mxu0 0
        %1864 = vmatpush2.bf16.msra.mxu0 0
        %1865 = vmatprep.mubr.bf16.mxu0 0
        %1866 = vmatmul.mubr.bf16.gmra.mxu0 %v1828
        %v1867 = vpop.f32.mrf.mxu0
        %v1868 = vadd.f32 0.0, %v1867
        %v1869 = vpop.f32.mrf.mxu0
        %v1870 = vpop.f32.mrf.mxu0
        %v1871 = vadd.f32 0.0, %v1870
        %v1872 = vpop.f32.mrf.mxu0
        %1873 = vmatprep.mubr.bf16.mxu0 0
        %1874 = vmatmul.mubr.bf16.gmra.mxu0 %v1831
        %v1875 = vpop.f32.mrf.mxu0
        %v1876 = vadd.f32 0.0, %v1875
        %v1877 = vpop.f32.mrf.mxu0
        %v1878 = vpop.f32.mrf.mxu0
        %v1879 = vpop.f32.mrf.mxu0
        %1880 = vdwg.mxu0
        %v1881 = vadd.f32 %v1641, %v1868
        %v1882 = vadd.f32 %v1642, %v1871
        %v1883 = vadd.f32 %v1643, %v1876
        %s1884 = scalar_lea.vmem [#allocation6], 512
        %v1885 = vld [vmem:[%s1884] sm:$0xf]
        %v1886 = vld [vmem:[%s1884 + $0x4] sm:$0xf]
        %v1887 = vld [vmem:[%s1884 + $0x8] sm:$0xf]
        %v1888 = vld [vmem:[%s1884 + $0xc] sm:$0xf]
        %v1889 = vld [vmem:[%s1884 + $0x10] sm:$0xf]
        %v1890 = vld [vmem:[%s1884 + $0x14] sm:$0xf]
        %v1891 = vld [vmem:[%s1884 + $0x18] sm:$0xf]
        %v1892 = vld [vmem:[%s1884 + $0x1c] sm:$0xf]
        %v1893 = vld [vmem:[%s1884 + $0x20] sm:$0xf]
        %v1894 = vld [vmem:[%s1884 + $0x24] sm:$0xf]
        %v1895 = vld [vmem:[%s1884 + $0x28] sm:$0xf]
        %v1896 = vld [vmem:[%s1884 + $0x2c] sm:$0xf]
        %v1897 = vld [vmem:[%s1884 + $0x30] sm:$0xf]
        %v1898 = vld [vmem:[%s1884 + $0x34] sm:$0xf]
        %v1899 = vld [vmem:[%s1884 + $0x38] sm:$0xf]
        %v1900 = vld [vmem:[%s1884 + $0x3c] sm:$0xf]
        %v1901 = vld [vmem:[%s1884 + $0x40] sm:$0xf]
        %v1902 = vld [vmem:[%s1884 + $0x44] sm:$0xf]
        %v1903 = vld [vmem:[%s1884 + $0x48] sm:$0xf]
        %v1904 = vld [vmem:[%s1884 + $0x4c] sm:$0xf]
        %v1905 = vld [vmem:[%s1884 + $0x50] sm:$0xf]
        %v1906 = vld [vmem:[%s1884 + $0x54] sm:$0xf]
        %v1907 = vld [vmem:[%s1884 + $0x58] sm:$0xf]
        %v1908 = vld [vmem:[%s1884 + $0x5c] sm:$0xf]
        %v1909 = vld [vmem:[%s1884 + $0x60] sm:$0xf]
        %v1910 = vld [vmem:[%s1884 + $0x64] sm:$0xf]
        %v1911 = vld [vmem:[%s1884 + $0x68] sm:$0xf]
        %v1912 = vld [vmem:[%s1884 + $0x6c] sm:$0xf]
        %v1913 = vld [vmem:[%s1884 + $0x70] sm:$0xf]
        %v1914 = vld [vmem:[%s1884 + $0x74] sm:$0xf]
        %v1915 = vld [vmem:[%s1884 + $0x78] sm:$0xf]
        %v1916 = vld [vmem:[%s1884 + $0x7c] sm:$0xf]
        %v1949 = vunpack.c.l.b16 %v1885
        %v1950 = vunpack.c.l.b16 %v1886
        %v1951 = vunpack.c.l.b16 %v1887
        %v1952 = vunpack.c.l.b16 %v1888
        %v1953 = vunpack.c.l.b16 %v1889
        %v1954 = vunpack.c.l.b16 %v1890
        %v1955 = vunpack.c.l.b16 %v1891
        %v1956 = vunpack.c.l.b16 %v1892
        %v1957 = vunpack.c.l.b16 %v1893
        %v1958 = vunpack.c.l.b16 %v1894
        %v1959 = vunpack.c.l.b16 %v1895
        %v1960 = vunpack.c.l.b16 %v1896
        %v1961 = vunpack.c.l.b16 %v1897
        %v1962 = vunpack.c.l.b16 %v1898
        %v1963 = vunpack.c.l.b16 %v1899
        %v1964 = vunpack.c.l.b16 %v1900
        %v1965 = vunpack.c.l.b16 %v1901
        %v1966 = vunpack.c.l.b16 %v1902
        %v1967 = vunpack.c.l.b16 %v1903
        %v1968 = vunpack.c.l.b16 %v1904
        %v1969 = vunpack.c.l.b16 %v1905
        %v1970 = vunpack.c.l.b16 %v1906
        %v1971 = vunpack.c.l.b16 %v1907
        %v1972 = vunpack.c.l.b16 %v1908
        %v1973 = vunpack.c.l.b16 %v1909
        %v1974 = vunpack.c.l.b16 %v1910
        %v1975 = vunpack.c.l.b16 %v1911
        %v1976 = vunpack.c.l.b16 %v1912
        %v1977 = vunpack.c.l.b16 %v1913
        %v1978 = vunpack.c.l.b16 %v1914
        %v1979 = vunpack.c.l.b16 %v1915
        %v1980 = vunpack.c.l.b16 %v1916
        %v1981 = vpack.c.b16 %v1950, %v1949
        %v1982 = vpack.c.b16 %v1952, %v1951
        %v1983 = vpack.c.b16 %v1954, %v1953
        %v1984 = vpack.c.b16 %v1956, %v1955
        %v1985 = vpack.c.b16 %v1958, %v1957
        %v1986 = vpack.c.b16 %v1960, %v1959
        %v1987 = vpack.c.b16 %v1962, %v1961
        %v1988 = vpack.c.b16 %v1964, %v1963
        %v1989 = vpack.c.b16 %v1966, %v1965
        %v1990 = vpack.c.b16 %v1968, %v1967
        %v1991 = vpack.c.b16 %v1970, %v1969
        %v1992 = vpack.c.b16 %v1972, %v1971
        %v1993 = vpack.c.b16 %v1974, %v1973
        %v1994 = vpack.c.b16 %v1976, %v1975
        %v1995 = vpack.c.b16 %v1978, %v1977
        %v1996 = vpack.c.b16 %v1980, %v1979
        %2013 = vmatprep.subr.bf16.mxu0 0
        %2014 = vmatpush1.bf16.msra.mxu0 %v1988
        %2015 = vmatprep.subr.bf16.mxu0 0
        %2016 = vmatpush1.bf16.msra.mxu0 %v1987
        %2017 = vmatprep.subr.bf16.mxu0 0
        %2018 = vmatpush1.bf16.msra.mxu0 %v1986
        %2019 = vmatprep.subr.bf16.mxu0 0
        %2020 = vmatpush1.bf16.msra.mxu0 %v1985
        %2021 = vmatprep.subr.bf16.mxu0 0
        %2022 = vmatpush1.bf16.msra.mxu0 %v1984
        %2023 = vmatprep.subr.bf16.mxu0 0
        %2024 = vmatpush1.bf16.msra.mxu0 %v1983
        %2025 = vmatprep.subr.bf16.mxu0 0
        %2026 = vmatpush1.bf16.msra.mxu0 %v1982
        %2027 = vmatprep.subr.bf16.mxu0 0
        %2028 = vmatpush1.bf16.msra.mxu0 %v1981
        %2029 = vmatprep.subr.bf16.mxu0 0
        %2030 = vmatpush2.bf16.msra.mxu0 %v1996
        %2031 = vmatprep.subr.bf16.mxu0 0
        %2032 = vmatpush2.bf16.msra.mxu0 %v1995
        %2033 = vmatprep.subr.bf16.mxu0 0
        %2034 = vmatpush2.bf16.msra.mxu0 %v1994
        %2035 = vmatprep.subr.bf16.mxu0 0
        %2036 = vmatpush2.bf16.msra.mxu0 %v1993
        %2037 = vmatprep.subr.bf16.mxu0 0
        %2038 = vmatpush2.bf16.msra.mxu0 %v1992
        %2039 = vmatprep.subr.bf16.mxu0 0
        %2040 = vmatpush2.bf16.msra.mxu0 %v1991
        %2041 = vmatprep.subr.bf16.mxu0 0
        %2042 = vmatpush2.bf16.msra.mxu0 %v1990
        %2043 = vmatprep.subr.bf16.mxu0 0
        %2044 = vmatpush2.bf16.msra.mxu0 %v1989
        %2045 = vmatprep.mubr.bf16.mxu0 %v930
        %2046 = vmatmul.mubr.bf16.gmra.mxu0 %v929
        %v2047 = vpop.f32.mrf.mxu0
        %v2048 = vadd.f32 0.0, %v2047
        %v2049 = vpop.f32.mrf.mxu0
        %v2050 = vpop.f32.mrf.mxu0
        %v2051 = vadd.f32 0.0, %v2050
        %v2052 = vpop.f32.mrf.mxu0
        %2053 = vdwg.mxu0
        %s2054 = scalar_lea.vmem [#allocation7], 48
        %v2055 = vld [vmem:[%s2054] sm:$0xf]
        %v2056 = vld [vmem:[%s2054 + $0x4] sm:$0xf]
        %v2057 = vld [vmem:[%s2054 + $0x8] sm:$0xf]
        %v2058 = vpack.c.bf16 %v2051, %v2048
        %v2062 = vunpack.c.l.b16 %v2055
        %v2063 = vunpack.c.l.b16 %v2056
        %v2064 = vunpack.c.l.b16 %v2057
        %v2065 = vpack.c.b16 %v2063, %v2062
        %v2066 = vpack.c.b16 %v2064, %v2064
        %v2068 = vsel %vm1287, %v2065, 0
        %v2071 = vsel %vm1287, %v2066, 0
        %2073 = vmatprep.subr.bf16.mxu0 0
        %2074 = vmatpush1.bf16.msra.mxu0 0
        %2075 = vmatprep.subr.bf16.mxu0 0
        %2076 = vmatpush1.bf16.msra.mxu0 0
        %2077 = vmatprep.subr.bf16.mxu0 0
        %2078 = vmatpush1.bf16.msra.mxu0 0
        %2079 = vmatprep.subr.bf16.mxu0 0
        %2080 = vmatpush1.bf16.msra.mxu0 0
        %2081 = vmatprep.subr.bf16.mxu0 0
        %2082 = vmatpush1.bf16.msra.mxu0 0
        %2083 = vmatprep.subr.bf16.mxu0 0
        %2084 = vmatpush1.bf16.msra.mxu0 0
        %2085 = vmatprep.subr.bf16.mxu0 0
        %2086 = vmatpush1.bf16.msra.mxu0 0
        %2087 = vmatprep.subr.bf16.mxu0 0
        %2088 = vmatpush1.bf16.msra.mxu0 %v2058
        %2089 = vmatprep.subr.bf16.mxu0 0
        %2090 = vmatpush2.bf16.msra.mxu0 0
        %2091 = vmatprep.subr.bf16.mxu0 0
        %2092 = vmatpush2.bf16.msra.mxu0 0
        %2093 = vmatprep.subr.bf16.mxu0 0
        %2094 = vmatpush2.bf16.msra.mxu0 0
        %2095 = vmatprep.subr.bf16.mxu0 0
        %2096 = vmatpush2.bf16.msra.mxu0 0
        %2097 = vmatprep.subr.bf16.mxu0 0
        %2098 = vmatpush2.bf16.msra.mxu0 0
        %2099 = vmatprep.subr.bf16.mxu0 0
        %2100 = vmatpush2.bf16.msra.mxu0 0
        %2101 = vmatprep.subr.bf16.mxu0 0
        %2102 = vmatpush2.bf16.msra.mxu0 0
        %2103 = vmatprep.subr.bf16.mxu0 0
        %2104 = vmatpush2.bf16.msra.mxu0 0
        %2105 = vmatprep.mubr.bf16.mxu0 0
        %2106 = vmatmul.mubr.bf16.gmra.mxu0 %v2068
        %v2107 = vpop.f32.mrf.mxu0
        %v2108 = vadd.f32 0.0, %v2107
        %v2109 = vpop.f32.mrf.mxu0
        %v2110 = vpop.f32.mrf.mxu0
        %v2111 = vadd.f32 0.0, %v2110
        %v2112 = vpop.f32.mrf.mxu0
        %2113 = vmatprep.mubr.bf16.mxu0 0
        %2114 = vmatmul.mubr.bf16.gmra.mxu0 %v2071
        %v2115 = vpop.f32.mrf.mxu0
        %v2116 = vadd.f32 0.0, %v2115
        %v2117 = vpop.f32.mrf.mxu0
        %v2118 = vpop.f32.mrf.mxu0
        %v2119 = vpop.f32.mrf.mxu0
        %2120 = vdwg.mxu0
        %v2121 = vadd.f32 %v1881, %v2108
        %v2122 = vadd.f32 %v1882, %v2111
        %v2123 = vadd.f32 %v1883, %v2116
        %s2124 = scalar_lea.vmem [#allocation6], 640
        %v2125 = vld [vmem:[%s2124] sm:$0xf]
        %v2126 = vld [vmem:[%s2124 + $0x4] sm:$0xf]
        %v2127 = vld [vmem:[%s2124 + $0x8] sm:$0xf]
        %v2128 = vld [vmem:[%s2124 + $0xc] sm:$0xf]
        %v2129 = vld [vmem:[%s2124 + $0x10] sm:$0xf]
        %v2130 = vld [vmem:[%s2124 + $0x14] sm:$0xf]
        %v2131 = vld [vmem:[%s2124 + $0x18] sm:$0xf]
        %v2132 = vld [vmem:[%s2124 + $0x1c] sm:$0xf]
        %v2133 = vld [vmem:[%s2124 + $0x20] sm:$0xf]
        %v2134 = vld [vmem:[%s2124 + $0x24] sm:$0xf]
        %v2135 = vld [vmem:[%s2124 + $0x28] sm:$0xf]
        %v2136 = vld [vmem:[%s2124 + $0x2c] sm:$0xf]
        %v2137 = vld [vmem:[%s2124 + $0x30] sm:$0xf]
        %v2138 = vld [vmem:[%s2124 + $0x34] sm:$0xf]
        %v2139 = vld [vmem:[%s2124 + $0x38] sm:$0xf]
        %v2140 = vld [vmem:[%s2124 + $0x3c] sm:$0xf]
        %v2141 = vld [vmem:[%s2124 + $0x40] sm:$0xf]
        %v2142 = vld [vmem:[%s2124 + $0x44] sm:$0xf]
        %v2143 = vld [vmem:[%s2124 + $0x48] sm:$0xf]
        %v2144 = vld [vmem:[%s2124 + $0x4c] sm:$0xf]
        %v2145 = vld [vmem:[%s2124 + $0x50] sm:$0xf]
        %v2146 = vld [vmem:[%s2124 + $0x54] sm:$0xf]
        %v2147 = vld [vmem:[%s2124 + $0x58] sm:$0xf]
        %v2148 = vld [vmem:[%s2124 + $0x5c] sm:$0xf]
        %v2149 = vld [vmem:[%s2124 + $0x60] sm:$0xf]
        %v2150 = vld [vmem:[%s2124 + $0x64] sm:$0xf]
        %v2151 = vld [vmem:[%s2124 + $0x68] sm:$0xf]
        %v2152 = vld [vmem:[%s2124 + $0x6c] sm:$0xf]
        %v2153 = vld [vmem:[%s2124 + $0x70] sm:$0xf]
        %v2154 = vld [vmem:[%s2124 + $0x74] sm:$0xf]
        %v2155 = vld [vmem:[%s2124 + $0x78] sm:$0xf]
        %v2156 = vld [vmem:[%s2124 + $0x7c] sm:$0xf]
        %v2189 = vunpack.c.l.b16 %v2125
        %v2190 = vunpack.c.l.b16 %v2126
        %v2191 = vunpack.c.l.b16 %v2127
        %v2192 = vunpack.c.l.b16 %v2128
        %v2193 = vunpack.c.l.b16 %v2129
        %v2194 = vunpack.c.l.b16 %v2130
        %v2195 = vunpack.c.l.b16 %v2131
        %v2196 = vunpack.c.l.b16 %v2132
        %v2197 = vunpack.c.l.b16 %v2133
        %v2198 = vunpack.c.l.b16 %v2134
        %v2199 = vunpack.c.l.b16 %v2135
        %v2200 = vunpack.c.l.b16 %v2136
        %v2201 = vunpack.c.l.b16 %v2137
        %v2202 = vunpack.c.l.b16 %v2138
        %v2203 = vunpack.c.l.b16 %v2139
        %v2204 = vunpack.c.l.b16 %v2140
        %v2205 = vunpack.c.l.b16 %v2141
        %v2206 = vunpack.c.l.b16 %v2142
        %v2207 = vunpack.c.l.b16 %v2143
        %v2208 = vunpack.c.l.b16 %v2144
        %v2209 = vunpack.c.l.b16 %v2145
        %v2210 = vunpack.c.l.b16 %v2146
        %v2211 = vunpack.c.l.b16 %v2147
        %v2212 = vunpack.c.l.b16 %v2148
        %v2213 = vunpack.c.l.b16 %v2149
        %v2214 = vunpack.c.l.b16 %v2150
        %v2215 = vunpack.c.l.b16 %v2151
        %v2216 = vunpack.c.l.b16 %v2152
        %v2217 = vunpack.c.l.b16 %v2153
        %v2218 = vunpack.c.l.b16 %v2154
        %v2219 = vunpack.c.l.b16 %v2155
        %v2220 = vunpack.c.l.b16 %v2156
        %v2221 = vpack.c.b16 %v2190, %v2189
        %v2222 = vpack.c.b16 %v2192, %v2191
        %v2223 = vpack.c.b16 %v2194, %v2193
        %v2224 = vpack.c.b16 %v2196, %v2195
        %v2225 = vpack.c.b16 %v2198, %v2197
        %v2226 = vpack.c.b16 %v2200, %v2199
        %v2227 = vpack.c.b16 %v2202, %v2201
        %v2228 = vpack.c.b16 %v2204, %v2203
        %v2229 = vpack.c.b16 %v2206, %v2205
        %v2230 = vpack.c.b16 %v2208, %v2207
        %v2231 = vpack.c.b16 %v2210, %v2209
        %v2232 = vpack.c.b16 %v2212, %v2211
        %v2233 = vpack.c.b16 %v2214, %v2213
        %v2234 = vpack.c.b16 %v2216, %v2215
        %v2235 = vpack.c.b16 %v2218, %v2217
        %v2236 = vpack.c.b16 %v2220, %v2219
        %2253 = vmatprep.subr.bf16.mxu0 0
        %2254 = vmatpush1.bf16.msra.mxu0 %v2228
        %2255 = vmatprep.subr.bf16.mxu0 0
        %2256 = vmatpush1.bf16.msra.mxu0 %v2227
        %2257 = vmatprep.subr.bf16.mxu0 0
        %2258 = vmatpush1.bf16.msra.mxu0 %v2226
        %2259 = vmatprep.subr.bf16.mxu0 0
        %2260 = vmatpush1.bf16.msra.mxu0 %v2225
        %2261 = vmatprep.subr.bf16.mxu0 0
        %2262 = vmatpush1.bf16.msra.mxu0 %v2224
        %2263 = vmatprep.subr.bf16.mxu0 0
        %2264 = vmatpush1.bf16.msra.mxu0 %v2223
        %2265 = vmatprep.subr.bf16.mxu0 0
        %2266 = vmatpush1.bf16.msra.mxu0 %v2222
        %2267 = vmatprep.subr.bf16.mxu0 0
        %2268 = vmatpush1.bf16.msra.mxu0 %v2221
        %2269 = vmatprep.subr.bf16.mxu0 0
        %2270 = vmatpush2.bf16.msra.mxu0 %v2236
        %2271 = vmatprep.subr.bf16.mxu0 0
        %2272 = vmatpush2.bf16.msra.mxu0 %v2235
        %2273 = vmatprep.subr.bf16.mxu0 0
        %2274 = vmatpush2.bf16.msra.mxu0 %v2234
        %2275 = vmatprep.subr.bf16.mxu0 0
        %2276 = vmatpush2.bf16.msra.mxu0 %v2233
        %2277 = vmatprep.subr.bf16.mxu0 0
        %2278 = vmatpush2.bf16.msra.mxu0 %v2232
        %2279 = vmatprep.subr.bf16.mxu0 0
        %2280 = vmatpush2.bf16.msra.mxu0 %v2231
        %2281 = vmatprep.subr.bf16.mxu0 0
        %2282 = vmatpush2.bf16.msra.mxu0 %v2230
        %2283 = vmatprep.subr.bf16.mxu0 0
        %2284 = vmatpush2.bf16.msra.mxu0 %v2229
        %2285 = vmatprep.mubr.bf16.mxu0 %v930
        %2286 = vmatmul.mubr.bf16.gmra.mxu0 %v929
        %v2287 = vpop.f32.mrf.mxu0
        %v2288 = vadd.f32 0.0, %v2287
        %v2289 = vpop.f32.mrf.mxu0
        %v2290 = vpop.f32.mrf.mxu0
        %v2291 = vadd.f32 0.0, %v2290
        %v2292 = vpop.f32.mrf.mxu0
        %2293 = vdwg.mxu0
        %s2294 = scalar_lea.vmem [#allocation7], 60
        %v2295 = vld [vmem:[%s2294] sm:$0xf]
        %v2296 = vld [vmem:[%s2294 + $0x4] sm:$0xf]
        %v2297 = vld [vmem:[%s2294 + $0x8] sm:$0xf]
        %v2298 = vpack.c.bf16 %v2291, %v2288
        %v2302 = vunpack.c.l.b16 %v2295
        %v2303 = vunpack.c.l.b16 %v2296
        %v2304 = vunpack.c.l.b16 %v2297
        %v2305 = vpack.c.b16 %v2303, %v2302
        %v2306 = vpack.c.b16 %v2304, %v2304
        %v2308 = vsel %vm1287, %v2305, 0
        %v2311 = vsel %vm1287, %v2306, 0
        %2313 = vmatprep.subr.bf16.mxu0 0
        %2314 = vmatpush1.bf16.msra.mxu0 0
        %2315 = vmatprep.subr.bf16.mxu0 0
        %2316 = vmatpush1.bf16.msra.mxu0 0
        %2317 = vmatprep.subr.bf16.mxu0 0
        %2318 = vmatpush1.bf16.msra.mxu0 0
        %2319 = vmatprep.subr.bf16.mxu0 0
        %2320 = vmatpush1.bf16.msra.mxu0 0
        %2321 = vmatprep.subr.bf16.mxu0 0
        %2322 = vmatpush1.bf16.msra.mxu0 0
        %2323 = vmatprep.subr.bf16.mxu0 0
        %2324 = vmatpush1.bf16.msra.mxu0 0
        %2325 = vmatprep.subr.bf16.mxu0 0
        %2326 = vmatpush1.bf16.msra.mxu0 0
        %2327 = vmatprep.subr.bf16.mxu0 0
        %2328 = vmatpush1.bf16.msra.mxu0 %v2298
        %2329 = vmatprep.subr.bf16.mxu0 0
        %2330 = vmatpush2.bf16.msra.mxu0 0
        %2331 = vmatprep.subr.bf16.mxu0 0
        %2332 = vmatpush2.bf16.msra.mxu0 0
        %2333 = vmatprep.subr.bf16.mxu0 0
        %2334 = vmatpush2.bf16.msra.mxu0 0
        %2335 = vmatprep.subr.bf16.mxu0 0
        %2336 = vmatpush2.bf16.msra.mxu0 0
        %2337 = vmatprep.subr.bf16.mxu0 0
        %2338 = vmatpush2.bf16.msra.mxu0 0
        %2339 = vmatprep.subr.bf16.mxu0 0
        %2340 = vmatpush2.bf16.msra.mxu0 0
        %2341 = vmatprep.subr.bf16.mxu0 0
        %2342 = vmatpush2.bf16.msra.mxu0 0
        %2343 = vmatprep.subr.bf16.mxu0 0
        %2344 = vmatpush2.bf16.msra.mxu0 0
        %2345 = vmatprep.mubr.bf16.mxu0 0
        %2346 = vmatmul.mubr.bf16.gmra.mxu0 %v2308
        %v2347 = vpop.f32.mrf.mxu0
        %v2348 = vadd.f32 0.0, %v2347
        %v2349 = vpop.f32.mrf.mxu0
        %v2350 = vpop.f32.mrf.mxu0
        %v2351 = vadd.f32 0.0, %v2350
        %v2352 = vpop.f32.mrf.mxu0
        %2353 = vmatprep.mubr.bf16.mxu0 0
        %2354 = vmatmul.mubr.bf16.gmra.mxu0 %v2311
        %v2355 = vpop.f32.mrf.mxu0
        %v2356 = vadd.f32 0.0, %v2355
        %v2357 = vpop.f32.mrf.mxu0
        %v2358 = vpop.f32.mrf.mxu0
        %v2359 = vpop.f32.mrf.mxu0
        %2360 = vdwg.mxu0
        %v2361 = vadd.f32 %v2121, %v2348
        %v2362 = vadd.f32 %v2122, %v2351
        %v2363 = vadd.f32 %v2123, %v2356
        %s2364 = scalar_lea.vmem [#allocation6], 768
        %v2365 = vld [vmem:[%s2364] sm:$0xf]
        %v2366 = vld [vmem:[%s2364 + $0x4] sm:$0xf]
        %v2367 = vld [vmem:[%s2364 + $0x8] sm:$0xf]
        %v2368 = vld [vmem:[%s2364 + $0xc] sm:$0xf]
        %v2369 = vld [vmem:[%s2364 + $0x10] sm:$0xf]
        %v2370 = vld [vmem:[%s2364 + $0x14] sm:$0xf]
        %v2371 = vld [vmem:[%s2364 + $0x18] sm:$0xf]
        %v2372 = vld [vmem:[%s2364 + $0x1c] sm:$0xf]
        %v2373 = vld [vmem:[%s2364 + $0x20] sm:$0xf]
        %v2374 = vld [vmem:[%s2364 + $0x24] sm:$0xf]
        %v2375 = vld [vmem:[%s2364 + $0x28] sm:$0xf]
        %v2376 = vld [vmem:[%s2364 + $0x2c] sm:$0xf]
        %v2377 = vld [vmem:[%s2364 + $0x30] sm:$0xf]
        %v2378 = vld [vmem:[%s2364 + $0x34] sm:$0xf]
        %v2379 = vld [vmem:[%s2364 + $0x38] sm:$0xf]
        %v2380 = vld [vmem:[%s2364 + $0x3c] sm:$0xf]
        %v2381 = vld [vmem:[%s2364 + $0x40] sm:$0xf]
        %v2382 = vld [vmem:[%s2364 + $0x44] sm:$0xf]
        %v2383 = vld [vmem:[%s2364 + $0x48] sm:$0xf]
        %v2384 = vld [vmem:[%s2364 + $0x4c] sm:$0xf]
        %v2385 = vld [vmem:[%s2364 + $0x50] sm:$0xf]
        %v2386 = vld [vmem:[%s2364 + $0x54] sm:$0xf]
        %v2387 = vld [vmem:[%s2364 + $0x58] sm:$0xf]
        %v2388 = vld [vmem:[%s2364 + $0x5c] sm:$0xf]
        %v2389 = vld [vmem:[%s2364 + $0x60] sm:$0xf]
        %v2390 = vld [vmem:[%s2364 + $0x64] sm:$0xf]
        %v2391 = vld [vmem:[%s2364 + $0x68] sm:$0xf]
        %v2392 = vld [vmem:[%s2364 + $0x6c] sm:$0xf]
        %v2393 = vld [vmem:[%s2364 + $0x70] sm:$0xf]
        %v2394 = vld [vmem:[%s2364 + $0x74] sm:$0xf]
        %v2395 = vld [vmem:[%s2364 + $0x78] sm:$0xf]
        %v2396 = vld [vmem:[%s2364 + $0x7c] sm:$0xf]
        %v2429 = vunpack.c.l.b16 %v2365
        %v2430 = vunpack.c.l.b16 %v2366
        %v2431 = vunpack.c.l.b16 %v2367
        %v2432 = vunpack.c.l.b16 %v2368
        %v2433 = vunpack.c.l.b16 %v2369
        %v2434 = vunpack.c.l.b16 %v2370
        %v2435 = vunpack.c.l.b16 %v2371
        %v2436 = vunpack.c.l.b16 %v2372
        %v2437 = vunpack.c.l.b16 %v2373
        %v2438 = vunpack.c.l.b16 %v2374
        %v2439 = vunpack.c.l.b16 %v2375
        %v2440 = vunpack.c.l.b16 %v2376
        %v2441 = vunpack.c.l.b16 %v2377
        %v2442 = vunpack.c.l.b16 %v2378
        %v2443 = vunpack.c.l.b16 %v2379
        %v2444 = vunpack.c.l.b16 %v2380
        %v2445 = vunpack.c.l.b16 %v2381
        %v2446 = vunpack.c.l.b16 %v2382
        %v2447 = vunpack.c.l.b16 %v2383
        %v2448 = vunpack.c.l.b16 %v2384
        %v2449 = vunpack.c.l.b16 %v2385
        %v2450 = vunpack.c.l.b16 %v2386
        %v2451 = vunpack.c.l.b16 %v2387
        %v2452 = vunpack.c.l.b16 %v2388
        %v2453 = vunpack.c.l.b16 %v2389
        %v2454 = vunpack.c.l.b16 %v2390
        %v2455 = vunpack.c.l.b16 %v2391
        %v2456 = vunpack.c.l.b16 %v2392
        %v2457 = vunpack.c.l.b16 %v2393
        %v2458 = vunpack.c.l.b16 %v2394
        %v2459 = vunpack.c.l.b16 %v2395
        %v2460 = vunpack.c.l.b16 %v2396
        %v2461 = vpack.c.b16 %v2430, %v2429
        %v2462 = vpack.c.b16 %v2432, %v2431
        %v2463 = vpack.c.b16 %v2434, %v2433
        %v2464 = vpack.c.b16 %v2436, %v2435
        %v2465 = vpack.c.b16 %v2438, %v2437
        %v2466 = vpack.c.b16 %v2440, %v2439
        %v2467 = vpack.c.b16 %v2442, %v2441
        %v2468 = vpack.c.b16 %v2444, %v2443
        %v2469 = vpack.c.b16 %v2446, %v2445
        %v2470 = vpack.c.b16 %v2448, %v2447
        %v2471 = vpack.c.b16 %v2450, %v2449
        %v2472 = vpack.c.b16 %v2452, %v2451
        %v2473 = vpack.c.b16 %v2454, %v2453
        %v2474 = vpack.c.b16 %v2456, %v2455
        %v2475 = vpack.c.b16 %v2458, %v2457
        %v2476 = vpack.c.b16 %v2460, %v2459
        %2493 = vmatprep.subr.bf16.mxu0 0
        %2494 = vmatpush1.bf16.msra.mxu0 %v2468
        %2495 = vmatprep.subr.bf16.mxu0 0
        %2496 = vmatpush1.bf16.msra.mxu0 %v2467
        %2497 = vmatprep.subr.bf16.mxu0 0
        %2498 = vmatpush1.bf16.msra.mxu0 %v2466
        %2499 = vmatprep.subr.bf16.mxu0 0
        %2500 = vmatpush1.bf16.msra.mxu0 %v2465
        %2501 = vmatprep.subr.bf16.mxu0 0
        %2502 = vmatpush1.bf16.msra.mxu0 %v2464
        %2503 = vmatprep.subr.bf16.mxu0 0
        %2504 = vmatpush1.bf16.msra.mxu0 %v2463
        %2505 = vmatprep.subr.bf16.mxu0 0
        %2506 = vmatpush1.bf16.msra.mxu0 %v2462
        %2507 = vmatprep.subr.bf16.mxu0 0
        %2508 = vmatpush1.bf16.msra.mxu0 %v2461
        %2509 = vmatprep.subr.bf16.mxu0 0
        %2510 = vmatpush2.bf16.msra.mxu0 %v2476
        %2511 = vmatprep.subr.bf16.mxu0 0
        %2512 = vmatpush2.bf16.msra.mxu0 %v2475
        %2513 = vmatprep.subr.bf16.mxu0 0
        %2514 = vmatpush2.bf16.msra.mxu0 %v2474
        %2515 = vmatprep.subr.bf16.mxu0 0
        %2516 = vmatpush2.bf16.msra.mxu0 %v2473
        %2517 = vmatprep.subr.bf16.mxu0 0
        %2518 = vmatpush2.bf16.msra.mxu0 %v2472
        %2519 = vmatprep.subr.bf16.mxu0 0
        %2520 = vmatpush2.bf16.msra.mxu0 %v2471
        %2521 = vmatprep.subr.bf16.mxu0 0
        %2522 = vmatpush2.bf16.msra.mxu0 %v2470
        %2523 = vmatprep.subr.bf16.mxu0 0
        %2524 = vmatpush2.bf16.msra.mxu0 %v2469
        %2525 = vmatprep.mubr.bf16.mxu0 %v930
        %2526 = vmatmul.mubr.bf16.gmra.mxu0 %v929
        %v2527 = vpop.f32.mrf.mxu0
        %v2528 = vadd.f32 0.0, %v2527
        %v2529 = vpop.f32.mrf.mxu0
        %v2530 = vpop.f32.mrf.mxu0
        %v2531 = vadd.f32 0.0, %v2530
        %v2532 = vpop.f32.mrf.mxu0
        %2533 = vdwg.mxu0
        %s2534 = scalar_lea.vmem [#allocation7], 72
        %v2535 = vld [vmem:[%s2534] sm:$0xf]
        %v2536 = vld [vmem:[%s2534 + $0x4] sm:$0xf]
        %v2537 = vld [vmem:[%s2534 + $0x8] sm:$0xf]
        %v2538 = vpack.c.bf16 %v2531, %v2528
        %v2542 = vunpack.c.l.b16 %v2535
        %v2543 = vunpack.c.l.b16 %v2536
        %v2544 = vunpack.c.l.b16 %v2537
        %v2545 = vpack.c.b16 %v2543, %v2542
        %v2546 = vpack.c.b16 %v2544, %v2544
        %v2548 = vsel %vm1287, %v2545, 0
        %v2551 = vsel %vm1287, %v2546, 0
        %2553 = vmatprep.subr.bf16.mxu0 0
        %2554 = vmatpush1.bf16.msra.mxu0 0
        %2555 = vmatprep.subr.bf16.mxu0 0
        %2556 = vmatpush1.bf16.msra.mxu0 0
        %2557 = vmatprep.subr.bf16.mxu0 0
        %2558 = vmatpush1.bf16.msra.mxu0 0
        %2559 = vmatprep.subr.bf16.mxu0 0
        %2560 = vmatpush1.bf16.msra.mxu0 0
        %2561 = vmatprep.subr.bf16.mxu0 0
        %2562 = vmatpush1.bf16.msra.mxu0 0
        %2563 = vmatprep.subr.bf16.mxu0 0
        %2564 = vmatpush1.bf16.msra.mxu0 0
        %2565 = vmatprep.subr.bf16.mxu0 0
        %2566 = vmatpush1.bf16.msra.mxu0 0
        %2567 = vmatprep.subr.bf16.mxu0 0
        %2568 = vmatpush1.bf16.msra.mxu0 %v2538
        %2569 = vmatprep.subr.bf16.mxu0 0
        %2570 = vmatpush2.bf16.msra.mxu0 0
        %2571 = vmatprep.subr.bf16.mxu0 0
        %2572 = vmatpush2.bf16.msra.mxu0 0
        %2573 = vmatprep.subr.bf16.mxu0 0
        %2574 = vmatpush2.bf16.msra.mxu0 0
        %2575 = vmatprep.subr.bf16.mxu0 0
        %2576 = vmatpush2.bf16.msra.mxu0 0
        %2577 = vmatprep.subr.bf16.mxu0 0
        %2578 = vmatpush2.bf16.msra.mxu0 0
        %2579 = vmatprep.subr.bf16.mxu0 0
        %2580 = vmatpush2.bf16.msra.mxu0 0
        %2581 = vmatprep.subr.bf16.mxu0 0
        %2582 = vmatpush2.bf16.msra.mxu0 0
        %2583 = vmatprep.subr.bf16.mxu0 0
        %2584 = vmatpush2.bf16.msra.mxu0 0
        %2585 = vmatprep.mubr.bf16.mxu0 0
        %2586 = vmatmul.mubr.bf16.gmra.mxu0 %v2548
        %v2587 = vpop.f32.mrf.mxu0
        %v2588 = vadd.f32 0.0, %v2587
        %v2589 = vpop.f32.mrf.mxu0
        %v2590 = vpop.f32.mrf.mxu0
        %v2591 = vadd.f32 0.0, %v2590
        %v2592 = vpop.f32.mrf.mxu0
        %2593 = vmatprep.mubr.bf16.mxu0 0
        %2594 = vmatmul.mubr.bf16.gmra.mxu0 %v2551
        %v2595 = vpop.f32.mrf.mxu0
        %v2596 = vadd.f32 0.0, %v2595
        %v2597 = vpop.f32.mrf.mxu0
        %v2598 = vpop.f32.mrf.mxu0
        %v2599 = vpop.f32.mrf.mxu0
        %2600 = vdwg.mxu0
        %v2601 = vadd.f32 %v2361, %v2588
        %v2602 = vadd.f32 %v2362, %v2591
        %v2603 = vadd.f32 %v2363, %v2596
        %s2604 = scalar_lea.vmem [#allocation6], 896
        %v2605 = vld [vmem:[%s2604] sm:$0xf]
        %v2606 = vld [vmem:[%s2604 + $0x4] sm:$0xf]
        %v2607 = vld [vmem:[%s2604 + $0x8] sm:$0xf]
        %v2608 = vld [vmem:[%s2604 + $0xc] sm:$0xf]
        %v2609 = vld [vmem:[%s2604 + $0x10] sm:$0xf]
        %v2610 = vld [vmem:[%s2604 + $0x14] sm:$0xf]
        %v2611 = vld [vmem:[%s2604 + $0x18] sm:$0xf]
        %v2612 = vld [vmem:[%s2604 + $0x1c] sm:$0xf]
        %v2613 = vld [vmem:[%s2604 + $0x20] sm:$0xf]
        %v2614 = vld [vmem:[%s2604 + $0x24] sm:$0xf]
        %v2615 = vld [vmem:[%s2604 + $0x28] sm:$0xf]
        %v2616 = vld [vmem:[%s2604 + $0x2c] sm:$0xf]
        %v2617 = vld [vmem:[%s2604 + $0x30] sm:$0xf]
        %v2618 = vld [vmem:[%s2604 + $0x34] sm:$0xf]
        %v2619 = vld [vmem:[%s2604 + $0x38] sm:$0xf]
        %v2620 = vld [vmem:[%s2604 + $0x3c] sm:$0xf]
        %v2621 = vld [vmem:[%s2604 + $0x40] sm:$0xf]
        %v2622 = vld [vmem:[%s2604 + $0x44] sm:$0xf]
        %v2623 = vld [vmem:[%s2604 + $0x48] sm:$0xf]
        %v2624 = vld [vmem:[%s2604 + $0x4c] sm:$0xf]
        %v2625 = vld [vmem:[%s2604 + $0x50] sm:$0xf]
        %v2626 = vld [vmem:[%s2604 + $0x54] sm:$0xf]
        %v2627 = vld [vmem:[%s2604 + $0x58] sm:$0xf]
        %v2628 = vld [vmem:[%s2604 + $0x5c] sm:$0xf]
        %v2629 = vld [vmem:[%s2604 + $0x60] sm:$0xf]
        %v2630 = vld [vmem:[%s2604 + $0x64] sm:$0xf]
        %v2631 = vld [vmem:[%s2604 + $0x68] sm:$0xf]
        %v2632 = vld [vmem:[%s2604 + $0x6c] sm:$0xf]
        %v2633 = vld [vmem:[%s2604 + $0x70] sm:$0xf]
        %v2634 = vld [vmem:[%s2604 + $0x74] sm:$0xf]
        %v2635 = vld [vmem:[%s2604 + $0x78] sm:$0xf]
        %v2636 = vld [vmem:[%s2604 + $0x7c] sm:$0xf]
        %v2669 = vunpack.c.l.b16 %v2605
        %v2670 = vunpack.c.l.b16 %v2606
        %v2671 = vunpack.c.l.b16 %v2607
        %v2672 = vunpack.c.l.b16 %v2608
        %v2673 = vunpack.c.l.b16 %v2609
        %v2674 = vunpack.c.l.b16 %v2610
        %v2675 = vunpack.c.l.b16 %v2611
        %v2676 = vunpack.c.l.b16 %v2612
        %v2677 = vunpack.c.l.b16 %v2613
        %v2678 = vunpack.c.l.b16 %v2614
        %v2679 = vunpack.c.l.b16 %v2615
        %v2680 = vunpack.c.l.b16 %v2616
        %v2681 = vunpack.c.l.b16 %v2617
        %v2682 = vunpack.c.l.b16 %v2618
        %v2683 = vunpack.c.l.b16 %v2619
        %v2684 = vunpack.c.l.b16 %v2620
        %v2685 = vunpack.c.l.b16 %v2621
        %v2686 = vunpack.c.l.b16 %v2622
        %v2687 = vunpack.c.l.b16 %v2623
        %v2688 = vunpack.c.l.b16 %v2624
        %v2689 = vunpack.c.l.b16 %v2625
        %v2690 = vunpack.c.l.b16 %v2626
        %v2691 = vunpack.c.l.b16 %v2627
        %v2692 = vunpack.c.l.b16 %v2628
        %v2693 = vunpack.c.l.b16 %v2629
        %v2694 = vunpack.c.l.b16 %v2630
        %v2695 = vunpack.c.l.b16 %v2631
        %v2696 = vunpack.c.l.b16 %v2632
        %v2697 = vunpack.c.l.b16 %v2633
        %v2698 = vunpack.c.l.b16 %v2634
        %v2699 = vunpack.c.l.b16 %v2635
        %v2700 = vunpack.c.l.b16 %v2636
        %v2701 = vpack.c.b16 %v2670, %v2669
        %v2702 = vpack.c.b16 %v2672, %v2671
        %v2703 = vpack.c.b16 %v2674, %v2673
        %v2704 = vpack.c.b16 %v2676, %v2675
        %v2705 = vpack.c.b16 %v2678, %v2677
        %v2706 = vpack.c.b16 %v2680, %v2679
        %v2707 = vpack.c.b16 %v2682, %v2681
        %v2708 = vpack.c.b16 %v2684, %v2683
        %v2709 = vpack.c.b16 %v2686, %v2685
        %v2710 = vpack.c.b16 %v2688, %v2687
        %v2711 = vpack.c.b16 %v2690, %v2689
        %v2712 = vpack.c.b16 %v2692, %v2691
        %v2713 = vpack.c.b16 %v2694, %v2693
        %v2714 = vpack.c.b16 %v2696, %v2695
        %v2715 = vpack.c.b16 %v2698, %v2697
        %v2716 = vpack.c.b16 %v2700, %v2699
        %2733 = vmatprep.subr.bf16.mxu0 0
        %2734 = vmatpush1.bf16.msra.mxu0 %v2708
        %2735 = vmatprep.subr.bf16.mxu0 0
        %2736 = vmatpush1.bf16.msra.mxu0 %v2707
        %2737 = vmatprep.subr.bf16.mxu0 0
        %2738 = vmatpush1.bf16.msra.mxu0 %v2706
        %2739 = vmatprep.subr.bf16.mxu0 0
        %2740 = vmatpush1.bf16.msra.mxu0 %v2705
        %2741 = vmatprep.subr.bf16.mxu0 0
        %2742 = vmatpush1.bf16.msra.mxu0 %v2704
        %2743 = vmatprep.subr.bf16.mxu0 0
        %2744 = vmatpush1.bf16.msra.mxu0 %v2703
        %2745 = vmatprep.subr.bf16.mxu0 0
        %2746 = vmatpush1.bf16.msra.mxu0 %v2702
        %2747 = vmatprep.subr.bf16.mxu0 0
        %2748 = vmatpush1.bf16.msra.mxu0 %v2701
        %2749 = vmatprep.subr.bf16.mxu0 0
        %2750 = vmatpush2.bf16.msra.mxu0 %v2716
        %2751 = vmatprep.subr.bf16.mxu0 0
        %2752 = vmatpush2.bf16.msra.mxu0 %v2715
        %2753 = vmatprep.subr.bf16.mxu0 0
        %2754 = vmatpush2.bf16.msra.mxu0 %v2714
        %2755 = vmatprep.subr.bf16.mxu0 0
        %2756 = vmatpush2.bf16.msra.mxu0 %v2713
        %2757 = vmatprep.subr.bf16.mxu0 0
        %2758 = vmatpush2.bf16.msra.mxu0 %v2712
        %2759 = vmatprep.subr.bf16.mxu0 0
        %2760 = vmatpush2.bf16.msra.mxu0 %v2711
        %2761 = vmatprep.subr.bf16.mxu0 0
        %2762 = vmatpush2.bf16.msra.mxu0 %v2710
        %2763 = vmatprep.subr.bf16.mxu0 0
        %2764 = vmatpush2.bf16.msra.mxu0 %v2709
        %2765 = vmatprep.mubr.bf16.mxu0 %v930
        %2766 = vmatmul.mubr.bf16.gmra.mxu0 %v929
        %v2767 = vpop.f32.mrf.mxu0
        %v2768 = vadd.f32 0.0, %v2767
        %v2769 = vpop.f32.mrf.mxu0
        %v2770 = vpop.f32.mrf.mxu0
        %v2771 = vadd.f32 0.0, %v2770
        %v2772 = vpop.f32.mrf.mxu0
        %2773 = vdwg.mxu0
        %s2774 = scalar_lea.vmem [#allocation7], 84
        %v2775 = vld [vmem:[%s2774] sm:$0xf]
        %v2776 = vld [vmem:[%s2774 + $0x4] sm:$0xf]
        %v2777 = vld [vmem:[%s2774 + $0x8] sm:$0xf]
        %v2778 = vpack.c.bf16 %v2771, %v2768
        %v2782 = vunpack.c.l.b16 %v2775
        %v2783 = vunpack.c.l.b16 %v2776
        %v2784 = vunpack.c.l.b16 %v2777
        %v2785 = vpack.c.b16 %v2783, %v2782
        %v2786 = vpack.c.b16 %v2784, %v2784
        %v2788 = vsel %vm1287, %v2785, 0
        %v2791 = vsel %vm1287, %v2786, 0
        %2793 = vmatprep.subr.bf16.mxu0 0
        %2794 = vmatpush1.bf16.msra.mxu0 0
        %2795 = vmatprep.subr.bf16.mxu0 0
        %2796 = vmatpush1.bf16.msra.mxu0 0
        %2797 = vmatprep.subr.bf16.mxu0 0
        %2798 = vmatpush1.bf16.msra.mxu0 0
        %2799 = vmatprep.subr.bf16.mxu0 0
        %2800 = vmatpush1.bf16.msra.mxu0 0
        %2801 = vmatprep.subr.bf16.mxu0 0
        %2802 = vmatpush1.bf16.msra.mxu0 0
        %2803 = vmatprep.subr.bf16.mxu0 0
        %2804 = vmatpush1.bf16.msra.mxu0 0
        %2805 = vmatprep.subr.bf16.mxu0 0
        %2806 = vmatpush1.bf16.msra.mxu0 0
        %2807 = vmatprep.subr.bf16.mxu0 0
        %2808 = vmatpush1.bf16.msra.mxu0 %v2778
        %2809 = vmatprep.subr.bf16.mxu0 0
        %2810 = vmatpush2.bf16.msra.mxu0 0
        %2811 = vmatprep.subr.bf16.mxu0 0
        %2812 = vmatpush2.bf16.msra.mxu0 0
        %2813 = vmatprep.subr.bf16.mxu0 0
        %2814 = vmatpush2.bf16.msra.mxu0 0
        %2815 = vmatprep.subr.bf16.mxu0 0
        %2816 = vmatpush2.bf16.msra.mxu0 0
        %2817 = vmatprep.subr.bf16.mxu0 0
        %2818 = vmatpush2.bf16.msra.mxu0 0
        %2819 = vmatprep.subr.bf16.mxu0 0
        %2820 = vmatpush2.bf16.msra.mxu0 0
        %2821 = vmatprep.subr.bf16.mxu0 0
        %2822 = vmatpush2.bf16.msra.mxu0 0
        %2823 = vmatprep.subr.bf16.mxu0 0
        %2824 = vmatpush2.bf16.msra.mxu0 0
        %2825 = vmatprep.mubr.bf16.mxu0 0
        %2826 = vmatmul.mubr.bf16.gmra.mxu0 %v2788
        %v2827 = vpop.f32.mrf.mxu0
        %v2828 = vadd.f32 0.0, %v2827
        %v2829 = vpop.f32.mrf.mxu0
        %v2830 = vpop.f32.mrf.mxu0
        %v2831 = vadd.f32 0.0, %v2830
        %v2832 = vpop.f32.mrf.mxu0
        %2833 = vmatprep.mubr.bf16.mxu0 0
        %2834 = vmatmul.mubr.bf16.gmra.mxu0 %v2791
        %v2835 = vpop.f32.mrf.mxu0
        %v2836 = vadd.f32 0.0, %v2835
        %v2837 = vpop.f32.mrf.mxu0
        %v2838 = vpop.f32.mrf.mxu0
        %v2839 = vpop.f32.mrf.mxu0
        %2840 = vdwg.mxu0
        %v2841 = vadd.f32 %v2601, %v2828
        %v2842 = vadd.f32 %v2602, %v2831
        %v2843 = vadd.f32 %v2603, %v2836
        %s2844 = scalar_lea.vmem [#allocation6], 1024
        %v2845 = vld [vmem:[%s2844] sm:$0xf]
        %v2846 = vld [vmem:[%s2844 + $0x4] sm:$0xf]
        %v2847 = vld [vmem:[%s2844 + $0x8] sm:$0xf]
        %v2848 = vld [vmem:[%s2844 + $0xc] sm:$0xf]
        %v2849 = vld [vmem:[%s2844 + $0x10] sm:$0xf]
        %v2850 = vld [vmem:[%s2844 + $0x14] sm:$0xf]
        %v2851 = vld [vmem:[%s2844 + $0x18] sm:$0xf]
        %v2852 = vld [vmem:[%s2844 + $0x1c] sm:$0xf]
        %v2853 = vld [vmem:[%s2844 + $0x20] sm:$0xf]
        %v2854 = vld [vmem:[%s2844 + $0x24] sm:$0xf]
        %v2855 = vld [vmem:[%s2844 + $0x28] sm:$0xf]
        %v2856 = vld [vmem:[%s2844 + $0x2c] sm:$0xf]
        %v2857 = vld [vmem:[%s2844 + $0x30] sm:$0xf]
        %v2858 = vld [vmem:[%s2844 + $0x34] sm:$0xf]
        %v2859 = vld [vmem:[%s2844 + $0x38] sm:$0xf]
        %v2860 = vld [vmem:[%s2844 + $0x3c] sm:$0xf]
        %v2861 = vld [vmem:[%s2844 + $0x40] sm:$0xf]
        %v2862 = vld [vmem:[%s2844 + $0x44] sm:$0xf]
        %v2863 = vld [vmem:[%s2844 + $0x48] sm:$0xf]
        %v2864 = vld [vmem:[%s2844 + $0x4c] sm:$0xf]
        %v2865 = vld [vmem:[%s2844 + $0x50] sm:$0xf]
        %v2866 = vld [vmem:[%s2844 + $0x54] sm:$0xf]
        %v2867 = vld [vmem:[%s2844 + $0x58] sm:$0xf]
        %v2868 = vld [vmem:[%s2844 + $0x5c] sm:$0xf]
        %v2869 = vld [vmem:[%s2844 + $0x60] sm:$0xf]
        %v2870 = vld [vmem:[%s2844 + $0x64] sm:$0xf]
        %v2871 = vld [vmem:[%s2844 + $0x68] sm:$0xf]
        %v2872 = vld [vmem:[%s2844 + $0x6c] sm:$0xf]
        %v2873 = vld [vmem:[%s2844 + $0x70] sm:$0xf]
        %v2874 = vld [vmem:[%s2844 + $0x74] sm:$0xf]
        %v2875 = vld [vmem:[%s2844 + $0x78] sm:$0xf]
        %v2876 = vld [vmem:[%s2844 + $0x7c] sm:$0xf]
        %v2909 = vunpack.c.l.b16 %v2845
        %v2910 = vunpack.c.l.b16 %v2846
        %v2911 = vunpack.c.l.b16 %v2847
        %v2912 = vunpack.c.l.b16 %v2848
        %v2913 = vunpack.c.l.b16 %v2849
        %v2914 = vunpack.c.l.b16 %v2850
        %v2915 = vunpack.c.l.b16 %v2851
        %v2916 = vunpack.c.l.b16 %v2852
        %v2917 = vunpack.c.l.b16 %v2853
        %v2918 = vunpack.c.l.b16 %v2854
        %v2919 = vunpack.c.l.b16 %v2855
        %v2920 = vunpack.c.l.b16 %v2856
        %v2921 = vunpack.c.l.b16 %v2857
        %v2922 = vunpack.c.l.b16 %v2858
        %v2923 = vunpack.c.l.b16 %v2859
        %v2924 = vunpack.c.l.b16 %v2860
        %v2925 = vunpack.c.l.b16 %v2861
        %v2926 = vunpack.c.l.b16 %v2862
        %v2927 = vunpack.c.l.b16 %v2863
        %v2928 = vunpack.c.l.b16 %v2864
        %v2929 = vunpack.c.l.b16 %v2865
        %v2930 = vunpack.c.l.b16 %v2866
        %v2931 = vunpack.c.l.b16 %v2867
        %v2932 = vunpack.c.l.b16 %v2868
        %v2933 = vunpack.c.l.b16 %v2869
        %v2934 = vunpack.c.l.b16 %v2870
        %v2935 = vunpack.c.l.b16 %v2871
        %v2936 = vunpack.c.l.b16 %v2872
        %v2937 = vunpack.c.l.b16 %v2873
        %v2938 = vunpack.c.l.b16 %v2874
        %v2939 = vunpack.c.l.b16 %v2875
        %v2940 = vunpack.c.l.b16 %v2876
        %v2941 = vpack.c.b16 %v2910, %v2909
        %v2942 = vpack.c.b16 %v2912, %v2911
        %v2943 = vpack.c.b16 %v2914, %v2913
        %v2944 = vpack.c.b16 %v2916, %v2915
        %v2945 = vpack.c.b16 %v2918, %v2917
        %v2946 = vpack.c.b16 %v2920, %v2919
        %v2947 = vpack.c.b16 %v2922, %v2921
        %v2948 = vpack.c.b16 %v2924, %v2923
        %v2949 = vpack.c.b16 %v2926, %v2925
        %v2950 = vpack.c.b16 %v2928, %v2927
        %v2951 = vpack.c.b16 %v2930, %v2929
        %v2952 = vpack.c.b16 %v2932, %v2931
        %v2953 = vpack.c.b16 %v2934, %v2933
        %v2954 = vpack.c.b16 %v2936, %v2935
        %v2955 = vpack.c.b16 %v2938, %v2937
        %v2956 = vpack.c.b16 %v2940, %v2939
        %2973 = vmatprep.subr.bf16.mxu0 0
        %2974 = vmatpush1.bf16.msra.mxu0 %v2948
        %2975 = vmatprep.subr.bf16.mxu0 0
        %2976 = vmatpush1.bf16.msra.mxu0 %v2947
        %2977 = vmatprep.subr.bf16.mxu0 0
        %2978 = vmatpush1.bf16.msra.mxu0 %v2946
        %2979 = vmatprep.subr.bf16.mxu0 0
        %2980 = vmatpush1.bf16.msra.mxu0 %v2945
        %2981 = vmatprep.subr.bf16.mxu0 0
        %2982 = vmatpush1.bf16.msra.mxu0 %v2944
        %2983 = vmatprep.subr.bf16.mxu0 0
        %2984 = vmatpush1.bf16.msra.mxu0 %v2943
        %2985 = vmatprep.subr.bf16.mxu0 0
        %2986 = vmatpush1.bf16.msra.mxu0 %v2942
        %2987 = vmatprep.subr.bf16.mxu0 0
        %2988 = vmatpush1.bf16.msra.mxu0 %v2941
        %2989 = vmatprep.subr.bf16.mxu0 0
        %2990 = vmatpush2.bf16.msra.mxu0 %v2956
        %2991 = vmatprep.subr.bf16.mxu0 0
        %2992 = vmatpush2.bf16.msra.mxu0 %v2955
        %2993 = vmatprep.subr.bf16.mxu0 0
        %2994 = vmatpush2.bf16.msra.mxu0 %v2954
        %2995 = vmatprep.subr.bf16.mxu0 0
        %2996 = vmatpush2.bf16.msra.mxu0 %v2953
        %2997 = vmatprep.subr.bf16.mxu0 0
        %2998 = vmatpush2.bf16.msra.mxu0 %v2952
        %2999 = vmatprep.subr.bf16.mxu0 0
        %3000 = vmatpush2.bf16.msra.mxu0 %v2951
        %3001 = vmatprep.subr.bf16.mxu0 0
        %3002 = vmatpush2.bf16.msra.mxu0 %v2950
        %3003 = vmatprep.subr.bf16.mxu0 0
        %3004 = vmatpush2.bf16.msra.mxu0 %v2949
        %3005 = vmatprep.mubr.bf16.mxu0 %v930
        %3006 = vmatmul.mubr.bf16.gmra.mxu0 %v929
        %v3007 = vpop.f32.mrf.mxu0
        %v3008 = vadd.f32 0.0, %v3007
        %v3009 = vpop.f32.mrf.mxu0
        %v3010 = vpop.f32.mrf.mxu0
        %v3011 = vadd.f32 0.0, %v3010
        %v3012 = vpop.f32.mrf.mxu0
        %3013 = vdwg.mxu0
        %s3014 = scalar_lea.vmem [#allocation7], 96
        %v3015 = vld [vmem:[%s3014] sm:$0xf]
        %v3016 = vld [vmem:[%s3014 + $0x4] sm:$0xf]
        %v3017 = vld [vmem:[%s3014 + $0x8] sm:$0xf]
        %v3018 = vpack.c.bf16 %v3011, %v3008
        %v3022 = vunpack.c.l.b16 %v3015
        %v3023 = vunpack.c.l.b16 %v3016
        %v3024 = vunpack.c.l.b16 %v3017
        %v3025 = vpack.c.b16 %v3023, %v3022
        %v3026 = vpack.c.b16 %v3024, %v3024
        %v3028 = vsel %vm1287, %v3025, 0
        %v3031 = vsel %vm1287, %v3026, 0
        %3033 = vmatprep.subr.bf16.mxu0 0
        %3034 = vmatpush1.bf16.msra.mxu0 0
        %3035 = vmatprep.subr.bf16.mxu0 0
        %3036 = vmatpush1.bf16.msra.mxu0 0
        %3037 = vmatprep.subr.bf16.mxu0 0
        %3038 = vmatpush1.bf16.msra.mxu0 0
        %3039 = vmatprep.subr.bf16.mxu0 0
        %3040 = vmatpush1.bf16.msra.mxu0 0
        %3041 = vmatprep.subr.bf16.mxu0 0
        %3042 = vmatpush1.bf16.msra.mxu0 0
        %3043 = vmatprep.subr.bf16.mxu0 0
        %3044 = vmatpush1.bf16.msra.mxu0 0
        %3045 = vmatprep.subr.bf16.mxu0 0
        %3046 = vmatpush1.bf16.msra.mxu0 0
        %3047 = vmatprep.subr.bf16.mxu0 0
        %3048 = vmatpush1.bf16.msra.mxu0 %v3018
        %3049 = vmatprep.subr.bf16.mxu0 0
        %3050 = vmatpush2.bf16.msra.mxu0 0
        %3051 = vmatprep.subr.bf16.mxu0 0
        %3052 = vmatpush2.bf16.msra.mxu0 0
        %3053 = vmatprep.subr.bf16.mxu0 0
        %3054 = vmatpush2.bf16.msra.mxu0 0
        %3055 = vmatprep.subr.bf16.mxu0 0
        %3056 = vmatpush2.bf16.msra.mxu0 0
        %3057 = vmatprep.subr.bf16.mxu0 0
        %3058 = vmatpush2.bf16.msra.mxu0 0
        %3059 = vmatprep.subr.bf16.mxu0 0
        %3060 = vmatpush2.bf16.msra.mxu0 0
        %3061 = vmatprep.subr.bf16.mxu0 0
        %3062 = vmatpush2.bf16.msra.mxu0 0
        %3063 = vmatprep.subr.bf16.mxu0 0
        %3064 = vmatpush2.bf16.msra.mxu0 0
        %3065 = vmatprep.mubr.bf16.mxu0 0
        %3066 = vmatmul.mubr.bf16.gmra.mxu0 %v3028
        %v3067 = vpop.f32.mrf.mxu0
        %v3068 = vadd.f32 0.0, %v3067
        %v3069 = vpop.f32.mrf.mxu0
        %v3070 = vpop.f32.mrf.mxu0
        %v3071 = vadd.f32 0.0, %v3070
        %v3072 = vpop.f32.mrf.mxu0
        %3073 = vmatprep.mubr.bf16.mxu0 0
        %3074 = vmatmul.mubr.bf16.gmra.mxu0 %v3031
        %v3075 = vpop.f32.mrf.mxu0
        %v3076 = vadd.f32 0.0, %v3075
        %v3077 = vpop.f32.mrf.mxu0
        %v3078 = vpop.f32.mrf.mxu0
        %v3079 = vpop.f32.mrf.mxu0
        %3080 = vdwg.mxu0
        %v3081 = vadd.f32 %v2841, %v3068
        %v3082 = vadd.f32 %v2842, %v3071
        %v3083 = vadd.f32 %v2843, %v3076
        %v3084 = vld [vmem:[#allocation9] sm:$0xff]
        %v3085 = vld [vmem:[#allocation9 + $0x8] sm:$0xff]
        %v3086 = vld [vmem:[#allocation9 + $0x10] sm:$0xff]
        %3088 = vset.pattern.permute.xlu0 0
        %3089 = vperm.xlu0 %3088, %v3084
        %v3090 = vpop.permute.xlu0 %3089
        %3093 = vset.pattern.permute.xlu0 0
        %3094 = vperm.xlu0 %3093, %v3085
        %v3095 = vpop.permute.xlu0 %3094
        %3098 = vset.pattern.permute.xlu0 0
        %3099 = vperm.xlu0 %3098, %v3086
        %v3100 = vpop.permute.xlu0 %3099
        %v3102 = vadd.f32 %v3081, %v3090
        %v3103 = vadd.f32 %v3082, %v3095
        %v3104 = vadd.f32 %v3083, %v3100
        %v3105 = vmax.f32 %v3102, 0.0
        %v3106 = vmax.f32 %v3103, 0.0
        %v3107 = vmax.f32 %v3104, 0.0
        %v3108 = vpack.c.bf16 %v3106, %v3105
        %v3109 = vpack.c.bf16 %v3107, %v3107
        %v3110 = vld [vmem:[#allocation10] sm:$0xf]
        %v3111 = vld [vmem:[#allocation10 + $0x4] sm:$0xf]
        %v3112 = vld [vmem:[#allocation10 + $0x8] sm:$0xf]
        %v3113 = vld [vmem:[#allocation10 + $0xc] sm:$0xf]
        %v3114 = vld [vmem:[#allocation10 + $0x10] sm:$0xf]
        %v3115 = vld [vmem:[#allocation10 + $0x14] sm:$0xf]
        %v3116 = vld [vmem:[#allocation10 + $0x18] sm:$0xf]
        %v3117 = vld [vmem:[#allocation10 + $0x1c] sm:$0xf]
        %v3126 = vunpack.c.l.b16 %v3110
        %v3127 = vunpack.c.l.b16 %v3111
        %v3128 = vunpack.c.l.b16 %v3112
        %v3129 = vunpack.c.l.b16 %v3113
        %v3130 = vunpack.c.l.b16 %v3114
        %v3131 = vunpack.c.l.b16 %v3115
        %v3132 = vunpack.c.l.b16 %v3116
        %v3133 = vunpack.c.l.b16 %v3117
        %v3134 = vpack.c.b16 %v3127, %v3126
        %v3135 = vpack.c.b16 %v3129, %v3128
        %v3136 = vpack.c.b16 %v3131, %v3130
        %v3137 = vpack.c.b16 %v3133, %v3132
        %vm3142 = vcmask 523264
        %v3144 = vsel %vm3142, %v3108, 0
        %v3147 = vsel %vm3142, %v3109, 0
        %3149 = vmatprep.subr.bf16.mxu0 0
        %3150 = vmatpush1.bf16.msra.mxu0 0
        %3151 = vmatprep.subr.bf16.mxu0 0
        %3152 = vmatpush1.bf16.msra.mxu0 0
        %3153 = vmatprep.subr.bf16.mxu0 0
        %3154 = vmatpush1.bf16.msra.mxu0 0
        %3155 = vmatprep.subr.bf16.mxu0 0
        %3156 = vmatpush1.bf16.msra.mxu0 0
        %3157 = vmatprep.subr.bf16.mxu0 0
        %3158 = vmatpush1.bf16.msra.mxu0 %v3137
        %3159 = vmatprep.subr.bf16.mxu0 0
        %3160 = vmatpush1.bf16.msra.mxu0 %v3136
        %3161 = vmatprep.subr.bf16.mxu0 0
        %3162 = vmatpush1.bf16.msra.mxu0 %v3135
        %3163 = vmatprep.subr.bf16.mxu0 0
        %3164 = vmatpush1.bf16.msra.mxu0 %v3134
        %3165 = vmatprep.subr.bf16.mxu0 0
        %3166 = vmatpush2.bf16.msra.mxu0 0
        %3167 = vmatprep.subr.bf16.mxu0 0
        %3168 = vmatpush2.bf16.msra.mxu0 0
        %3169 = vmatprep.subr.bf16.mxu0 0
        %3170 = vmatpush2.bf16.msra.mxu0 0
        %3171 = vmatprep.subr.bf16.mxu0 0
        %3172 = vmatpush2.bf16.msra.mxu0 0
        %3173 = vmatprep.subr.bf16.mxu0 0
        %3174 = vmatpush2.bf16.msra.mxu0 0
        %3175 = vmatprep.subr.bf16.mxu0 0
        %3176 = vmatpush2.bf16.msra.mxu0 0
        %3177 = vmatprep.subr.bf16.mxu0 0
        %3178 = vmatpush2.bf16.msra.mxu0 0
        %3179 = vmatprep.subr.bf16.mxu0 0
        %3180 = vmatpush2.bf16.msra.mxu0 0
        %3181 = vmatprep.mubr.bf16.mxu0 0
        %3182 = vmatmul.mubr.bf16.gmra.mxu0 %v3144
        %v3183 = vpop.f32.mrf.mxu0
        %v3184 = vadd.f32 0.0, %v3183
        %v3185 = vpop.f32.mrf.mxu0
        %v3186 = vpop.f32.mrf.mxu0
        %v3187 = vadd.f32 0.0, %v3186
        %v3188 = vpop.f32.mrf.mxu0
        %3189 = vmatprep.mubr.bf16.mxu0 0
        %3190 = vmatmul.mubr.bf16.gmra.mxu0 %v3147
        %v3191 = vpop.f32.mrf.mxu0
        %v3192 = vadd.f32 0.0, %v3191
        %v3193 = vpop.f32.mrf.mxu0
        %v3194 = vpop.f32.mrf.mxu0
        %v3195 = vpop.f32.mrf.mxu0
        %3196 = vdwg.mxu0
        %v3197 = vld [vmem:[#allocation12] sm:$0xf]
        %v3198 = vld [vmem:[#allocation12 + $0x4] sm:$0xf]
        %v3199 = vld [vmem:[#allocation12 + $0x8] sm:$0xf]
        %v3200 = vld [vmem:[#allocation12 + $0xc] sm:$0xf]
        %v3201 = vld [vmem:[#allocation12 + $0x10] sm:$0xf]
        %v3202 = vpack.c.bf16 %v3187, %v3184
        %v3203 = vpack.c.bf16 %v3192, %v3192
        %s3204 = scalar_lea.vmem [#allocation10], 32
        %v3205 = vld [vmem:[%s3204] sm:$0xf]
        %v3206 = vld [vmem:[%s3204 + $0x4] sm:$0xf]
        %v3207 = vld [vmem:[%s3204 + $0x8] sm:$0xf]
        %v3208 = vld [vmem:[%s3204 + $0xc] sm:$0xf]
        %v3209 = vld [vmem:[%s3204 + $0x10] sm:$0xf]
        %v3210 = vld [vmem:[%s3204 + $0x14] sm:$0xf]
        %v3211 = vld [vmem:[%s3204 + $0x18] sm:$0xf]
        %v3212 = vld [vmem:[%s3204 + $0x1c] sm:$0xf]
        %v3221 = vunpack.c.l.b16 %v3205
        %v3222 = vunpack.c.l.b16 %v3206
        %v3223 = vunpack.c.l.b16 %v3207
        %v3224 = vunpack.c.l.b16 %v3208
        %v3225 = vunpack.c.l.b16 %v3209
        %v3226 = vunpack.c.l.b16 %v3210
        %v3227 = vunpack.c.l.b16 %v3211
        %v3228 = vunpack.c.l.b16 %v3212
        %v3229 = vpack.c.b16 %v3222, %v3221
        %v3230 = vpack.c.b16 %v3224, %v3223
        %v3231 = vpack.c.b16 %v3226, %v3225
        %v3232 = vpack.c.b16 %v3228, %v3227
        %3237 = vmatprep.subr.bf16.mxu0 0
        %3238 = vmatpush1.bf16.msra.mxu0 0
        %3239 = vmatprep.subr.bf16.mxu0 0
        %3240 = vmatpush1.bf16.msra.mxu0 0
        %3241 = vmatprep.subr.bf16.mxu0 0
        %3242 = vmatpush1.bf16.msra.mxu0 0
        %3243 = vmatprep.subr.bf16.mxu0 0
        %3244 = vmatpush1.bf16.msra.mxu0 0
        %3245 = vmatprep.subr.bf16.mxu0 0
        %3246 = vmatpush1.bf16.msra.mxu0 %v3232
        %3247 = vmatprep.subr.bf16.mxu0 0
        %3248 = vmatpush1.bf16.msra.mxu0 %v3231
        %3249 = vmatprep.subr.bf16.mxu0 0
        %3250 = vmatpush1.bf16.msra.mxu0 %v3230
        %3251 = vmatprep.subr.bf16.mxu0 0
        %3252 = vmatpush1.bf16.msra.mxu0 %v3229
        %3253 = vmatprep.subr.bf16.mxu0 0
        %3254 = vmatpush2.bf16.msra.mxu0 0
        %3255 = vmatprep.subr.bf16.mxu0 0
        %3256 = vmatpush2.bf16.msra.mxu0 0
        %3257 = vmatprep.subr.bf16.mxu0 0
        %3258 = vmatpush2.bf16.msra.mxu0 0
        %3259 = vmatprep.subr.bf16.mxu0 0
        %3260 = vmatpush2.bf16.msra.mxu0 0
        %3261 = vmatprep.subr.bf16.mxu0 0
        %3262 = vmatpush2.bf16.msra.mxu0 0
        %3263 = vmatprep.subr.bf16.mxu0 0
        %3264 = vmatpush2.bf16.msra.mxu0 0
        %3265 = vmatprep.subr.bf16.mxu0 0
        %3266 = vmatpush2.bf16.msra.mxu0 0
        %3267 = vmatprep.subr.bf16.mxu0 0
        %3268 = vmatpush2.bf16.msra.mxu0 0
        %3269 = vmatprep.mubr.bf16.mxu0 0
        %3270 = vmatmul.mubr.bf16.gmra.mxu0 %v3144
        %v3271 = vpop.f32.mrf.mxu0
        %v3272 = vadd.f32 0.0, %v3271
        %v3273 = vpop.f32.mrf.mxu0
        %v3274 = vpop.f32.mrf.mxu0
        %v3275 = vadd.f32 0.0, %v3274
        %v3276 = vpop.f32.mrf.mxu0
        %3277 = vmatprep.mubr.bf16.mxu0 0
        %3278 = vmatmul.mubr.bf16.gmra.mxu0 %v3147
        %v3279 = vpop.f32.mrf.mxu0
        %v3280 = vadd.f32 0.0, %v3279
        %v3281 = vpop.f32.mrf.mxu0
        %v3282 = vpop.f32.mrf.mxu0
        %v3283 = vpop.f32.mrf.mxu0
        %3284 = vdwg.mxu0
        %s3285 = scalar_lea.vmem [#allocation12], 20
        %v3286 = vld [vmem:[%s3285] sm:$0xf]
        %v3287 = vld [vmem:[%s3285 + $0x4] sm:$0xf]
        %v3288 = vld [vmem:[%s3285 + $0x8] sm:$0xf]
        %v3289 = vld [vmem:[%s3285 + $0xc] sm:$0xf]
        %v3290 = vld [vmem:[%s3285 + $0x10] sm:$0xf]
        %v3291 = vpack.c.bf16 %v3275, %v3272
        %v3292 = vpack.c.bf16 %v3280, %v3280
        %v3298 = vunpack.c.l.b16 %v3286
        %v3299 = vunpack.c.l.b16 %v3287
        %v3300 = vunpack.c.l.b16 %v3288
        %v3301 = vunpack.c.l.b16 %v3289
        %v3302 = vunpack.c.l.b16 %v3290
        %v3303 = vpack.c.b16 %v3299, %v3298
        %v3304 = vpack.c.b16 %v3301, %v3300
        %v3305 = vpack.c.b16 %v3302, %v3302
        %vm3306 = vcmask 195584
        %v3308 = vsel %vm3306, %v3303, 0
        %v3311 = vsel %vm3306, %v3304, 0
        %v3314 = vsel %vm3306, %v3305, 0
        %vm3316 = vcmask 1043456
        %v3318 = vsel %vm3316, %v3292, 0
        %3320 = vmatprep.subr.bf16.mxu0 0
        %3321 = vmatpush1.bf16.msra.mxu0 0
        %3322 = vmatprep.subr.bf16.mxu0 0
        %3323 = vmatpush1.bf16.msra.mxu0 0
        %3324 = vmatprep.subr.bf16.mxu0 0
        %3325 = vmatpush1.bf16.msra.mxu0 0
        %3326 = vmatprep.subr.bf16.mxu0 0
        %3327 = vmatpush1.bf16.msra.mxu0 0
        %3328 = vmatprep.subr.bf16.mxu0 0
        %3329 = vmatpush1.bf16.msra.mxu0 0
        %3330 = vmatprep.subr.bf16.mxu0 0
        %3331 = vmatpush1.bf16.msra.mxu0 0
        %3332 = vmatprep.subr.bf16.mxu0 0
        %3333 = vmatpush1.bf16.msra.mxu0 %v3318
        %3334 = vmatprep.subr.bf16.mxu0 0
        %3335 = vmatpush1.bf16.msra.mxu0 %v3291
        %3336 = vmatprep.subr.bf16.mxu0 0
        %3337 = vmatpush2.bf16.msra.mxu0 0
        %3338 = vmatprep.subr.bf16.mxu0 0
        %3339 = vmatpush2.bf16.msra.mxu0 0
        %3340 = vmatprep.subr.bf16.mxu0 0
        %3341 = vmatpush2.bf16.msra.mxu0 0
        %3342 = vmatprep.subr.bf16.mxu0 0
        %3343 = vmatpush2.bf16.msra.mxu0 0
        %3344 = vmatprep.subr.bf16.mxu0 0
        %3345 = vmatpush2.bf16.msra.mxu0 0
        %3346 = vmatprep.subr.bf16.mxu0 0
        %3347 = vmatpush2.bf16.msra.mxu0 0
        %3348 = vmatprep.subr.bf16.mxu0 0
        %3349 = vmatpush2.bf16.msra.mxu0 0
        %3350 = vmatprep.subr.bf16.mxu0 0
        %3351 = vmatpush2.bf16.msra.mxu0 0
        %3352 = vmatprep.mubr.bf16.mxu0 0
        %3353 = vmatmul.mubr.bf16.gmra.mxu0 %v3308
        %v3354 = vpop.f32.mrf.mxu0
        %v3355 = vadd.f32 0.0, %v3354
        %v3356 = vpop.f32.mrf.mxu0
        %v3357 = vpop.f32.mrf.mxu0
        %v3358 = vadd.f32 0.0, %v3357
        %v3359 = vpop.f32.mrf.mxu0
        %3360 = vmatprep.mubr.bf16.mxu0 0
        %3361 = vmatmul.mubr.bf16.gmra.mxu0 %v3311
        %v3362 = vpop.f32.mrf.mxu0
        %v3363 = vadd.f32 0.0, %v3362
        %v3364 = vpop.f32.mrf.mxu0
        %v3365 = vpop.f32.mrf.mxu0
        %v3366 = vadd.f32 0.0, %v3365
        %v3367 = vpop.f32.mrf.mxu0
        %3368 = vmatprep.mubr.bf16.mxu0 0
        %3369 = vmatmul.mubr.bf16.gmra.mxu0 %v3314
        %v3370 = vpop.f32.mrf.mxu0
        %v3371 = vadd.f32 0.0, %v3370
        %v3372 = vpop.f32.mrf.mxu0
        %v3373 = vpop.f32.mrf.mxu0
        %v3374 = vpop.f32.mrf.mxu0
        %3375 = vdwg.mxu0
        %v3381 = vunpack.c.l.b16 %v3197
        %v3382 = vunpack.c.l.b16 %v3198
        %v3383 = vunpack.c.l.b16 %v3199
        %v3384 = vunpack.c.l.b16 %v3200
        %v3385 = vunpack.c.l.b16 %v3201
        %v3386 = vpack.c.b16 %v3382, %v3381
        %v3387 = vpack.c.b16 %v3384, %v3383
        %v3388 = vpack.c.b16 %v3385, %v3385
        %v3390 = vsel %vm3306, %v3386, 0
        %v3393 = vsel %vm3306, %v3387, 0
        %v3396 = vsel %vm3306, %v3388, 0
        %v3399 = vsel %vm3316, %v3203, 0
        %3401 = vmatprep.subr.bf16.mxu0 0
        %3402 = vmatpush1.bf16.msra.mxu0 0
        %3403 = vmatprep.subr.bf16.mxu0 0
        %3404 = vmatpush1.bf16.msra.mxu0 0
        %3405 = vmatprep.subr.bf16.mxu0 0
        %3406 = vmatpush1.bf16.msra.mxu0 0
        %3407 = vmatprep.subr.bf16.mxu0 0
        %3408 = vmatpush1.bf16.msra.mxu0 0
        %3409 = vmatprep.subr.bf16.mxu0 0
        %3410 = vmatpush1.bf16.msra.mxu0 0
        %3411 = vmatprep.subr.bf16.mxu0 0
        %3412 = vmatpush1.bf16.msra.mxu0 0
        %3413 = vmatprep.subr.bf16.mxu0 0
        %3414 = vmatpush1.bf16.msra.mxu0 %v3399
        %3415 = vmatprep.subr.bf16.mxu0 0
        %3416 = vmatpush1.bf16.msra.mxu0 %v3202
        %3417 = vmatprep.subr.bf16.mxu0 0
        %3418 = vmatpush2.bf16.msra.mxu0 0
        %3419 = vmatprep.subr.bf16.mxu0 0
        %3420 = vmatpush2.bf16.msra.mxu0 0
        %3421 = vmatprep.subr.bf16.mxu0 0
        %3422 = vmatpush2.bf16.msra.mxu0 0
        %3423 = vmatprep.subr.bf16.mxu0 0
        %3424 = vmatpush2.bf16.msra.mxu0 0
        %3425 = vmatprep.subr.bf16.mxu0 0
        %3426 = vmatpush2.bf16.msra.mxu0 0
        %3427 = vmatprep.subr.bf16.mxu0 0
        %3428 = vmatpush2.bf16.msra.mxu0 0
        %3429 = vmatprep.subr.bf16.mxu0 0
        %3430 = vmatpush2.bf16.msra.mxu0 0
        %3431 = vmatprep.subr.bf16.mxu0 0
        %3432 = vmatpush2.bf16.msra.mxu0 0
        %3433 = vmatprep.mubr.bf16.mxu0 0
        %3434 = vmatmul.mubr.bf16.gmra.mxu0 %v3390
        %v3435 = vpop.f32.mrf.mxu0
        %v3436 = vadd.f32 %v3355, %v3435
        %v3437 = vpop.f32.mrf.mxu0
        %v3438 = vpop.f32.mrf.mxu0
        %v3439 = vadd.f32 %v3358, %v3438
        %v3440 = vpop.f32.mrf.mxu0
        %3441 = vmatprep.mubr.bf16.mxu0 0
        %3442 = vmatmul.mubr.bf16.gmra.mxu0 %v3393
        %v3443 = vpop.f32.mrf.mxu0
        %v3444 = vadd.f32 %v3363, %v3443
        %v3445 = vpop.f32.mrf.mxu0
        %v3446 = vpop.f32.mrf.mxu0
        %v3447 = vadd.f32 %v3366, %v3446
        %v3448 = vpop.f32.mrf.mxu0
        %3449 = vmatprep.mubr.bf16.mxu0 0
        %3450 = vmatmul.mubr.bf16.gmra.mxu0 %v3396
        %v3451 = vpop.f32.mrf.mxu0
        %v3452 = vadd.f32 %v3371, %v3451
        %v3453 = vpop.f32.mrf.mxu0
        %v3454 = vpop.f32.mrf.mxu0
        %v3455 = vpop.f32.mrf.mxu0
        %3456 = vdwg.mxu0
        %s3457 = scalar_lea.vmem [#allocation10], 64
        %v3458 = vld [vmem:[%s3457] sm:$0xf]
        %v3459 = vld [vmem:[%s3457 + $0x4] sm:$0xf]
        %v3460 = vld [vmem:[%s3457 + $0x8] sm:$0xf]
        %v3461 = vld [vmem:[%s3457 + $0xc] sm:$0xf]
        %v3462 = vld [vmem:[%s3457 + $0x10] sm:$0xf]
        %v3463 = vld [vmem:[%s3457 + $0x14] sm:$0xf]
        %v3464 = vld [vmem:[%s3457 + $0x18] sm:$0xf]
        %v3465 = vld [vmem:[%s3457 + $0x1c] sm:$0xf]
        %v3474 = vunpack.c.l.b16 %v3458
        %v3475 = vunpack.c.l.b16 %v3459
        %v3476 = vunpack.c.l.b16 %v3460
        %v3477 = vunpack.c.l.b16 %v3461
        %v3478 = vunpack.c.l.b16 %v3462
        %v3479 = vunpack.c.l.b16 %v3463
        %v3480 = vunpack.c.l.b16 %v3464
        %v3481 = vunpack.c.l.b16 %v3465
        %v3482 = vpack.c.b16 %v3475, %v3474
        %v3483 = vpack.c.b16 %v3477, %v3476
        %v3484 = vpack.c.b16 %v3479, %v3478
        %v3485 = vpack.c.b16 %v3481, %v3480
        %3490 = vmatprep.subr.bf16.mxu0 0
        %3491 = vmatpush1.bf16.msra.mxu0 0
        %3492 = vmatprep.subr.bf16.mxu0 0
        %3493 = vmatpush1.bf16.msra.mxu0 0
        %3494 = vmatprep.subr.bf16.mxu0 0
        %3495 = vmatpush1.bf16.msra.mxu0 0
        %3496 = vmatprep.subr.bf16.mxu0 0
        %3497 = vmatpush1.bf16.msra.mxu0 0
        %3498 = vmatprep.subr.bf16.mxu0 0
        %3499 = vmatpush1.bf16.msra.mxu0 %v3485
        %3500 = vmatprep.subr.bf16.mxu0 0
        %3501 = vmatpush1.bf16.msra.mxu0 %v3484
        %3502 = vmatprep.subr.bf16.mxu0 0
        %3503 = vmatpush1.bf16.msra.mxu0 %v3483
        %3504 = vmatprep.subr.bf16.mxu0 0
        %3505 = vmatpush1.bf16.msra.mxu0 %v3482
        %3506 = vmatprep.subr.bf16.mxu0 0
        %3507 = vmatpush2.bf16.msra.mxu0 0
        %3508 = vmatprep.subr.bf16.mxu0 0
        %3509 = vmatpush2.bf16.msra.mxu0 0
        %3510 = vmatprep.subr.bf16.mxu0 0
        %3511 = vmatpush2.bf16.msra.mxu0 0
        %3512 = vmatprep.subr.bf16.mxu0 0
        %3513 = vmatpush2.bf16.msra.mxu0 0
        %3514 = vmatprep.subr.bf16.mxu0 0
        %3515 = vmatpush2.bf16.msra.mxu0 0
        %3516 = vmatprep.subr.bf16.mxu0 0
        %3517 = vmatpush2.bf16.msra.mxu0 0
        %3518 = vmatprep.subr.bf16.mxu0 0
        %3519 = vmatpush2.bf16.msra.mxu0 0
        %3520 = vmatprep.subr.bf16.mxu0 0
        %3521 = vmatpush2.bf16.msra.mxu0 0
        %3522 = vmatprep.mubr.bf16.mxu0 0
        %3523 = vmatmul.mubr.bf16.gmra.mxu0 %v3144
        %v3524 = vpop.f32.mrf.mxu0
        %v3525 = vadd.f32 0.0, %v3524
        %v3526 = vpop.f32.mrf.mxu0
        %v3527 = vpop.f32.mrf.mxu0
        %v3528 = vadd.f32 0.0, %v3527
        %v3529 = vpop.f32.mrf.mxu0
        %3530 = vmatprep.mubr.bf16.mxu0 0
        %3531 = vmatmul.mubr.bf16.gmra.mxu0 %v3147
        %v3532 = vpop.f32.mrf.mxu0
        %v3533 = vadd.f32 0.0, %v3532
        %v3534 = vpop.f32.mrf.mxu0
        %v3535 = vpop.f32.mrf.mxu0
        %v3536 = vpop.f32.mrf.mxu0
        %3537 = vdwg.mxu0
        %s3538 = scalar_lea.vmem [#allocation12], 40
        %v3539 = vld [vmem:[%s3538] sm:$0xf]
        %v3540 = vld [vmem:[%s3538 + $0x4] sm:$0xf]
        %v3541 = vld [vmem:[%s3538 + $0x8] sm:$0xf]
        %v3542 = vld [vmem:[%s3538 + $0xc] sm:$0xf]
        %v3543 = vld [vmem:[%s3538 + $0x10] sm:$0xf]
        %v3544 = vpack.c.bf16 %v3528, %v3525
        %v3545 = vpack.c.bf16 %v3533, %v3533
        %v3551 = vunpack.c.l.b16 %v3539
        %v3552 = vunpack.c.l.b16 %v3540
        %v3553 = vunpack.c.l.b16 %v3541
        %v3554 = vunpack.c.l.b16 %v3542
        %v3555 = vunpack.c.l.b16 %v3543
        %v3556 = vpack.c.b16 %v3552, %v3551
        %v3557 = vpack.c.b16 %v3554, %v3553
        %v3558 = vpack.c.b16 %v3555, %v3555
        %v3560 = vsel %vm3306, %v3556, 0
        %v3563 = vsel %vm3306, %v3557, 0
        %v3566 = vsel %vm3306, %v3558, 0
        %v3569 = vsel %vm3316, %v3545, 0
        %3571 = vmatprep.subr.bf16.mxu0 0
        %3572 = vmatpush1.bf16.msra.mxu0 0
        %3573 = vmatprep.subr.bf16.mxu0 0
        %3574 = vmatpush1.bf16.msra.mxu0 0
        %3575 = vmatprep.subr.bf16.mxu0 0
        %3576 = vmatpush1.bf16.msra.mxu0 0
        %3577 = vmatprep.subr.bf16.mxu0 0
        %3578 = vmatpush1.bf16.msra.mxu0 0
        %3579 = vmatprep.subr.bf16.mxu0 0
        %3580 = vmatpush1.bf16.msra.mxu0 0
        %3581 = vmatprep.subr.bf16.mxu0 0
        %3582 = vmatpush1.bf16.msra.mxu0 0
        %3583 = vmatprep.subr.bf16.mxu0 0
        %3584 = vmatpush1.bf16.msra.mxu0 %v3569
        %3585 = vmatprep.subr.bf16.mxu0 0
        %3586 = vmatpush1.bf16.msra.mxu0 %v3544
        %3587 = vmatprep.subr.bf16.mxu0 0
        %3588 = vmatpush2.bf16.msra.mxu0 0
        %3589 = vmatprep.subr.bf16.mxu0 0
        %3590 = vmatpush2.bf16.msra.mxu0 0
        %3591 = vmatprep.subr.bf16.mxu0 0
        %3592 = vmatpush2.bf16.msra.mxu0 0
        %3593 = vmatprep.subr.bf16.mxu0 0
        %3594 = vmatpush2.bf16.msra.mxu0 0
        %3595 = vmatprep.subr.bf16.mxu0 0
        %3596 = vmatpush2.bf16.msra.mxu0 0
        %3597 = vmatprep.subr.bf16.mxu0 0
        %3598 = vmatpush2.bf16.msra.mxu0 0
        %3599 = vmatprep.subr.bf16.mxu0 0
        %3600 = vmatpush2.bf16.msra.mxu0 0
        %3601 = vmatprep.subr.bf16.mxu0 0
        %3602 = vmatpush2.bf16.msra.mxu0 0
        %3603 = vmatprep.mubr.bf16.mxu0 0
        %3604 = vmatmul.mubr.bf16.gmra.mxu0 %v3560
        %v3605 = vpop.f32.mrf.mxu0
        %v3606 = vadd.f32 0.0, %v3605
        %v3607 = vpop.f32.mrf.mxu0
        %v3608 = vpop.f32.mrf.mxu0
        %v3609 = vadd.f32 0.0, %v3608
        %v3610 = vpop.f32.mrf.mxu0
        %3611 = vmatprep.mubr.bf16.mxu0 0
        %3612 = vmatmul.mubr.bf16.gmra.mxu0 %v3563
        %v3613 = vpop.f32.mrf.mxu0
        %v3614 = vadd.f32 0.0, %v3613
        %v3615 = vpop.f32.mrf.mxu0
        %v3616 = vpop.f32.mrf.mxu0
        %v3617 = vadd.f32 0.0, %v3616
        %v3618 = vpop.f32.mrf.mxu0
        %3619 = vmatprep.mubr.bf16.mxu0 0
        %3620 = vmatmul.mubr.bf16.gmra.mxu0 %v3566
        %v3621 = vpop.f32.mrf.mxu0
        %v3622 = vadd.f32 0.0, %v3621
        %v3623 = vpop.f32.mrf.mxu0
        %v3624 = vpop.f32.mrf.mxu0
        %v3625 = vpop.f32.mrf.mxu0
        %3626 = vdwg.mxu0
        %v3627 = vadd.f32 %v3436, %v3606
        %v3628 = vadd.f32 %v3439, %v3609
        %v3629 = vadd.f32 %v3444, %v3614
        %v3630 = vadd.f32 %v3447, %v3617
        %v3631 = vadd.f32 %v3452, %v3622
        %s3632 = scalar_lea.vmem [#allocation10], 96
        %v3633 = vld [vmem:[%s3632] sm:$0xf]
        %v3634 = vld [vmem:[%s3632 + $0x4] sm:$0xf]
        %v3635 = vld [vmem:[%s3632 + $0x8] sm:$0xf]
        %v3636 = vld [vmem:[%s3632 + $0xc] sm:$0xf]
        %v3637 = vld [vmem:[%s3632 + $0x10] sm:$0xf]
        %v3638 = vld [vmem:[%s3632 + $0x14] sm:$0xf]
        %v3639 = vld [vmem:[%s3632 + $0x18] sm:$0xf]
        %v3640 = vld [vmem:[%s3632 + $0x1c] sm:$0xf]
        %v3649 = vunpack.c.l.b16 %v3633
        %v3650 = vunpack.c.l.b16 %v3634
        %v3651 = vunpack.c.l.b16 %v3635
        %v3652 = vunpack.c.l.b16 %v3636
        %v3653 = vunpack.c.l.b16 %v3637
        %v3654 = vunpack.c.l.b16 %v3638
        %v3655 = vunpack.c.l.b16 %v3639
        %v3656 = vunpack.c.l.b16 %v3640
        %v3657 = vpack.c.b16 %v3650, %v3649
        %v3658 = vpack.c.b16 %v3652, %v3651
        %v3659 = vpack.c.b16 %v3654, %v3653
        %v3660 = vpack.c.b16 %v3656, %v3655
        %3665 = vmatprep.subr.bf16.mxu0 0
        %3666 = vmatpush1.bf16.msra.mxu0 0
        %3667 = vmatprep.subr.bf16.mxu0 0
        %3668 = vmatpush1.bf16.msra.mxu0 0
        %3669 = vmatprep.subr.bf16.mxu0 0
        %3670 = vmatpush1.bf16.msra.mxu0 0
        %3671 = vmatprep.subr.bf16.mxu0 0
        %3672 = vmatpush1.bf16.msra.mxu0 0
        %3673 = vmatprep.subr.bf16.mxu0 0
        %3674 = vmatpush1.bf16.msra.mxu0 %v3660
        %3675 = vmatprep.subr.bf16.mxu0 0
        %3676 = vmatpush1.bf16.msra.mxu0 %v3659
        %3677 = vmatprep.subr.bf16.mxu0 0
        %3678 = vmatpush1.bf16.msra.mxu0 %v3658
        %3679 = vmatprep.subr.bf16.mxu0 0
        %3680 = vmatpush1.bf16.msra.mxu0 %v3657
        %3681 = vmatprep.subr.bf16.mxu0 0
        %3682 = vmatpush2.bf16.msra.mxu0 0
        %3683 = vmatprep.subr.bf16.mxu0 0
        %3684 = vmatpush2.bf16.msra.mxu0 0
        %3685 = vmatprep.subr.bf16.mxu0 0
        %3686 = vmatpush2.bf16.msra.mxu0 0
        %3687 = vmatprep.subr.bf16.mxu0 0
        %3688 = vmatpush2.bf16.msra.mxu0 0
        %3689 = vmatprep.subr.bf16.mxu0 0
        %3690 = vmatpush2.bf16.msra.mxu0 0
        %3691 = vmatprep.subr.bf16.mxu0 0
        %3692 = vmatpush2.bf16.msra.mxu0 0
        %3693 = vmatprep.subr.bf16.mxu0 0
        %3694 = vmatpush2.bf16.msra.mxu0 0
        %3695 = vmatprep.subr.bf16.mxu0 0
        %3696 = vmatpush2.bf16.msra.mxu0 0
        %3697 = vmatprep.mubr.bf16.mxu0 0
        %3698 = vmatmul.mubr.bf16.gmra.mxu0 %v3144
        %v3699 = vpop.f32.mrf.mxu0
        %v3700 = vadd.f32 0.0, %v3699
        %v3701 = vpop.f32.mrf.mxu0
        %v3702 = vpop.f32.mrf.mxu0
        %v3703 = vadd.f32 0.0, %v3702
        %v3704 = vpop.f32.mrf.mxu0
        %3705 = vmatprep.mubr.bf16.mxu0 0
        %3706 = vmatmul.mubr.bf16.gmra.mxu0 %v3147
        %v3707 = vpop.f32.mrf.mxu0
        %v3708 = vadd.f32 0.0, %v3707
        %v3709 = vpop.f32.mrf.mxu0
        %v3710 = vpop.f32.mrf.mxu0
        %v3711 = vpop.f32.mrf.mxu0
        %3712 = vdwg.mxu0
        %s3713 = scalar_lea.vmem [#allocation12], 60
        %v3714 = vld [vmem:[%s3713] sm:$0xf]
        %v3715 = vld [vmem:[%s3713 + $0x4] sm:$0xf]
        %v3716 = vld [vmem:[%s3713 + $0x8] sm:$0xf]
        %v3717 = vld [vmem:[%s3713 + $0xc] sm:$0xf]
        %v3718 = vld [vmem:[%s3713 + $0x10] sm:$0xf]
        %v3719 = vpack.c.bf16 %v3703, %v3700
        %v3720 = vpack.c.bf16 %v3708, %v3708
        %v3726 = vunpack.c.l.b16 %v3714
        %v3727 = vunpack.c.l.b16 %v3715
        %v3728 = vunpack.c.l.b16 %v3716
        %v3729 = vunpack.c.l.b16 %v3717
        %v3730 = vunpack.c.l.b16 %v3718
        %v3731 = vpack.c.b16 %v3727, %v3726
        %v3732 = vpack.c.b16 %v3729, %v3728
        %v3733 = vpack.c.b16 %v3730, %v3730
        %v3735 = vsel %vm3306, %v3731, 0
        %v3738 = vsel %vm3306, %v3732, 0
        %v3741 = vsel %vm3306, %v3733, 0
        %v3744 = vsel %vm3316, %v3720, 0
        %3746 = vmatprep.subr.bf16.mxu0 0
        %3747 = vmatpush1.bf16.msra.mxu0 0
        %3748 = vmatprep.subr.bf16.mxu0 0
        %3749 = vmatpush1.bf16.msra.mxu0 0
        %3750 = vmatprep.subr.bf16.mxu0 0
        %3751 = vmatpush1.bf16.msra.mxu0 0
        %3752 = vmatprep.subr.bf16.mxu0 0
        %3753 = vmatpush1.bf16.msra.mxu0 0
        %3754 = vmatprep.subr.bf16.mxu0 0
        %3755 = vmatpush1.bf16.msra.mxu0 0
        %3756 = vmatprep.subr.bf16.mxu0 0
        %3757 = vmatpush1.bf16.msra.mxu0 0
        %3758 = vmatprep.subr.bf16.mxu0 0
        %3759 = vmatpush1.bf16.msra.mxu0 %v3744
        %3760 = vmatprep.subr.bf16.mxu0 0
        %3761 = vmatpush1.bf16.msra.mxu0 %v3719
        %3762 = vmatprep.subr.bf16.mxu0 0
        %3763 = vmatpush2.bf16.msra.mxu0 0
        %3764 = vmatprep.subr.bf16.mxu0 0
        %3765 = vmatpush2.bf16.msra.mxu0 0
        %3766 = vmatprep.subr.bf16.mxu0 0
        %3767 = vmatpush2.bf16.msra.mxu0 0
        %3768 = vmatprep.subr.bf16.mxu0 0
        %3769 = vmatpush2.bf16.msra.mxu0 0
        %3770 = vmatprep.subr.bf16.mxu0 0
        %3771 = vmatpush2.bf16.msra.mxu0 0
        %3772 = vmatprep.subr.bf16.mxu0 0
        %3773 = vmatpush2.bf16.msra.mxu0 0
        %3774 = vmatprep.subr.bf16.mxu0 0
        %3775 = vmatpush2.bf16.msra.mxu0 0
        %3776 = vmatprep.subr.bf16.mxu0 0
        %3777 = vmatpush2.bf16.msra.mxu0 0
        %3778 = vmatprep.mubr.bf16.mxu0 0
        %3779 = vmatmul.mubr.bf16.gmra.mxu0 %v3735
        %v3780 = vpop.f32.mrf.mxu0
        %v3781 = vadd.f32 0.0, %v3780
        %v3782 = vpop.f32.mrf.mxu0
        %v3783 = vpop.f32.mrf.mxu0
        %v3784 = vadd.f32 0.0, %v3783
        %v3785 = vpop.f32.mrf.mxu0
        %3786 = vmatprep.mubr.bf16.mxu0 0
        %3787 = vmatmul.mubr.bf16.gmra.mxu0 %v3738
        %v3788 = vpop.f32.mrf.mxu0
        %v3789 = vadd.f32 0.0, %v3788
        %v3790 = vpop.f32.mrf.mxu0
        %v3791 = vpop.f32.mrf.mxu0
        %v3792 = vadd.f32 0.0, %v3791
        %v3793 = vpop.f32.mrf.mxu0
        %3794 = vmatprep.mubr.bf16.mxu0 0
        %3795 = vmatmul.mubr.bf16.gmra.mxu0 %v3741
        %v3796 = vpop.f32.mrf.mxu0
        %v3797 = vadd.f32 0.0, %v3796
        %v3798 = vpop.f32.mrf.mxu0
        %v3799 = vpop.f32.mrf.mxu0
        %v3800 = vpop.f32.mrf.mxu0
        %3801 = vdwg.mxu0
        %v3802 = vadd.f32 %v3627, %v3781
        %v3803 = vadd.f32 %v3628, %v3784
        %v3804 = vadd.f32 %v3629, %v3789
        %v3805 = vadd.f32 %v3630, %v3792
        %v3806 = vadd.f32 %v3631, %v3797
        %s3807 = scalar_lea.vmem [#allocation10], 128
        %v3808 = vld [vmem:[%s3807] sm:$0xf]
        %v3809 = vld [vmem:[%s3807 + $0x4] sm:$0xf]
        %v3810 = vld [vmem:[%s3807 + $0x8] sm:$0xf]
        %v3811 = vld [vmem:[%s3807 + $0xc] sm:$0xf]
        %v3812 = vld [vmem:[%s3807 + $0x10] sm:$0xf]
        %v3813 = vld [vmem:[%s3807 + $0x14] sm:$0xf]
        %v3814 = vld [vmem:[%s3807 + $0x18] sm:$0xf]
        %v3815 = vld [vmem:[%s3807 + $0x1c] sm:$0xf]
        %v3824 = vunpack.c.l.b16 %v3808
        %v3825 = vunpack.c.l.b16 %v3809
        %v3826 = vunpack.c.l.b16 %v3810
        %v3827 = vunpack.c.l.b16 %v3811
        %v3828 = vunpack.c.l.b16 %v3812
        %v3829 = vunpack.c.l.b16 %v3813
        %v3830 = vunpack.c.l.b16 %v3814
        %v3831 = vunpack.c.l.b16 %v3815
        %v3832 = vpack.c.b16 %v3825, %v3824
        %v3833 = vpack.c.b16 %v3827, %v3826
        %v3834 = vpack.c.b16 %v3829, %v3828
        %v3835 = vpack.c.b16 %v3831, %v3830
        %3840 = vmatprep.subr.bf16.mxu0 0
        %3841 = vmatpush1.bf16.msra.mxu0 0
        %3842 = vmatprep.subr.bf16.mxu0 0
        %3843 = vmatpush1.bf16.msra.mxu0 0
        %3844 = vmatprep.subr.bf16.mxu0 0
        %3845 = vmatpush1.bf16.msra.mxu0 0
        %3846 = vmatprep.subr.bf16.mxu0 0
        %3847 = vmatpush1.bf16.msra.mxu0 0
        %3848 = vmatprep.subr.bf16.mxu0 0
        %3849 = vmatpush1.bf16.msra.mxu0 %v3835
        %3850 = vmatprep.subr.bf16.mxu0 0
        %3851 = vmatpush1.bf16.msra.mxu0 %v3834
        %3852 = vmatprep.subr.bf16.mxu0 0
        %3853 = vmatpush1.bf16.msra.mxu0 %v3833
        %3854 = vmatprep.subr.bf16.mxu0 0
        %3855 = vmatpush1.bf16.msra.mxu0 %v3832
        %3856 = vmatprep.subr.bf16.mxu0 0
        %3857 = vmatpush2.bf16.msra.mxu0 0
        %3858 = vmatprep.subr.bf16.mxu0 0
        %3859 = vmatpush2.bf16.msra.mxu0 0
        %3860 = vmatprep.subr.bf16.mxu0 0
        %3861 = vmatpush2.bf16.msra.mxu0 0
        %3862 = vmatprep.subr.bf16.mxu0 0
        %3863 = vmatpush2.bf16.msra.mxu0 0
        %3864 = vmatprep.subr.bf16.mxu0 0
        %3865 = vmatpush2.bf16.msra.mxu0 0
        %3866 = vmatprep.subr.bf16.mxu0 0
        %3867 = vmatpush2.bf16.msra.mxu0 0
        %3868 = vmatprep.subr.bf16.mxu0 0
        %3869 = vmatpush2.bf16.msra.mxu0 0
        %3870 = vmatprep.subr.bf16.mxu0 0
        %3871 = vmatpush2.bf16.msra.mxu0 0
        %3872 = vmatprep.mubr.bf16.mxu0 0
        %3873 = vmatmul.mubr.bf16.gmra.mxu0 %v3144
        %v3874 = vpop.f32.mrf.mxu0
        %v3875 = vadd.f32 0.0, %v3874
        %v3876 = vpop.f32.mrf.mxu0
        %v3877 = vpop.f32.mrf.mxu0
        %v3878 = vadd.f32 0.0, %v3877
        %v3879 = vpop.f32.mrf.mxu0
        %3880 = vmatprep.mubr.bf16.mxu0 0
        %3881 = vmatmul.mubr.bf16.gmra.mxu0 %v3147
        %v3882 = vpop.f32.mrf.mxu0
        %v3883 = vadd.f32 0.0, %v3882
        %v3884 = vpop.f32.mrf.mxu0
        %v3885 = vpop.f32.mrf.mxu0
        %v3886 = vpop.f32.mrf.mxu0
        %3887 = vdwg.mxu0
        %s3888 = scalar_lea.vmem [#allocation12], 80
        %v3889 = vld [vmem:[%s3888] sm:$0xf]
        %v3890 = vld [vmem:[%s3888 + $0x4] sm:$0xf]
        %v3891 = vld [vmem:[%s3888 + $0x8] sm:$0xf]
        %v3892 = vld [vmem:[%s3888 + $0xc] sm:$0xf]
        %v3893 = vld [vmem:[%s3888 + $0x10] sm:$0xf]
        %v3894 = vpack.c.bf16 %v3878, %v3875
        %v3895 = vpack.c.bf16 %v3883, %v3883
        %v3901 = vunpack.c.l.b16 %v3889
        %v3902 = vunpack.c.l.b16 %v3890
        %v3903 = vunpack.c.l.b16 %v3891
        %v3904 = vunpack.c.l.b16 %v3892
        %v3905 = vunpack.c.l.b16 %v3893
        %v3906 = vpack.c.b16 %v3902, %v3901
        %v3907 = vpack.c.b16 %v3904, %v3903
        %v3908 = vpack.c.b16 %v3905, %v3905
        %v3910 = vsel %vm3306, %v3906, 0
        %v3913 = vsel %vm3306, %v3907, 0
        %v3916 = vsel %vm3306, %v3908, 0
        %v3919 = vsel %vm3316, %v3895, 0
        %3921 = vmatprep.subr.bf16.mxu0 0
        %3922 = vmatpush1.bf16.msra.mxu0 0
        %3923 = vmatprep.subr.bf16.mxu0 0
        %3924 = vmatpush1.bf16.msra.mxu0 0
        %3925 = vmatprep.subr.bf16.mxu0 0
        %3926 = vmatpush1.bf16.msra.mxu0 0
        %3927 = vmatprep.subr.bf16.mxu0 0
        %3928 = vmatpush1.bf16.msra.mxu0 0
        %3929 = vmatprep.subr.bf16.mxu0 0
        %3930 = vmatpush1.bf16.msra.mxu0 0
        %3931 = vmatprep.subr.bf16.mxu0 0
        %3932 = vmatpush1.bf16.msra.mxu0 0
        %3933 = vmatprep.subr.bf16.mxu0 0
        %3934 = vmatpush1.bf16.msra.mxu0 %v3919
        %3935 = vmatprep.subr.bf16.mxu0 0
        %3936 = vmatpush1.bf16.msra.mxu0 %v3894
        %3937 = vmatprep.subr.bf16.mxu0 0
        %3938 = vmatpush2.bf16.msra.mxu0 0
        %3939 = vmatprep.subr.bf16.mxu0 0
        %3940 = vmatpush2.bf16.msra.mxu0 0
        %3941 = vmatprep.subr.bf16.mxu0 0
        %3942 = vmatpush2.bf16.msra.mxu0 0
        %3943 = vmatprep.subr.bf16.mxu0 0
        %3944 = vmatpush2.bf16.msra.mxu0 0
        %3945 = vmatprep.subr.bf16.mxu0 0
        %3946 = vmatpush2.bf16.msra.mxu0 0
        %3947 = vmatprep.subr.bf16.mxu0 0
        %3948 = vmatpush2.bf16.msra.mxu0 0
        %3949 = vmatprep.subr.bf16.mxu0 0
        %3950 = vmatpush2.bf16.msra.mxu0 0
        %3951 = vmatprep.subr.bf16.mxu0 0
        %3952 = vmatpush2.bf16.msra.mxu0 0
        %3953 = vmatprep.mubr.bf16.mxu0 0
        %3954 = vmatmul.mubr.bf16.gmra.mxu0 %v3910
        %v3955 = vpop.f32.mrf.mxu0
        %v3956 = vadd.f32 0.0, %v3955
        %v3957 = vpop.f32.mrf.mxu0
        %v3958 = vpop.f32.mrf.mxu0
        %v3959 = vadd.f32 0.0, %v3958
        %v3960 = vpop.f32.mrf.mxu0
        %3961 = vmatprep.mubr.bf16.mxu0 0
        %3962 = vmatmul.mubr.bf16.gmra.mxu0 %v3913
        %v3963 = vpop.f32.mrf.mxu0
        %v3964 = vadd.f32 0.0, %v3963
        %v3965 = vpop.f32.mrf.mxu0
        %v3966 = vpop.f32.mrf.mxu0
        %v3967 = vadd.f32 0.0, %v3966
        %v3968 = vpop.f32.mrf.mxu0
        %3969 = vmatprep.mubr.bf16.mxu0 0
        %3970 = vmatmul.mubr.bf16.gmra.mxu0 %v3916
        %v3971 = vpop.f32.mrf.mxu0
        %v3972 = vadd.f32 0.0, %v3971
        %v3973 = vpop.f32.mrf.mxu0
        %v3974 = vpop.f32.mrf.mxu0
        %v3975 = vpop.f32.mrf.mxu0
        %3976 = vdwg.mxu0
        %v3977 = vadd.f32 %v3802, %v3956
        %v3978 = vadd.f32 %v3803, %v3959
        %v3979 = vadd.f32 %v3804, %v3964
        %v3980 = vadd.f32 %v3805, %v3967
        %v3981 = vadd.f32 %v3806, %v3972
        %s3982 = scalar_lea.vmem [#allocation10], 160
        %v3983 = vld [vmem:[%s3982] sm:$0xf]
        %v3984 = vld [vmem:[%s3982 + $0x4] sm:$0xf]
        %v3985 = vld [vmem:[%s3982 + $0x8] sm:$0xf]
        %v3986 = vld [vmem:[%s3982 + $0xc] sm:$0xf]
        %v3987 = vld [vmem:[%s3982 + $0x10] sm:$0xf]
        %v3988 = vld [vmem:[%s3982 + $0x14] sm:$0xf]
        %v3989 = vld [vmem:[%s3982 + $0x18] sm:$0xf]
        %v3990 = vld [vmem:[%s3982 + $0x1c] sm:$0xf]
        %v3999 = vunpack.c.l.b16 %v3983
        %v4000 = vunpack.c.l.b16 %v3984
        %v4001 = vunpack.c.l.b16 %v3985
        %v4002 = vunpack.c.l.b16 %v3986
        %v4003 = vunpack.c.l.b16 %v3987
        %v4004 = vunpack.c.l.b16 %v3988
        %v4005 = vunpack.c.l.b16 %v3989
        %v4006 = vunpack.c.l.b16 %v3990
        %v4007 = vpack.c.b16 %v4000, %v3999
        %v4008 = vpack.c.b16 %v4002, %v4001
        %v4009 = vpack.c.b16 %v4004, %v4003
        %v4010 = vpack.c.b16 %v4006, %v4005
        %4015 = vmatprep.subr.bf16.mxu0 0
        %4016 = vmatpush1.bf16.msra.mxu0 0
        %4017 = vmatprep.subr.bf16.mxu0 0
        %4018 = vmatpush1.bf16.msra.mxu0 0
        %4019 = vmatprep.subr.bf16.mxu0 0
        %4020 = vmatpush1.bf16.msra.mxu0 0
        %4021 = vmatprep.subr.bf16.mxu0 0
        %4022 = vmatpush1.bf16.msra.mxu0 0
        %4023 = vmatprep.subr.bf16.mxu0 0
        %4024 = vmatpush1.bf16.msra.mxu0 %v4010
        %4025 = vmatprep.subr.bf16.mxu0 0
        %4026 = vmatpush1.bf16.msra.mxu0 %v4009
        %4027 = vmatprep.subr.bf16.mxu0 0
        %4028 = vmatpush1.bf16.msra.mxu0 %v4008
        %4029 = vmatprep.subr.bf16.mxu0 0
        %4030 = vmatpush1.bf16.msra.mxu0 %v4007
        %4031 = vmatprep.subr.bf16.mxu0 0
        %4032 = vmatpush2.bf16.msra.mxu0 0
        %4033 = vmatprep.subr.bf16.mxu0 0
        %4034 = vmatpush2.bf16.msra.mxu0 0
        %4035 = vmatprep.subr.bf16.mxu0 0
        %4036 = vmatpush2.bf16.msra.mxu0 0
        %4037 = vmatprep.subr.bf16.mxu0 0
        %4038 = vmatpush2.bf16.msra.mxu0 0
        %4039 = vmatprep.subr.bf16.mxu0 0
        %4040 = vmatpush2.bf16.msra.mxu0 0
        %4041 = vmatprep.subr.bf16.mxu0 0
        %4042 = vmatpush2.bf16.msra.mxu0 0
        %4043 = vmatprep.subr.bf16.mxu0 0
        %4044 = vmatpush2.bf16.msra.mxu0 0
        %4045 = vmatprep.subr.bf16.mxu0 0
        %4046 = vmatpush2.bf16.msra.mxu0 0
        %4047 = vmatprep.mubr.bf16.mxu0 0
        %4048 = vmatmul.mubr.bf16.gmra.mxu0 %v3144
        %v4049 = vpop.f32.mrf.mxu0
        %v4050 = vadd.f32 0.0, %v4049
        %v4051 = vpop.f32.mrf.mxu0
        %v4052 = vpop.f32.mrf.mxu0
        %v4053 = vadd.f32 0.0, %v4052
        %v4054 = vpop.f32.mrf.mxu0
        %4055 = vmatprep.mubr.bf16.mxu0 0
        %4056 = vmatmul.mubr.bf16.gmra.mxu0 %v3147
        %v4057 = vpop.f32.mrf.mxu0
        %v4058 = vadd.f32 0.0, %v4057
        %v4059 = vpop.f32.mrf.mxu0
        %v4060 = vpop.f32.mrf.mxu0
        %v4061 = vpop.f32.mrf.mxu0
        %4062 = vdwg.mxu0
        %s4063 = scalar_lea.vmem [#allocation12], 100
        %v4064 = vld [vmem:[%s4063] sm:$0xf]
        %v4065 = vld [vmem:[%s4063 + $0x4] sm:$0xf]
        %v4066 = vld [vmem:[%s4063 + $0x8] sm:$0xf]
        %v4067 = vld [vmem:[%s4063 + $0xc] sm:$0xf]
        %v4068 = vld [vmem:[%s4063 + $0x10] sm:$0xf]
        %v4069 = vpack.c.bf16 %v4053, %v4050
        %v4070 = vpack.c.bf16 %v4058, %v4058
        %v4076 = vunpack.c.l.b16 %v4064
        %v4077 = vunpack.c.l.b16 %v4065
        %v4078 = vunpack.c.l.b16 %v4066
        %v4079 = vunpack.c.l.b16 %v4067
        %v4080 = vunpack.c.l.b16 %v4068
        %v4081 = vpack.c.b16 %v4077, %v4076
        %v4082 = vpack.c.b16 %v4079, %v4078
        %v4083 = vpack.c.b16 %v4080, %v4080
        %v4085 = vsel %vm3306, %v4081, 0
        %v4088 = vsel %vm3306, %v4082, 0
        %v4091 = vsel %vm3306, %v4083, 0
        %v4094 = vsel %vm3316, %v4070, 0
        %4096 = vmatprep.subr.bf16.mxu0 0
        %4097 = vmatpush1.bf16.msra.mxu0 0
        %4098 = vmatprep.subr.bf16.mxu0 0
        %4099 = vmatpush1.bf16.msra.mxu0 0
        %4100 = vmatprep.subr.bf16.mxu0 0
        %4101 = vmatpush1.bf16.msra.mxu0 0
        %4102 = vmatprep.subr.bf16.mxu0 0
        %4103 = vmatpush1.bf16.msra.mxu0 0
        %4104 = vmatprep.subr.bf16.mxu0 0
        %4105 = vmatpush1.bf16.msra.mxu0 0
        %4106 = vmatprep.subr.bf16.mxu0 0
        %4107 = vmatpush1.bf16.msra.mxu0 0
        %4108 = vmatprep.subr.bf16.mxu0 0
        %4109 = vmatpush1.bf16.msra.mxu0 %v4094
        %4110 = vmatprep.subr.bf16.mxu0 0
        %4111 = vmatpush1.bf16.msra.mxu0 %v4069
        %4112 = vmatprep.subr.bf16.mxu0 0
        %4113 = vmatpush2.bf16.msra.mxu0 0
        %4114 = vmatprep.subr.bf16.mxu0 0
        %4115 = vmatpush2.bf16.msra.mxu0 0
        %4116 = vmatprep.subr.bf16.mxu0 0
        %4117 = vmatpush2.bf16.msra.mxu0 0
        %4118 = vmatprep.subr.bf16.mxu0 0
        %4119 = vmatpush2.bf16.msra.mxu0 0
        %4120 = vmatprep.subr.bf16.mxu0 0
        %4121 = vmatpush2.bf16.msra.mxu0 0
        %4122 = vmatprep.subr.bf16.mxu0 0
        %4123 = vmatpush2.bf16.msra.mxu0 0
        %4124 = vmatprep.subr.bf16.mxu0 0
        %4125 = vmatpush2.bf16.msra.mxu0 0
        %4126 = vmatprep.subr.bf16.mxu0 0
        %4127 = vmatpush2.bf16.msra.mxu0 0
        %4128 = vmatprep.mubr.bf16.mxu0 0
        %4129 = vmatmul.mubr.bf16.gmra.mxu0 %v4085
        %v4130 = vpop.f32.mrf.mxu0
        %v4131 = vadd.f32 0.0, %v4130
        %v4132 = vpop.f32.mrf.mxu0
        %v4133 = vpop.f32.mrf.mxu0
        %v4134 = vadd.f32 0.0, %v4133
        %v4135 = vpop.f32.mrf.mxu0
        %4136 = vmatprep.mubr.bf16.mxu0 0
        %4137 = vmatmul.mubr.bf16.gmra.mxu0 %v4088
        %v4138 = vpop.f32.mrf.mxu0
        %v4139 = vadd.f32 0.0, %v4138
        %v4140 = vpop.f32.mrf.mxu0
        %v4141 = vpop.f32.mrf.mxu0
        %v4142 = vadd.f32 0.0, %v4141
        %v4143 = vpop.f32.mrf.mxu0
        %4144 = vmatprep.mubr.bf16.mxu0 0
        %4145 = vmatmul.mubr.bf16.gmra.mxu0 %v4091
        %v4146 = vpop.f32.mrf.mxu0
        %v4147 = vadd.f32 0.0, %v4146
        %v4148 = vpop.f32.mrf.mxu0
        %v4149 = vpop.f32.mrf.mxu0
        %v4150 = vpop.f32.mrf.mxu0
        %4151 = vdwg.mxu0
        %v4152 = vadd.f32 %v3977, %v4131
        %v4153 = vadd.f32 %v3978, %v4134
        %v4154 = vadd.f32 %v3979, %v4139
        %v4155 = vadd.f32 %v3980, %v4142
        %v4156 = vadd.f32 %v3981, %v4147
        %s4157 = scalar_lea.vmem [#allocation10], 192
        %v4158 = vld [vmem:[%s4157] sm:$0xf]
        %v4159 = vld [vmem:[%s4157 + $0x4] sm:$0xf]
        %v4160 = vld [vmem:[%s4157 + $0x8] sm:$0xf]
        %v4161 = vld [vmem:[%s4157 + $0xc] sm:$0xf]
        %v4162 = vld [vmem:[%s4157 + $0x10] sm:$0xf]
        %v4163 = vld [vmem:[%s4157 + $0x14] sm:$0xf]
        %v4164 = vld [vmem:[%s4157 + $0x18] sm:$0xf]
        %v4165 = vld [vmem:[%s4157 + $0x1c] sm:$0xf]
        %v4174 = vunpack.c.l.b16 %v4158
        %v4175 = vunpack.c.l.b16 %v4159
        %v4176 = vunpack.c.l.b16 %v4160
        %v4177 = vunpack.c.l.b16 %v4161
        %v4178 = vunpack.c.l.b16 %v4162
        %v4179 = vunpack.c.l.b16 %v4163
        %v4180 = vunpack.c.l.b16 %v4164
        %v4181 = vunpack.c.l.b16 %v4165
        %v4182 = vpack.c.b16 %v4175, %v4174
        %v4183 = vpack.c.b16 %v4177, %v4176
        %v4184 = vpack.c.b16 %v4179, %v4178
        %v4185 = vpack.c.b16 %v4181, %v4180
        %4190 = vmatprep.subr.bf16.mxu0 0
        %4191 = vmatpush1.bf16.msra.mxu0 0
        %4192 = vmatprep.subr.bf16.mxu0 0
        %4193 = vmatpush1.bf16.msra.mxu0 0
        %4194 = vmatprep.subr.bf16.mxu0 0
        %4195 = vmatpush1.bf16.msra.mxu0 0
        %4196 = vmatprep.subr.bf16.mxu0 0
        %4197 = vmatpush1.bf16.msra.mxu0 0
        %4198 = vmatprep.subr.bf16.mxu0 0
        %4199 = vmatpush1.bf16.msra.mxu0 %v4185
        %4200 = vmatprep.subr.bf16.mxu0 0
        %4201 = vmatpush1.bf16.msra.mxu0 %v4184
        %4202 = vmatprep.subr.bf16.mxu0 0
        %4203 = vmatpush1.bf16.msra.mxu0 %v4183
        %4204 = vmatprep.subr.bf16.mxu0 0
        %4205 = vmatpush1.bf16.msra.mxu0 %v4182
        %4206 = vmatprep.subr.bf16.mxu0 0
        %4207 = vmatpush2.bf16.msra.mxu0 0
        %4208 = vmatprep.subr.bf16.mxu0 0
        %4209 = vmatpush2.bf16.msra.mxu0 0
        %4210 = vmatprep.subr.bf16.mxu0 0
        %4211 = vmatpush2.bf16.msra.mxu0 0
        %4212 = vmatprep.subr.bf16.mxu0 0
        %4213 = vmatpush2.bf16.msra.mxu0 0
        %4214 = vmatprep.subr.bf16.mxu0 0
        %4215 = vmatpush2.bf16.msra.mxu0 0
        %4216 = vmatprep.subr.bf16.mxu0 0
        %4217 = vmatpush2.bf16.msra.mxu0 0
        %4218 = vmatprep.subr.bf16.mxu0 0
        %4219 = vmatpush2.bf16.msra.mxu0 0
        %4220 = vmatprep.subr.bf16.mxu0 0
        %4221 = vmatpush2.bf16.msra.mxu0 0
        %4222 = vmatprep.mubr.bf16.mxu0 0
        %4223 = vmatmul.mubr.bf16.gmra.mxu0 %v3144
        %v4224 = vpop.f32.mrf.mxu0
        %v4225 = vadd.f32 0.0, %v4224
        %v4226 = vpop.f32.mrf.mxu0
        %v4227 = vpop.f32.mrf.mxu0
        %v4228 = vadd.f32 0.0, %v4227
        %v4229 = vpop.f32.mrf.mxu0
        %4230 = vmatprep.mubr.bf16.mxu0 0
        %4231 = vmatmul.mubr.bf16.gmra.mxu0 %v3147
        %v4232 = vpop.f32.mrf.mxu0
        %v4233 = vadd.f32 0.0, %v4232
        %v4234 = vpop.f32.mrf.mxu0
        %v4235 = vpop.f32.mrf.mxu0
        %v4236 = vpop.f32.mrf.mxu0
        %4237 = vdwg.mxu0
        %s4238 = scalar_lea.vmem [#allocation12], 120
        %v4239 = vld [vmem:[%s4238] sm:$0xf]
        %v4240 = vld [vmem:[%s4238 + $0x4] sm:$0xf]
        %v4241 = vld [vmem:[%s4238 + $0x8] sm:$0xf]
        %v4242 = vld [vmem:[%s4238 + $0xc] sm:$0xf]
        %v4243 = vld [vmem:[%s4238 + $0x10] sm:$0xf]
        %v4244 = vpack.c.bf16 %v4228, %v4225
        %v4245 = vpack.c.bf16 %v4233, %v4233
        %v4251 = vunpack.c.l.b16 %v4239
        %v4252 = vunpack.c.l.b16 %v4240
        %v4253 = vunpack.c.l.b16 %v4241
        %v4254 = vunpack.c.l.b16 %v4242
        %v4255 = vunpack.c.l.b16 %v4243
        %v4256 = vpack.c.b16 %v4252, %v4251
        %v4257 = vpack.c.b16 %v4254, %v4253
        %v4258 = vpack.c.b16 %v4255, %v4255
        %v4260 = vsel %vm3306, %v4256, 0
        %v4263 = vsel %vm3306, %v4257, 0
        %v4266 = vsel %vm3306, %v4258, 0
        %v4269 = vsel %vm3316, %v4245, 0
        %4271 = vmatprep.subr.bf16.mxu0 0
        %4272 = vmatpush1.bf16.msra.mxu0 0
        %4273 = vmatprep.subr.bf16.mxu0 0
        %4274 = vmatpush1.bf16.msra.mxu0 0
        %4275 = vmatprep.subr.bf16.mxu0 0
        %4276 = vmatpush1.bf16.msra.mxu0 0
        %4277 = vmatprep.subr.bf16.mxu0 0
        %4278 = vmatpush1.bf16.msra.mxu0 0
        %4279 = vmatprep.subr.bf16.mxu0 0
        %4280 = vmatpush1.bf16.msra.mxu0 0
        %4281 = vmatprep.subr.bf16.mxu0 0
        %4282 = vmatpush1.bf16.msra.mxu0 0
        %4283 = vmatprep.subr.bf16.mxu0 0
        %4284 = vmatpush1.bf16.msra.mxu0 %v4269
        %4285 = vmatprep.subr.bf16.mxu0 0
        %4286 = vmatpush1.bf16.msra.mxu0 %v4244
        %4287 = vmatprep.subr.bf16.mxu0 0
        %4288 = vmatpush2.bf16.msra.mxu0 0
        %4289 = vmatprep.subr.bf16.mxu0 0
        %4290 = vmatpush2.bf16.msra.mxu0 0
        %4291 = vmatprep.subr.bf16.mxu0 0
        %4292 = vmatpush2.bf16.msra.mxu0 0
        %4293 = vmatprep.subr.bf16.mxu0 0
        %4294 = vmatpush2.bf16.msra.mxu0 0
        %4295 = vmatprep.subr.bf16.mxu0 0
        %4296 = vmatpush2.bf16.msra.mxu0 0
        %4297 = vmatprep.subr.bf16.mxu0 0
        %4298 = vmatpush2.bf16.msra.mxu0 0
        %4299 = vmatprep.subr.bf16.mxu0 0
        %4300 = vmatpush2.bf16.msra.mxu0 0
        %4301 = vmatprep.subr.bf16.mxu0 0
        %4302 = vmatpush2.bf16.msra.mxu0 0
        %4303 = vmatprep.mubr.bf16.mxu0 0
        %4304 = vmatmul.mubr.bf16.gmra.mxu0 %v4260
        %v4305 = vpop.f32.mrf.mxu0
        %v4306 = vadd.f32 0.0, %v4305
        %v4307 = vpop.f32.mrf.mxu0
        %v4308 = vpop.f32.mrf.mxu0
        %v4309 = vadd.f32 0.0, %v4308
        %v4310 = vpop.f32.mrf.mxu0
        %4311 = vmatprep.mubr.bf16.mxu0 0
        %4312 = vmatmul.mubr.bf16.gmra.mxu0 %v4263
        %v4313 = vpop.f32.mrf.mxu0
        %v4314 = vadd.f32 0.0, %v4313
        %v4315 = vpop.f32.mrf.mxu0
        %v4316 = vpop.f32.mrf.mxu0
        %v4317 = vadd.f32 0.0, %v4316
        %v4318 = vpop.f32.mrf.mxu0
        %4319 = vmatprep.mubr.bf16.mxu0 0
        %4320 = vmatmul.mubr.bf16.gmra.mxu0 %v4266
        %v4321 = vpop.f32.mrf.mxu0
        %v4322 = vadd.f32 0.0, %v4321
        %v4323 = vpop.f32.mrf.mxu0
        %v4324 = vpop.f32.mrf.mxu0
        %v4325 = vpop.f32.mrf.mxu0
        %4326 = vdwg.mxu0
        %v4327 = vadd.f32 %v4152, %v4306
        %v4328 = vadd.f32 %v4153, %v4309
        %v4329 = vadd.f32 %v4154, %v4314
        %v4330 = vadd.f32 %v4155, %v4317
        %v4331 = vadd.f32 %v4156, %v4322
        %s4332 = scalar_lea.vmem [#allocation10], 224
        %v4333 = vld [vmem:[%s4332] sm:$0xf]
        %v4334 = vld [vmem:[%s4332 + $0x4] sm:$0xf]
        %v4335 = vld [vmem:[%s4332 + $0x8] sm:$0xf]
        %v4336 = vld [vmem:[%s4332 + $0xc] sm:$0xf]
        %v4337 = vld [vmem:[%s4332 + $0x10] sm:$0xf]
        %v4338 = vld [vmem:[%s4332 + $0x14] sm:$0xf]
        %v4339 = vld [vmem:[%s4332 + $0x18] sm:$0xf]
        %v4340 = vld [vmem:[%s4332 + $0x1c] sm:$0xf]
        %v4349 = vunpack.c.l.b16 %v4333
        %v4350 = vunpack.c.l.b16 %v4334
        %v4351 = vunpack.c.l.b16 %v4335
        %v4352 = vunpack.c.l.b16 %v4336
        %v4353 = vunpack.c.l.b16 %v4337
        %v4354 = vunpack.c.l.b16 %v4338
        %v4355 = vunpack.c.l.b16 %v4339
        %v4356 = vunpack.c.l.b16 %v4340
        %v4357 = vpack.c.b16 %v4350, %v4349
        %v4358 = vpack.c.b16 %v4352, %v4351
        %v4359 = vpack.c.b16 %v4354, %v4353
        %v4360 = vpack.c.b16 %v4356, %v4355
        %4365 = vmatprep.subr.bf16.mxu0 0
        %4366 = vmatpush1.bf16.msra.mxu0 0
        %4367 = vmatprep.subr.bf16.mxu0 0
        %4368 = vmatpush1.bf16.msra.mxu0 0
        %4369 = vmatprep.subr.bf16.mxu0 0
        %4370 = vmatpush1.bf16.msra.mxu0 0
        %4371 = vmatprep.subr.bf16.mxu0 0
        %4372 = vmatpush1.bf16.msra.mxu0 0
        %4373 = vmatprep.subr.bf16.mxu0 0
        %4374 = vmatpush1.bf16.msra.mxu0 %v4360
        %4375 = vmatprep.subr.bf16.mxu0 0
        %4376 = vmatpush1.bf16.msra.mxu0 %v4359
        %4377 = vmatprep.subr.bf16.mxu0 0
        %4378 = vmatpush1.bf16.msra.mxu0 %v4358
        %4379 = vmatprep.subr.bf16.mxu0 0
        %4380 = vmatpush1.bf16.msra.mxu0 %v4357
        %4381 = vmatprep.subr.bf16.mxu0 0
        %4382 = vmatpush2.bf16.msra.mxu0 0
        %4383 = vmatprep.subr.bf16.mxu0 0
        %4384 = vmatpush2.bf16.msra.mxu0 0
        %4385 = vmatprep.subr.bf16.mxu0 0
        %4386 = vmatpush2.bf16.msra.mxu0 0
        %4387 = vmatprep.subr.bf16.mxu0 0
        %4388 = vmatpush2.bf16.msra.mxu0 0
        %4389 = vmatprep.subr.bf16.mxu0 0
        %4390 = vmatpush2.bf16.msra.mxu0 0
        %4391 = vmatprep.subr.bf16.mxu0 0
        %4392 = vmatpush2.bf16.msra.mxu0 0
        %4393 = vmatprep.subr.bf16.mxu0 0
        %4394 = vmatpush2.bf16.msra.mxu0 0
        %4395 = vmatprep.subr.bf16.mxu0 0
        %4396 = vmatpush2.bf16.msra.mxu0 0
        %4397 = vmatprep.mubr.bf16.mxu0 0
        %4398 = vmatmul.mubr.bf16.gmra.mxu0 %v3144
        %v4399 = vpop.f32.mrf.mxu0
        %v4400 = vadd.f32 0.0, %v4399
        %v4401 = vpop.f32.mrf.mxu0
        %v4402 = vpop.f32.mrf.mxu0
        %v4403 = vadd.f32 0.0, %v4402
        %v4404 = vpop.f32.mrf.mxu0
        %4405 = vmatprep.mubr.bf16.mxu0 0
        %4406 = vmatmul.mubr.bf16.gmra.mxu0 %v3147
        %v4407 = vpop.f32.mrf.mxu0
        %v4408 = vadd.f32 0.0, %v4407
        %v4409 = vpop.f32.mrf.mxu0
        %v4410 = vpop.f32.mrf.mxu0
        %v4411 = vpop.f32.mrf.mxu0
        %4412 = vdwg.mxu0
        %s4413 = scalar_lea.vmem [#allocation12], 140
        %v4414 = vld [vmem:[%s4413] sm:$0xf]
        %v4415 = vld [vmem:[%s4413 + $0x4] sm:$0xf]
        %v4416 = vld [vmem:[%s4413 + $0x8] sm:$0xf]
        %v4417 = vld [vmem:[%s4413 + $0xc] sm:$0xf]
        %v4418 = vld [vmem:[%s4413 + $0x10] sm:$0xf]
        %v4419 = vpack.c.bf16 %v4403, %v4400
        %v4420 = vpack.c.bf16 %v4408, %v4408
        %v4426 = vunpack.c.l.b16 %v4414
        %v4427 = vunpack.c.l.b16 %v4415
        %v4428 = vunpack.c.l.b16 %v4416
        %v4429 = vunpack.c.l.b16 %v4417
        %v4430 = vunpack.c.l.b16 %v4418
        %v4431 = vpack.c.b16 %v4427, %v4426
        %v4432 = vpack.c.b16 %v4429, %v4428
        %v4433 = vpack.c.b16 %v4430, %v4430
        %v4435 = vsel %vm3306, %v4431, 0
        %v4438 = vsel %vm3306, %v4432, 0
        %v4441 = vsel %vm3306, %v4433, 0
        %v4444 = vsel %vm3316, %v4420, 0
        %4446 = vmatprep.subr.bf16.mxu0 0
        %4447 = vmatpush1.bf16.msra.mxu0 0
        %4448 = vmatprep.subr.bf16.mxu0 0
        %4449 = vmatpush1.bf16.msra.mxu0 0
        %4450 = vmatprep.subr.bf16.mxu0 0
        %4451 = vmatpush1.bf16.msra.mxu0 0
        %4452 = vmatprep.subr.bf16.mxu0 0
        %4453 = vmatpush1.bf16.msra.mxu0 0
        %4454 = vmatprep.subr.bf16.mxu0 0
        %4455 = vmatpush1.bf16.msra.mxu0 0
        %4456 = vmatprep.subr.bf16.mxu0 0
        %4457 = vmatpush1.bf16.msra.mxu0 0
        %4458 = vmatprep.subr.bf16.mxu0 0
        %4459 = vmatpush1.bf16.msra.mxu0 %v4444
        %4460 = vmatprep.subr.bf16.mxu0 0
        %4461 = vmatpush1.bf16.msra.mxu0 %v4419
        %4462 = vmatprep.subr.bf16.mxu0 0
        %4463 = vmatpush2.bf16.msra.mxu0 0
        %4464 = vmatprep.subr.bf16.mxu0 0
        %4465 = vmatpush2.bf16.msra.mxu0 0
        %4466 = vmatprep.subr.bf16.mxu0 0
        %4467 = vmatpush2.bf16.msra.mxu0 0
        %4468 = vmatprep.subr.bf16.mxu0 0
        %4469 = vmatpush2.bf16.msra.mxu0 0
        %4470 = vmatprep.subr.bf16.mxu0 0
        %4471 = vmatpush2.bf16.msra.mxu0 0
        %4472 = vmatprep.subr.bf16.mxu0 0
        %4473 = vmatpush2.bf16.msra.mxu0 0
        %4474 = vmatprep.subr.bf16.mxu0 0
        %4475 = vmatpush2.bf16.msra.mxu0 0
        %4476 = vmatprep.subr.bf16.mxu0 0
        %4477 = vmatpush2.bf16.msra.mxu0 0
        %4478 = vmatprep.mubr.bf16.mxu0 0
        %4479 = vmatmul.mubr.bf16.gmra.mxu0 %v4435
        %v4480 = vpop.f32.mrf.mxu0
        %v4481 = vadd.f32 0.0, %v4480
        %v4482 = vpop.f32.mrf.mxu0
        %v4483 = vpop.f32.mrf.mxu0
        %v4484 = vadd.f32 0.0, %v4483
        %v4485 = vpop.f32.mrf.mxu0
        %4486 = vmatprep.mubr.bf16.mxu0 0
        %4487 = vmatmul.mubr.bf16.gmra.mxu0 %v4438
        %v4488 = vpop.f32.mrf.mxu0
        %v4489 = vadd.f32 0.0, %v4488
        %v4490 = vpop.f32.mrf.mxu0
        %v4491 = vpop.f32.mrf.mxu0
        %v4492 = vadd.f32 0.0, %v4491
        %v4493 = vpop.f32.mrf.mxu0
        %4494 = vmatprep.mubr.bf16.mxu0 0
        %4495 = vmatmul.mubr.bf16.gmra.mxu0 %v4441
        %v4496 = vpop.f32.mrf.mxu0
        %v4497 = vadd.f32 0.0, %v4496
        %v4498 = vpop.f32.mrf.mxu0
        %v4499 = vpop.f32.mrf.mxu0
        %v4500 = vpop.f32.mrf.mxu0
        %4501 = vdwg.mxu0
        %v4502 = vadd.f32 %v4327, %v4481
        %v4503 = vadd.f32 %v4328, %v4484
        %v4504 = vadd.f32 %v4329, %v4489
        %v4505 = vadd.f32 %v4330, %v4492
        %v4506 = vadd.f32 %v4331, %v4497
        %s4507 = scalar_lea.vmem [#allocation10], 256
        %v4508 = vld [vmem:[%s4507] sm:$0xf]
        %v4509 = vld [vmem:[%s4507 + $0x4] sm:$0xf]
        %v4510 = vld [vmem:[%s4507 + $0x8] sm:$0xf]
        %v4511 = vld [vmem:[%s4507 + $0xc] sm:$0xf]
        %v4512 = vld [vmem:[%s4507 + $0x10] sm:$0xf]
        %v4513 = vld [vmem:[%s4507 + $0x14] sm:$0xf]
        %v4514 = vld [vmem:[%s4507 + $0x18] sm:$0xf]
        %v4515 = vld [vmem:[%s4507 + $0x1c] sm:$0xf]
        %v4524 = vunpack.c.l.b16 %v4508
        %v4525 = vunpack.c.l.b16 %v4509
        %v4526 = vunpack.c.l.b16 %v4510
        %v4527 = vunpack.c.l.b16 %v4511
        %v4528 = vunpack.c.l.b16 %v4512
        %v4529 = vunpack.c.l.b16 %v4513
        %v4530 = vunpack.c.l.b16 %v4514
        %v4531 = vunpack.c.l.b16 %v4515
        %v4532 = vpack.c.b16 %v4525, %v4524
        %v4533 = vpack.c.b16 %v4527, %v4526
        %v4534 = vpack.c.b16 %v4529, %v4528
        %v4535 = vpack.c.b16 %v4531, %v4530
        %4540 = vmatprep.subr.bf16.mxu0 0
        %4541 = vmatpush1.bf16.msra.mxu0 0
        %4542 = vmatprep.subr.bf16.mxu0 0
        %4543 = vmatpush1.bf16.msra.mxu0 0
        %4544 = vmatprep.subr.bf16.mxu0 0
        %4545 = vmatpush1.bf16.msra.mxu0 0
        %4546 = vmatprep.subr.bf16.mxu0 0
        %4547 = vmatpush1.bf16.msra.mxu0 0
        %4548 = vmatprep.subr.bf16.mxu0 0
        %4549 = vmatpush1.bf16.msra.mxu0 %v4535
        %4550 = vmatprep.subr.bf16.mxu0 0
        %4551 = vmatpush1.bf16.msra.mxu0 %v4534
        %4552 = vmatprep.subr.bf16.mxu0 0
        %4553 = vmatpush1.bf16.msra.mxu0 %v4533
        %4554 = vmatprep.subr.bf16.mxu0 0
        %4555 = vmatpush1.bf16.msra.mxu0 %v4532
        %4556 = vmatprep.subr.bf16.mxu0 0
        %4557 = vmatpush2.bf16.msra.mxu0 0
        %4558 = vmatprep.subr.bf16.mxu0 0
        %4559 = vmatpush2.bf16.msra.mxu0 0
        %4560 = vmatprep.subr.bf16.mxu0 0
        %4561 = vmatpush2.bf16.msra.mxu0 0
        %4562 = vmatprep.subr.bf16.mxu0 0
        %4563 = vmatpush2.bf16.msra.mxu0 0
        %4564 = vmatprep.subr.bf16.mxu0 0
        %4565 = vmatpush2.bf16.msra.mxu0 0
        %4566 = vmatprep.subr.bf16.mxu0 0
        %4567 = vmatpush2.bf16.msra.mxu0 0
        %4568 = vmatprep.subr.bf16.mxu0 0
        %4569 = vmatpush2.bf16.msra.mxu0 0
        %4570 = vmatprep.subr.bf16.mxu0 0
        %4571 = vmatpush2.bf16.msra.mxu0 0
        %4572 = vmatprep.mubr.bf16.mxu0 0
        %4573 = vmatmul.mubr.bf16.gmra.mxu0 %v3144
        %v4574 = vpop.f32.mrf.mxu0
        %v4575 = vadd.f32 0.0, %v4574
        %v4576 = vpop.f32.mrf.mxu0
        %v4577 = vpop.f32.mrf.mxu0
        %v4578 = vadd.f32 0.0, %v4577
        %v4579 = vpop.f32.mrf.mxu0
        %4580 = vmatprep.mubr.bf16.mxu0 0
        %4581 = vmatmul.mubr.bf16.gmra.mxu0 %v3147
        %v4582 = vpop.f32.mrf.mxu0
        %v4583 = vadd.f32 0.0, %v4582
        %v4584 = vpop.f32.mrf.mxu0
        %v4585 = vpop.f32.mrf.mxu0
        %v4586 = vpop.f32.mrf.mxu0
        %4587 = vdwg.mxu0
        %s4588 = scalar_lea.vmem [#allocation12], 160
        %v4589 = vld [vmem:[%s4588] sm:$0xf]
        %v4590 = vld [vmem:[%s4588 + $0x4] sm:$0xf]
        %v4591 = vld [vmem:[%s4588 + $0x8] sm:$0xf]
        %v4592 = vld [vmem:[%s4588 + $0xc] sm:$0xf]
        %v4593 = vld [vmem:[%s4588 + $0x10] sm:$0xf]
        %v4594 = vpack.c.bf16 %v4578, %v4575
        %v4595 = vpack.c.bf16 %v4583, %v4583
        %v4601 = vunpack.c.l.b16 %v4589
        %v4602 = vunpack.c.l.b16 %v4590
        %v4603 = vunpack.c.l.b16 %v4591
        %v4604 = vunpack.c.l.b16 %v4592
        %v4605 = vunpack.c.l.b16 %v4593
        %v4606 = vpack.c.b16 %v4602, %v4601
        %v4607 = vpack.c.b16 %v4604, %v4603
        %v4608 = vpack.c.b16 %v4605, %v4605
        %v4610 = vsel %vm3306, %v4606, 0
        %v4613 = vsel %vm3306, %v4607, 0
        %v4616 = vsel %vm3306, %v4608, 0
        %v4619 = vsel %vm3316, %v4595, 0
        %4621 = vmatprep.subr.bf16.mxu0 0
        %4622 = vmatpush1.bf16.msra.mxu0 0
        %4623 = vmatprep.subr.bf16.mxu0 0
        %4624 = vmatpush1.bf16.msra.mxu0 0
        %4625 = vmatprep.subr.bf16.mxu0 0
        %4626 = vmatpush1.bf16.msra.mxu0 0
        %4627 = vmatprep.subr.bf16.mxu0 0
        %4628 = vmatpush1.bf16.msra.mxu0 0
        %4629 = vmatprep.subr.bf16.mxu0 0
        %4630 = vmatpush1.bf16.msra.mxu0 0
        %4631 = vmatprep.subr.bf16.mxu0 0
        %4632 = vmatpush1.bf16.msra.mxu0 0
        %4633 = vmatprep.subr.bf16.mxu0 0
        %4634 = vmatpush1.bf16.msra.mxu0 %v4619
        %4635 = vmatprep.subr.bf16.mxu0 0
        %4636 = vmatpush1.bf16.msra.mxu0 %v4594
        %4637 = vmatprep.subr.bf16.mxu0 0
        %4638 = vmatpush2.bf16.msra.mxu0 0
        %4639 = vmatprep.subr.bf16.mxu0 0
        %4640 = vmatpush2.bf16.msra.mxu0 0
        %4641 = vmatprep.subr.bf16.mxu0 0
        %4642 = vmatpush2.bf16.msra.mxu0 0
        %4643 = vmatprep.subr.bf16.mxu0 0
        %4644 = vmatpush2.bf16.msra.mxu0 0
        %4645 = vmatprep.subr.bf16.mxu0 0
        %4646 = vmatpush2.bf16.msra.mxu0 0
        %4647 = vmatprep.subr.bf16.mxu0 0
        %4648 = vmatpush2.bf16.msra.mxu0 0
        %4649 = vmatprep.subr.bf16.mxu0 0
        %4650 = vmatpush2.bf16.msra.mxu0 0
        %4651 = vmatprep.subr.bf16.mxu0 0
        %4652 = vmatpush2.bf16.msra.mxu0 0
        %4653 = vmatprep.mubr.bf16.mxu0 0
        %4654 = vmatmul.mubr.bf16.gmra.mxu0 %v4610
        %v4655 = vpop.f32.mrf.mxu0
        %v4656 = vadd.f32 0.0, %v4655
        %v4657 = vpop.f32.mrf.mxu0
        %v4658 = vpop.f32.mrf.mxu0
        %v4659 = vadd.f32 0.0, %v4658
        %v4660 = vpop.f32.mrf.mxu0
        %4661 = vmatprep.mubr.bf16.mxu0 0
        %4662 = vmatmul.mubr.bf16.gmra.mxu0 %v4613
        %v4663 = vpop.f32.mrf.mxu0
        %v4664 = vadd.f32 0.0, %v4663
        %v4665 = vpop.f32.mrf.mxu0
        %v4666 = vpop.f32.mrf.mxu0
        %v4667 = vadd.f32 0.0, %v4666
        %v4668 = vpop.f32.mrf.mxu0
        %4669 = vmatprep.mubr.bf16.mxu0 0
        %4670 = vmatmul.mubr.bf16.gmra.mxu0 %v4616
        %v4671 = vpop.f32.mrf.mxu0
        %v4672 = vadd.f32 0.0, %v4671
        %v4673 = vpop.f32.mrf.mxu0
        %v4674 = vpop.f32.mrf.mxu0
        %v4675 = vpop.f32.mrf.mxu0
        %4676 = vdwg.mxu0
        %v4677 = vadd.f32 %v4502, %v4656
        %v4678 = vadd.f32 %v4503, %v4659
        %v4679 = vadd.f32 %v4504, %v4664
        %v4680 = vadd.f32 %v4505, %v4667
        %v4681 = vadd.f32 %v4506, %v4672
        %v4682 = vld [vmem:[%s8] sm:$0xff]
        %v4683 = vld [vmem:[%s8 + $0x8] sm:$0xff]
        %v4684 = vld [vmem:[%s8 + $0x10] sm:$0xff]
        %v4685 = vld [vmem:[%s8 + $0x18] sm:$0xff]
        %v4686 = vld [vmem:[%s8 + $0x20] sm:$0xff]
        %4688 = vset.pattern.permute.xlu0 0
        %4689 = vperm.xlu0 %4688, %v4682
        %v4690 = vpop.permute.xlu0 %4689
        %4693 = vset.pattern.permute.xlu0 0
        %4694 = vperm.xlu0 %4693, %v4683
        %v4695 = vpop.permute.xlu0 %4694
        %4698 = vset.pattern.permute.xlu0 0
        %4699 = vperm.xlu0 %4698, %v4684
        %v4700 = vpop.permute.xlu0 %4699
        %4703 = vset.pattern.permute.xlu0 0
        %4704 = vperm.xlu0 %4703, %v4685
        %v4705 = vpop.permute.xlu0 %4704
        %4708 = vset.pattern.permute.xlu0 0
        %4709 = vperm.xlu0 %4708, %v4686
        %v4710 = vpop.permute.xlu0 %4709
        %v4712 = vadd.f32 %v4677, %v4690
        %v4713 = vadd.f32 %v4678, %v4695
        %v4714 = vadd.f32 %v4679, %v4700
        %v4715 = vadd.f32 %v4680, %v4705
        %v4716 = vadd.f32 %v4681, %v4710
        %v4717 = vmax.f32 %v4712, 0.0
        %v4718 = vmax.f32 %v4713, 0.0
        %v4719 = vmax.f32 %v4714, 0.0
        %v4720 = vmax.f32 %v4715, 0.0
        %v4721 = vmax.f32 %v4716, 0.0
        %v4722 = vpack.c.bf16 %v4718, %v4717
        %v4723 = vpack.c.bf16 %v4720, %v4719
        %v4724 = vpack.c.bf16 %v4721, %v4721
        %v4725 = vld [vmem:[#allocation13] sm:$0x3]
        %v4727 = vsel %vm1287, %v4725, 0
        %v4730 = vsel %vm1287, %v4722, 0
        %v4733 = vsel %vm1287, %v4723, 0
        %v4736 = vsel %vm1287, %v4724, 0
        %4738 = vmatprep.subr.bf16.mxu0 0
        %4739 = vmatpush1.bf16.xpose.msra.mxu0 0
        %4740 = vmatprep.subr.bf16.mxu0 0
        %4741 = vmatpush1.bf16.xpose.msra.mxu0 0
        %4742 = vmatprep.subr.bf16.mxu0 0
        %4743 = vmatpush1.bf16.xpose.msra.mxu0 0
        %4744 = vmatprep.subr.bf16.mxu0 0
        %4745 = vmatpush1.bf16.xpose.msra.mxu0 0
        %4746 = vmatprep.subr.bf16.mxu0 0
        %4747 = vmatpush1.bf16.xpose.msra.mxu0 0
        %4748 = vmatprep.subr.bf16.mxu0 0
        %4749 = vmatpush1.bf16.xpose.msra.mxu0 %v4736
        %4750 = vmatprep.subr.bf16.mxu0 0
        %4751 = vmatpush1.bf16.xpose.msra.mxu0 %v4733
        %4752 = vmatprep.subr.bf16.mxu0 0
        %4753 = vmatpush1.bf16.xpose.msra.mxu0 %v4730
        %4754 = vmatprep.subr.bf16.mxu0 0
        %4755 = vmatpush2.bf16.xpose.msra.mxu0 0
        %4756 = vmatprep.subr.bf16.mxu0 0
        %4757 = vmatpush2.bf16.xpose.msra.mxu0 0
        %4758 = vmatprep.subr.bf16.mxu0 0
        %4759 = vmatpush2.bf16.xpose.msra.mxu0 0
        %4760 = vmatprep.subr.bf16.mxu0 0
        %4761 = vmatpush2.bf16.xpose.msra.mxu0 0
        %4762 = vmatprep.subr.bf16.mxu0 0
        %4763 = vmatpush2.bf16.xpose.msra.mxu0 0
        %4764 = vmatprep.subr.bf16.mxu0 0
        %4765 = vmatpush2.bf16.xpose.msra.mxu0 0
        %4766 = vmatprep.subr.bf16.mxu0 0
        %4767 = vmatpush2.bf16.xpose.msra.mxu0 0
        %4768 = vmatprep.subr.bf16.mxu0 0
        %4769 = vmatpush2.bf16.xpose.msra.mxu0 0
        %4770 = vmatprep.mubr.bf16.mxu0 0
        %4771 = vmatmul.mubr.bf16.gmra.mxu0 %v4727
        %v4772 = vpop.f32.mrf.mxu0
        %v4773 = vadd.f32 0.0, %v4772
        %v4774 = vpop.f32.mrf.mxu0
        %v4775 = vpop.f32.mrf.mxu0
        %v4776 = vpop.f32.mrf.mxu0
        %4777 = vdwg.mxu0
        %v4778 = vpack.c.bf16 %v4773, %v4773
        %v4779 = vld [vmem:[%s10] sm:$0xf]
        %v4780 = vld [vmem:[%s10 + $0x4] sm:$0xf]
        %v4781 = vld [vmem:[%s10 + $0x8] sm:$0xf]
        %v4782 = vld [vmem:[%s10 + $0xc] sm:$0xf]
        %v4783 = vld [vmem:[%s10 + $0x10] sm:$0xf]
        %s4784 = scalar_lea.vmem [#allocation13], 2
        %v4785 = vld [vmem:[%s4784] sm:$0x3]
        %v4787 = vsel %vm1287, %v4785, 0
        %4789 = vmatprep.subr.bf16.mxu0 0
        %4790 = vmatpush1.bf16.xpose.msra.mxu0 0
        %4791 = vmatprep.subr.bf16.mxu0 0
        %4792 = vmatpush1.bf16.xpose.msra.mxu0 0
        %4793 = vmatprep.subr.bf16.mxu0 0
        %4794 = vmatpush1.bf16.xpose.msra.mxu0 0
        %4795 = vmatprep.subr.bf16.mxu0 0
        %4796 = vmatpush1.bf16.xpose.msra.mxu0 0
        %4797 = vmatprep.subr.bf16.mxu0 0
        %4798 = vmatpush1.bf16.xpose.msra.mxu0 0
        %4799 = vmatprep.subr.bf16.mxu0 0
        %4800 = vmatpush1.bf16.xpose.msra.mxu0 %v4736
        %4801 = vmatprep.subr.bf16.mxu0 0
        %4802 = vmatpush1.bf16.xpose.msra.mxu0 %v4733
        %4803 = vmatprep.subr.bf16.mxu0 0
        %4804 = vmatpush1.bf16.xpose.msra.mxu0 %v4730
        %4805 = vmatprep.subr.bf16.mxu0 0
        %4806 = vmatpush2.bf16.xpose.msra.mxu0 0
        %4807 = vmatprep.subr.bf16.mxu0 0
        %4808 = vmatpush2.bf16.xpose.msra.mxu0 0
        %4809 = vmatprep.subr.bf16.mxu0 0
        %4810 = vmatpush2.bf16.xpose.msra.mxu0 0
        %4811 = vmatprep.subr.bf16.mxu0 0
        %4812 = vmatpush2.bf16.xpose.msra.mxu0 0
        %4813 = vmatprep.subr.bf16.mxu0 0
        %4814 = vmatpush2.bf16.xpose.msra.mxu0 0
        %4815 = vmatprep.subr.bf16.mxu0 0
        %4816 = vmatpush2.bf16.xpose.msra.mxu0 0
        %4817 = vmatprep.subr.bf16.mxu0 0
        %4818 = vmatpush2.bf16.xpose.msra.mxu0 0
        %4819 = vmatprep.subr.bf16.mxu0 0
        %4820 = vmatpush2.bf16.xpose.msra.mxu0 0
        %4821 = vmatprep.mubr.bf16.mxu0 0
        %4822 = vmatmul.mubr.bf16.gmra.mxu0 %v4787
        %v4823 = vpop.f32.mrf.mxu0
        %v4824 = vadd.f32 0.0, %v4823
        %v4825 = vpop.f32.mrf.mxu0
        %v4826 = vpop.f32.mrf.mxu0
        %v4827 = vpop.f32.mrf.mxu0
        %4828 = vdwg.mxu0
        %v4829 = vpack.c.bf16 %v4824, %v4824
        %s4830 = scalar_lea.vmem %s10, 20
        %v4831 = vld [vmem:[%s4830] sm:$0xf]
        %v4832 = vld [vmem:[%s4830 + $0x4] sm:$0xf]
        %v4833 = vld [vmem:[%s4830 + $0x8] sm:$0xf]
        %v4834 = vld [vmem:[%s4830 + $0xc] sm:$0xf]
        %v4835 = vld [vmem:[%s4830 + $0x10] sm:$0xf]
        %v4841 = vunpack.c.l.b16 %v4831
        %v4842 = vunpack.c.l.b16 %v4832
        %v4843 = vunpack.c.l.b16 %v4833
        %v4844 = vunpack.c.l.b16 %v4834
        %v4845 = vunpack.c.l.b16 %v4835
        %v4846 = vpack.c.b16 %v4842, %v4841
        %v4847 = vpack.c.b16 %v4844, %v4843
        %v4848 = vpack.c.b16 %v4845, %v4845
        %vm4851 = vcmask 326656
        %v4853 = vsel %vm4851, %v4829, 0
        %v4856 = vsel %vm3316, %v4848, 0
        %4858 = vmatprep.subr.bf16.mxu0 0
        %4859 = vmatpush1.bf16.msra.mxu0 0
        %4860 = vmatprep.subr.bf16.mxu0 0
        %4861 = vmatpush1.bf16.msra.mxu0 0
        %4862 = vmatprep.subr.bf16.mxu0 0
        %4863 = vmatpush1.bf16.msra.mxu0 0
        %4864 = vmatprep.subr.bf16.mxu0 0
        %4865 = vmatpush1.bf16.msra.mxu0 0
        %4866 = vmatprep.subr.bf16.mxu0 0
        %4867 = vmatpush1.bf16.msra.mxu0 0
        %4868 = vmatprep.subr.bf16.mxu0 0
        %4869 = vmatpush1.bf16.msra.mxu0 %v4856
        %4870 = vmatprep.subr.bf16.mxu0 0
        %4871 = vmatpush1.bf16.msra.mxu0 %v4847
        %4872 = vmatprep.subr.bf16.mxu0 0
        %4873 = vmatpush1.bf16.msra.mxu0 %v4846
        %4874 = vmatprep.subr.bf16.mxu0 0
        %4875 = vmatpush2.bf16.msra.mxu0 0
        %4876 = vmatprep.subr.bf16.mxu0 0
        %4877 = vmatpush2.bf16.msra.mxu0 0
        %4878 = vmatprep.subr.bf16.mxu0 0
        %4879 = vmatpush2.bf16.msra.mxu0 0
        %4880 = vmatprep.subr.bf16.mxu0 0
        %4881 = vmatpush2.bf16.msra.mxu0 0
        %4882 = vmatprep.subr.bf16.mxu0 0
        %4883 = vmatpush2.bf16.msra.mxu0 0
        %4884 = vmatprep.subr.bf16.mxu0 0
        %4885 = vmatpush2.bf16.msra.mxu0 0
        %4886 = vmatprep.subr.bf16.mxu0 0
        %4887 = vmatpush2.bf16.msra.mxu0 0
        %4888 = vmatprep.subr.bf16.mxu0 0
        %4889 = vmatpush2.bf16.msra.mxu0 0
        %4890 = vmatprep.mubr.bf16.mxu0 0
        %4891 = vmatmul.mubr.bf16.gmra.mxu0 %v4853
        %v4892 = vpop.f32.mrf.mxu0
        %v4893 = vadd.f32 0.0, %v4892
        %v4894 = vpop.f32.mrf.mxu0
        %v4895 = vpop.f32.mrf.mxu0
        %v4896 = vpop.f32.mrf.mxu0
        %4897 = vdwg.mxu0
        %v4903 = vunpack.c.l.b16 %v4779
        %v4904 = vunpack.c.l.b16 %v4780
        %v4905 = vunpack.c.l.b16 %v4781
        %v4906 = vunpack.c.l.b16 %v4782
        %v4907 = vunpack.c.l.b16 %v4783
        %v4908 = vpack.c.b16 %v4904, %v4903
        %v4909 = vpack.c.b16 %v4906, %v4905
        %v4910 = vpack.c.b16 %v4907, %v4907
        %v4914 = vsel %vm4851, %v4778, 0
        %v4917 = vsel %vm3316, %v4910, 0
        %4919 = vmatprep.subr.bf16.mxu0 0
        %4920 = vmatpush1.bf16.msra.mxu0 0
        %4921 = vmatprep.subr.bf16.mxu0 0
        %4922 = vmatpush1.bf16.msra.mxu0 0
        %4923 = vmatprep.subr.bf16.mxu0 0
        %4924 = vmatpush1.bf16.msra.mxu0 0
        %4925 = vmatprep.subr.bf16.mxu0 0
        %4926 = vmatpush1.bf16.msra.mxu0 0
        %4927 = vmatprep.subr.bf16.mxu0 0
        %4928 = vmatpush1.bf16.msra.mxu0 0
        %4929 = vmatprep.subr.bf16.mxu0 0
        %4930 = vmatpush1.bf16.msra.mxu0 %v4917
        %4931 = vmatprep.subr.bf16.mxu0 0
        %4932 = vmatpush1.bf16.msra.mxu0 %v4909
        %4933 = vmatprep.subr.bf16.mxu0 0
        %4934 = vmatpush1.bf16.msra.mxu0 %v4908
        %4935 = vmatprep.subr.bf16.mxu0 0
        %4936 = vmatpush2.bf16.msra.mxu0 0
        %4937 = vmatprep.subr.bf16.mxu0 0
        %4938 = vmatpush2.bf16.msra.mxu0 0
        %4939 = vmatprep.subr.bf16.mxu0 0
        %4940 = vmatpush2.bf16.msra.mxu0 0
        %4941 = vmatprep.subr.bf16.mxu0 0
        %4942 = vmatpush2.bf16.msra.mxu0 0
        %4943 = vmatprep.subr.bf16.mxu0 0
        %4944 = vmatpush2.bf16.msra.mxu0 0
        %4945 = vmatprep.subr.bf16.mxu0 0
        %4946 = vmatpush2.bf16.msra.mxu0 0
        %4947 = vmatprep.subr.bf16.mxu0 0
        %4948 = vmatpush2.bf16.msra.mxu0 0
        %4949 = vmatprep.subr.bf16.mxu0 0
        %4950 = vmatpush2.bf16.msra.mxu0 0
        %4951 = vmatprep.mubr.bf16.mxu0 0
        %4952 = vmatmul.mubr.bf16.gmra.mxu0 %v4914
        %v4953 = vpop.f32.mrf.mxu0
        %v4954 = vadd.f32 %v4893, %v4953
        %v4955 = vpop.f32.mrf.mxu0
        %v4956 = vpop.f32.mrf.mxu0
        %v4957 = vpop.f32.mrf.mxu0
        %4958 = vdwg.mxu0
        %s4959 = scalar_lea.vmem [#allocation13], 4
        %v4960 = vld [vmem:[%s4959] sm:$0x3]
        %v4962 = vsel %vm1287, %v4960, 0
        %4964 = vmatprep.subr.bf16.mxu0 0
        %4965 = vmatpush1.bf16.xpose.msra.mxu0 0
        %4966 = vmatprep.subr.bf16.mxu0 0
        %4967 = vmatpush1.bf16.xpose.msra.mxu0 0
        %4968 = vmatprep.subr.bf16.mxu0 0
        %4969 = vmatpush1.bf16.xpose.msra.mxu0 0
        %4970 = vmatprep.subr.bf16.mxu0 0
        %4971 = vmatpush1.bf16.xpose.msra.mxu0 0
        %4972 = vmatprep.subr.bf16.mxu0 0
        %4973 = vmatpush1.bf16.xpose.msra.mxu0 0
        %4974 = vmatprep.subr.bf16.mxu0 0
        %4975 = vmatpush1.bf16.xpose.msra.mxu0 %v4736
        %4976 = vmatprep.subr.bf16.mxu0 0
        %4977 = vmatpush1.bf16.xpose.msra.mxu0 %v4733
        %4978 = vmatprep.subr.bf16.mxu0 0
        %4979 = vmatpush1.bf16.xpose.msra.mxu0 %v4730
        %4980 = vmatprep.subr.bf16.mxu0 0
        %4981 = vmatpush2.bf16.xpose.msra.mxu0 0
        %4982 = vmatprep.subr.bf16.mxu0 0
        %4983 = vmatpush2.bf16.xpose.msra.mxu0 0
        %4984 = vmatprep.subr.bf16.mxu0 0
        %4985 = vmatpush2.bf16.xpose.msra.mxu0 0
        %4986 = vmatprep.subr.bf16.mxu0 0
        %4987 = vmatpush2.bf16.xpose.msra.mxu0 0
        %4988 = vmatprep.subr.bf16.mxu0 0
        %4989 = vmatpush2.bf16.xpose.msra.mxu0 0
        %4990 = vmatprep.subr.bf16.mxu0 0
        %4991 = vmatpush2.bf16.xpose.msra.mxu0 0
        %4992 = vmatprep.subr.bf16.mxu0 0
        %4993 = vmatpush2.bf16.xpose.msra.mxu0 0
        %4994 = vmatprep.subr.bf16.mxu0 0
        %4995 = vmatpush2.bf16.xpose.msra.mxu0 0
        %4996 = vmatprep.mubr.bf16.mxu0 0
        %4997 = vmatmul.mubr.bf16.gmra.mxu0 %v4962
        %v4998 = vpop.f32.mrf.mxu0
        %v4999 = vadd.f32 0.0, %v4998
        %v5000 = vpop.f32.mrf.mxu0
        %v5001 = vpop.f32.mrf.mxu0
        %v5002 = vpop.f32.mrf.mxu0
        %5003 = vdwg.mxu0
        %v5004 = vpack.c.bf16 %v4999, %v4999
        %s5005 = scalar_lea.vmem %s10, 40
        %v5006 = vld [vmem:[%s5005] sm:$0xf]
        %v5007 = vld [vmem:[%s5005 + $0x4] sm:$0xf]
        %v5008 = vld [vmem:[%s5005 + $0x8] sm:$0xf]
        %v5009 = vld [vmem:[%s5005 + $0xc] sm:$0xf]
        %v5010 = vld [vmem:[%s5005 + $0x10] sm:$0xf]
        %v5016 = vunpack.c.l.b16 %v5006
        %v5017 = vunpack.c.l.b16 %v5007
        %v5018 = vunpack.c.l.b16 %v5008
        %v5019 = vunpack.c.l.b16 %v5009
        %v5020 = vunpack.c.l.b16 %v5010
        %v5021 = vpack.c.b16 %v5017, %v5016
        %v5022 = vpack.c.b16 %v5019, %v5018
        %v5023 = vpack.c.b16 %v5020, %v5020
        %v5027 = vsel %vm4851, %v5004, 0
        %v5030 = vsel %vm3316, %v5023, 0
        %5032 = vmatprep.subr.bf16.mxu0 0
        %5033 = vmatpush1.bf16.msra.mxu0 0
        %5034 = vmatprep.subr.bf16.mxu0 0
        %5035 = vmatpush1.bf16.msra.mxu0 0
        %5036 = vmatprep.subr.bf16.mxu0 0
        %5037 = vmatpush1.bf16.msra.mxu0 0
        %5038 = vmatprep.subr.bf16.mxu0 0
        %5039 = vmatpush1.bf16.msra.mxu0 0
        %5040 = vmatprep.subr.bf16.mxu0 0
        %5041 = vmatpush1.bf16.msra.mxu0 0
        %5042 = vmatprep.subr.bf16.mxu0 0
        %5043 = vmatpush1.bf16.msra.mxu0 %v5030
        %5044 = vmatprep.subr.bf16.mxu0 0
        %5045 = vmatpush1.bf16.msra.mxu0 %v5022
        %5046 = vmatprep.subr.bf16.mxu0 0
        %5047 = vmatpush1.bf16.msra.mxu0 %v5021
        %5048 = vmatprep.subr.bf16.mxu0 0
        %5049 = vmatpush2.bf16.msra.mxu0 0
        %5050 = vmatprep.subr.bf16.mxu0 0
        %5051 = vmatpush2.bf16.msra.mxu0 0
        %5052 = vmatprep.subr.bf16.mxu0 0
        %5053 = vmatpush2.bf16.msra.mxu0 0
        %5054 = vmatprep.subr.bf16.mxu0 0
        %5055 = vmatpush2.bf16.msra.mxu0 0
        %5056 = vmatprep.subr.bf16.mxu0 0
        %5057 = vmatpush2.bf16.msra.mxu0 0
        %5058 = vmatprep.subr.bf16.mxu0 0
        %5059 = vmatpush2.bf16.msra.mxu0 0
        %5060 = vmatprep.subr.bf16.mxu0 0
        %5061 = vmatpush2.bf16.msra.mxu0 0
        %5062 = vmatprep.subr.bf16.mxu0 0
        %5063 = vmatpush2.bf16.msra.mxu0 0
        %5064 = vmatprep.mubr.bf16.mxu0 0
        %5065 = vmatmul.mubr.bf16.gmra.mxu0 %v5027
        %v5066 = vpop.f32.mrf.mxu0
        %v5067 = vadd.f32 0.0, %v5066
        %v5068 = vpop.f32.mrf.mxu0
        %v5069 = vpop.f32.mrf.mxu0
        %v5070 = vpop.f32.mrf.mxu0
        %5071 = vdwg.mxu0
        %v5072 = vadd.f32 %v4954, %v5067
        %s5073 = scalar_lea.vmem [#allocation13], 6
        %v5074 = vld [vmem:[%s5073] sm:$0x3]
        %v5076 = vsel %vm1287, %v5074, 0
        %5078 = vmatprep.subr.bf16.mxu0 0
        %5079 = vmatpush1.bf16.xpose.msra.mxu0 0
        %5080 = vmatprep.subr.bf16.mxu0 0
        %5081 = vmatpush1.bf16.xpose.msra.mxu0 0
        %5082 = vmatprep.subr.bf16.mxu0 0
        %5083 = vmatpush1.bf16.xpose.msra.mxu0 0
        %5084 = vmatprep.subr.bf16.mxu0 0
        %5085 = vmatpush1.bf16.xpose.msra.mxu0 0
        %5086 = vmatprep.subr.bf16.mxu0 0
        %5087 = vmatpush1.bf16.xpose.msra.mxu0 0
        %5088 = vmatprep.subr.bf16.mxu0 0
        %5089 = vmatpush1.bf16.xpose.msra.mxu0 %v4736
        %5090 = vmatprep.subr.bf16.mxu0 0
        %5091 = vmatpush1.bf16.xpose.msra.mxu0 %v4733
        %5092 = vmatprep.subr.bf16.mxu0 0
        %5093 = vmatpush1.bf16.xpose.msra.mxu0 %v4730
        %5094 = vmatprep.subr.bf16.mxu0 0
        %5095 = vmatpush2.bf16.xpose.msra.mxu0 0
        %5096 = vmatprep.subr.bf16.mxu0 0
        %5097 = vmatpush2.bf16.xpose.msra.mxu0 0
        %5098 = vmatprep.subr.bf16.mxu0 0
        %5099 = vmatpush2.bf16.xpose.msra.mxu0 0
        %5100 = vmatprep.subr.bf16.mxu0 0
        %5101 = vmatpush2.bf16.xpose.msra.mxu0 0
        %5102 = vmatprep.subr.bf16.mxu0 0
        %5103 = vmatpush2.bf16.xpose.msra.mxu0 0
        %5104 = vmatprep.subr.bf16.mxu0 0
        %5105 = vmatpush2.bf16.xpose.msra.mxu0 0
        %5106 = vmatprep.subr.bf16.mxu0 0
        %5107 = vmatpush2.bf16.xpose.msra.mxu0 0
        %5108 = vmatprep.subr.bf16.mxu0 0
        %5109 = vmatpush2.bf16.xpose.msra.mxu0 0
        %5110 = vmatprep.mubr.bf16.mxu0 0
        %5111 = vmatmul.mubr.bf16.gmra.mxu0 %v5076
        %v5112 = vpop.f32.mrf.mxu0
        %v5113 = vadd.f32 0.0, %v5112
        %v5114 = vpop.f32.mrf.mxu0
        %v5115 = vpop.f32.mrf.mxu0
        %v5116 = vpop.f32.mrf.mxu0
        %5117 = vdwg.mxu0
        %v5118 = vpack.c.bf16 %v5113, %v5113
        %s5119 = scalar_lea.vmem %s10, 60
        %v5120 = vld [vmem:[%s5119] sm:$0xf]
        %v5121 = vld [vmem:[%s5119 + $0x4] sm:$0xf]
        %v5122 = vld [vmem:[%s5119 + $0x8] sm:$0xf]
        %v5123 = vld [vmem:[%s5119 + $0xc] sm:$0xf]
        %v5124 = vld [vmem:[%s5119 + $0x10] sm:$0xf]
        %v5130 = vunpack.c.l.b16 %v5120
        %v5131 = vunpack.c.l.b16 %v5121
        %v5132 = vunpack.c.l.b16 %v5122
        %v5133 = vunpack.c.l.b16 %v5123
        %v5134 = vunpack.c.l.b16 %v5124
        %v5135 = vpack.c.b16 %v5131, %v5130
        %v5136 = vpack.c.b16 %v5133, %v5132
        %v5137 = vpack.c.b16 %v5134, %v5134
        %v5141 = vsel %vm4851, %v5118, 0
        %v5144 = vsel %vm3316, %v5137, 0
        %5146 = vmatprep.subr.bf16.mxu0 0
        %5147 = vmatpush1.bf16.msra.mxu0 0
        %5148 = vmatprep.subr.bf16.mxu0 0
        %5149 = vmatpush1.bf16.msra.mxu0 0
        %5150 = vmatprep.subr.bf16.mxu0 0
        %5151 = vmatpush1.bf16.msra.mxu0 0
        %5152 = vmatprep.subr.bf16.mxu0 0
        %5153 = vmatpush1.bf16.msra.mxu0 0
        %5154 = vmatprep.subr.bf16.mxu0 0
        %5155 = vmatpush1.bf16.msra.mxu0 0
        %5156 = vmatprep.subr.bf16.mxu0 0
        %5157 = vmatpush1.bf16.msra.mxu0 %v5144
        %5158 = vmatprep.subr.bf16.mxu0 0
        %5159 = vmatpush1.bf16.msra.mxu0 %v5136
        %5160 = vmatprep.subr.bf16.mxu0 0
        %5161 = vmatpush1.bf16.msra.mxu0 %v5135
        %5162 = vmatprep.subr.bf16.mxu0 0
        %5163 = vmatpush2.bf16.msra.mxu0 0
        %5164 = vmatprep.subr.bf16.mxu0 0
        %5165 = vmatpush2.bf16.msra.mxu0 0
        %5166 = vmatprep.subr.bf16.mxu0 0
        %5167 = vmatpush2.bf16.msra.mxu0 0
        %5168 = vmatprep.subr.bf16.mxu0 0
        %5169 = vmatpush2.bf16.msra.mxu0 0
        %5170 = vmatprep.subr.bf16.mxu0 0
        %5171 = vmatpush2.bf16.msra.mxu0 0
        %5172 = vmatprep.subr.bf16.mxu0 0
        %5173 = vmatpush2.bf16.msra.mxu0 0
        %5174 = vmatprep.subr.bf16.mxu0 0
        %5175 = vmatpush2.bf16.msra.mxu0 0
        %5176 = vmatprep.subr.bf16.mxu0 0
        %5177 = vmatpush2.bf16.msra.mxu0 0
        %5178 = vmatprep.mubr.bf16.mxu0 0
        %5179 = vmatmul.mubr.bf16.gmra.mxu0 %v5141
        %v5180 = vpop.f32.mrf.mxu0
        %v5181 = vadd.f32 0.0, %v5180
        %v5182 = vpop.f32.mrf.mxu0
        %v5183 = vpop.f32.mrf.mxu0
        %v5184 = vpop.f32.mrf.mxu0
        %5185 = vdwg.mxu0
        %v5186 = vadd.f32 %v5072, %v5181
        %s5187 = scalar_lea.vmem [#allocation13], 8
        %v5188 = vld [vmem:[%s5187] sm:$0x3]
        %v5190 = vsel %vm1287, %v5188, 0
        %5192 = vmatprep.subr.bf16.mxu0 0
        %5193 = vmatpush1.bf16.xpose.msra.mxu0 0
        %5194 = vmatprep.subr.bf16.mxu0 0
        %5195 = vmatpush1.bf16.xpose.msra.mxu0 0
        %5196 = vmatprep.subr.bf16.mxu0 0
        %5197 = vmatpush1.bf16.xpose.msra.mxu0 0
        %5198 = vmatprep.subr.bf16.mxu0 0
        %5199 = vmatpush1.bf16.xpose.msra.mxu0 0
        %5200 = vmatprep.subr.bf16.mxu0 0
        %5201 = vmatpush1.bf16.xpose.msra.mxu0 0
        %5202 = vmatprep.subr.bf16.mxu0 0
        %5203 = vmatpush1.bf16.xpose.msra.mxu0 %v4736
        %5204 = vmatprep.subr.bf16.mxu0 0
        %5205 = vmatpush1.bf16.xpose.msra.mxu0 %v4733
        %5206 = vmatprep.subr.bf16.mxu0 0
        %5207 = vmatpush1.bf16.xpose.msra.mxu0 %v4730
        %5208 = vmatprep.subr.bf16.mxu0 0
        %5209 = vmatpush2.bf16.xpose.msra.mxu0 0
        %5210 = vmatprep.subr.bf16.mxu0 0
        %5211 = vmatpush2.bf16.xpose.msra.mxu0 0
        %5212 = vmatprep.subr.bf16.mxu0 0
        %5213 = vmatpush2.bf16.xpose.msra.mxu0 0
        %5214 = vmatprep.subr.bf16.mxu0 0
        %5215 = vmatpush2.bf16.xpose.msra.mxu0 0
        %5216 = vmatprep.subr.bf16.mxu0 0
        %5217 = vmatpush2.bf16.xpose.msra.mxu0 0
        %5218 = vmatprep.subr.bf16.mxu0 0
        %5219 = vmatpush2.bf16.xpose.msra.mxu0 0
        %5220 = vmatprep.subr.bf16.mxu0 0
        %5221 = vmatpush2.bf16.xpose.msra.mxu0 0
        %5222 = vmatprep.subr.bf16.mxu0 0
        %5223 = vmatpush2.bf16.xpose.msra.mxu0 0
        %5224 = vmatprep.mubr.bf16.mxu0 0
        %5225 = vmatmul.mubr.bf16.gmra.mxu0 %v5190
        %v5226 = vpop.f32.mrf.mxu0
        %v5227 = vadd.f32 0.0, %v5226
        %v5228 = vpop.f32.mrf.mxu0
        %v5229 = vpop.f32.mrf.mxu0
        %v5230 = vpop.f32.mrf.mxu0
        %5231 = vdwg.mxu0
        %v5232 = vpack.c.bf16 %v5227, %v5227
        %s5233 = scalar_lea.vmem %s10, 80
        %v5234 = vld [vmem:[%s5233] sm:$0xf]
        %v5235 = vld [vmem:[%s5233 + $0x4] sm:$0xf]
        %v5236 = vld [vmem:[%s5233 + $0x8] sm:$0xf]
        %v5237 = vld [vmem:[%s5233 + $0xc] sm:$0xf]
        %v5238 = vld [vmem:[%s5233 + $0x10] sm:$0xf]
        %v5244 = vunpack.c.l.b16 %v5234
        %v5245 = vunpack.c.l.b16 %v5235
        %v5246 = vunpack.c.l.b16 %v5236
        %v5247 = vunpack.c.l.b16 %v5237
        %v5248 = vunpack.c.l.b16 %v5238
        %v5249 = vpack.c.b16 %v5245, %v5244
        %v5250 = vpack.c.b16 %v5247, %v5246
        %v5251 = vpack.c.b16 %v5248, %v5248
        %v5255 = vsel %vm4851, %v5232, 0
        %v5258 = vsel %vm3316, %v5251, 0
        %5260 = vmatprep.subr.bf16.mxu0 0
        %5261 = vmatpush1.bf16.msra.mxu0 0
        %5262 = vmatprep.subr.bf16.mxu0 0
        %5263 = vmatpush1.bf16.msra.mxu0 0
        %5264 = vmatprep.subr.bf16.mxu0 0
        %5265 = vmatpush1.bf16.msra.mxu0 0
        %5266 = vmatprep.subr.bf16.mxu0 0
        %5267 = vmatpush1.bf16.msra.mxu0 0
        %5268 = vmatprep.subr.bf16.mxu0 0
        %5269 = vmatpush1.bf16.msra.mxu0 0
        %5270 = vmatprep.subr.bf16.mxu0 0
        %5271 = vmatpush1.bf16.msra.mxu0 %v5258
        %5272 = vmatprep.subr.bf16.mxu0 0
        %5273 = vmatpush1.bf16.msra.mxu0 %v5250
        %5274 = vmatprep.subr.bf16.mxu0 0
        %5275 = vmatpush1.bf16.msra.mxu0 %v5249
        %5276 = vmatprep.subr.bf16.mxu0 0
        %5277 = vmatpush2.bf16.msra.mxu0 0
        %5278 = vmatprep.subr.bf16.mxu0 0
        %5279 = vmatpush2.bf16.msra.mxu0 0
        %5280 = vmatprep.subr.bf16.mxu0 0
        %5281 = vmatpush2.bf16.msra.mxu0 0
        %5282 = vmatprep.subr.bf16.mxu0 0
        %5283 = vmatpush2.bf16.msra.mxu0 0
        %5284 = vmatprep.subr.bf16.mxu0 0
        %5285 = vmatpush2.bf16.msra.mxu0 0
        %5286 = vmatprep.subr.bf16.mxu0 0
        %5287 = vmatpush2.bf16.msra.mxu0 0
        %5288 = vmatprep.subr.bf16.mxu0 0
        %5289 = vmatpush2.bf16.msra.mxu0 0
        %5290 = vmatprep.subr.bf16.mxu0 0
        %5291 = vmatpush2.bf16.msra.mxu0 0
        %5292 = vmatprep.mubr.bf16.mxu0 0
        %5293 = vmatmul.mubr.bf16.gmra.mxu0 %v5255
        %v5294 = vpop.f32.mrf.mxu0
        %v5295 = vadd.f32 0.0, %v5294
        %v5296 = vpop.f32.mrf.mxu0
        %v5297 = vpop.f32.mrf.mxu0
        %v5298 = vpop.f32.mrf.mxu0
        %5299 = vdwg.mxu0
        %v5300 = vadd.f32 %v5186, %v5295
        %s5301 = scalar_lea.vmem [#allocation13], 10
        %v5302 = vld [vmem:[%s5301] sm:$0x3]
        %v5304 = vsel %vm1287, %v5302, 0
        %5306 = vmatprep.subr.bf16.mxu0 0
        %5307 = vmatpush1.bf16.xpose.msra.mxu0 0
        %5308 = vmatprep.subr.bf16.mxu0 0
        %5309 = vmatpush1.bf16.xpose.msra.mxu0 0
        %5310 = vmatprep.subr.bf16.mxu0 0
        %5311 = vmatpush1.bf16.xpose.msra.mxu0 0
        %5312 = vmatprep.subr.bf16.mxu0 0
        %5313 = vmatpush1.bf16.xpose.msra.mxu0 0
        %5314 = vmatprep.subr.bf16.mxu0 0
        %5315 = vmatpush1.bf16.xpose.msra.mxu0 0
        %5316 = vmatprep.subr.bf16.mxu0 0
        %5317 = vmatpush1.bf16.xpose.msra.mxu0 %v4736
        %5318 = vmatprep.subr.bf16.mxu0 0
        %5319 = vmatpush1.bf16.xpose.msra.mxu0 %v4733
        %5320 = vmatprep.subr.bf16.mxu0 0
        %5321 = vmatpush1.bf16.xpose.msra.mxu0 %v4730
        %5322 = vmatprep.subr.bf16.mxu0 0
        %5323 = vmatpush2.bf16.xpose.msra.mxu0 0
        %5324 = vmatprep.subr.bf16.mxu0 0
        %5325 = vmatpush2.bf16.xpose.msra.mxu0 0
        %5326 = vmatprep.subr.bf16.mxu0 0
        %5327 = vmatpush2.bf16.xpose.msra.mxu0 0
        %5328 = vmatprep.subr.bf16.mxu0 0
        %5329 = vmatpush2.bf16.xpose.msra.mxu0 0
        %5330 = vmatprep.subr.bf16.mxu0 0
        %5331 = vmatpush2.bf16.xpose.msra.mxu0 0
        %5332 = vmatprep.subr.bf16.mxu0 0
        %5333 = vmatpush2.bf16.xpose.msra.mxu0 0
        %5334 = vmatprep.subr.bf16.mxu0 0
        %5335 = vmatpush2.bf16.xpose.msra.mxu0 0
        %5336 = vmatprep.subr.bf16.mxu0 0
        %5337 = vmatpush2.bf16.xpose.msra.mxu0 0
        %5338 = vmatprep.mubr.bf16.mxu0 0
        %5339 = vmatmul.mubr.bf16.gmra.mxu0 %v5304
        %v5340 = vpop.f32.mrf.mxu0
        %v5341 = vadd.f32 0.0, %v5340
        %v5342 = vpop.f32.mrf.mxu0
        %v5343 = vpop.f32.mrf.mxu0
        %v5344 = vpop.f32.mrf.mxu0
        %5345 = vdwg.mxu0
        %v5346 = vpack.c.bf16 %v5341, %v5341
        %s5347 = scalar_lea.vmem %s10, 100
        %v5348 = vld [vmem:[%s5347] sm:$0xf]
        %v5349 = vld [vmem:[%s5347 + $0x4] sm:$0xf]
        %v5350 = vld [vmem:[%s5347 + $0x8] sm:$0xf]
        %v5351 = vld [vmem:[%s5347 + $0xc] sm:$0xf]
        %v5352 = vld [vmem:[%s5347 + $0x10] sm:$0xf]
        %v5358 = vunpack.c.l.b16 %v5348
        %v5359 = vunpack.c.l.b16 %v5349
        %v5360 = vunpack.c.l.b16 %v5350
        %v5361 = vunpack.c.l.b16 %v5351
        %v5362 = vunpack.c.l.b16 %v5352
        %v5363 = vpack.c.b16 %v5359, %v5358
        %v5364 = vpack.c.b16 %v5361, %v5360
        %v5365 = vpack.c.b16 %v5362, %v5362
        %v5369 = vsel %vm4851, %v5346, 0
        %v5372 = vsel %vm3316, %v5365, 0
        %5374 = vmatprep.subr.bf16.mxu0 0
        %5375 = vmatpush1.bf16.msra.mxu0 0
        %5376 = vmatprep.subr.bf16.mxu0 0
        %5377 = vmatpush1.bf16.msra.mxu0 0
        %5378 = vmatprep.subr.bf16.mxu0 0
        %5379 = vmatpush1.bf16.msra.mxu0 0
        %5380 = vmatprep.subr.bf16.mxu0 0
        %5381 = vmatpush1.bf16.msra.mxu0 0
        %5382 = vmatprep.subr.bf16.mxu0 0
        %5383 = vmatpush1.bf16.msra.mxu0 0
        %5384 = vmatprep.subr.bf16.mxu0 0
        %5385 = vmatpush1.bf16.msra.mxu0 %v5372
        %5386 = vmatprep.subr.bf16.mxu0 0
        %5387 = vmatpush1.bf16.msra.mxu0 %v5364
        %5388 = vmatprep.subr.bf16.mxu0 0
        %5389 = vmatpush1.bf16.msra.mxu0 %v5363
        %5390 = vmatprep.subr.bf16.mxu0 0
        %5391 = vmatpush2.bf16.msra.mxu0 0
        %5392 = vmatprep.subr.bf16.mxu0 0
        %5393 = vmatpush2.bf16.msra.mxu0 0
        %5394 = vmatprep.subr.bf16.mxu0 0
        %5395 = vmatpush2.bf16.msra.mxu0 0
        %5396 = vmatprep.subr.bf16.mxu0 0
        %5397 = vmatpush2.bf16.msra.mxu0 0
        %5398 = vmatprep.subr.bf16.mxu0 0
        %5399 = vmatpush2.bf16.msra.mxu0 0
        %5400 = vmatprep.subr.bf16.mxu0 0
        %5401 = vmatpush2.bf16.msra.mxu0 0
        %5402 = vmatprep.subr.bf16.mxu0 0
        %5403 = vmatpush2.bf16.msra.mxu0 0
        %5404 = vmatprep.subr.bf16.mxu0 0
        %5405 = vmatpush2.bf16.msra.mxu0 0
        %5406 = vmatprep.mubr.bf16.mxu0 0
        %5407 = vmatmul.mubr.bf16.gmra.mxu0 %v5369
        %v5408 = vpop.f32.mrf.mxu0
        %v5409 = vadd.f32 0.0, %v5408
        %v5410 = vpop.f32.mrf.mxu0
        %v5411 = vpop.f32.mrf.mxu0
        %v5412 = vpop.f32.mrf.mxu0
        %5413 = vdwg.mxu0
        %v5414 = vadd.f32 %v5300, %v5409
        %s5415 = scalar_lea.vmem [#allocation13], 12
        %v5416 = vld [vmem:[%s5415] sm:$0x3]
        %v5418 = vsel %vm1287, %v5416, 0
        %5420 = vmatprep.subr.bf16.mxu0 0
        %5421 = vmatpush1.bf16.xpose.msra.mxu0 0
        %5422 = vmatprep.subr.bf16.mxu0 0
        %5423 = vmatpush1.bf16.xpose.msra.mxu0 0
        %5424 = vmatprep.subr.bf16.mxu0 0
        %5425 = vmatpush1.bf16.xpose.msra.mxu0 0
        %5426 = vmatprep.subr.bf16.mxu0 0
        %5427 = vmatpush1.bf16.xpose.msra.mxu0 0
        %5428 = vmatprep.subr.bf16.mxu0 0
        %5429 = vmatpush1.bf16.xpose.msra.mxu0 0
        %5430 = vmatprep.subr.bf16.mxu0 0
        %5431 = vmatpush1.bf16.xpose.msra.mxu0 %v4736
        %5432 = vmatprep.subr.bf16.mxu0 0
        %5433 = vmatpush1.bf16.xpose.msra.mxu0 %v4733
        %5434 = vmatprep.subr.bf16.mxu0 0
        %5435 = vmatpush1.bf16.xpose.msra.mxu0 %v4730
        %5436 = vmatprep.subr.bf16.mxu0 0
        %5437 = vmatpush2.bf16.xpose.msra.mxu0 0
        %5438 = vmatprep.subr.bf16.mxu0 0
        %5439 = vmatpush2.bf16.xpose.msra.mxu0 0
        %5440 = vmatprep.subr.bf16.mxu0 0
        %5441 = vmatpush2.bf16.xpose.msra.mxu0 0
        %5442 = vmatprep.subr.bf16.mxu0 0
        %5443 = vmatpush2.bf16.xpose.msra.mxu0 0
        %5444 = vmatprep.subr.bf16.mxu0 0
        %5445 = vmatpush2.bf16.xpose.msra.mxu0 0
        %5446 = vmatprep.subr.bf16.mxu0 0
        %5447 = vmatpush2.bf16.xpose.msra.mxu0 0
        %5448 = vmatprep.subr.bf16.mxu0 0
        %5449 = vmatpush2.bf16.xpose.msra.mxu0 0
        %5450 = vmatprep.subr.bf16.mxu0 0
        %5451 = vmatpush2.bf16.xpose.msra.mxu0 0
        %5452 = vmatprep.mubr.bf16.mxu0 0
        %5453 = vmatmul.mubr.bf16.gmra.mxu0 %v5418
        %v5454 = vpop.f32.mrf.mxu0
        %v5455 = vadd.f32 0.0, %v5454
        %v5456 = vpop.f32.mrf.mxu0
        %v5457 = vpop.f32.mrf.mxu0
        %v5458 = vpop.f32.mrf.mxu0
        %5459 = vdwg.mxu0
        %v5460 = vpack.c.bf16 %v5455, %v5455
        %s5461 = scalar_lea.vmem %s10, 120
        %v5462 = vld [vmem:[%s5461] sm:$0xf]
        %v5463 = vld [vmem:[%s5461 + $0x4] sm:$0xf]
        %v5464 = vld [vmem:[%s5461 + $0x8] sm:$0xf]
        %v5465 = vld [vmem:[%s5461 + $0xc] sm:$0xf]
        %v5466 = vld [vmem:[%s5461 + $0x10] sm:$0xf]
        %v5472 = vunpack.c.l.b16 %v5462
        %v5473 = vunpack.c.l.b16 %v5463
        %v5474 = vunpack.c.l.b16 %v5464
        %v5475 = vunpack.c.l.b16 %v5465
        %v5476 = vunpack.c.l.b16 %v5466
        %v5477 = vpack.c.b16 %v5473, %v5472
        %v5478 = vpack.c.b16 %v5475, %v5474
        %v5479 = vpack.c.b16 %v5476, %v5476
        %v5483 = vsel %vm4851, %v5460, 0
        %v5486 = vsel %vm3316, %v5479, 0
        %5488 = vmatprep.subr.bf16.mxu0 0
        %5489 = vmatpush1.bf16.msra.mxu0 0
        %5490 = vmatprep.subr.bf16.mxu0 0
        %5491 = vmatpush1.bf16.msra.mxu0 0
        %5492 = vmatprep.subr.bf16.mxu0 0
        %5493 = vmatpush1.bf16.msra.mxu0 0
        %5494 = vmatprep.subr.bf16.mxu0 0
        %5495 = vmatpush1.bf16.msra.mxu0 0
        %5496 = vmatprep.subr.bf16.mxu0 0
        %5497 = vmatpush1.bf16.msra.mxu0 0
        %5498 = vmatprep.subr.bf16.mxu0 0
        %5499 = vmatpush1.bf16.msra.mxu0 %v5486
        %5500 = vmatprep.subr.bf16.mxu0 0
        %5501 = vmatpush1.bf16.msra.mxu0 %v5478
        %5502 = vmatprep.subr.bf16.mxu0 0
        %5503 = vmatpush1.bf16.msra.mxu0 %v5477
        %5504 = vmatprep.subr.bf16.mxu0 0
        %5505 = vmatpush2.bf16.msra.mxu0 0
        %5506 = vmatprep.subr.bf16.mxu0 0
        %5507 = vmatpush2.bf16.msra.mxu0 0
        %5508 = vmatprep.subr.bf16.mxu0 0
        %5509 = vmatpush2.bf16.msra.mxu0 0
        %5510 = vmatprep.subr.bf16.mxu0 0
        %5511 = vmatpush2.bf16.msra.mxu0 0
        %5512 = vmatprep.subr.bf16.mxu0 0
        %5513 = vmatpush2.bf16.msra.mxu0 0
        %5514 = vmatprep.subr.bf16.mxu0 0
        %5515 = vmatpush2.bf16.msra.mxu0 0
        %5516 = vmatprep.subr.bf16.mxu0 0
        %5517 = vmatpush2.bf16.msra.mxu0 0
        %5518 = vmatprep.subr.bf16.mxu0 0
        %5519 = vmatpush2.bf16.msra.mxu0 0
        %5520 = vmatprep.mubr.bf16.mxu0 0
        %5521 = vmatmul.mubr.bf16.gmra.mxu0 %v5483
        %v5522 = vpop.f32.mrf.mxu0
        %v5523 = vadd.f32 0.0, %v5522
        %v5524 = vpop.f32.mrf.mxu0
        %v5525 = vpop.f32.mrf.mxu0
        %v5526 = vpop.f32.mrf.mxu0
        %5527 = vdwg.mxu0
        %v5528 = vadd.f32 %v5414, %v5523
        %s5529 = scalar_lea.vmem [#allocation13], 14
        %v5530 = vld [vmem:[%s5529] sm:$0x3]
        %v5532 = vsel %vm1287, %v5530, 0
        %5534 = vmatprep.subr.bf16.mxu0 0
        %5535 = vmatpush1.bf16.xpose.msra.mxu0 0
        %5536 = vmatprep.subr.bf16.mxu0 0
        %5537 = vmatpush1.bf16.xpose.msra.mxu0 0
        %5538 = vmatprep.subr.bf16.mxu0 0
        %5539 = vmatpush1.bf16.xpose.msra.mxu0 0
        %5540 = vmatprep.subr.bf16.mxu0 0
        %5541 = vmatpush1.bf16.xpose.msra.mxu0 0
        %5542 = vmatprep.subr.bf16.mxu0 0
        %5543 = vmatpush1.bf16.xpose.msra.mxu0 0
        %5544 = vmatprep.subr.bf16.mxu0 0
        %5545 = vmatpush1.bf16.xpose.msra.mxu0 %v4736
        %5546 = vmatprep.subr.bf16.mxu0 0
        %5547 = vmatpush1.bf16.xpose.msra.mxu0 %v4733
        %5548 = vmatprep.subr.bf16.mxu0 0
        %5549 = vmatpush1.bf16.xpose.msra.mxu0 %v4730
        %5550 = vmatprep.subr.bf16.mxu0 0
        %5551 = vmatpush2.bf16.xpose.msra.mxu0 0
        %5552 = vmatprep.subr.bf16.mxu0 0
        %5553 = vmatpush2.bf16.xpose.msra.mxu0 0
        %5554 = vmatprep.subr.bf16.mxu0 0
        %5555 = vmatpush2.bf16.xpose.msra.mxu0 0
        %5556 = vmatprep.subr.bf16.mxu0 0
        %5557 = vmatpush2.bf16.xpose.msra.mxu0 0
        %5558 = vmatprep.subr.bf16.mxu0 0
        %5559 = vmatpush2.bf16.xpose.msra.mxu0 0
        %5560 = vmatprep.subr.bf16.mxu0 0
        %5561 = vmatpush2.bf16.xpose.msra.mxu0 0
        %5562 = vmatprep.subr.bf16.mxu0 0
        %5563 = vmatpush2.bf16.xpose.msra.mxu0 0
        %5564 = vmatprep.subr.bf16.mxu0 0
        %5565 = vmatpush2.bf16.xpose.msra.mxu0 0
        %5566 = vmatprep.mubr.bf16.mxu0 0
        %5567 = vmatmul.mubr.bf16.gmra.mxu0 %v5532
        %v5568 = vpop.f32.mrf.mxu0
        %v5569 = vadd.f32 0.0, %v5568
        %v5570 = vpop.f32.mrf.mxu0
        %v5571 = vpop.f32.mrf.mxu0
        %v5572 = vpop.f32.mrf.mxu0
        %5573 = vdwg.mxu0
        %v5574 = vpack.c.bf16 %v5569, %v5569
        %s5575 = scalar_lea.vmem %s10, 140
        %v5576 = vld [vmem:[%s5575] sm:$0xf]
        %v5577 = vld [vmem:[%s5575 + $0x4] sm:$0xf]
        %v5578 = vld [vmem:[%s5575 + $0x8] sm:$0xf]
        %v5579 = vld [vmem:[%s5575 + $0xc] sm:$0xf]
        %v5580 = vld [vmem:[%s5575 + $0x10] sm:$0xf]
        %v5586 = vunpack.c.l.b16 %v5576
        %v5587 = vunpack.c.l.b16 %v5577
        %v5588 = vunpack.c.l.b16 %v5578
        %v5589 = vunpack.c.l.b16 %v5579
        %v5590 = vunpack.c.l.b16 %v5580
        %v5591 = vpack.c.b16 %v5587, %v5586
        %v5592 = vpack.c.b16 %v5589, %v5588
        %v5593 = vpack.c.b16 %v5590, %v5590
        %v5597 = vsel %vm4851, %v5574, 0
        %v5600 = vsel %vm3316, %v5593, 0
        %5602 = vmatprep.subr.bf16.mxu0 0
        %5603 = vmatpush1.bf16.msra.mxu0 0
        %5604 = vmatprep.subr.bf16.mxu0 0
        %5605 = vmatpush1.bf16.msra.mxu0 0
        %5606 = vmatprep.subr.bf16.mxu0 0
        %5607 = vmatpush1.bf16.msra.mxu0 0
        %5608 = vmatprep.subr.bf16.mxu0 0
        %5609 = vmatpush1.bf16.msra.mxu0 0
        %5610 = vmatprep.subr.bf16.mxu0 0
        %5611 = vmatpush1.bf16.msra.mxu0 0
        %5612 = vmatprep.subr.bf16.mxu0 0
        %5613 = vmatpush1.bf16.msra.mxu0 %v5600
        %5614 = vmatprep.subr.bf16.mxu0 0
        %5615 = vmatpush1.bf16.msra.mxu0 %v5592
        %5616 = vmatprep.subr.bf16.mxu0 0
        %5617 = vmatpush1.bf16.msra.mxu0 %v5591
        %5618 = vmatprep.subr.bf16.mxu0 0
        %5619 = vmatpush2.bf16.msra.mxu0 0
        %5620 = vmatprep.subr.bf16.mxu0 0
        %5621 = vmatpush2.bf16.msra.mxu0 0
        %5622 = vmatprep.subr.bf16.mxu0 0
        %5623 = vmatpush2.bf16.msra.mxu0 0
        %5624 = vmatprep.subr.bf16.mxu0 0
        %5625 = vmatpush2.bf16.msra.mxu0 0
        %5626 = vmatprep.subr.bf16.mxu0 0
        %5627 = vmatpush2.bf16.msra.mxu0 0
        %5628 = vmatprep.subr.bf16.mxu0 0
        %5629 = vmatpush2.bf16.msra.mxu0 0
        %5630 = vmatprep.subr.bf16.mxu0 0
        %5631 = vmatpush2.bf16.msra.mxu0 0
        %5632 = vmatprep.subr.bf16.mxu0 0
        %5633 = vmatpush2.bf16.msra.mxu0 0
        %5634 = vmatprep.mubr.bf16.mxu0 0
        %5635 = vmatmul.mubr.bf16.gmra.mxu0 %v5597
        %v5636 = vpop.f32.mrf.mxu0
        %v5637 = vadd.f32 0.0, %v5636
        %v5638 = vpop.f32.mrf.mxu0
        %v5639 = vpop.f32.mrf.mxu0
        %v5640 = vpop.f32.mrf.mxu0
        %5641 = vdwg.mxu0
        %v5642 = vadd.f32 %v5528, %v5637
        %s5643 = scalar_lea.vmem [#allocation13], 16
        %v5644 = vld [vmem:[%s5643] sm:$0x3]
        %v5646 = vsel %vm1287, %v5644, 0
        %5648 = vmatprep.subr.bf16.mxu0 0
        %5649 = vmatpush1.bf16.xpose.msra.mxu0 0
        %5650 = vmatprep.subr.bf16.mxu0 0
        %5651 = vmatpush1.bf16.xpose.msra.mxu0 0
        %5652 = vmatprep.subr.bf16.mxu0 0
        %5653 = vmatpush1.bf16.xpose.msra.mxu0 0
        %5654 = vmatprep.subr.bf16.mxu0 0
        %5655 = vmatpush1.bf16.xpose.msra.mxu0 0
        %5656 = vmatprep.subr.bf16.mxu0 0
        %5657 = vmatpush1.bf16.xpose.msra.mxu0 0
        %5658 = vmatprep.subr.bf16.mxu0 0
        %5659 = vmatpush1.bf16.xpose.msra.mxu0 %v4736
        %5660 = vmatprep.subr.bf16.mxu0 0
        %5661 = vmatpush1.bf16.xpose.msra.mxu0 %v4733
        %5662 = vmatprep.subr.bf16.mxu0 0
        %5663 = vmatpush1.bf16.xpose.msra.mxu0 %v4730
        %5664 = vmatprep.subr.bf16.mxu0 0
        %5665 = vmatpush2.bf16.xpose.msra.mxu0 0
        %5666 = vmatprep.subr.bf16.mxu0 0
        %5667 = vmatpush2.bf16.xpose.msra.mxu0 0
        %5668 = vmatprep.subr.bf16.mxu0 0
        %5669 = vmatpush2.bf16.xpose.msra.mxu0 0
        %5670 = vmatprep.subr.bf16.mxu0 0
        %5671 = vmatpush2.bf16.xpose.msra.mxu0 0
        %5672 = vmatprep.subr.bf16.mxu0 0
        %5673 = vmatpush2.bf16.xpose.msra.mxu0 0
        %5674 = vmatprep.subr.bf16.mxu0 0
        %5675 = vmatpush2.bf16.xpose.msra.mxu0 0
        %5676 = vmatprep.subr.bf16.mxu0 0
        %5677 = vmatpush2.bf16.xpose.msra.mxu0 0
        %5678 = vmatprep.subr.bf16.mxu0 0
        %5679 = vmatpush2.bf16.xpose.msra.mxu0 0
        %5680 = vmatprep.mubr.bf16.mxu0 0
        %5681 = vmatmul.mubr.bf16.gmra.mxu0 %v5646
        %v5682 = vpop.f32.mrf.mxu0
        %v5683 = vadd.f32 0.0, %v5682
        %v5684 = vpop.f32.mrf.mxu0
        %v5685 = vpop.f32.mrf.mxu0
        %v5686 = vpop.f32.mrf.mxu0
        %5687 = vdwg.mxu0
        %v5688 = vpack.c.bf16 %v5683, %v5683
        %s5689 = scalar_lea.vmem %s10, 160
        %v5690 = vld [vmem:[%s5689] sm:$0xf]
        %v5691 = vld [vmem:[%s5689 + $0x4] sm:$0xf]
        %v5692 = vld [vmem:[%s5689 + $0x8] sm:$0xf]
        %v5693 = vld [vmem:[%s5689 + $0xc] sm:$0xf]
        %v5694 = vld [vmem:[%s5689 + $0x10] sm:$0xf]
        %v5700 = vunpack.c.l.b16 %v5690
        %v5701 = vunpack.c.l.b16 %v5691
        %v5702 = vunpack.c.l.b16 %v5692
        %v5703 = vunpack.c.l.b16 %v5693
        %v5704 = vunpack.c.l.b16 %v5694
        %v5705 = vpack.c.b16 %v5701, %v5700
        %v5706 = vpack.c.b16 %v5703, %v5702
        %v5707 = vpack.c.b16 %v5704, %v5704
        %v5711 = vsel %vm4851, %v5688, 0
        %v5714 = vsel %vm3316, %v5707, 0
        %5716 = vmatprep.subr.bf16.mxu0 0
        %5717 = vmatpush1.bf16.msra.mxu0 0
        %5718 = vmatprep.subr.bf16.mxu0 0
        %5719 = vmatpush1.bf16.msra.mxu0 0
        %5720 = vmatprep.subr.bf16.mxu0 0
        %5721 = vmatpush1.bf16.msra.mxu0 0
        %5722 = vmatprep.subr.bf16.mxu0 0
        %5723 = vmatpush1.bf16.msra.mxu0 0
        %5724 = vmatprep.subr.bf16.mxu0 0
        %5725 = vmatpush1.bf16.msra.mxu0 0
        %5726 = vmatprep.subr.bf16.mxu0 0
        %5727 = vmatpush1.bf16.msra.mxu0 %v5714
        %5728 = vmatprep.subr.bf16.mxu0 0
        %5729 = vmatpush1.bf16.msra.mxu0 %v5706
        %5730 = vmatprep.subr.bf16.mxu0 0
        %5731 = vmatpush1.bf16.msra.mxu0 %v5705
        %5732 = vmatprep.subr.bf16.mxu0 0
        %5733 = vmatpush2.bf16.msra.mxu0 0
        %5734 = vmatprep.subr.bf16.mxu0 0
        %5735 = vmatpush2.bf16.msra.mxu0 0
        %5736 = vmatprep.subr.bf16.mxu0 0
        %5737 = vmatpush2.bf16.msra.mxu0 0
        %5738 = vmatprep.subr.bf16.mxu0 0
        %5739 = vmatpush2.bf16.msra.mxu0 0
        %5740 = vmatprep.subr.bf16.mxu0 0
        %5741 = vmatpush2.bf16.msra.mxu0 0
        %5742 = vmatprep.subr.bf16.mxu0 0
        %5743 = vmatpush2.bf16.msra.mxu0 0
        %5744 = vmatprep.subr.bf16.mxu0 0
        %5745 = vmatpush2.bf16.msra.mxu0 0
        %5746 = vmatprep.subr.bf16.mxu0 0
        %5747 = vmatpush2.bf16.msra.mxu0 0
        %5748 = vmatprep.mubr.bf16.mxu0 0
        %5749 = vmatmul.mubr.bf16.gmra.mxu0 %v5711
        %v5750 = vpop.f32.mrf.mxu0
        %v5751 = vadd.f32 0.0, %v5750
        %v5752 = vpop.f32.mrf.mxu0
        %v5753 = vpop.f32.mrf.mxu0
        %v5754 = vpop.f32.mrf.mxu0
        %5755 = vdwg.mxu0
        %v5756 = vadd.f32 %v5642, %v5751
        %v5757 = vld [vmem:[#allocation15] sm:$0x1]
        %v5759 = vlaneseq
        %v5760 = vshrl.u32 %v5759, 7
        %v5761 = vsub.s32 0, %v5760
        %v5762 = vrot.slane %v5757, %v5761
        %v5764 = vadd.f32 %v5756, %v5762
        %v5765 = vmax.f32 %v5764, 0.0
        %v5766 = vpack.c.bf16 %v5765, %v5765
        %v5767 = vld [vmem:[%s12] sm:$0x3]
        %vm5768 = vcmask 31744
        %v5770 = vsel %vm5768, %v5767, 0
        %vm5772 = vcmask 1041408
        %v5774 = vsel %vm5772, %v5766, 0
        %5776 = vmatprep.subr.bf16.mxu0 0
        %5777 = vmatpush1.bf16.msra.mxu0 0
        %5778 = vmatprep.subr.bf16.mxu0 0
        %5779 = vmatpush1.bf16.msra.mxu0 0
        %5780 = vmatprep.subr.bf16.mxu0 0
        %5781 = vmatpush1.bf16.msra.mxu0 0
        %5782 = vmatprep.subr.bf16.mxu0 0
        %5783 = vmatpush1.bf16.msra.mxu0 0
        %5784 = vmatprep.subr.bf16.mxu0 0
        %5785 = vmatpush1.bf16.msra.mxu0 0
        %5786 = vmatprep.subr.bf16.mxu0 0
        %5787 = vmatpush1.bf16.msra.mxu0 0
        %5788 = vmatprep.subr.bf16.mxu0 0
        %5789 = vmatpush1.bf16.msra.mxu0 0
        %5790 = vmatprep.subr.bf16.mxu0 0
        %5791 = vmatpush1.bf16.msra.mxu0 %v5774
        %5792 = vmatprep.subr.bf16.mxu0 0
        %5793 = vmatpush2.bf16.msra.mxu0 0
        %5794 = vmatprep.subr.bf16.mxu0 0
        %5795 = vmatpush2.bf16.msra.mxu0 0
        %5796 = vmatprep.subr.bf16.mxu0 0
        %5797 = vmatpush2.bf16.msra.mxu0 0
        %5798 = vmatprep.subr.bf16.mxu0 0
        %5799 = vmatpush2.bf16.msra.mxu0 0
        %5800 = vmatprep.subr.bf16.mxu0 0
        %5801 = vmatpush2.bf16.msra.mxu0 0
        %5802 = vmatprep.subr.bf16.mxu0 0
        %5803 = vmatpush2.bf16.msra.mxu0 0
        %5804 = vmatprep.subr.bf16.mxu0 0
        %5805 = vmatpush2.bf16.msra.mxu0 0
        %5806 = vmatprep.subr.bf16.mxu0 0
        %5807 = vmatpush2.bf16.msra.mxu0 0
        %5808 = vmatprep.mubr.bf16.mxu0 0
        %5809 = vmatmul.mubr.bf16.gmra.mxu0 %v5770
        %v5810 = vpop.f32.mrf.mxu0
        %v5811 = vadd.f32 0.0, %v5810
        %v5812 = vpop.f32.mrf.mxu0
        %v5813 = vpop.f32.mrf.mxu0
        %v5814 = vpop.f32.mrf.mxu0
        %5815 = vdwg.mxu0
        %v5816 = vpack.c.bf16 %v5811, %v5811
        %v5817 = vld [vmem:[%s13] sm:$0xff]
        %v5818 = vld [vmem:[%s13 + $0x8] sm:$0xff]
        %v5819 = vld [vmem:[%s13 + $0x10] sm:$0xff]
        %v5820 = vld [vmem:[%s13 + $0x18] sm:$0xff]
        %v5821 = vld [vmem:[%s13 + $0x20] sm:$0xff]
        %v5822 = vld [vmem:[%s13 + $0x28] sm:$0xff]
        %v5823 = vld [vmem:[%s13 + $0x30] sm:$0xff]
        %v5824 = vld [vmem:[%s13 + $0x38] sm:$0xff]
        %v5825 = vld [vmem:[%s13 + $0x40] sm:$0xff]
        %v5826 = vld [vmem:[%s13 + $0x48] sm:$0xff]
        %v5827 = vld [vmem:[%s13 + $0x50] sm:$0xff]
        %v5828 = vld [vmem:[%s13 + $0x58] sm:$0xff]
        %s5829 = scalar_lea.vmem %s12, 2
        %v5830 = vld [vmem:[%s5829] sm:$0x3]
        %v5832 = vsel %vm5768, %v5830, 0
        %5834 = vmatprep.subr.bf16.mxu0 0
        %5835 = vmatpush1.bf16.msra.mxu0 0
        %5836 = vmatprep.subr.bf16.mxu0 0
        %5837 = vmatpush1.bf16.msra.mxu0 0
        %5838 = vmatprep.subr.bf16.mxu0 0
        %5839 = vmatpush1.bf16.msra.mxu0 0
        %5840 = vmatprep.subr.bf16.mxu0 0
        %5841 = vmatpush1.bf16.msra.mxu0 0
        %5842 = vmatprep.subr.bf16.mxu0 0
        %5843 = vmatpush1.bf16.msra.mxu0 0
        %5844 = vmatprep.subr.bf16.mxu0 0
        %5845 = vmatpush1.bf16.msra.mxu0 0
        %5846 = vmatprep.subr.bf16.mxu0 0
        %5847 = vmatpush1.bf16.msra.mxu0 0
        %5848 = vmatprep.subr.bf16.mxu0 0
        %5849 = vmatpush1.bf16.msra.mxu0 %v5774
        %5850 = vmatprep.subr.bf16.mxu0 0
        %5851 = vmatpush2.bf16.msra.mxu0 0
        %5852 = vmatprep.subr.bf16.mxu0 0
        %5853 = vmatpush2.bf16.msra.mxu0 0
        %5854 = vmatprep.subr.bf16.mxu0 0
        %5855 = vmatpush2.bf16.msra.mxu0 0
        %5856 = vmatprep.subr.bf16.mxu0 0
        %5857 = vmatpush2.bf16.msra.mxu0 0
        %5858 = vmatprep.subr.bf16.mxu0 0
        %5859 = vmatpush2.bf16.msra.mxu0 0
        %5860 = vmatprep.subr.bf16.mxu0 0
        %5861 = vmatpush2.bf16.msra.mxu0 0
        %5862 = vmatprep.subr.bf16.mxu0 0
        %5863 = vmatpush2.bf16.msra.mxu0 0
        %5864 = vmatprep.subr.bf16.mxu0 0
        %5865 = vmatpush2.bf16.msra.mxu0 0
        %5866 = vmatprep.mubr.bf16.mxu0 0
        %5867 = vmatmul.mubr.bf16.gmra.mxu0 %v5832
        %v5868 = vpop.f32.mrf.mxu0
        %v5869 = vadd.f32 0.0, %v5868
        %v5870 = vpop.f32.mrf.mxu0
        %v5871 = vpop.f32.mrf.mxu0
        %v5872 = vpop.f32.mrf.mxu0
        %5873 = vdwg.mxu0
        %v5874 = vpack.c.bf16 %v5869, %v5869
        %s5875 = scalar_lea.vmem %s13, 96
        %v5876 = vld [vmem:[%s5875] sm:$0xff]
        %v5877 = vld [vmem:[%s5875 + $0x8] sm:$0xff]
        %v5878 = vld [vmem:[%s5875 + $0x10] sm:$0xff]
        %v5879 = vld [vmem:[%s5875 + $0x18] sm:$0xff]
        %v5880 = vld [vmem:[%s5875 + $0x20] sm:$0xff]
        %v5881 = vld [vmem:[%s5875 + $0x28] sm:$0xff]
        %v5882 = vld [vmem:[%s5875 + $0x30] sm:$0xff]
        %v5883 = vld [vmem:[%s5875 + $0x38] sm:$0xff]
        %v5884 = vld [vmem:[%s5875 + $0x40] sm:$0xff]
        %v5885 = vld [vmem:[%s5875 + $0x48] sm:$0xff]
        %v5886 = vld [vmem:[%s5875 + $0x50] sm:$0xff]
        %v5887 = vld [vmem:[%s5875 + $0x58] sm:$0xff]
        %v5900 = vunpack.c.l.b16 %v5876
        %v5901 = vunpack.c.h.b16 %v5876
        %v5902 = vunpack.c.l.b16 %v5877
        %v5903 = vunpack.c.h.b16 %v5877
        %v5904 = vunpack.c.l.b16 %v5878
        %v5905 = vunpack.c.h.b16 %v5878
        %v5906 = vunpack.c.l.b16 %v5879
        %v5907 = vunpack.c.h.b16 %v5879
        %v5908 = vunpack.c.l.b16 %v5880
        %v5909 = vunpack.c.h.b16 %v5880
        %v5910 = vunpack.c.l.b16 %v5881
        %v5911 = vunpack.c.h.b16 %v5881
        %v5912 = vunpack.c.l.b16 %v5882
        %v5913 = vunpack.c.h.b16 %v5882
        %v5914 = vunpack.c.l.b16 %v5883
        %v5915 = vunpack.c.h.b16 %v5883
        %v5916 = vunpack.c.l.b16 %v5884
        %v5917 = vunpack.c.h.b16 %v5884
        %v5918 = vunpack.c.l.b16 %v5885
        %v5919 = vunpack.c.h.b16 %v5885
        %v5920 = vunpack.c.l.b16 %v5886
        %v5921 = vunpack.c.h.b16 %v5886
        %v5922 = vunpack.c.l.b16 %v5887
        %v5923 = vunpack.c.h.b16 %v5887
        %v5924 = vpack.c.b16 %v5902, %v5900
        %v5925 = vpack.c.b16 %v5903, %v5901
        %v5926 = vpack.c.b16 %v5906, %v5904
        %v5927 = vpack.c.b16 %v5907, %v5905
        %v5928 = vpack.c.b16 %v5910, %v5908
        %v5929 = vpack.c.b16 %v5911, %v5909
        %v5930 = vpack.c.b16 %v5914, %v5912
        %v5931 = vpack.c.b16 %v5915, %v5913
        %v5932 = vpack.c.b16 %v5918, %v5916
        %v5933 = vpack.c.b16 %v5919, %v5917
        %v5934 = vpack.c.b16 %v5922, %v5920
        %v5935 = vpack.c.b16 %v5923, %v5921
        %vm5948 = vcmask 785408
        %v5950 = vsel %vm5948, %v5874, 0
        %5952 = vmatprep.subr.bf16.mxu0 0
        %5953 = vmatpush1.bf16.msra.mxu0 0
        %5954 = vmatprep.subr.bf16.mxu0 0
        %5955 = vmatpush1.bf16.msra.mxu0 0
        %5956 = vmatprep.subr.bf16.mxu0 %v5935
        %5957 = vmatpush1.bf16.msra.mxu0 %v5934
        %5958 = vmatprep.subr.bf16.mxu0 %v5933
        %5959 = vmatpush1.bf16.msra.mxu0 %v5932
        %5960 = vmatprep.subr.bf16.mxu0 %v5931
        %5961 = vmatpush1.bf16.msra.mxu0 %v5930
        %5962 = vmatprep.subr.bf16.mxu0 %v5929
        %5963 = vmatpush1.bf16.msra.mxu0 %v5928
        %5964 = vmatprep.subr.bf16.mxu0 %v5927
        %5965 = vmatpush1.bf16.msra.mxu0 %v5926
        %5966 = vmatprep.subr.bf16.mxu0 %v5925
        %5967 = vmatpush1.bf16.msra.mxu0 %v5924
        %5968 = vmatprep.subr.bf16.mxu0 0
        %5969 = vmatpush2.bf16.msra.mxu0 0
        %5970 = vmatprep.subr.bf16.mxu0 0
        %5971 = vmatpush2.bf16.msra.mxu0 0
        %5972 = vmatprep.subr.bf16.mxu0 0
        %5973 = vmatpush2.bf16.msra.mxu0 0
        %5974 = vmatprep.subr.bf16.mxu0 0
        %5975 = vmatpush2.bf16.msra.mxu0 0
        %5976 = vmatprep.subr.bf16.mxu0 0
        %5977 = vmatpush2.bf16.msra.mxu0 0
        %5978 = vmatprep.subr.bf16.mxu0 0
        %5979 = vmatpush2.bf16.msra.mxu0 0
        %5980 = vmatprep.subr.bf16.mxu0 0
        %5981 = vmatpush2.bf16.msra.mxu0 0
        %5982 = vmatprep.subr.bf16.mxu0 0
        %5983 = vmatpush2.bf16.msra.mxu0 0
        %5984 = vmatprep.mubr.bf16.mxu0 0
        %5985 = vmatmul.mubr.bf16.gmra.mxu0 %v5950
        %v5986 = vpop.f32.mrf.mxu0
        %v5987 = vadd.f32 0.0, %v5986
        %v5988 = vpop.f32.mrf.mxu0
        %v5989 = vadd.f32 0.0, %v5988
        %v5990 = vpop.f32.mrf.mxu0
        %v5991 = vpop.f32.mrf.mxu0
        %5992 = vdwg.mxu0
        %v6005 = vunpack.c.l.b16 %v5817
        %v6006 = vunpack.c.h.b16 %v5817
        %v6007 = vunpack.c.l.b16 %v5818
        %v6008 = vunpack.c.h.b16 %v5818
        %v6009 = vunpack.c.l.b16 %v5819
        %v6010 = vunpack.c.h.b16 %v5819
        %v6011 = vunpack.c.l.b16 %v5820
        %v6012 = vunpack.c.h.b16 %v5820
        %v6013 = vunpack.c.l.b16 %v5821
        %v6014 = vunpack.c.h.b16 %v5821
        %v6015 = vunpack.c.l.b16 %v5822
        %v6016 = vunpack.c.h.b16 %v5822
        %v6017 = vunpack.c.l.b16 %v5823
        %v6018 = vunpack.c.h.b16 %v5823
        %v6019 = vunpack.c.l.b16 %v5824
        %v6020 = vunpack.c.h.b16 %v5824
        %v6021 = vunpack.c.l.b16 %v5825
        %v6022 = vunpack.c.h.b16 %v5825
        %v6023 = vunpack.c.l.b16 %v5826
        %v6024 = vunpack.c.h.b16 %v5826
        %v6025 = vunpack.c.l.b16 %v5827
        %v6026 = vunpack.c.h.b16 %v5827
        %v6027 = vunpack.c.l.b16 %v5828
        %v6028 = vunpack.c.h.b16 %v5828
        %v6029 = vpack.c.b16 %v6007, %v6005
        %v6030 = vpack.c.b16 %v6008, %v6006
        %v6031 = vpack.c.b16 %v6011, %v6009
        %v6032 = vpack.c.b16 %v6012, %v6010
        %v6033 = vpack.c.b16 %v6015, %v6013
        %v6034 = vpack.c.b16 %v6016, %v6014
        %v6035 = vpack.c.b16 %v6019, %v6017
        %v6036 = vpack.c.b16 %v6020, %v6018
        %v6037 = vpack.c.b16 %v6023, %v6021
        %v6038 = vpack.c.b16 %v6024, %v6022
        %v6039 = vpack.c.b16 %v6027, %v6025
        %v6040 = vpack.c.b16 %v6028, %v6026
        %v6054 = vsel %vm5948, %v5816, 0
        %6056 = vmatprep.subr.bf16.mxu0 0
        %6057 = vmatpush1.bf16.msra.mxu0 0
        %6058 = vmatprep.subr.bf16.mxu0 0
        %6059 = vmatpush1.bf16.msra.mxu0 0
        %6060 = vmatprep.subr.bf16.mxu0 %v6040
        %6061 = vmatpush1.bf16.msra.mxu0 %v6039
        %6062 = vmatprep.subr.bf16.mxu0 %v6038
        %6063 = vmatpush1.bf16.msra.mxu0 %v6037
        %6064 = vmatprep.subr.bf16.mxu0 %v6036
        %6065 = vmatpush1.bf16.msra.mxu0 %v6035
        %6066 = vmatprep.subr.bf16.mxu0 %v6034
        %6067 = vmatpush1.bf16.msra.mxu0 %v6033
        %6068 = vmatprep.subr.bf16.mxu0 %v6032
        %6069 = vmatpush1.bf16.msra.mxu0 %v6031
        %6070 = vmatprep.subr.bf16.mxu0 %v6030
        %6071 = vmatpush1.bf16.msra.mxu0 %v6029
        %6072 = vmatprep.subr.bf16.mxu0 0
        %6073 = vmatpush2.bf16.msra.mxu0 0
        %6074 = vmatprep.subr.bf16.mxu0 0
        %6075 = vmatpush2.bf16.msra.mxu0 0
        %6076 = vmatprep.subr.bf16.mxu0 0
        %6077 = vmatpush2.bf16.msra.mxu0 0
        %6078 = vmatprep.subr.bf16.mxu0 0
        %6079 = vmatpush2.bf16.msra.mxu0 0
        %6080 = vmatprep.subr.bf16.mxu0 0
        %6081 = vmatpush2.bf16.msra.mxu0 0
        %6082 = vmatprep.subr.bf16.mxu0 0
        %6083 = vmatpush2.bf16.msra.mxu0 0
        %6084 = vmatprep.subr.bf16.mxu0 0
        %6085 = vmatpush2.bf16.msra.mxu0 0
        %6086 = vmatprep.subr.bf16.mxu0 0
        %6087 = vmatpush2.bf16.msra.mxu0 0
        %6088 = vmatprep.mubr.bf16.mxu0 0
        %6089 = vmatmul.mubr.bf16.gmra.mxu0 %v6054
        %v6090 = vpop.f32.mrf.mxu0
        %v6091 = vadd.f32 %v5987, %v6090
        %v6092 = vpop.f32.mrf.mxu0
        %v6093 = vadd.f32 %v5989, %v6092
        %v6094 = vpop.f32.mrf.mxu0
        %v6095 = vpop.f32.mrf.mxu0
        %6096 = vdwg.mxu0
        %s6097 = scalar_lea.vmem %s12, 4
        %v6098 = vld [vmem:[%s6097] sm:$0x3]
        %v6100 = vsel %vm5768, %v6098, 0
        %6102 = vmatprep.subr.bf16.mxu0 0
        %6103 = vmatpush1.bf16.msra.mxu0 0
        %6104 = vmatprep.subr.bf16.mxu0 0
        %6105 = vmatpush1.bf16.msra.mxu0 0
        %6106 = vmatprep.subr.bf16.mxu0 0
        %6107 = vmatpush1.bf16.msra.mxu0 0
        %6108 = vmatprep.subr.bf16.mxu0 0
        %6109 = vmatpush1.bf16.msra.mxu0 0
        %6110 = vmatprep.subr.bf16.mxu0 0
        %6111 = vmatpush1.bf16.msra.mxu0 0
        %6112 = vmatprep.subr.bf16.mxu0 0
        %6113 = vmatpush1.bf16.msra.mxu0 0
        %6114 = vmatprep.subr.bf16.mxu0 0
        %6115 = vmatpush1.bf16.msra.mxu0 0
        %6116 = vmatprep.subr.bf16.mxu0 0
        %6117 = vmatpush1.bf16.msra.mxu0 %v5774
        %6118 = vmatprep.subr.bf16.mxu0 0
        %6119 = vmatpush2.bf16.msra.mxu0 0
        %6120 = vmatprep.subr.bf16.mxu0 0
        %6121 = vmatpush2.bf16.msra.mxu0 0
        %6122 = vmatprep.subr.bf16.mxu0 0
        %6123 = vmatpush2.bf16.msra.mxu0 0
        %6124 = vmatprep.subr.bf16.mxu0 0
        %6125 = vmatpush2.bf16.msra.mxu0 0
        %6126 = vmatprep.subr.bf16.mxu0 0
        %6127 = vmatpush2.bf16.msra.mxu0 0
        %6128 = vmatprep.subr.bf16.mxu0 0
        %6129 = vmatpush2.bf16.msra.mxu0 0
        %6130 = vmatprep.subr.bf16.mxu0 0
        %6131 = vmatpush2.bf16.msra.mxu0 0
        %6132 = vmatprep.subr.bf16.mxu0 0
        %6133 = vmatpush2.bf16.msra.mxu0 0
        %6134 = vmatprep.mubr.bf16.mxu0 0
        %6135 = vmatmul.mubr.bf16.gmra.mxu0 %v6100
        %v6136 = vpop.f32.mrf.mxu0
        %v6137 = vadd.f32 0.0, %v6136
        %v6138 = vpop.f32.mrf.mxu0
        %v6139 = vpop.f32.mrf.mxu0
        %v6140 = vpop.f32.mrf.mxu0
        %6141 = vdwg.mxu0
        %v6142 = vpack.c.bf16 %v6137, %v6137
        %s6143 = scalar_lea.vmem %s13, 192
        %v6144 = vld [vmem:[%s6143] sm:$0xff]
        %v6145 = vld [vmem:[%s6143 + $0x8] sm:$0xff]
        %v6146 = vld [vmem:[%s6143 + $0x10] sm:$0xff]
        %v6147 = vld [vmem:[%s6143 + $0x18] sm:$0xff]
        %v6148 = vld [vmem:[%s6143 + $0x20] sm:$0xff]
        %v6149 = vld [vmem:[%s6143 + $0x28] sm:$0xff]
        %v6150 = vld [vmem:[%s6143 + $0x30] sm:$0xff]
        %v6151 = vld [vmem:[%s6143 + $0x38] sm:$0xff]
        %v6152 = vld [vmem:[%s6143 + $0x40] sm:$0xff]
        %v6153 = vld [vmem:[%s6143 + $0x48] sm:$0xff]
        %v6154 = vld [vmem:[%s6143 + $0x50] sm:$0xff]
        %v6155 = vld [vmem:[%s6143 + $0x58] sm:$0xff]
        %v6168 = vunpack.c.l.b16 %v6144
        %v6169 = vunpack.c.h.b16 %v6144
        %v6170 = vunpack.c.l.b16 %v6145
        %v6171 = vunpack.c.h.b16 %v6145
        %v6172 = vunpack.c.l.b16 %v6146
        %v6173 = vunpack.c.h.b16 %v6146
        %v6174 = vunpack.c.l.b16 %v6147
        %v6175 = vunpack.c.h.b16 %v6147
        %v6176 = vunpack.c.l.b16 %v6148
        %v6177 = vunpack.c.h.b16 %v6148
        %v6178 = vunpack.c.l.b16 %v6149
        %v6179 = vunpack.c.h.b16 %v6149
        %v6180 = vunpack.c.l.b16 %v6150
        %v6181 = vunpack.c.h.b16 %v6150
        %v6182 = vunpack.c.l.b16 %v6151
        %v6183 = vunpack.c.h.b16 %v6151
        %v6184 = vunpack.c.l.b16 %v6152
        %v6185 = vunpack.c.h.b16 %v6152
        %v6186 = vunpack.c.l.b16 %v6153
        %v6187 = vunpack.c.h.b16 %v6153
        %v6188 = vunpack.c.l.b16 %v6154
        %v6189 = vunpack.c.h.b16 %v6154
        %v6190 = vunpack.c.l.b16 %v6155
        %v6191 = vunpack.c.h.b16 %v6155
        %v6192 = vpack.c.b16 %v6170, %v6168
        %v6193 = vpack.c.b16 %v6171, %v6169
        %v6194 = vpack.c.b16 %v6174, %v6172
        %v6195 = vpack.c.b16 %v6175, %v6173
        %v6196 = vpack.c.b16 %v6178, %v6176
        %v6197 = vpack.c.b16 %v6179, %v6177
        %v6198 = vpack.c.b16 %v6182, %v6180
        %v6199 = vpack.c.b16 %v6183, %v6181
        %v6200 = vpack.c.b16 %v6186, %v6184
        %v6201 = vpack.c.b16 %v6187, %v6185
        %v6202 = vpack.c.b16 %v6190, %v6188
        %v6203 = vpack.c.b16 %v6191, %v6189
        %v6217 = vsel %vm5948, %v6142, 0
        %6219 = vmatprep.subr.bf16.mxu0 0
        %6220 = vmatpush1.bf16.msra.mxu0 0
        %6221 = vmatprep.subr.bf16.mxu0 0
        %6222 = vmatpush1.bf16.msra.mxu0 0
        %6223 = vmatprep.subr.bf16.mxu0 %v6203
        %6224 = vmatpush1.bf16.msra.mxu0 %v6202
        %6225 = vmatprep.subr.bf16.mxu0 %v6201
        %6226 = vmatpush1.bf16.msra.mxu0 %v6200
        %6227 = vmatprep.subr.bf16.mxu0 %v6199
        %6228 = vmatpush1.bf16.msra.mxu0 %v6198
        %6229 = vmatprep.subr.bf16.mxu0 %v6197
        %6230 = vmatpush1.bf16.msra.mxu0 %v6196
        %6231 = vmatprep.subr.bf16.mxu0 %v6195
        %6232 = vmatpush1.bf16.msra.mxu0 %v6194
        %6233 = vmatprep.subr.bf16.mxu0 %v6193
        %6234 = vmatpush1.bf16.msra.mxu0 %v6192
        %6235 = vmatprep.subr.bf16.mxu0 0
        %6236 = vmatpush2.bf16.msra.mxu0 0
        %6237 = vmatprep.subr.bf16.mxu0 0
        %6238 = vmatpush2.bf16.msra.mxu0 0
        %6239 = vmatprep.subr.bf16.mxu0 0
        %6240 = vmatpush2.bf16.msra.mxu0 0
        %6241 = vmatprep.subr.bf16.mxu0 0
        %6242 = vmatpush2.bf16.msra.mxu0 0
        %6243 = vmatprep.subr.bf16.mxu0 0
        %6244 = vmatpush2.bf16.msra.mxu0 0
        %6245 = vmatprep.subr.bf16.mxu0 0
        %6246 = vmatpush2.bf16.msra.mxu0 0
        %6247 = vmatprep.subr.bf16.mxu0 0
        %6248 = vmatpush2.bf16.msra.mxu0 0
        %6249 = vmatprep.subr.bf16.mxu0 0
        %6250 = vmatpush2.bf16.msra.mxu0 0
        %6251 = vmatprep.mubr.bf16.mxu0 0
        %6252 = vmatmul.mubr.bf16.gmra.mxu0 %v6217
        %v6253 = vpop.f32.mrf.mxu0
        %v6254 = vadd.f32 0.0, %v6253
        %v6255 = vpop.f32.mrf.mxu0
        %v6256 = vadd.f32 0.0, %v6255
        %v6257 = vpop.f32.mrf.mxu0
        %v6258 = vpop.f32.mrf.mxu0
        %6259 = vdwg.mxu0
        %v6260 = vadd.f32 %v6091, %v6254
        %v6261 = vadd.f32 %v6093, %v6256
        %s6262 = scalar_lea.vmem %s12, 6
        %v6263 = vld [vmem:[%s6262] sm:$0x3]
        %v6265 = vsel %vm5768, %v6263, 0
        %6267 = vmatprep.subr.bf16.mxu0 0
        %6268 = vmatpush1.bf16.msra.mxu0 0
        %6269 = vmatprep.subr.bf16.mxu0 0
        %6270 = vmatpush1.bf16.msra.mxu0 0
        %6271 = vmatprep.subr.bf16.mxu0 0
        %6272 = vmatpush1.bf16.msra.mxu0 0
        %6273 = vmatprep.subr.bf16.mxu0 0
        %6274 = vmatpush1.bf16.msra.mxu0 0
        %6275 = vmatprep.subr.bf16.mxu0 0
        %6276 = vmatpush1.bf16.msra.mxu0 0
        %6277 = vmatprep.subr.bf16.mxu0 0
        %6278 = vmatpush1.bf16.msra.mxu0 0
        %6279 = vmatprep.subr.bf16.mxu0 0
        %6280 = vmatpush1.bf16.msra.mxu0 0
        %6281 = vmatprep.subr.bf16.mxu0 0
        %6282 = vmatpush1.bf16.msra.mxu0 %v5774
        %6283 = vmatprep.subr.bf16.mxu0 0
        %6284 = vmatpush2.bf16.msra.mxu0 0
        %6285 = vmatprep.subr.bf16.mxu0 0
        %6286 = vmatpush2.bf16.msra.mxu0 0
        %6287 = vmatprep.subr.bf16.mxu0 0
        %6288 = vmatpush2.bf16.msra.mxu0 0
        %6289 = vmatprep.subr.bf16.mxu0 0
        %6290 = vmatpush2.bf16.msra.mxu0 0
        %6291 = vmatprep.subr.bf16.mxu0 0
        %6292 = vmatpush2.bf16.msra.mxu0 0
        %6293 = vmatprep.subr.bf16.mxu0 0
        %6294 = vmatpush2.bf16.msra.mxu0 0
        %6295 = vmatprep.subr.bf16.mxu0 0
        %6296 = vmatpush2.bf16.msra.mxu0 0
        %6297 = vmatprep.subr.bf16.mxu0 0
        %6298 = vmatpush2.bf16.msra.mxu0 0
        %6299 = vmatprep.mubr.bf16.mxu0 0
        %6300 = vmatmul.mubr.bf16.gmra.mxu0 %v6265
        %v6301 = vpop.f32.mrf.mxu0
        %v6302 = vadd.f32 0.0, %v6301
        %v6303 = vpop.f32.mrf.mxu0
        %v6304 = vpop.f32.mrf.mxu0
        %v6305 = vpop.f32.mrf.mxu0
        %6306 = vdwg.mxu0
        %v6307 = vpack.c.bf16 %v6302, %v6302
        %s6308 = scalar_lea.vmem %s13, 288
        %v6309 = vld [vmem:[%s6308] sm:$0xff]
        %v6310 = vld [vmem:[%s6308 + $0x8] sm:$0xff]
        %v6311 = vld [vmem:[%s6308 + $0x10] sm:$0xff]
        %v6312 = vld [vmem:[%s6308 + $0x18] sm:$0xff]
        %v6313 = vld [vmem:[%s6308 + $0x20] sm:$0xff]
        %v6314 = vld [vmem:[%s6308 + $0x28] sm:$0xff]
        %v6315 = vld [vmem:[%s6308 + $0x30] sm:$0xff]
        %v6316 = vld [vmem:[%s6308 + $0x38] sm:$0xff]
        %v6317 = vld [vmem:[%s6308 + $0x40] sm:$0xff]
        %v6318 = vld [vmem:[%s6308 + $0x48] sm:$0xff]
        %v6319 = vld [vmem:[%s6308 + $0x50] sm:$0xff]
        %v6320 = vld [vmem:[%s6308 + $0x58] sm:$0xff]
        %v6333 = vunpack.c.l.b16 %v6309
        %v6334 = vunpack.c.h.b16 %v6309
        %v6335 = vunpack.c.l.b16 %v6310
        %v6336 = vunpack.c.h.b16 %v6310
        %v6337 = vunpack.c.l.b16 %v6311
        %v6338 = vunpack.c.h.b16 %v6311
        %v6339 = vunpack.c.l.b16 %v6312
        %v6340 = vunpack.c.h.b16 %v6312
        %v6341 = vunpack.c.l.b16 %v6313
        %v6342 = vunpack.c.h.b16 %v6313
        %v6343 = vunpack.c.l.b16 %v6314
        %v6344 = vunpack.c.h.b16 %v6314
        %v6345 = vunpack.c.l.b16 %v6315
        %v6346 = vunpack.c.h.b16 %v6315
        %v6347 = vunpack.c.l.b16 %v6316
        %v6348 = vunpack.c.h.b16 %v6316
        %v6349 = vunpack.c.l.b16 %v6317
        %v6350 = vunpack.c.h.b16 %v6317
        %v6351 = vunpack.c.l.b16 %v6318
        %v6352 = vunpack.c.h.b16 %v6318
        %v6353 = vunpack.c.l.b16 %v6319
        %v6354 = vunpack.c.h.b16 %v6319
        %v6355 = vunpack.c.l.b16 %v6320
        %v6356 = vunpack.c.h.b16 %v6320
        %v6357 = vpack.c.b16 %v6335, %v6333
        %v6358 = vpack.c.b16 %v6336, %v6334
        %v6359 = vpack.c.b16 %v6339, %v6337
        %v6360 = vpack.c.b16 %v6340, %v6338
        %v6361 = vpack.c.b16 %v6343, %v6341
        %v6362 = vpack.c.b16 %v6344, %v6342
        %v6363 = vpack.c.b16 %v6347, %v6345
        %v6364 = vpack.c.b16 %v6348, %v6346
        %v6365 = vpack.c.b16 %v6351, %v6349
        %v6366 = vpack.c.b16 %v6352, %v6350
        %v6367 = vpack.c.b16 %v6355, %v6353
        %v6368 = vpack.c.b16 %v6356, %v6354
        %v6382 = vsel %vm5948, %v6307, 0
        %6384 = vmatprep.subr.bf16.mxu0 0
        %6385 = vmatpush1.bf16.msra.mxu0 0
        %6386 = vmatprep.subr.bf16.mxu0 0
        %6387 = vmatpush1.bf16.msra.mxu0 0
        %6388 = vmatprep.subr.bf16.mxu0 %v6368
        %6389 = vmatpush1.bf16.msra.mxu0 %v6367
        %6390 = vmatprep.subr.bf16.mxu0 %v6366
        %6391 = vmatpush1.bf16.msra.mxu0 %v6365
        %6392 = vmatprep.subr.bf16.mxu0 %v6364
        %6393 = vmatpush1.bf16.msra.mxu0 %v6363
        %6394 = vmatprep.subr.bf16.mxu0 %v6362
        %6395 = vmatpush1.bf16.msra.mxu0 %v6361
        %6396 = vmatprep.subr.bf16.mxu0 %v6360
        %6397 = vmatpush1.bf16.msra.mxu0 %v6359
        %6398 = vmatprep.subr.bf16.mxu0 %v6358
        %6399 = vmatpush1.bf16.msra.mxu0 %v6357
        %6400 = vmatprep.subr.bf16.mxu0 0
        %6401 = vmatpush2.bf16.msra.mxu0 0
        %6402 = vmatprep.subr.bf16.mxu0 0
        %6403 = vmatpush2.bf16.msra.mxu0 0
        %6404 = vmatprep.subr.bf16.mxu0 0
        %6405 = vmatpush2.bf16.msra.mxu0 0
        %6406 = vmatprep.subr.bf16.mxu0 0
        %6407 = vmatpush2.bf16.msra.mxu0 0
        %6408 = vmatprep.subr.bf16.mxu0 0
        %6409 = vmatpush2.bf16.msra.mxu0 0
        %6410 = vmatprep.subr.bf16.mxu0 0
        %6411 = vmatpush2.bf16.msra.mxu0 0
        %6412 = vmatprep.subr.bf16.mxu0 0
        %6413 = vmatpush2.bf16.msra.mxu0 0
        %6414 = vmatprep.subr.bf16.mxu0 0
        %6415 = vmatpush2.bf16.msra.mxu0 0
        %6416 = vmatprep.mubr.bf16.mxu0 0
        %6417 = vmatmul.mubr.bf16.gmra.mxu0 %v6382
        %v6418 = vpop.f32.mrf.mxu0
        %v6419 = vadd.f32 0.0, %v6418
        %v6420 = vpop.f32.mrf.mxu0
        %v6421 = vadd.f32 0.0, %v6420
        %v6422 = vpop.f32.mrf.mxu0
        %v6423 = vpop.f32.mrf.mxu0
        %6424 = vdwg.mxu0
        %v6425 = vadd.f32 %v6260, %v6419
        %v6426 = vadd.f32 %v6261, %v6421
        %s6427 = scalar_lea.vmem %s12, 8
        %v6428 = vld [vmem:[%s6427] sm:$0x3]
        %v6430 = vsel %vm5768, %v6428, 0
        %6432 = vmatprep.subr.bf16.mxu0 0
        %6433 = vmatpush1.bf16.msra.mxu0 0
        %6434 = vmatprep.subr.bf16.mxu0 0
        %6435 = vmatpush1.bf16.msra.mxu0 0
        %6436 = vmatprep.subr.bf16.mxu0 0
        %6437 = vmatpush1.bf16.msra.mxu0 0
        %6438 = vmatprep.subr.bf16.mxu0 0
        %6439 = vmatpush1.bf16.msra.mxu0 0
        %6440 = vmatprep.subr.bf16.mxu0 0
        %6441 = vmatpush1.bf16.msra.mxu0 0
        %6442 = vmatprep.subr.bf16.mxu0 0
        %6443 = vmatpush1.bf16.msra.mxu0 0
        %6444 = vmatprep.subr.bf16.mxu0 0
        %6445 = vmatpush1.bf16.msra.mxu0 0
        %6446 = vmatprep.subr.bf16.mxu0 0
        %6447 = vmatpush1.bf16.msra.mxu0 %v5774
        %6448 = vmatprep.subr.bf16.mxu0 0
        %6449 = vmatpush2.bf16.msra.mxu0 0
        %6450 = vmatprep.subr.bf16.mxu0 0
        %6451 = vmatpush2.bf16.msra.mxu0 0
        %6452 = vmatprep.subr.bf16.mxu0 0
        %6453 = vmatpush2.bf16.msra.mxu0 0
        %6454 = vmatprep.subr.bf16.mxu0 0
        %6455 = vmatpush2.bf16.msra.mxu0 0
        %6456 = vmatprep.subr.bf16.mxu0 0
        %6457 = vmatpush2.bf16.msra.mxu0 0
        %6458 = vmatprep.subr.bf16.mxu0 0
        %6459 = vmatpush2.bf16.msra.mxu0 0
        %6460 = vmatprep.subr.bf16.mxu0 0
        %6461 = vmatpush2.bf16.msra.mxu0 0
        %6462 = vmatprep.subr.bf16.mxu0 0
        %6463 = vmatpush2.bf16.msra.mxu0 0
        %6464 = vmatprep.mubr.bf16.mxu0 0
        %6465 = vmatmul.mubr.bf16.gmra.mxu0 %v6430
        %v6466 = vpop.f32.mrf.mxu0
        %v6467 = vadd.f32 0.0, %v6466
        %v6468 = vpop.f32.mrf.mxu0
        %v6469 = vpop.f32.mrf.mxu0
        %v6470 = vpop.f32.mrf.mxu0
        %6471 = vdwg.mxu0
        %v6472 = vpack.c.bf16 %v6467, %v6467
        %s6473 = scalar_lea.vmem %s13, 384
        %v6474 = vld [vmem:[%s6473] sm:$0xff]
        %v6475 = vld [vmem:[%s6473 + $0x8] sm:$0xff]
        %v6476 = vld [vmem:[%s6473 + $0x10] sm:$0xff]
        %v6477 = vld [vmem:[%s6473 + $0x18] sm:$0xff]
        %v6478 = vld [vmem:[%s6473 + $0x20] sm:$0xff]
        %v6479 = vld [vmem:[%s6473 + $0x28] sm:$0xff]
        %v6480 = vld [vmem:[%s6473 + $0x30] sm:$0xff]
        %v6481 = vld [vmem:[%s6473 + $0x38] sm:$0xff]
        %v6482 = vld [vmem:[%s6473 + $0x40] sm:$0xff]
        %v6483 = vld [vmem:[%s6473 + $0x48] sm:$0xff]
        %v6484 = vld [vmem:[%s6473 + $0x50] sm:$0xff]
        %v6485 = vld [vmem:[%s6473 + $0x58] sm:$0xff]
        %v6498 = vunpack.c.l.b16 %v6474
        %v6499 = vunpack.c.h.b16 %v6474
        %v6500 = vunpack.c.l.b16 %v6475
        %v6501 = vunpack.c.h.b16 %v6475
        %v6502 = vunpack.c.l.b16 %v6476
        %v6503 = vunpack.c.h.b16 %v6476
        %v6504 = vunpack.c.l.b16 %v6477
        %v6505 = vunpack.c.h.b16 %v6477
        %v6506 = vunpack.c.l.b16 %v6478
        %v6507 = vunpack.c.h.b16 %v6478
        %v6508 = vunpack.c.l.b16 %v6479
        %v6509 = vunpack.c.h.b16 %v6479
        %v6510 = vunpack.c.l.b16 %v6480
        %v6511 = vunpack.c.h.b16 %v6480
        %v6512 = vunpack.c.l.b16 %v6481
        %v6513 = vunpack.c.h.b16 %v6481
        %v6514 = vunpack.c.l.b16 %v6482
        %v6515 = vunpack.c.h.b16 %v6482
        %v6516 = vunpack.c.l.b16 %v6483
        %v6517 = vunpack.c.h.b16 %v6483
        %v6518 = vunpack.c.l.b16 %v6484
        %v6519 = vunpack.c.h.b16 %v6484
        %v6520 = vunpack.c.l.b16 %v6485
        %v6521 = vunpack.c.h.b16 %v6485
        %v6522 = vpack.c.b16 %v6500, %v6498
        %v6523 = vpack.c.b16 %v6501, %v6499
        %v6524 = vpack.c.b16 %v6504, %v6502
        %v6525 = vpack.c.b16 %v6505, %v6503
        %v6526 = vpack.c.b16 %v6508, %v6506
        %v6527 = vpack.c.b16 %v6509, %v6507
        %v6528 = vpack.c.b16 %v6512, %v6510
        %v6529 = vpack.c.b16 %v6513, %v6511
        %v6530 = vpack.c.b16 %v6516, %v6514
        %v6531 = vpack.c.b16 %v6517, %v6515
        %v6532 = vpack.c.b16 %v6520, %v6518
        %v6533 = vpack.c.b16 %v6521, %v6519
        %v6547 = vsel %vm5948, %v6472, 0
        %6549 = vmatprep.subr.bf16.mxu0 0
        %6550 = vmatpush1.bf16.msra.mxu0 0
        %6551 = vmatprep.subr.bf16.mxu0 0
        %6552 = vmatpush1.bf16.msra.mxu0 0
        %6553 = vmatprep.subr.bf16.mxu0 %v6533
        %6554 = vmatpush1.bf16.msra.mxu0 %v6532
        %6555 = vmatprep.subr.bf16.mxu0 %v6531
        %6556 = vmatpush1.bf16.msra.mxu0 %v6530
        %6557 = vmatprep.subr.bf16.mxu0 %v6529
        %6558 = vmatpush1.bf16.msra.mxu0 %v6528
        %6559 = vmatprep.subr.bf16.mxu0 %v6527
        %6560 = vmatpush1.bf16.msra.mxu0 %v6526
        %6561 = vmatprep.subr.bf16.mxu0 %v6525
        %6562 = vmatpush1.bf16.msra.mxu0 %v6524
        %6563 = vmatprep.subr.bf16.mxu0 %v6523
        %6564 = vmatpush1.bf16.msra.mxu0 %v6522
        %6565 = vmatprep.subr.bf16.mxu0 0
        %6566 = vmatpush2.bf16.msra.mxu0 0
        %6567 = vmatprep.subr.bf16.mxu0 0
        %6568 = vmatpush2.bf16.msra.mxu0 0
        %6569 = vmatprep.subr.bf16.mxu0 0
        %6570 = vmatpush2.bf16.msra.mxu0 0
        %6571 = vmatprep.subr.bf16.mxu0 0
        %6572 = vmatpush2.bf16.msra.mxu0 0
        %6573 = vmatprep.subr.bf16.mxu0 0
        %6574 = vmatpush2.bf16.msra.mxu0 0
        %6575 = vmatprep.subr.bf16.mxu0 0
        %6576 = vmatpush2.bf16.msra.mxu0 0
        %6577 = vmatprep.subr.bf16.mxu0 0
        %6578 = vmatpush2.bf16.msra.mxu0 0
        %6579 = vmatprep.subr.bf16.mxu0 0
        %6580 = vmatpush2.bf16.msra.mxu0 0
        %6581 = vmatprep.mubr.bf16.mxu0 0
        %6582 = vmatmul.mubr.bf16.gmra.mxu0 %v6547
        %v6583 = vpop.f32.mrf.mxu0
        %v6584 = vadd.f32 0.0, %v6583
        %v6585 = vpop.f32.mrf.mxu0
        %v6586 = vadd.f32 0.0, %v6585
        %v6587 = vpop.f32.mrf.mxu0
        %v6588 = vpop.f32.mrf.mxu0
        %6589 = vdwg.mxu0
        %v6590 = vadd.f32 %v6425, %v6584
        %v6591 = vadd.f32 %v6426, %v6586
        %s6592 = scalar_lea.vmem %s12, 10
        %v6593 = vld [vmem:[%s6592] sm:$0x3]
        %v6595 = vsel %vm5768, %v6593, 0
        %6597 = vmatprep.subr.bf16.mxu0 0
        %6598 = vmatpush1.bf16.msra.mxu0 0
        %6599 = vmatprep.subr.bf16.mxu0 0
        %6600 = vmatpush1.bf16.msra.mxu0 0
        %6601 = vmatprep.subr.bf16.mxu0 0
        %6602 = vmatpush1.bf16.msra.mxu0 0
        %6603 = vmatprep.subr.bf16.mxu0 0
        %6604 = vmatpush1.bf16.msra.mxu0 0
        %6605 = vmatprep.subr.bf16.mxu0 0
        %6606 = vmatpush1.bf16.msra.mxu0 0
        %6607 = vmatprep.subr.bf16.mxu0 0
        %6608 = vmatpush1.bf16.msra.mxu0 0
        %6609 = vmatprep.subr.bf16.mxu0 0
        %6610 = vmatpush1.bf16.msra.mxu0 0
        %6611 = vmatprep.subr.bf16.mxu0 0
        %6612 = vmatpush1.bf16.msra.mxu0 %v5774
        %6613 = vmatprep.subr.bf16.mxu0 0
        %6614 = vmatpush2.bf16.msra.mxu0 0
        %6615 = vmatprep.subr.bf16.mxu0 0
        %6616 = vmatpush2.bf16.msra.mxu0 0
        %6617 = vmatprep.subr.bf16.mxu0 0
        %6618 = vmatpush2.bf16.msra.mxu0 0
        %6619 = vmatprep.subr.bf16.mxu0 0
        %6620 = vmatpush2.bf16.msra.mxu0 0
        %6621 = vmatprep.subr.bf16.mxu0 0
        %6622 = vmatpush2.bf16.msra.mxu0 0
        %6623 = vmatprep.subr.bf16.mxu0 0
        %6624 = vmatpush2.bf16.msra.mxu0 0
        %6625 = vmatprep.subr.bf16.mxu0 0
        %6626 = vmatpush2.bf16.msra.mxu0 0
        %6627 = vmatprep.subr.bf16.mxu0 0
        %6628 = vmatpush2.bf16.msra.mxu0 0
        %6629 = vmatprep.mubr.bf16.mxu0 0
        %6630 = vmatmul.mubr.bf16.gmra.mxu0 %v6595
        %v6631 = vpop.f32.mrf.mxu0
        %v6632 = vadd.f32 0.0, %v6631
        %v6633 = vpop.f32.mrf.mxu0
        %v6634 = vpop.f32.mrf.mxu0
        %v6635 = vpop.f32.mrf.mxu0
        %6636 = vdwg.mxu0
        %v6637 = vpack.c.bf16 %v6632, %v6632
        %s6638 = scalar_lea.vmem %s13, 480
        %v6639 = vld [vmem:[%s6638] sm:$0xff]
        %v6640 = vld [vmem:[%s6638 + $0x8] sm:$0xff]
        %v6641 = vld [vmem:[%s6638 + $0x10] sm:$0xff]
        %v6642 = vld [vmem:[%s6638 + $0x18] sm:$0xff]
        %v6643 = vld [vmem:[%s6638 + $0x20] sm:$0xff]
        %v6644 = vld [vmem:[%s6638 + $0x28] sm:$0xff]
        %v6645 = vld [vmem:[%s6638 + $0x30] sm:$0xff]
        %v6646 = vld [vmem:[%s6638 + $0x38] sm:$0xff]
        %v6647 = vld [vmem:[%s6638 + $0x40] sm:$0xff]
        %v6648 = vld [vmem:[%s6638 + $0x48] sm:$0xff]
        %v6649 = vld [vmem:[%s6638 + $0x50] sm:$0xff]
        %v6650 = vld [vmem:[%s6638 + $0x58] sm:$0xff]
        %v6663 = vunpack.c.l.b16 %v6639
        %v6664 = vunpack.c.h.b16 %v6639
        %v6665 = vunpack.c.l.b16 %v6640
        %v6666 = vunpack.c.h.b16 %v6640
        %v6667 = vunpack.c.l.b16 %v6641
        %v6668 = vunpack.c.h.b16 %v6641
        %v6669 = vunpack.c.l.b16 %v6642
        %v6670 = vunpack.c.h.b16 %v6642
        %v6671 = vunpack.c.l.b16 %v6643
        %v6672 = vunpack.c.h.b16 %v6643
        %v6673 = vunpack.c.l.b16 %v6644
        %v6674 = vunpack.c.h.b16 %v6644
        %v6675 = vunpack.c.l.b16 %v6645
        %v6676 = vunpack.c.h.b16 %v6645
        %v6677 = vunpack.c.l.b16 %v6646
        %v6678 = vunpack.c.h.b16 %v6646
        %v6679 = vunpack.c.l.b16 %v6647
        %v6680 = vunpack.c.h.b16 %v6647
        %v6681 = vunpack.c.l.b16 %v6648
        %v6682 = vunpack.c.h.b16 %v6648
        %v6683 = vunpack.c.l.b16 %v6649
        %v6684 = vunpack.c.h.b16 %v6649
        %v6685 = vunpack.c.l.b16 %v6650
        %v6686 = vunpack.c.h.b16 %v6650
        %v6687 = vpack.c.b16 %v6665, %v6663
        %v6688 = vpack.c.b16 %v6666, %v6664
        %v6689 = vpack.c.b16 %v6669, %v6667
        %v6690 = vpack.c.b16 %v6670, %v6668
        %v6691 = vpack.c.b16 %v6673, %v6671
        %v6692 = vpack.c.b16 %v6674, %v6672
        %v6693 = vpack.c.b16 %v6677, %v6675
        %v6694 = vpack.c.b16 %v6678, %v6676
        %v6695 = vpack.c.b16 %v6681, %v6679
        %v6696 = vpack.c.b16 %v6682, %v6680
        %v6697 = vpack.c.b16 %v6685, %v6683
        %v6698 = vpack.c.b16 %v6686, %v6684
        %v6712 = vsel %vm5948, %v6637, 0
        %6714 = vmatprep.subr.bf16.mxu0 0
        %6715 = vmatpush1.bf16.msra.mxu0 0
        %6716 = vmatprep.subr.bf16.mxu0 0
        %6717 = vmatpush1.bf16.msra.mxu0 0
        %6718 = vmatprep.subr.bf16.mxu0 %v6698
        %6719 = vmatpush1.bf16.msra.mxu0 %v6697
        %6720 = vmatprep.subr.bf16.mxu0 %v6696
        %6721 = vmatpush1.bf16.msra.mxu0 %v6695
        %6722 = vmatprep.subr.bf16.mxu0 %v6694
        %6723 = vmatpush1.bf16.msra.mxu0 %v6693
        %6724 = vmatprep.subr.bf16.mxu0 %v6692
        %6725 = vmatpush1.bf16.msra.mxu0 %v6691
        %6726 = vmatprep.subr.bf16.mxu0 %v6690
        %6727 = vmatpush1.bf16.msra.mxu0 %v6689
        %6728 = vmatprep.subr.bf16.mxu0 %v6688
        %6729 = vmatpush1.bf16.msra.mxu0 %v6687
        %6730 = vmatprep.subr.bf16.mxu0 0
        %6731 = vmatpush2.bf16.msra.mxu0 0
        %6732 = vmatprep.subr.bf16.mxu0 0
        %6733 = vmatpush2.bf16.msra.mxu0 0
        %6734 = vmatprep.subr.bf16.mxu0 0
        %6735 = vmatpush2.bf16.msra.mxu0 0
        %6736 = vmatprep.subr.bf16.mxu0 0
        %6737 = vmatpush2.bf16.msra.mxu0 0
        %6738 = vmatprep.subr.bf16.mxu0 0
        %6739 = vmatpush2.bf16.msra.mxu0 0
        %6740 = vmatprep.subr.bf16.mxu0 0
        %6741 = vmatpush2.bf16.msra.mxu0 0
        %6742 = vmatprep.subr.bf16.mxu0 0
        %6743 = vmatpush2.bf16.msra.mxu0 0
        %6744 = vmatprep.subr.bf16.mxu0 0
        %6745 = vmatpush2.bf16.msra.mxu0 0
        %6746 = vmatprep.mubr.bf16.mxu0 0
        %6747 = vmatmul.mubr.bf16.gmra.mxu0 %v6712
        %v6748 = vpop.f32.mrf.mxu0
        %v6749 = vadd.f32 0.0, %v6748
        %v6750 = vpop.f32.mrf.mxu0
        %v6751 = vadd.f32 0.0, %v6750
        %v6752 = vpop.f32.mrf.mxu0
        %v6753 = vpop.f32.mrf.mxu0
        %6754 = vdwg.mxu0
        %v6755 = vadd.f32 %v6590, %v6749
        %v6756 = vadd.f32 %v6591, %v6751
        %s6757 = scalar_lea.vmem %s12, 12
        %v6758 = vld [vmem:[%s6757] sm:$0x3]
        %v6760 = vsel %vm5768, %v6758, 0
        %6762 = vmatprep.subr.bf16.mxu0 0
        %6763 = vmatpush1.bf16.msra.mxu0 0
        %6764 = vmatprep.subr.bf16.mxu0 0
        %6765 = vmatpush1.bf16.msra.mxu0 0
        %6766 = vmatprep.subr.bf16.mxu0 0
        %6767 = vmatpush1.bf16.msra.mxu0 0
        %6768 = vmatprep.subr.bf16.mxu0 0
        %6769 = vmatpush1.bf16.msra.mxu0 0
        %6770 = vmatprep.subr.bf16.mxu0 0
        %6771 = vmatpush1.bf16.msra.mxu0 0
        %6772 = vmatprep.subr.bf16.mxu0 0
        %6773 = vmatpush1.bf16.msra.mxu0 0
        %6774 = vmatprep.subr.bf16.mxu0 0
        %6775 = vmatpush1.bf16.msra.mxu0 0
        %6776 = vmatprep.subr.bf16.mxu0 0
        %6777 = vmatpush1.bf16.msra.mxu0 %v5774
        %6778 = vmatprep.subr.bf16.mxu0 0
        %6779 = vmatpush2.bf16.msra.mxu0 0
        %6780 = vmatprep.subr.bf16.mxu0 0
        %6781 = vmatpush2.bf16.msra.mxu0 0
        %6782 = vmatprep.subr.bf16.mxu0 0
        %6783 = vmatpush2.bf16.msra.mxu0 0
        %6784 = vmatprep.subr.bf16.mxu0 0
        %6785 = vmatpush2.bf16.msra.mxu0 0
        %6786 = vmatprep.subr.bf16.mxu0 0
        %6787 = vmatpush2.bf16.msra.mxu0 0
        %6788 = vmatprep.subr.bf16.mxu0 0
        %6789 = vmatpush2.bf16.msra.mxu0 0
        %6790 = vmatprep.subr.bf16.mxu0 0
        %6791 = vmatpush2.bf16.msra.mxu0 0
        %6792 = vmatprep.subr.bf16.mxu0 0
        %6793 = vmatpush2.bf16.msra.mxu0 0
        %6794 = vmatprep.mubr.bf16.mxu0 0
        %6795 = vmatmul.mubr.bf16.gmra.mxu0 %v6760
        %v6796 = vpop.f32.mrf.mxu0
        %v6797 = vadd.f32 0.0, %v6796
        %v6798 = vpop.f32.mrf.mxu0
        %v6799 = vpop.f32.mrf.mxu0
        %v6800 = vpop.f32.mrf.mxu0
        %6801 = vdwg.mxu0
        %v6802 = vpack.c.bf16 %v6797, %v6797
        %s6803 = scalar_lea.vmem %s13, 576
        %v6804 = vld [vmem:[%s6803] sm:$0xff]
        %v6805 = vld [vmem:[%s6803 + $0x8] sm:$0xff]
        %v6806 = vld [vmem:[%s6803 + $0x10] sm:$0xff]
        %v6807 = vld [vmem:[%s6803 + $0x18] sm:$0xff]
        %v6808 = vld [vmem:[%s6803 + $0x20] sm:$0xff]
        %v6809 = vld [vmem:[%s6803 + $0x28] sm:$0xff]
        %v6810 = vld [vmem:[%s6803 + $0x30] sm:$0xff]
        %v6811 = vld [vmem:[%s6803 + $0x38] sm:$0xff]
        %v6812 = vld [vmem:[%s6803 + $0x40] sm:$0xff]
        %v6813 = vld [vmem:[%s6803 + $0x48] sm:$0xff]
        %v6814 = vld [vmem:[%s6803 + $0x50] sm:$0xff]
        %v6815 = vld [vmem:[%s6803 + $0x58] sm:$0xff]
        %v6828 = vunpack.c.l.b16 %v6804
        %v6829 = vunpack.c.h.b16 %v6804
        %v6830 = vunpack.c.l.b16 %v6805
        %v6831 = vunpack.c.h.b16 %v6805
        %v6832 = vunpack.c.l.b16 %v6806
        %v6833 = vunpack.c.h.b16 %v6806
        %v6834 = vunpack.c.l.b16 %v6807
        %v6835 = vunpack.c.h.b16 %v6807
        %v6836 = vunpack.c.l.b16 %v6808
        %v6837 = vunpack.c.h.b16 %v6808
        %v6838 = vunpack.c.l.b16 %v6809
        %v6839 = vunpack.c.h.b16 %v6809
        %v6840 = vunpack.c.l.b16 %v6810
        %v6841 = vunpack.c.h.b16 %v6810
        %v6842 = vunpack.c.l.b16 %v6811
        %v6843 = vunpack.c.h.b16 %v6811
        %v6844 = vunpack.c.l.b16 %v6812
        %v6845 = vunpack.c.h.b16 %v6812
        %v6846 = vunpack.c.l.b16 %v6813
        %v6847 = vunpack.c.h.b16 %v6813
        %v6848 = vunpack.c.l.b16 %v6814
        %v6849 = vunpack.c.h.b16 %v6814
        %v6850 = vunpack.c.l.b16 %v6815
        %v6851 = vunpack.c.h.b16 %v6815
        %v6852 = vpack.c.b16 %v6830, %v6828
        %v6853 = vpack.c.b16 %v6831, %v6829
        %v6854 = vpack.c.b16 %v6834, %v6832
        %v6855 = vpack.c.b16 %v6835, %v6833
        %v6856 = vpack.c.b16 %v6838, %v6836
        %v6857 = vpack.c.b16 %v6839, %v6837
        %v6858 = vpack.c.b16 %v6842, %v6840
        %v6859 = vpack.c.b16 %v6843, %v6841
        %v6860 = vpack.c.b16 %v6846, %v6844
        %v6861 = vpack.c.b16 %v6847, %v6845
        %v6862 = vpack.c.b16 %v6850, %v6848
        %v6863 = vpack.c.b16 %v6851, %v6849
        %v6877 = vsel %vm5948, %v6802, 0
        %6879 = vmatprep.subr.bf16.mxu0 0
        %6880 = vmatpush1.bf16.msra.mxu0 0
        %6881 = vmatprep.subr.bf16.mxu0 0
        %6882 = vmatpush1.bf16.msra.mxu0 0
        %6883 = vmatprep.subr.bf16.mxu0 %v6863
        %6884 = vmatpush1.bf16.msra.mxu0 %v6862
        %6885 = vmatprep.subr.bf16.mxu0 %v6861
        %6886 = vmatpush1.bf16.msra.mxu0 %v6860
        %6887 = vmatprep.subr.bf16.mxu0 %v6859
        %6888 = vmatpush1.bf16.msra.mxu0 %v6858
        %6889 = vmatprep.subr.bf16.mxu0 %v6857
        %6890 = vmatpush1.bf16.msra.mxu0 %v6856
        %6891 = vmatprep.subr.bf16.mxu0 %v6855
        %6892 = vmatpush1.bf16.msra.mxu0 %v6854
        %6893 = vmatprep.subr.bf16.mxu0 %v6853
        %6894 = vmatpush1.bf16.msra.mxu0 %v6852
        %6895 = vmatprep.subr.bf16.mxu0 0
        %6896 = vmatpush2.bf16.msra.mxu0 0
        %6897 = vmatprep.subr.bf16.mxu0 0
        %6898 = vmatpush2.bf16.msra.mxu0 0
        %6899 = vmatprep.subr.bf16.mxu0 0
        %6900 = vmatpush2.bf16.msra.mxu0 0
        %6901 = vmatprep.subr.bf16.mxu0 0
        %6902 = vmatpush2.bf16.msra.mxu0 0
        %6903 = vmatprep.subr.bf16.mxu0 0
        %6904 = vmatpush2.bf16.msra.mxu0 0
        %6905 = vmatprep.subr.bf16.mxu0 0
        %6906 = vmatpush2.bf16.msra.mxu0 0
        %6907 = vmatprep.subr.bf16.mxu0 0
        %6908 = vmatpush2.bf16.msra.mxu0 0
        %6909 = vmatprep.subr.bf16.mxu0 0
        %6910 = vmatpush2.bf16.msra.mxu0 0
        %6911 = vmatprep.mubr.bf16.mxu0 0
        %6912 = vmatmul.mubr.bf16.gmra.mxu0 %v6877
        %v6913 = vpop.f32.mrf.mxu0
        %v6914 = vadd.f32 0.0, %v6913
        %v6915 = vpop.f32.mrf.mxu0
        %v6916 = vadd.f32 0.0, %v6915
        %v6917 = vpop.f32.mrf.mxu0
        %v6918 = vpop.f32.mrf.mxu0
        %6919 = vdwg.mxu0
        %v6920 = vadd.f32 %v6755, %v6914
        %v6921 = vadd.f32 %v6756, %v6916
        %s6922 = scalar_lea.vmem %s12, 14
        %v6923 = vld [vmem:[%s6922] sm:$0x3]
        %v6925 = vsel %vm5768, %v6923, 0
        %6927 = vmatprep.subr.bf16.mxu0 0
        %6928 = vmatpush1.bf16.msra.mxu0 0
        %6929 = vmatprep.subr.bf16.mxu0 0
        %6930 = vmatpush1.bf16.msra.mxu0 0
        %6931 = vmatprep.subr.bf16.mxu0 0
        %6932 = vmatpush1.bf16.msra.mxu0 0
        %6933 = vmatprep.subr.bf16.mxu0 0
        %6934 = vmatpush1.bf16.msra.mxu0 0
        %6935 = vmatprep.subr.bf16.mxu0 0
        %6936 = vmatpush1.bf16.msra.mxu0 0
        %6937 = vmatprep.subr.bf16.mxu0 0
        %6938 = vmatpush1.bf16.msra.mxu0 0
        %6939 = vmatprep.subr.bf16.mxu0 0
        %6940 = vmatpush1.bf16.msra.mxu0 0
        %6941 = vmatprep.subr.bf16.mxu0 0
        %6942 = vmatpush1.bf16.msra.mxu0 %v5774
        %6943 = vmatprep.subr.bf16.mxu0 0
        %6944 = vmatpush2.bf16.msra.mxu0 0
        %6945 = vmatprep.subr.bf16.mxu0 0
        %6946 = vmatpush2.bf16.msra.mxu0 0
        %6947 = vmatprep.subr.bf16.mxu0 0
        %6948 = vmatpush2.bf16.msra.mxu0 0
        %6949 = vmatprep.subr.bf16.mxu0 0
        %6950 = vmatpush2.bf16.msra.mxu0 0
        %6951 = vmatprep.subr.bf16.mxu0 0
        %6952 = vmatpush2.bf16.msra.mxu0 0
        %6953 = vmatprep.subr.bf16.mxu0 0
        %6954 = vmatpush2.bf16.msra.mxu0 0
        %6955 = vmatprep.subr.bf16.mxu0 0
        %6956 = vmatpush2.bf16.msra.mxu0 0
        %6957 = vmatprep.subr.bf16.mxu0 0
        %6958 = vmatpush2.bf16.msra.mxu0 0
        %6959 = vmatprep.mubr.bf16.mxu0 0
        %6960 = vmatmul.mubr.bf16.gmra.mxu0 %v6925
        %v6961 = vpop.f32.mrf.mxu0
        %v6962 = vadd.f32 0.0, %v6961
        %v6963 = vpop.f32.mrf.mxu0
        %v6964 = vpop.f32.mrf.mxu0
        %v6965 = vpop.f32.mrf.mxu0
        %6966 = vdwg.mxu0
        %v6967 = vpack.c.bf16 %v6962, %v6962
        %s6968 = scalar_lea.vmem %s13, 672
        %v6969 = vld [vmem:[%s6968] sm:$0xff]
        %v6970 = vld [vmem:[%s6968 + $0x8] sm:$0xff]
        %v6971 = vld [vmem:[%s6968 + $0x10] sm:$0xff]
        %v6972 = vld [vmem:[%s6968 + $0x18] sm:$0xff]
        %v6973 = vld [vmem:[%s6968 + $0x20] sm:$0xff]
        %v6974 = vld [vmem:[%s6968 + $0x28] sm:$0xff]
        %v6975 = vld [vmem:[%s6968 + $0x30] sm:$0xff]
        %v6976 = vld [vmem:[%s6968 + $0x38] sm:$0xff]
        %v6977 = vld [vmem:[%s6968 + $0x40] sm:$0xff]
        %v6978 = vld [vmem:[%s6968 + $0x48] sm:$0xff]
        %v6979 = vld [vmem:[%s6968 + $0x50] sm:$0xff]
        %v6980 = vld [vmem:[%s6968 + $0x58] sm:$0xff]
        %v6993 = vunpack.c.l.b16 %v6969
        %v6994 = vunpack.c.h.b16 %v6969
        %v6995 = vunpack.c.l.b16 %v6970
        %v6996 = vunpack.c.h.b16 %v6970
        %v6997 = vunpack.c.l.b16 %v6971
        %v6998 = vunpack.c.h.b16 %v6971
        %v6999 = vunpack.c.l.b16 %v6972
        %v7000 = vunpack.c.h.b16 %v6972
        %v7001 = vunpack.c.l.b16 %v6973
        %v7002 = vunpack.c.h.b16 %v6973
        %v7003 = vunpack.c.l.b16 %v6974
        %v7004 = vunpack.c.h.b16 %v6974
        %v7005 = vunpack.c.l.b16 %v6975
        %v7006 = vunpack.c.h.b16 %v6975
        %v7007 = vunpack.c.l.b16 %v6976
        %v7008 = vunpack.c.h.b16 %v6976
        %v7009 = vunpack.c.l.b16 %v6977
        %v7010 = vunpack.c.h.b16 %v6977
        %v7011 = vunpack.c.l.b16 %v6978
        %v7012 = vunpack.c.h.b16 %v6978
        %v7013 = vunpack.c.l.b16 %v6979
        %v7014 = vunpack.c.h.b16 %v6979
        %v7015 = vunpack.c.l.b16 %v6980
        %v7016 = vunpack.c.h.b16 %v6980
        %v7017 = vpack.c.b16 %v6995, %v6993
        %v7018 = vpack.c.b16 %v6996, %v6994
        %v7019 = vpack.c.b16 %v6999, %v6997
        %v7020 = vpack.c.b16 %v7000, %v6998
        %v7021 = vpack.c.b16 %v7003, %v7001
        %v7022 = vpack.c.b16 %v7004, %v7002
        %v7023 = vpack.c.b16 %v7007, %v7005
        %v7024 = vpack.c.b16 %v7008, %v7006
        %v7025 = vpack.c.b16 %v7011, %v7009
        %v7026 = vpack.c.b16 %v7012, %v7010
        %v7027 = vpack.c.b16 %v7015, %v7013
        %v7028 = vpack.c.b16 %v7016, %v7014
        %v7042 = vsel %vm5948, %v6967, 0
        %7044 = vmatprep.subr.bf16.mxu0 0
        %7045 = vmatpush1.bf16.msra.mxu0 0
        %7046 = vmatprep.subr.bf16.mxu0 0
        %7047 = vmatpush1.bf16.msra.mxu0 0
        %7048 = vmatprep.subr.bf16.mxu0 %v7028
        %7049 = vmatpush1.bf16.msra.mxu0 %v7027
        %7050 = vmatprep.subr.bf16.mxu0 %v7026
        %7051 = vmatpush1.bf16.msra.mxu0 %v7025
        %7052 = vmatprep.subr.bf16.mxu0 %v7024
        %7053 = vmatpush1.bf16.msra.mxu0 %v7023
        %7054 = vmatprep.subr.bf16.mxu0 %v7022
        %7055 = vmatpush1.bf16.msra.mxu0 %v7021
        %7056 = vmatprep.subr.bf16.mxu0 %v7020
        %7057 = vmatpush1.bf16.msra.mxu0 %v7019
        %7058 = vmatprep.subr.bf16.mxu0 %v7018
        %7059 = vmatpush1.bf16.msra.mxu0 %v7017
        %7060 = vmatprep.subr.bf16.mxu0 0
        %7061 = vmatpush2.bf16.msra.mxu0 0
        %7062 = vmatprep.subr.bf16.mxu0 0
        %7063 = vmatpush2.bf16.msra.mxu0 0
        %7064 = vmatprep.subr.bf16.mxu0 0
        %7065 = vmatpush2.bf16.msra.mxu0 0
        %7066 = vmatprep.subr.bf16.mxu0 0
        %7067 = vmatpush2.bf16.msra.mxu0 0
        %7068 = vmatprep.subr.bf16.mxu0 0
        %7069 = vmatpush2.bf16.msra.mxu0 0
        %7070 = vmatprep.subr.bf16.mxu0 0
        %7071 = vmatpush2.bf16.msra.mxu0 0
        %7072 = vmatprep.subr.bf16.mxu0 0
        %7073 = vmatpush2.bf16.msra.mxu0 0
        %7074 = vmatprep.subr.bf16.mxu0 0
        %7075 = vmatpush2.bf16.msra.mxu0 0
        %7076 = vmatprep.mubr.bf16.mxu0 0
        %7077 = vmatmul.mubr.bf16.gmra.mxu0 %v7042
        %v7078 = vpop.f32.mrf.mxu0
        %v7079 = vadd.f32 0.0, %v7078
        %v7080 = vpop.f32.mrf.mxu0
        %v7081 = vadd.f32 0.0, %v7080
        %v7082 = vpop.f32.mrf.mxu0
        %v7083 = vpop.f32.mrf.mxu0
        %7084 = vdwg.mxu0
        %v7085 = vadd.f32 %v6920, %v7079
        %v7086 = vadd.f32 %v6921, %v7081
        %s7087 = scalar_lea.vmem %s12, 16
        %v7088 = vld [vmem:[%s7087] sm:$0x3]
        %v7090 = vsel %vm5768, %v7088, 0
        %7092 = vmatprep.subr.bf16.mxu0 0
        %7093 = vmatpush1.bf16.msra.mxu0 0
        %7094 = vmatprep.subr.bf16.mxu0 0
        %7095 = vmatpush1.bf16.msra.mxu0 0
        %7096 = vmatprep.subr.bf16.mxu0 0
        %7097 = vmatpush1.bf16.msra.mxu0 0
        %7098 = vmatprep.subr.bf16.mxu0 0
        %7099 = vmatpush1.bf16.msra.mxu0 0
        %7100 = vmatprep.subr.bf16.mxu0 0
        %7101 = vmatpush1.bf16.msra.mxu0 0
        %7102 = vmatprep.subr.bf16.mxu0 0
        %7103 = vmatpush1.bf16.msra.mxu0 0
        %7104 = vmatprep.subr.bf16.mxu0 0
        %7105 = vmatpush1.bf16.msra.mxu0 0
        %7106 = vmatprep.subr.bf16.mxu0 0
        %7107 = vmatpush1.bf16.msra.mxu0 %v5774
        %7108 = vmatprep.subr.bf16.mxu0 0
        %7109 = vmatpush2.bf16.msra.mxu0 0
        %7110 = vmatprep.subr.bf16.mxu0 0
        %7111 = vmatpush2.bf16.msra.mxu0 0
        %7112 = vmatprep.subr.bf16.mxu0 0
        %7113 = vmatpush2.bf16.msra.mxu0 0
        %7114 = vmatprep.subr.bf16.mxu0 0
        %7115 = vmatpush2.bf16.msra.mxu0 0
        %7116 = vmatprep.subr.bf16.mxu0 0
        %7117 = vmatpush2.bf16.msra.mxu0 0
        %7118 = vmatprep.subr.bf16.mxu0 0
        %7119 = vmatpush2.bf16.msra.mxu0 0
        %7120 = vmatprep.subr.bf16.mxu0 0
        %7121 = vmatpush2.bf16.msra.mxu0 0
        %7122 = vmatprep.subr.bf16.mxu0 0
        %7123 = vmatpush2.bf16.msra.mxu0 0
        %7124 = vmatprep.mubr.bf16.mxu0 0
        %7125 = vmatmul.mubr.bf16.gmra.mxu0 %v7090
        %v7126 = vpop.f32.mrf.mxu0
        %v7127 = vadd.f32 0.0, %v7126
        %v7128 = vpop.f32.mrf.mxu0
        %v7129 = vpop.f32.mrf.mxu0
        %v7130 = vpop.f32.mrf.mxu0
        %7131 = vdwg.mxu0
        %v7132 = vpack.c.bf16 %v7127, %v7127
        %s7133 = scalar_lea.vmem %s13, 768
        %v7134 = vld [vmem:[%s7133] sm:$0xff]
        %v7135 = vld [vmem:[%s7133 + $0x8] sm:$0xff]
        %v7136 = vld [vmem:[%s7133 + $0x10] sm:$0xff]
        %v7137 = vld [vmem:[%s7133 + $0x18] sm:$0xff]
        %v7138 = vld [vmem:[%s7133 + $0x20] sm:$0xff]
        %v7139 = vld [vmem:[%s7133 + $0x28] sm:$0xff]
        %v7140 = vld [vmem:[%s7133 + $0x30] sm:$0xff]
        %v7141 = vld [vmem:[%s7133 + $0x38] sm:$0xff]
        %v7142 = vld [vmem:[%s7133 + $0x40] sm:$0xff]
        %v7143 = vld [vmem:[%s7133 + $0x48] sm:$0xff]
        %v7144 = vld [vmem:[%s7133 + $0x50] sm:$0xff]
        %v7145 = vld [vmem:[%s7133 + $0x58] sm:$0xff]
        %v7158 = vunpack.c.l.b16 %v7134
        %v7159 = vunpack.c.h.b16 %v7134
        %v7160 = vunpack.c.l.b16 %v7135
        %v7161 = vunpack.c.h.b16 %v7135
        %v7162 = vunpack.c.l.b16 %v7136
        %v7163 = vunpack.c.h.b16 %v7136
        %v7164 = vunpack.c.l.b16 %v7137
        %v7165 = vunpack.c.h.b16 %v7137
        %v7166 = vunpack.c.l.b16 %v7138
        %v7167 = vunpack.c.h.b16 %v7138
        %v7168 = vunpack.c.l.b16 %v7139
        %v7169 = vunpack.c.h.b16 %v7139
        %v7170 = vunpack.c.l.b16 %v7140
        %v7171 = vunpack.c.h.b16 %v7140
        %v7172 = vunpack.c.l.b16 %v7141
        %v7173 = vunpack.c.h.b16 %v7141
        %v7174 = vunpack.c.l.b16 %v7142
        %v7175 = vunpack.c.h.b16 %v7142
        %v7176 = vunpack.c.l.b16 %v7143
        %v7177 = vunpack.c.h.b16 %v7143
        %v7178 = vunpack.c.l.b16 %v7144
        %v7179 = vunpack.c.h.b16 %v7144
        %v7180 = vunpack.c.l.b16 %v7145
        %v7181 = vunpack.c.h.b16 %v7145
        %v7182 = vpack.c.b16 %v7160, %v7158
        %v7183 = vpack.c.b16 %v7161, %v7159
        %v7184 = vpack.c.b16 %v7164, %v7162
        %v7185 = vpack.c.b16 %v7165, %v7163
        %v7186 = vpack.c.b16 %v7168, %v7166
        %v7187 = vpack.c.b16 %v7169, %v7167
        %v7188 = vpack.c.b16 %v7172, %v7170
        %v7189 = vpack.c.b16 %v7173, %v7171
        %v7190 = vpack.c.b16 %v7176, %v7174
        %v7191 = vpack.c.b16 %v7177, %v7175
        %v7192 = vpack.c.b16 %v7180, %v7178
        %v7193 = vpack.c.b16 %v7181, %v7179
        %v7207 = vsel %vm5948, %v7132, 0
        %7209 = vmatprep.subr.bf16.mxu0 0
        %7210 = vmatpush1.bf16.msra.mxu0 0
        %7211 = vmatprep.subr.bf16.mxu0 0
        %7212 = vmatpush1.bf16.msra.mxu0 0
        %7213 = vmatprep.subr.bf16.mxu0 %v7193
        %7214 = vmatpush1.bf16.msra.mxu0 %v7192
        %7215 = vmatprep.subr.bf16.mxu0 %v7191
        %7216 = vmatpush1.bf16.msra.mxu0 %v7190
        %7217 = vmatprep.subr.bf16.mxu0 %v7189
        %7218 = vmatpush1.bf16.msra.mxu0 %v7188
        %7219 = vmatprep.subr.bf16.mxu0 %v7187
        %7220 = vmatpush1.bf16.msra.mxu0 %v7186
        %7221 = vmatprep.subr.bf16.mxu0 %v7185
        %7222 = vmatpush1.bf16.msra.mxu0 %v7184
        %7223 = vmatprep.subr.bf16.mxu0 %v7183
        %7224 = vmatpush1.bf16.msra.mxu0 %v7182
        %7225 = vmatprep.subr.bf16.mxu0 0
        %7226 = vmatpush2.bf16.msra.mxu0 0
        %7227 = vmatprep.subr.bf16.mxu0 0
        %7228 = vmatpush2.bf16.msra.mxu0 0
        %7229 = vmatprep.subr.bf16.mxu0 0
        %7230 = vmatpush2.bf16.msra.mxu0 0
        %7231 = vmatprep.subr.bf16.mxu0 0
        %7232 = vmatpush2.bf16.msra.mxu0 0
        %7233 = vmatprep.subr.bf16.mxu0 0
        %7234 = vmatpush2.bf16.msra.mxu0 0
        %7235 = vmatprep.subr.bf16.mxu0 0
        %7236 = vmatpush2.bf16.msra.mxu0 0
        %7237 = vmatprep.subr.bf16.mxu0 0
        %7238 = vmatpush2.bf16.msra.mxu0 0
        %7239 = vmatprep.subr.bf16.mxu0 0
        %7240 = vmatpush2.bf16.msra.mxu0 0
        %7241 = vmatprep.mubr.bf16.mxu0 0
        %7242 = vmatmul.mubr.bf16.gmra.mxu0 %v7207
        %v7243 = vpop.f32.mrf.mxu0
        %v7244 = vadd.f32 0.0, %v7243
        %v7245 = vpop.f32.mrf.mxu0
        %v7246 = vadd.f32 0.0, %v7245
        %v7247 = vpop.f32.mrf.mxu0
        %v7248 = vpop.f32.mrf.mxu0
        %7249 = vdwg.mxu0
        %v7250 = vadd.f32 %v7085, %v7244
        %v7251 = vadd.f32 %v7086, %v7246
        %v7252 = vld [vmem:[#allocation16] sm:$0x3]
        %v7254 = vlaneseq
        %v7255 = vshrl.u32 %v7254, 7
        %v7256 = vsub.s32 0, %v7255
        %v7257 = vrot.slane %v7252, %v7256
        %v7258 = vlaneseq
        %v7259 = vshrl.u32 %v7258, 7
        %v7260 = vsub.s32 1, %v7259
        %v7261 = vrot.slane %v7252, %v7260
        %v7264 = vadd.f32 %v7250, %v7257
        %v7265 = vadd.f32 %v7251, %v7261
        %v7266 = vmax.f32 %v7264, 0.0
        %v7267 = vmax.f32 %v7265, 0.0
        %v7268 = vpack.c.bf16 %v7266, %v7266
        %v7269 = vpack.c.bf16 %v7267, %v7267
        %v7270 = vld [vmem:[%s15] sm:$0x3]
        %v7272 = vsel %vm5768, %v7270, 0
        %v7275 = vsel %vm5772, %v7268, 0
        %v7278 = vsel %vm5772, %v7269, 0
        %7280 = vmatprep.subr.bf16.mxu0 0
        %7281 = vmatpush1.bf16.msra.mxu0 0
        %7282 = vmatprep.subr.bf16.mxu0 0
        %7283 = vmatpush1.bf16.msra.mxu0 0
        %7284 = vmatprep.subr.bf16.mxu0 0
        %7285 = vmatpush1.bf16.msra.mxu0 0
        %7286 = vmatprep.subr.bf16.mxu0 0
        %7287 = vmatpush1.bf16.msra.mxu0 0
        %7288 = vmatprep.subr.bf16.mxu0 0
        %7289 = vmatpush1.bf16.msra.mxu0 0
        %7290 = vmatprep.subr.bf16.mxu0 0
        %7291 = vmatpush1.bf16.msra.mxu0 0
        %7292 = vmatprep.subr.bf16.mxu0 0
        %7293 = vmatpush1.bf16.msra.mxu0 0
        %7294 = vmatprep.subr.bf16.mxu0 %v7278
        %7295 = vmatpush1.bf16.msra.mxu0 %v7275
        %7296 = vmatprep.subr.bf16.mxu0 0
        %7297 = vmatpush2.bf16.msra.mxu0 0
        %7298 = vmatprep.subr.bf16.mxu0 0
        %7299 = vmatpush2.bf16.msra.mxu0 0
        %7300 = vmatprep.subr.bf16.mxu0 0
        %7301 = vmatpush2.bf16.msra.mxu0 0
        %7302 = vmatprep.subr.bf16.mxu0 0
        %7303 = vmatpush2.bf16.msra.mxu0 0
        %7304 = vmatprep.subr.bf16.mxu0 0
        %7305 = vmatpush2.bf16.msra.mxu0 0
        %7306 = vmatprep.subr.bf16.mxu0 0
        %7307 = vmatpush2.bf16.msra.mxu0 0
        %7308 = vmatprep.subr.bf16.mxu0 0
        %7309 = vmatpush2.bf16.msra.mxu0 0
        %7310 = vmatprep.subr.bf16.mxu0 0
        %7311 = vmatpush2.bf16.msra.mxu0 0
        %7312 = vmatprep.mubr.bf16.mxu0 0
        %7313 = vmatmul.mubr.bf16.gmra.mxu0 %v7272
        %v7314 = vpop.f32.mrf.mxu0
        %v7315 = vadd.f32 0.0, %v7314
        %v7316 = vpop.f32.mrf.mxu0
        %v7317 = vadd.f32 0.0, %v7316
        %v7318 = vpop.f32.mrf.mxu0
        %v7319 = vpop.f32.mrf.mxu0
        %7320 = vdwg.mxu0
        %v7321 = vpack.c.bf16 %v7315, %v7315
        %v7322 = vpack.c.bf16 %v7317, %v7317
        %v7323 = vld [vmem:[%s16] sm:$0xff]
        %v7324 = vld [vmem:[%s16 + $0x8] sm:$0xff]
        %v7325 = vld [vmem:[%s16 + $0x10] sm:$0xff]
        %v7326 = vld [vmem:[%s16 + $0x18] sm:$0xff]
        %v7327 = vld [vmem:[%s16 + $0x20] sm:$0xff]
        %v7328 = vld [vmem:[%s16 + $0x28] sm:$0xff]
        %v7329 = vld [vmem:[%s16 + $0x30] sm:$0xff]
        %v7330 = vld [vmem:[%s16 + $0x38] sm:$0xff]
        %v7331 = vld [vmem:[%s16 + $0x40] sm:$0xff]
        %v7332 = vld [vmem:[%s16 + $0x48] sm:$0xff]
        %v7333 = vld [vmem:[%s16 + $0x50] sm:$0xff]
        %v7334 = vld [vmem:[%s16 + $0x58] sm:$0xff]
        %v7335 = vld [vmem:[%s16 + $0x60] sm:$0xff]
        %v7336 = vld [vmem:[%s16 + $0x68] sm:$0xff]
        %v7337 = vld [vmem:[%s16 + $0x70] sm:$0xff]
        %v7338 = vld [vmem:[%s16 + $0x78] sm:$0xff]
        %v7339 = vld [vmem:[%s16 + $0x80] sm:$0xff]
        %v7340 = vld [vmem:[%s16 + $0x88] sm:$0xff]
        %v7341 = vld [vmem:[%s16 + $0x90] sm:$0xff]
        %v7342 = vld [vmem:[%s16 + $0x98] sm:$0xff]
        %v7343 = vld [vmem:[%s16 + $0xa0] sm:$0xff]
        %v7344 = vld [vmem:[%s16 + $0xa8] sm:$0xff]
        %v7345 = vld [vmem:[%s16 + $0xb0] sm:$0xff]
        %v7346 = vld [vmem:[%s16 + $0xb8] sm:$0xff]
        %v7347 = vld [vmem:[%s16 + $0xc0] sm:$0xff]
        %v7348 = vld [vmem:[%s16 + $0xc8] sm:$0xff]
        %v7349 = vld [vmem:[%s16 + $0xd0] sm:$0xff]
        %v7350 = vld [vmem:[%s16 + $0xd8] sm:$0xff]
        %v7351 = vld [vmem:[%s16 + $0xe0] sm:$0xff]
        %v7352 = vld [vmem:[%s16 + $0xe8] sm:$0xff]
        %v7353 = vld [vmem:[%s16 + $0xf0] sm:$0xff]
        %v7354 = vld [vmem:[%s16 + $0xf8] sm:$0xff]
        %s7355 = scalar_lea.vmem %s15, 2
        %v7356 = vld [vmem:[%s7355] sm:$0x3]
        %v7358 = vsel %vm5768, %v7356, 0
        %7360 = vmatprep.subr.bf16.mxu0 0
        %7361 = vmatpush1.bf16.msra.mxu0 0
        %7362 = vmatprep.subr.bf16.mxu0 0
        %7363 = vmatpush1.bf16.msra.mxu0 0
        %7364 = vmatprep.subr.bf16.mxu0 0
        %7365 = vmatpush1.bf16.msra.mxu0 0
        %7366 = vmatprep.subr.bf16.mxu0 0
        %7367 = vmatpush1.bf16.msra.mxu0 0
        %7368 = vmatprep.subr.bf16.mxu0 0
        %7369 = vmatpush1.bf16.msra.mxu0 0
        %7370 = vmatprep.subr.bf16.mxu0 0
        %7371 = vmatpush1.bf16.msra.mxu0 0
        %7372 = vmatprep.subr.bf16.mxu0 0
        %7373 = vmatpush1.bf16.msra.mxu0 0
        %7374 = vmatprep.subr.bf16.mxu0 %v7278
        %7375 = vmatpush1.bf16.msra.mxu0 %v7275
        %7376 = vmatprep.subr.bf16.mxu0 0
        %7377 = vmatpush2.bf16.msra.mxu0 0
        %7378 = vmatprep.subr.bf16.mxu0 0
        %7379 = vmatpush2.bf16.msra.mxu0 0
        %7380 = vmatprep.subr.bf16.mxu0 0
        %7381 = vmatpush2.bf16.msra.mxu0 0
        %7382 = vmatprep.subr.bf16.mxu0 0
        %7383 = vmatpush2.bf16.msra.mxu0 0
        %7384 = vmatprep.subr.bf16.mxu0 0
        %7385 = vmatpush2.bf16.msra.mxu0 0
        %7386 = vmatprep.subr.bf16.mxu0 0
        %7387 = vmatpush2.bf16.msra.mxu0 0
        %7388 = vmatprep.subr.bf16.mxu0 0
        %7389 = vmatpush2.bf16.msra.mxu0 0
        %7390 = vmatprep.subr.bf16.mxu0 0
        %7391 = vmatpush2.bf16.msra.mxu0 0
        %7392 = vmatprep.mubr.bf16.mxu0 0
        %7393 = vmatmul.mubr.bf16.gmra.mxu0 %v7358
        %v7394 = vpop.f32.mrf.mxu0
        %v7395 = vadd.f32 0.0, %v7394
        %v7396 = vpop.f32.mrf.mxu0
        %v7397 = vadd.f32 0.0, %v7396
        %v7398 = vpop.f32.mrf.mxu0
        %v7399 = vpop.f32.mrf.mxu0
        %7400 = vdwg.mxu0
        %v7401 = vpack.c.bf16 %v7395, %v7395
        %v7402 = vpack.c.bf16 %v7397, %v7397
        %s7403 = scalar_lea.vmem %s16, 256
        %v7404 = vld [vmem:[%s7403] sm:$0xff]
        %v7405 = vld [vmem:[%s7403 + $0x8] sm:$0xff]
        %v7406 = vld [vmem:[%s7403 + $0x10] sm:$0xff]
        %v7407 = vld [vmem:[%s7403 + $0x18] sm:$0xff]
        %v7408 = vld [vmem:[%s7403 + $0x20] sm:$0xff]
        %v7409 = vld [vmem:[%s7403 + $0x28] sm:$0xff]
        %v7410 = vld [vmem:[%s7403 + $0x30] sm:$0xff]
        %v7411 = vld [vmem:[%s7403 + $0x38] sm:$0xff]
        %v7412 = vld [vmem:[%s7403 + $0x40] sm:$0xff]
        %v7413 = vld [vmem:[%s7403 + $0x48] sm:$0xff]
        %v7414 = vld [vmem:[%s7403 + $0x50] sm:$0xff]
        %v7415 = vld [vmem:[%s7403 + $0x58] sm:$0xff]
        %v7416 = vld [vmem:[%s7403 + $0x60] sm:$0xff]
        %v7417 = vld [vmem:[%s7403 + $0x68] sm:$0xff]
        %v7418 = vld [vmem:[%s7403 + $0x70] sm:$0xff]
        %v7419 = vld [vmem:[%s7403 + $0x78] sm:$0xff]
        %v7420 = vld [vmem:[%s7403 + $0x80] sm:$0xff]
        %v7421 = vld [vmem:[%s7403 + $0x88] sm:$0xff]
        %v7422 = vld [vmem:[%s7403 + $0x90] sm:$0xff]
        %v7423 = vld [vmem:[%s7403 + $0x98] sm:$0xff]
        %v7424 = vld [vmem:[%s7403 + $0xa0] sm:$0xff]
        %v7425 = vld [vmem:[%s7403 + $0xa8] sm:$0xff]
        %v7426 = vld [vmem:[%s7403 + $0xb0] sm:$0xff]
        %v7427 = vld [vmem:[%s7403 + $0xb8] sm:$0xff]
        %v7428 = vld [vmem:[%s7403 + $0xc0] sm:$0xff]
        %v7429 = vld [vmem:[%s7403 + $0xc8] sm:$0xff]
        %v7430 = vld [vmem:[%s7403 + $0xd0] sm:$0xff]
        %v7431 = vld [vmem:[%s7403 + $0xd8] sm:$0xff]
        %v7432 = vld [vmem:[%s7403 + $0xe0] sm:$0xff]
        %v7433 = vld [vmem:[%s7403 + $0xe8] sm:$0xff]
        %v7434 = vld [vmem:[%s7403 + $0xf0] sm:$0xff]
        %v7435 = vld [vmem:[%s7403 + $0xf8] sm:$0xff]
        %v7468 = vunpack.c.l.b16 %v7404
        %v7469 = vunpack.c.h.b16 %v7404
        %v7470 = vunpack.c.l.b16 %v7405
        %v7471 = vunpack.c.h.b16 %v7405
        %v7472 = vunpack.c.l.b16 %v7406
        %v7473 = vunpack.c.h.b16 %v7406
        %v7474 = vunpack.c.l.b16 %v7407
        %v7475 = vunpack.c.h.b16 %v7407
        %v7476 = vunpack.c.l.b16 %v7408
        %v7477 = vunpack.c.h.b16 %v7408
        %v7478 = vunpack.c.l.b16 %v7409
        %v7479 = vunpack.c.h.b16 %v7409
        %v7480 = vunpack.c.l.b16 %v7410
        %v7481 = vunpack.c.h.b16 %v7410
        %v7482 = vunpack.c.l.b16 %v7411
        %v7483 = vunpack.c.h.b16 %v7411
        %v7484 = vunpack.c.l.b16 %v7412
        %v7485 = vunpack.c.h.b16 %v7412
        %v7486 = vunpack.c.l.b16 %v7413
        %v7487 = vunpack.c.h.b16 %v7413
        %v7488 = vunpack.c.l.b16 %v7414
        %v7489 = vunpack.c.h.b16 %v7414
        %v7490 = vunpack.c.l.b16 %v7415
        %v7491 = vunpack.c.h.b16 %v7415
        %v7492 = vunpack.c.l.b16 %v7416
        %v7493 = vunpack.c.h.b16 %v7416
        %v7494 = vunpack.c.l.b16 %v7417
        %v7495 = vunpack.c.h.b16 %v7417
        %v7496 = vunpack.c.l.b16 %v7418
        %v7497 = vunpack.c.h.b16 %v7418
        %v7498 = vunpack.c.l.b16 %v7419
        %v7499 = vunpack.c.h.b16 %v7419
        %v7500 = vunpack.c.l.b16 %v7420
        %v7501 = vunpack.c.h.b16 %v7420
        %v7502 = vunpack.c.l.b16 %v7421
        %v7503 = vunpack.c.h.b16 %v7421
        %v7504 = vunpack.c.l.b16 %v7422
        %v7505 = vunpack.c.h.b16 %v7422
        %v7506 = vunpack.c.l.b16 %v7423
        %v7507 = vunpack.c.h.b16 %v7423
        %v7508 = vunpack.c.l.b16 %v7424
        %v7509 = vunpack.c.h.b16 %v7424
        %v7510 = vunpack.c.l.b16 %v7425
        %v7511 = vunpack.c.h.b16 %v7425
        %v7512 = vunpack.c.l.b16 %v7426
        %v7513 = vunpack.c.h.b16 %v7426
        %v7514 = vunpack.c.l.b16 %v7427
        %v7515 = vunpack.c.h.b16 %v7427
        %v7516 = vunpack.c.l.b16 %v7428
        %v7517 = vunpack.c.h.b16 %v7428
        %v7518 = vunpack.c.l.b16 %v7429
        %v7519 = vunpack.c.h.b16 %v7429
        %v7520 = vunpack.c.l.b16 %v7430
        %v7521 = vunpack.c.h.b16 %v7430
        %v7522 = vunpack.c.l.b16 %v7431
        %v7523 = vunpack.c.h.b16 %v7431
        %v7524 = vunpack.c.l.b16 %v7432
        %v7525 = vunpack.c.h.b16 %v7432
        %v7526 = vunpack.c.l.b16 %v7433
        %v7527 = vunpack.c.h.b16 %v7433
        %v7528 = vunpack.c.l.b16 %v7434
        %v7529 = vunpack.c.h.b16 %v7434
        %v7530 = vunpack.c.l.b16 %v7435
        %v7531 = vunpack.c.h.b16 %v7435
        %v7532 = vpack.c.b16 %v7470, %v7468
        %v7533 = vpack.c.b16 %v7471, %v7469
        %v7534 = vpack.c.b16 %v7474, %v7472
        %v7535 = vpack.c.b16 %v7475, %v7473
        %v7536 = vpack.c.b16 %v7478, %v7476
        %v7537 = vpack.c.b16 %v7479, %v7477
        %v7538 = vpack.c.b16 %v7482, %v7480
        %v7539 = vpack.c.b16 %v7483, %v7481
        %v7540 = vpack.c.b16 %v7486, %v7484
        %v7541 = vpack.c.b16 %v7487, %v7485
        %v7542 = vpack.c.b16 %v7490, %v7488
        %v7543 = vpack.c.b16 %v7491, %v7489
        %v7544 = vpack.c.b16 %v7494, %v7492
        %v7545 = vpack.c.b16 %v7495, %v7493
        %v7546 = vpack.c.b16 %v7498, %v7496
        %v7547 = vpack.c.b16 %v7499, %v7497
        %v7548 = vpack.c.b16 %v7502, %v7500
        %v7549 = vpack.c.b16 %v7503, %v7501
        %v7550 = vpack.c.b16 %v7506, %v7504
        %v7551 = vpack.c.b16 %v7507, %v7505
        %v7552 = vpack.c.b16 %v7510, %v7508
        %v7553 = vpack.c.b16 %v7511, %v7509
        %v7554 = vpack.c.b16 %v7514, %v7512
        %v7555 = vpack.c.b16 %v7515, %v7513
        %v7556 = vpack.c.b16 %v7518, %v7516
        %v7557 = vpack.c.b16 %v7519, %v7517
        %v7558 = vpack.c.b16 %v7522, %v7520
        %v7559 = vpack.c.b16 %v7523, %v7521
        %v7560 = vpack.c.b16 %v7526, %v7524
        %v7561 = vpack.c.b16 %v7527, %v7525
        %v7562 = vpack.c.b16 %v7530, %v7528
        %v7563 = vpack.c.b16 %v7531, %v7529
        %7596 = vmatprep.subr.bf16.mxu0 %v7547
        %7597 = vmatpush1.bf16.msra.mxu0 %v7546
        %7598 = vmatprep.subr.bf16.mxu0 %v7545
        %7599 = vmatpush1.bf16.msra.mxu0 %v7544
        %7600 = vmatprep.subr.bf16.mxu0 %v7543
        %7601 = vmatpush1.bf16.msra.mxu0 %v7542
        %7602 = vmatprep.subr.bf16.mxu0 %v7541
        %7603 = vmatpush1.bf16.msra.mxu0 %v7540
        %7604 = vmatprep.subr.bf16.mxu0 %v7539
        %7605 = vmatpush1.bf16.msra.mxu0 %v7538
        %7606 = vmatprep.subr.bf16.mxu0 %v7537
        %7607 = vmatpush1.bf16.msra.mxu0 %v7536
        %7608 = vmatprep.subr.bf16.mxu0 %v7535
        %7609 = vmatpush1.bf16.msra.mxu0 %v7534
        %7610 = vmatprep.subr.bf16.mxu0 %v7533
        %7611 = vmatpush1.bf16.msra.mxu0 %v7532
        %7612 = vmatprep.subr.bf16.mxu0 %v7563
        %7613 = vmatpush2.bf16.msra.mxu0 %v7562
        %7614 = vmatprep.subr.bf16.mxu0 %v7561
        %7615 = vmatpush2.bf16.msra.mxu0 %v7560
        %7616 = vmatprep.subr.bf16.mxu0 %v7559
        %7617 = vmatpush2.bf16.msra.mxu0 %v7558
        %7618 = vmatprep.subr.bf16.mxu0 %v7557
        %7619 = vmatpush2.bf16.msra.mxu0 %v7556
        %7620 = vmatprep.subr.bf16.mxu0 %v7555
        %7621 = vmatpush2.bf16.msra.mxu0 %v7554
        %7622 = vmatprep.subr.bf16.mxu0 %v7553
        %7623 = vmatpush2.bf16.msra.mxu0 %v7552
        %7624 = vmatprep.subr.bf16.mxu0 %v7551
        %7625 = vmatpush2.bf16.msra.mxu0 %v7550
        %7626 = vmatprep.subr.bf16.mxu0 %v7549
        %7627 = vmatpush2.bf16.msra.mxu0 %v7548
        %7628 = vmatprep.mubr.bf16.mxu0 %v7402
        %7629 = vmatmul.mubr.bf16.gmra.mxu0 %v7401
        %v7630 = vpop.f32.mrf.mxu0
        %v7631 = vadd.f32 0.0, %v7630
        %v7632 = vpop.f32.mrf.mxu0
        %v7633 = vadd.f32 0.0, %v7632
        %v7634 = vpop.f32.mrf.mxu0
        %v7635 = vpop.f32.mrf.mxu0
        %7636 = vdwg.mxu0
        %v7669 = vunpack.c.l.b16 %v7323
        %v7670 = vunpack.c.h.b16 %v7323
        %v7671 = vunpack.c.l.b16 %v7324
        %v7672 = vunpack.c.h.b16 %v7324
        %v7673 = vunpack.c.l.b16 %v7325
        %v7674 = vunpack.c.h.b16 %v7325
        %v7675 = vunpack.c.l.b16 %v7326
        %v7676 = vunpack.c.h.b16 %v7326
        %v7677 = vunpack.c.l.b16 %v7327
        %v7678 = vunpack.c.h.b16 %v7327
        %v7679 = vunpack.c.l.b16 %v7328
        %v7680 = vunpack.c.h.b16 %v7328
        %v7681 = vunpack.c.l.b16 %v7329
        %v7682 = vunpack.c.h.b16 %v7329
        %v7683 = vunpack.c.l.b16 %v7330
        %v7684 = vunpack.c.h.b16 %v7330
        %v7685 = vunpack.c.l.b16 %v7331
        %v7686 = vunpack.c.h.b16 %v7331
        %v7687 = vunpack.c.l.b16 %v7332
        %v7688 = vunpack.c.h.b16 %v7332
        %v7689 = vunpack.c.l.b16 %v7333
        %v7690 = vunpack.c.h.b16 %v7333
        %v7691 = vunpack.c.l.b16 %v7334
        %v7692 = vunpack.c.h.b16 %v7334
        %v7693 = vunpack.c.l.b16 %v7335
        %v7694 = vunpack.c.h.b16 %v7335
        %v7695 = vunpack.c.l.b16 %v7336
        %v7696 = vunpack.c.h.b16 %v7336
        %v7697 = vunpack.c.l.b16 %v7337
        %v7698 = vunpack.c.h.b16 %v7337
        %v7699 = vunpack.c.l.b16 %v7338
        %v7700 = vunpack.c.h.b16 %v7338
        %v7701 = vunpack.c.l.b16 %v7339
        %v7702 = vunpack.c.h.b16 %v7339
        %v7703 = vunpack.c.l.b16 %v7340
        %v7704 = vunpack.c.h.b16 %v7340
        %v7705 = vunpack.c.l.b16 %v7341
        %v7706 = vunpack.c.h.b16 %v7341
        %v7707 = vunpack.c.l.b16 %v7342
        %v7708 = vunpack.c.h.b16 %v7342
        %v7709 = vunpack.c.l.b16 %v7343
        %v7710 = vunpack.c.h.b16 %v7343
        %v7711 = vunpack.c.l.b16 %v7344
        %v7712 = vunpack.c.h.b16 %v7344
        %v7713 = vunpack.c.l.b16 %v7345
        %v7714 = vunpack.c.h.b16 %v7345
        %v7715 = vunpack.c.l.b16 %v7346
        %v7716 = vunpack.c.h.b16 %v7346
        %v7717 = vunpack.c.l.b16 %v7347
        %v7718 = vunpack.c.h.b16 %v7347
        %v7719 = vunpack.c.l.b16 %v7348
        %v7720 = vunpack.c.h.b16 %v7348
        %v7721 = vunpack.c.l.b16 %v7349
        %v7722 = vunpack.c.h.b16 %v7349
        %v7723 = vunpack.c.l.b16 %v7350
        %v7724 = vunpack.c.h.b16 %v7350
        %v7725 = vunpack.c.l.b16 %v7351
        %v7726 = vunpack.c.h.b16 %v7351
        %v7727 = vunpack.c.l.b16 %v7352
        %v7728 = vunpack.c.h.b16 %v7352
        %v7729 = vunpack.c.l.b16 %v7353
        %v7730 = vunpack.c.h.b16 %v7353
        %v7731 = vunpack.c.l.b16 %v7354
        %v7732 = vunpack.c.h.b16 %v7354
        %v7733 = vpack.c.b16 %v7671, %v7669
        %v7734 = vpack.c.b16 %v7672, %v7670
        %v7735 = vpack.c.b16 %v7675, %v7673
        %v7736 = vpack.c.b16 %v7676, %v7674
        %v7737 = vpack.c.b16 %v7679, %v7677
        %v7738 = vpack.c.b16 %v7680, %v7678
        %v7739 = vpack.c.b16 %v7683, %v7681
        %v7740 = vpack.c.b16 %v7684, %v7682
        %v7741 = vpack.c.b16 %v7687, %v7685
        %v7742 = vpack.c.b16 %v7688, %v7686
        %v7743 = vpack.c.b16 %v7691, %v7689
        %v7744 = vpack.c.b16 %v7692, %v7690
        %v7745 = vpack.c.b16 %v7695, %v7693
        %v7746 = vpack.c.b16 %v7696, %v7694
        %v7747 = vpack.c.b16 %v7699, %v7697
        %v7748 = vpack.c.b16 %v7700, %v7698
        %v7749 = vpack.c.b16 %v7703, %v7701
        %v7750 = vpack.c.b16 %v7704, %v7702
        %v7751 = vpack.c.b16 %v7707, %v7705
        %v7752 = vpack.c.b16 %v7708, %v7706
        %v7753 = vpack.c.b16 %v7711, %v7709
        %v7754 = vpack.c.b16 %v7712, %v7710
        %v7755 = vpack.c.b16 %v7715, %v7713
        %v7756 = vpack.c.b16 %v7716, %v7714
        %v7757 = vpack.c.b16 %v7719, %v7717
        %v7758 = vpack.c.b16 %v7720, %v7718
        %v7759 = vpack.c.b16 %v7723, %v7721
        %v7760 = vpack.c.b16 %v7724, %v7722
        %v7761 = vpack.c.b16 %v7727, %v7725
        %v7762 = vpack.c.b16 %v7728, %v7726
        %v7763 = vpack.c.b16 %v7731, %v7729
        %v7764 = vpack.c.b16 %v7732, %v7730
        %7797 = vmatprep.subr.bf16.mxu0 %v7748
        %7798 = vmatpush1.bf16.msra.mxu0 %v7747
        %7799 = vmatprep.subr.bf16.mxu0 %v7746
        %7800 = vmatpush1.bf16.msra.mxu0 %v7745
        %7801 = vmatprep.subr.bf16.mxu0 %v7744
        %7802 = vmatpush1.bf16.msra.mxu0 %v7743
        %7803 = vmatprep.subr.bf16.mxu0 %v7742
        %7804 = vmatpush1.bf16.msra.mxu0 %v7741
        %7805 = vmatprep.subr.bf16.mxu0 %v7740
        %7806 = vmatpush1.bf16.msra.mxu0 %v7739
        %7807 = vmatprep.subr.bf16.mxu0 %v7738
        %7808 = vmatpush1.bf16.msra.mxu0 %v7737
        %7809 = vmatprep.subr.bf16.mxu0 %v7736
        %7810 = vmatpush1.bf16.msra.mxu0 %v7735
        %7811 = vmatprep.subr.bf16.mxu0 %v7734
        %7812 = vmatpush1.bf16.msra.mxu0 %v7733
        %7813 = vmatprep.subr.bf16.mxu0 %v7764
        %7814 = vmatpush2.bf16.msra.mxu0 %v7763
        %7815 = vmatprep.subr.bf16.mxu0 %v7762
        %7816 = vmatpush2.bf16.msra.mxu0 %v7761
        %7817 = vmatprep.subr.bf16.mxu0 %v7760
        %7818 = vmatpush2.bf16.msra.mxu0 %v7759
        %7819 = vmatprep.subr.bf16.mxu0 %v7758
        %7820 = vmatpush2.bf16.msra.mxu0 %v7757
        %7821 = vmatprep.subr.bf16.mxu0 %v7756
        %7822 = vmatpush2.bf16.msra.mxu0 %v7755
        %7823 = vmatprep.subr.bf16.mxu0 %v7754
        %7824 = vmatpush2.bf16.msra.mxu0 %v7753
        %7825 = vmatprep.subr.bf16.mxu0 %v7752
        %7826 = vmatpush2.bf16.msra.mxu0 %v7751
        %7827 = vmatprep.subr.bf16.mxu0 %v7750
        %7828 = vmatpush2.bf16.msra.mxu0 %v7749
        %7829 = vmatprep.mubr.bf16.mxu0 %v7322
        %7830 = vmatmul.mubr.bf16.gmra.mxu0 %v7321
        %v7831 = vpop.f32.mrf.mxu0
        %v7832 = vadd.f32 %v7631, %v7831
        %v7833 = vpop.f32.mrf.mxu0
        %v7834 = vadd.f32 %v7633, %v7833
        %v7835 = vpop.f32.mrf.mxu0
        %v7836 = vpop.f32.mrf.mxu0
        %7837 = vdwg.mxu0
        %s7838 = scalar_lea.vmem %s15, 4
        %v7839 = vld [vmem:[%s7838] sm:$0x3]
        %v7841 = vsel %vm5768, %v7839, 0
        %7843 = vmatprep.subr.bf16.mxu0 0
        %7844 = vmatpush1.bf16.msra.mxu0 0
        %7845 = vmatprep.subr.bf16.mxu0 0
        %7846 = vmatpush1.bf16.msra.mxu0 0
        %7847 = vmatprep.subr.bf16.mxu0 0
        %7848 = vmatpush1.bf16.msra.mxu0 0
        %7849 = vmatprep.subr.bf16.mxu0 0
        %7850 = vmatpush1.bf16.msra.mxu0 0
        %7851 = vmatprep.subr.bf16.mxu0 0
        %7852 = vmatpush1.bf16.msra.mxu0 0
        %7853 = vmatprep.subr.bf16.mxu0 0
        %7854 = vmatpush1.bf16.msra.mxu0 0
        %7855 = vmatprep.subr.bf16.mxu0 0
        %7856 = vmatpush1.bf16.msra.mxu0 0
        %7857 = vmatprep.subr.bf16.mxu0 %v7278
        %7858 = vmatpush1.bf16.msra.mxu0 %v7275
        %7859 = vmatprep.subr.bf16.mxu0 0
        %7860 = vmatpush2.bf16.msra.mxu0 0
        %7861 = vmatprep.subr.bf16.mxu0 0
        %7862 = vmatpush2.bf16.msra.mxu0 0
        %7863 = vmatprep.subr.bf16.mxu0 0
        %7864 = vmatpush2.bf16.msra.mxu0 0
        %7865 = vmatprep.subr.bf16.mxu0 0
        %7866 = vmatpush2.bf16.msra.mxu0 0
        %7867 = vmatprep.subr.bf16.mxu0 0
        %7868 = vmatpush2.bf16.msra.mxu0 0
        %7869 = vmatprep.subr.bf16.mxu0 0
        %7870 = vmatpush2.bf16.msra.mxu0 0
        %7871 = vmatprep.subr.bf16.mxu0 0
        %7872 = vmatpush2.bf16.msra.mxu0 0
        %7873 = vmatprep.subr.bf16.mxu0 0
        %7874 = vmatpush2.bf16.msra.mxu0 0
        %7875 = vmatprep.mubr.bf16.mxu0 0
        %7876 = vmatmul.mubr.bf16.gmra.mxu0 %v7841
        %v7877 = vpop.f32.mrf.mxu0
        %v7878 = vadd.f32 0.0, %v7877
        %v7879 = vpop.f32.mrf.mxu0
        %v7880 = vadd.f32 0.0, %v7879
        %v7881 = vpop.f32.mrf.mxu0
        %v7882 = vpop.f32.mrf.mxu0
        %7883 = vdwg.mxu0
        %v7884 = vpack.c.bf16 %v7878, %v7878
        %v7885 = vpack.c.bf16 %v7880, %v7880
        %s7886 = scalar_lea.vmem %s16, 512
        %v7887 = vld [vmem:[%s7886] sm:$0xff]
        %v7888 = vld [vmem:[%s7886 + $0x8] sm:$0xff]
        %v7889 = vld [vmem:[%s7886 + $0x10] sm:$0xff]
        %v7890 = vld [vmem:[%s7886 + $0x18] sm:$0xff]
        %v7891 = vld [vmem:[%s7886 + $0x20] sm:$0xff]
        %v7892 = vld [vmem:[%s7886 + $0x28] sm:$0xff]
        %v7893 = vld [vmem:[%s7886 + $0x30] sm:$0xff]
        %v7894 = vld [vmem:[%s7886 + $0x38] sm:$0xff]
        %v7895 = vld [vmem:[%s7886 + $0x40] sm:$0xff]
        %v7896 = vld [vmem:[%s7886 + $0x48] sm:$0xff]
        %v7897 = vld [vmem:[%s7886 + $0x50] sm:$0xff]
        %v7898 = vld [vmem:[%s7886 + $0x58] sm:$0xff]
        %v7899 = vld [vmem:[%s7886 + $0x60] sm:$0xff]
        %v7900 = vld [vmem:[%s7886 + $0x68] sm:$0xff]
        %v7901 = vld [vmem:[%s7886 + $0x70] sm:$0xff]
        %v7902 = vld [vmem:[%s7886 + $0x78] sm:$0xff]
        %v7903 = vld [vmem:[%s7886 + $0x80] sm:$0xff]
        %v7904 = vld [vmem:[%s7886 + $0x88] sm:$0xff]
        %v7905 = vld [vmem:[%s7886 + $0x90] sm:$0xff]
        %v7906 = vld [vmem:[%s7886 + $0x98] sm:$0xff]
        %v7907 = vld [vmem:[%s7886 + $0xa0] sm:$0xff]
        %v7908 = vld [vmem:[%s7886 + $0xa8] sm:$0xff]
        %v7909 = vld [vmem:[%s7886 + $0xb0] sm:$0xff]
        %v7910 = vld [vmem:[%s7886 + $0xb8] sm:$0xff]
        %v7911 = vld [vmem:[%s7886 + $0xc0] sm:$0xff]
        %v7912 = vld [vmem:[%s7886 + $0xc8] sm:$0xff]
        %v7913 = vld [vmem:[%s7886 + $0xd0] sm:$0xff]
        %v7914 = vld [vmem:[%s7886 + $0xd8] sm:$0xff]
        %v7915 = vld [vmem:[%s7886 + $0xe0] sm:$0xff]
        %v7916 = vld [vmem:[%s7886 + $0xe8] sm:$0xff]
        %v7917 = vld [vmem:[%s7886 + $0xf0] sm:$0xff]
        %v7918 = vld [vmem:[%s7886 + $0xf8] sm:$0xff]
        %v7951 = vunpack.c.l.b16 %v7887
        %v7952 = vunpack.c.h.b16 %v7887
        %v7953 = vunpack.c.l.b16 %v7888
        %v7954 = vunpack.c.h.b16 %v7888
        %v7955 = vunpack.c.l.b16 %v7889
        %v7956 = vunpack.c.h.b16 %v7889
        %v7957 = vunpack.c.l.b16 %v7890
        %v7958 = vunpack.c.h.b16 %v7890
        %v7959 = vunpack.c.l.b16 %v7891
        %v7960 = vunpack.c.h.b16 %v7891
        %v7961 = vunpack.c.l.b16 %v7892
        %v7962 = vunpack.c.h.b16 %v7892
        %v7963 = vunpack.c.l.b16 %v7893
        %v7964 = vunpack.c.h.b16 %v7893
        %v7965 = vunpack.c.l.b16 %v7894
        %v7966 = vunpack.c.h.b16 %v7894
        %v7967 = vunpack.c.l.b16 %v7895
        %v7968 = vunpack.c.h.b16 %v7895
        %v7969 = vunpack.c.l.b16 %v7896
        %v7970 = vunpack.c.h.b16 %v7896
        %v7971 = vunpack.c.l.b16 %v7897
        %v7972 = vunpack.c.h.b16 %v7897
        %v7973 = vunpack.c.l.b16 %v7898
        %v7974 = vunpack.c.h.b16 %v7898
        %v7975 = vunpack.c.l.b16 %v7899
        %v7976 = vunpack.c.h.b16 %v7899
        %v7977 = vunpack.c.l.b16 %v7900
        %v7978 = vunpack.c.h.b16 %v7900
        %v7979 = vunpack.c.l.b16 %v7901
        %v7980 = vunpack.c.h.b16 %v7901
        %v7981 = vunpack.c.l.b16 %v7902
        %v7982 = vunpack.c.h.b16 %v7902
        %v7983 = vunpack.c.l.b16 %v7903
        %v7984 = vunpack.c.h.b16 %v7903
        %v7985 = vunpack.c.l.b16 %v7904
        %v7986 = vunpack.c.h.b16 %v7904
        %v7987 = vunpack.c.l.b16 %v7905
        %v7988 = vunpack.c.h.b16 %v7905
        %v7989 = vunpack.c.l.b16 %v7906
        %v7990 = vunpack.c.h.b16 %v7906
        %v7991 = vunpack.c.l.b16 %v7907
        %v7992 = vunpack.c.h.b16 %v7907
        %v7993 = vunpack.c.l.b16 %v7908
        %v7994 = vunpack.c.h.b16 %v7908
        %v7995 = vunpack.c.l.b16 %v7909
        %v7996 = vunpack.c.h.b16 %v7909
        %v7997 = vunpack.c.l.b16 %v7910
        %v7998 = vunpack.c.h.b16 %v7910
        %v7999 = vunpack.c.l.b16 %v7911
        %v8000 = vunpack.c.h.b16 %v7911
        %v8001 = vunpack.c.l.b16 %v7912
        %v8002 = vunpack.c.h.b16 %v7912
        %v8003 = vunpack.c.l.b16 %v7913
        %v8004 = vunpack.c.h.b16 %v7913
        %v8005 = vunpack.c.l.b16 %v7914
        %v8006 = vunpack.c.h.b16 %v7914
        %v8007 = vunpack.c.l.b16 %v7915
        %v8008 = vunpack.c.h.b16 %v7915
        %v8009 = vunpack.c.l.b16 %v7916
        %v8010 = vunpack.c.h.b16 %v7916
        %v8011 = vunpack.c.l.b16 %v7917
        %v8012 = vunpack.c.h.b16 %v7917
        %v8013 = vunpack.c.l.b16 %v7918
        %v8014 = vunpack.c.h.b16 %v7918
        %v8015 = vpack.c.b16 %v7953, %v7951
        %v8016 = vpack.c.b16 %v7954, %v7952
        %v8017 = vpack.c.b16 %v7957, %v7955
        %v8018 = vpack.c.b16 %v7958, %v7956
        %v8019 = vpack.c.b16 %v7961, %v7959
        %v8020 = vpack.c.b16 %v7962, %v7960
        %v8021 = vpack.c.b16 %v7965, %v7963
        %v8022 = vpack.c.b16 %v7966, %v7964
        %v8023 = vpack.c.b16 %v7969, %v7967
        %v8024 = vpack.c.b16 %v7970, %v7968
        %v8025 = vpack.c.b16 %v7973, %v7971
        %v8026 = vpack.c.b16 %v7974, %v7972
        %v8027 = vpack.c.b16 %v7977, %v7975
        %v8028 = vpack.c.b16 %v7978, %v7976
        %v8029 = vpack.c.b16 %v7981, %v7979
        %v8030 = vpack.c.b16 %v7982, %v7980
        %v8031 = vpack.c.b16 %v7985, %v7983
        %v8032 = vpack.c.b16 %v7986, %v7984
        %v8033 = vpack.c.b16 %v7989, %v7987
        %v8034 = vpack.c.b16 %v7990, %v7988
        %v8035 = vpack.c.b16 %v7993, %v7991
        %v8036 = vpack.c.b16 %v7994, %v7992
        %v8037 = vpack.c.b16 %v7997, %v7995
        %v8038 = vpack.c.b16 %v7998, %v7996
        %v8039 = vpack.c.b16 %v8001, %v7999
        %v8040 = vpack.c.b16 %v8002, %v8000
        %v8041 = vpack.c.b16 %v8005, %v8003
        %v8042 = vpack.c.b16 %v8006, %v8004
        %v8043 = vpack.c.b16 %v8009, %v8007
        %v8044 = vpack.c.b16 %v8010, %v8008
        %v8045 = vpack.c.b16 %v8013, %v8011
        %v8046 = vpack.c.b16 %v8014, %v8012
        %8079 = vmatprep.subr.bf16.mxu0 %v8030
        %8080 = vmatpush1.bf16.msra.mxu0 %v8029
        %8081 = vmatprep.subr.bf16.mxu0 %v8028
        %8082 = vmatpush1.bf16.msra.mxu0 %v8027
        %8083 = vmatprep.subr.bf16.mxu0 %v8026
        %8084 = vmatpush1.bf16.msra.mxu0 %v8025
        %8085 = vmatprep.subr.bf16.mxu0 %v8024
        %8086 = vmatpush1.bf16.msra.mxu0 %v8023
        %8087 = vmatprep.subr.bf16.mxu0 %v8022
        %8088 = vmatpush1.bf16.msra.mxu0 %v8021
        %8089 = vmatprep.subr.bf16.mxu0 %v8020
        %8090 = vmatpush1.bf16.msra.mxu0 %v8019
        %8091 = vmatprep.subr.bf16.mxu0 %v8018
        %8092 = vmatpush1.bf16.msra.mxu0 %v8017
        %8093 = vmatprep.subr.bf16.mxu0 %v8016
        %8094 = vmatpush1.bf16.msra.mxu0 %v8015
        %8095 = vmatprep.subr.bf16.mxu0 %v8046
        %8096 = vmatpush2.bf16.msra.mxu0 %v8045
        %8097 = vmatprep.subr.bf16.mxu0 %v8044
        %8098 = vmatpush2.bf16.msra.mxu0 %v8043
        %8099 = vmatprep.subr.bf16.mxu0 %v8042
        %8100 = vmatpush2.bf16.msra.mxu0 %v8041
        %8101 = vmatprep.subr.bf16.mxu0 %v8040
        %8102 = vmatpush2.bf16.msra.mxu0 %v8039
        %8103 = vmatprep.subr.bf16.mxu0 %v8038
        %8104 = vmatpush2.bf16.msra.mxu0 %v8037
        %8105 = vmatprep.subr.bf16.mxu0 %v8036
        %8106 = vmatpush2.bf16.msra.mxu0 %v8035
        %8107 = vmatprep.subr.bf16.mxu0 %v8034
        %8108 = vmatpush2.bf16.msra.mxu0 %v8033
        %8109 = vmatprep.subr.bf16.mxu0 %v8032
        %8110 = vmatpush2.bf16.msra.mxu0 %v8031
        %8111 = vmatprep.mubr.bf16.mxu0 %v7885
        %8112 = vmatmul.mubr.bf16.gmra.mxu0 %v7884
        %v8113 = vpop.f32.mrf.mxu0
        %v8114 = vadd.f32 0.0, %v8113
        %v8115 = vpop.f32.mrf.mxu0
        %v8116 = vadd.f32 0.0, %v8115
        %v8117 = vpop.f32.mrf.mxu0
        %v8118 = vpop.f32.mrf.mxu0
        %8119 = vdwg.mxu0
        %v8120 = vadd.f32 %v7832, %v8114
        %v8121 = vadd.f32 %v7834, %v8116
        %s8122 = scalar_lea.vmem %s15, 6
        %v8123 = vld [vmem:[%s8122] sm:$0x3]
        %v8125 = vsel %vm5768, %v8123, 0
        %8127 = vmatprep.subr.bf16.mxu0 0
        %8128 = vmatpush1.bf16.msra.mxu0 0
        %8129 = vmatprep.subr.bf16.mxu0 0
        %8130 = vmatpush1.bf16.msra.mxu0 0
        %8131 = vmatprep.subr.bf16.mxu0 0
        %8132 = vmatpush1.bf16.msra.mxu0 0
        %8133 = vmatprep.subr.bf16.mxu0 0
        %8134 = vmatpush1.bf16.msra.mxu0 0
        %8135 = vmatprep.subr.bf16.mxu0 0
        %8136 = vmatpush1.bf16.msra.mxu0 0
        %8137 = vmatprep.subr.bf16.mxu0 0
        %8138 = vmatpush1.bf16.msra.mxu0 0
        %8139 = vmatprep.subr.bf16.mxu0 0
        %8140 = vmatpush1.bf16.msra.mxu0 0
        %8141 = vmatprep.subr.bf16.mxu0 %v7278
        %8142 = vmatpush1.bf16.msra.mxu0 %v7275
        %8143 = vmatprep.subr.bf16.mxu0 0
        %8144 = vmatpush2.bf16.msra.mxu0 0
        %8145 = vmatprep.subr.bf16.mxu0 0
        %8146 = vmatpush2.bf16.msra.mxu0 0
        %8147 = vmatprep.subr.bf16.mxu0 0
        %8148 = vmatpush2.bf16.msra.mxu0 0
        %8149 = vmatprep.subr.bf16.mxu0 0
        %8150 = vmatpush2.bf16.msra.mxu0 0
        %8151 = vmatprep.subr.bf16.mxu0 0
        %8152 = vmatpush2.bf16.msra.mxu0 0
        %8153 = vmatprep.subr.bf16.mxu0 0
        %8154 = vmatpush2.bf16.msra.mxu0 0
        %8155 = vmatprep.subr.bf16.mxu0 0
        %8156 = vmatpush2.bf16.msra.mxu0 0
        %8157 = vmatprep.subr.bf16.mxu0 0
        %8158 = vmatpush2.bf16.msra.mxu0 0
        %8159 = vmatprep.mubr.bf16.mxu0 0
        %8160 = vmatmul.mubr.bf16.gmra.mxu0 %v8125
        %v8161 = vpop.f32.mrf.mxu0
        %v8162 = vadd.f32 0.0, %v8161
        %v8163 = vpop.f32.mrf.mxu0
        %v8164 = vadd.f32 0.0, %v8163
        %v8165 = vpop.f32.mrf.mxu0
        %v8166 = vpop.f32.mrf.mxu0
        %8167 = vdwg.mxu0
        %v8168 = vpack.c.bf16 %v8162, %v8162
        %v8169 = vpack.c.bf16 %v8164, %v8164
        %s8170 = scalar_lea.vmem %s16, 768
        %v8171 = vld [vmem:[%s8170] sm:$0xff]
        %v8172 = vld [vmem:[%s8170 + $0x8] sm:$0xff]
        %v8173 = vld [vmem:[%s8170 + $0x10] sm:$0xff]
        %v8174 = vld [vmem:[%s8170 + $0x18] sm:$0xff]
        %v8175 = vld [vmem:[%s8170 + $0x20] sm:$0xff]
        %v8176 = vld [vmem:[%s8170 + $0x28] sm:$0xff]
        %v8177 = vld [vmem:[%s8170 + $0x30] sm:$0xff]
        %v8178 = vld [vmem:[%s8170 + $0x38] sm:$0xff]
        %v8179 = vld [vmem:[%s8170 + $0x40] sm:$0xff]
        %v8180 = vld [vmem:[%s8170 + $0x48] sm:$0xff]
        %v8181 = vld [vmem:[%s8170 + $0x50] sm:$0xff]
        %v8182 = vld [vmem:[%s8170 + $0x58] sm:$0xff]
        %v8183 = vld [vmem:[%s8170 + $0x60] sm:$0xff]
        %v8184 = vld [vmem:[%s8170 + $0x68] sm:$0xff]
        %v8185 = vld [vmem:[%s8170 + $0x70] sm:$0xff]
        %v8186 = vld [vmem:[%s8170 + $0x78] sm:$0xff]
        %v8187 = vld [vmem:[%s8170 + $0x80] sm:$0xff]
        %v8188 = vld [vmem:[%s8170 + $0x88] sm:$0xff]
        %v8189 = vld [vmem:[%s8170 + $0x90] sm:$0xff]
        %v8190 = vld [vmem:[%s8170 + $0x98] sm:$0xff]
        %v8191 = vld [vmem:[%s8170 + $0xa0] sm:$0xff]
        %v8192 = vld [vmem:[%s8170 + $0xa8] sm:$0xff]
        %v8193 = vld [vmem:[%s8170 + $0xb0] sm:$0xff]
        %v8194 = vld [vmem:[%s8170 + $0xb8] sm:$0xff]
        %v8195 = vld [vmem:[%s8170 + $0xc0] sm:$0xff]
        %v8196 = vld [vmem:[%s8170 + $0xc8] sm:$0xff]
        %v8197 = vld [vmem:[%s8170 + $0xd0] sm:$0xff]
        %v8198 = vld [vmem:[%s8170 + $0xd8] sm:$0xff]
        %v8199 = vld [vmem:[%s8170 + $0xe0] sm:$0xff]
        %v8200 = vld [vmem:[%s8170 + $0xe8] sm:$0xff]
        %v8201 = vld [vmem:[%s8170 + $0xf0] sm:$0xff]
        %v8202 = vld [vmem:[%s8170 + $0xf8] sm:$0xff]
        %v8235 = vunpack.c.l.b16 %v8171
        %v8236 = vunpack.c.h.b16 %v8171
        %v8237 = vunpack.c.l.b16 %v8172
        %v8238 = vunpack.c.h.b16 %v8172
        %v8239 = vunpack.c.l.b16 %v8173
        %v8240 = vunpack.c.h.b16 %v8173
        %v8241 = vunpack.c.l.b16 %v8174
        %v8242 = vunpack.c.h.b16 %v8174
        %v8243 = vunpack.c.l.b16 %v8175
        %v8244 = vunpack.c.h.b16 %v8175
        %v8245 = vunpack.c.l.b16 %v8176
        %v8246 = vunpack.c.h.b16 %v8176
        %v8247 = vunpack.c.l.b16 %v8177
        %v8248 = vunpack.c.h.b16 %v8177
        %v8249 = vunpack.c.l.b16 %v8178
        %v8250 = vunpack.c.h.b16 %v8178
        %v8251 = vunpack.c.l.b16 %v8179
        %v8252 = vunpack.c.h.b16 %v8179
        %v8253 = vunpack.c.l.b16 %v8180
        %v8254 = vunpack.c.h.b16 %v8180
        %v8255 = vunpack.c.l.b16 %v8181
        %v8256 = vunpack.c.h.b16 %v8181
        %v8257 = vunpack.c.l.b16 %v8182
        %v8258 = vunpack.c.h.b16 %v8182
        %v8259 = vunpack.c.l.b16 %v8183
        %v8260 = vunpack.c.h.b16 %v8183
        %v8261 = vunpack.c.l.b16 %v8184
        %v8262 = vunpack.c.h.b16 %v8184
        %v8263 = vunpack.c.l.b16 %v8185
        %v8264 = vunpack.c.h.b16 %v8185
        %v8265 = vunpack.c.l.b16 %v8186
        %v8266 = vunpack.c.h.b16 %v8186
        %v8267 = vunpack.c.l.b16 %v8187
        %v8268 = vunpack.c.h.b16 %v8187
        %v8269 = vunpack.c.l.b16 %v8188
        %v8270 = vunpack.c.h.b16 %v8188
        %v8271 = vunpack.c.l.b16 %v8189
        %v8272 = vunpack.c.h.b16 %v8189
        %v8273 = vunpack.c.l.b16 %v8190
        %v8274 = vunpack.c.h.b16 %v8190
        %v8275 = vunpack.c.l.b16 %v8191
        %v8276 = vunpack.c.h.b16 %v8191
        %v8277 = vunpack.c.l.b16 %v8192
        %v8278 = vunpack.c.h.b16 %v8192
        %v8279 = vunpack.c.l.b16 %v8193
        %v8280 = vunpack.c.h.b16 %v8193
        %v8281 = vunpack.c.l.b16 %v8194
        %v8282 = vunpack.c.h.b16 %v8194
        %v8283 = vunpack.c.l.b16 %v8195
        %v8284 = vunpack.c.h.b16 %v8195
        %v8285 = vunpack.c.l.b16 %v8196
        %v8286 = vunpack.c.h.b16 %v8196
        %v8287 = vunpack.c.l.b16 %v8197
        %v8288 = vunpack.c.h.b16 %v8197
        %v8289 = vunpack.c.l.b16 %v8198
        %v8290 = vunpack.c.h.b16 %v8198
        %v8291 = vunpack.c.l.b16 %v8199
        %v8292 = vunpack.c.h.b16 %v8199
        %v8293 = vunpack.c.l.b16 %v8200
        %v8294 = vunpack.c.h.b16 %v8200
        %v8295 = vunpack.c.l.b16 %v8201
        %v8296 = vunpack.c.h.b16 %v8201
        %v8297 = vunpack.c.l.b16 %v8202
        %v8298 = vunpack.c.h.b16 %v8202
        %v8299 = vpack.c.b16 %v8237, %v8235
        %v8300 = vpack.c.b16 %v8238, %v8236
        %v8301 = vpack.c.b16 %v8241, %v8239
        %v8302 = vpack.c.b16 %v8242, %v8240
        %v8303 = vpack.c.b16 %v8245, %v8243
        %v8304 = vpack.c.b16 %v8246, %v8244
        %v8305 = vpack.c.b16 %v8249, %v8247
        %v8306 = vpack.c.b16 %v8250, %v8248
        %v8307 = vpack.c.b16 %v8253, %v8251
        %v8308 = vpack.c.b16 %v8254, %v8252
        %v8309 = vpack.c.b16 %v8257, %v8255
        %v8310 = vpack.c.b16 %v8258, %v8256
        %v8311 = vpack.c.b16 %v8261, %v8259
        %v8312 = vpack.c.b16 %v8262, %v8260
        %v8313 = vpack.c.b16 %v8265, %v8263
        %v8314 = vpack.c.b16 %v8266, %v8264
        %v8315 = vpack.c.b16 %v8269, %v8267
        %v8316 = vpack.c.b16 %v8270, %v8268
        %v8317 = vpack.c.b16 %v8273, %v8271
        %v8318 = vpack.c.b16 %v8274, %v8272
        %v8319 = vpack.c.b16 %v8277, %v8275
        %v8320 = vpack.c.b16 %v8278, %v8276
        %v8321 = vpack.c.b16 %v8281, %v8279
        %v8322 = vpack.c.b16 %v8282, %v8280
        %v8323 = vpack.c.b16 %v8285, %v8283
        %v8324 = vpack.c.b16 %v8286, %v8284
        %v8325 = vpack.c.b16 %v8289, %v8287
        %v8326 = vpack.c.b16 %v8290, %v8288
        %v8327 = vpack.c.b16 %v8293, %v8291
        %v8328 = vpack.c.b16 %v8294, %v8292
        %v8329 = vpack.c.b16 %v8297, %v8295
        %v8330 = vpack.c.b16 %v8298, %v8296
        %8363 = vmatprep.subr.bf16.mxu0 %v8314
        %8364 = vmatpush1.bf16.msra.mxu0 %v8313
        %8365 = vmatprep.subr.bf16.mxu0 %v8312
        %8366 = vmatpush1.bf16.msra.mxu0 %v8311
        %8367 = vmatprep.subr.bf16.mxu0 %v8310
        %8368 = vmatpush1.bf16.msra.mxu0 %v8309
        %8369 = vmatprep.subr.bf16.mxu0 %v8308
        %8370 = vmatpush1.bf16.msra.mxu0 %v8307
        %8371 = vmatprep.subr.bf16.mxu0 %v8306
        %8372 = vmatpush1.bf16.msra.mxu0 %v8305
        %8373 = vmatprep.subr.bf16.mxu0 %v8304
        %8374 = vmatpush1.bf16.msra.mxu0 %v8303
        %8375 = vmatprep.subr.bf16.mxu0 %v8302
        %8376 = vmatpush1.bf16.msra.mxu0 %v8301
        %8377 = vmatprep.subr.bf16.mxu0 %v8300
        %8378 = vmatpush1.bf16.msra.mxu0 %v8299
        %8379 = vmatprep.subr.bf16.mxu0 %v8330
        %8380 = vmatpush2.bf16.msra.mxu0 %v8329
        %8381 = vmatprep.subr.bf16.mxu0 %v8328
        %8382 = vmatpush2.bf16.msra.mxu0 %v8327
        %8383 = vmatprep.subr.bf16.mxu0 %v8326
        %8384 = vmatpush2.bf16.msra.mxu0 %v8325
        %8385 = vmatprep.subr.bf16.mxu0 %v8324
        %8386 = vmatpush2.bf16.msra.mxu0 %v8323
        %8387 = vmatprep.subr.bf16.mxu0 %v8322
        %8388 = vmatpush2.bf16.msra.mxu0 %v8321
        %8389 = vmatprep.subr.bf16.mxu0 %v8320
        %8390 = vmatpush2.bf16.msra.mxu0 %v8319
        %8391 = vmatprep.subr.bf16.mxu0 %v8318
        %8392 = vmatpush2.bf16.msra.mxu0 %v8317
        %8393 = vmatprep.subr.bf16.mxu0 %v8316
        %8394 = vmatpush2.bf16.msra.mxu0 %v8315
        %8395 = vmatprep.mubr.bf16.mxu0 %v8169
        %8396 = vmatmul.mubr.bf16.gmra.mxu0 %v8168
        %v8397 = vpop.f32.mrf.mxu0
        %v8398 = vadd.f32 0.0, %v8397
        %v8399 = vpop.f32.mrf.mxu0
        %v8400 = vadd.f32 0.0, %v8399
        %v8401 = vpop.f32.mrf.mxu0
        %v8402 = vpop.f32.mrf.mxu0
        %8403 = vdwg.mxu0
        %v8404 = vadd.f32 %v8120, %v8398
        %v8405 = vadd.f32 %v8121, %v8400
        %s8406 = scalar_lea.vmem %s15, 8
        %v8407 = vld [vmem:[%s8406] sm:$0x3]
        %v8409 = vsel %vm5768, %v8407, 0
        %8411 = vmatprep.subr.bf16.mxu0 0
        %8412 = vmatpush1.bf16.msra.mxu0 0
        %8413 = vmatprep.subr.bf16.mxu0 0
        %8414 = vmatpush1.bf16.msra.mxu0 0
        %8415 = vmatprep.subr.bf16.mxu0 0
        %8416 = vmatpush1.bf16.msra.mxu0 0
        %8417 = vmatprep.subr.bf16.mxu0 0
        %8418 = vmatpush1.bf16.msra.mxu0 0
        %8419 = vmatprep.subr.bf16.mxu0 0
        %8420 = vmatpush1.bf16.msra.mxu0 0
        %8421 = vmatprep.subr.bf16.mxu0 0
        %8422 = vmatpush1.bf16.msra.mxu0 0
        %8423 = vmatprep.subr.bf16.mxu0 0
        %8424 = vmatpush1.bf16.msra.mxu0 0
        %8425 = vmatprep.subr.bf16.mxu0 %v7278
        %8426 = vmatpush1.bf16.msra.mxu0 %v7275
        %8427 = vmatprep.subr.bf16.mxu0 0
        %8428 = vmatpush2.bf16.msra.mxu0 0
        %8429 = vmatprep.subr.bf16.mxu0 0
        %8430 = vmatpush2.bf16.msra.mxu0 0
        %8431 = vmatprep.subr.bf16.mxu0 0
        %8432 = vmatpush2.bf16.msra.mxu0 0
        %8433 = vmatprep.subr.bf16.mxu0 0
        %8434 = vmatpush2.bf16.msra.mxu0 0
        %8435 = vmatprep.subr.bf16.mxu0 0
        %8436 = vmatpush2.bf16.msra.mxu0 0
        %8437 = vmatprep.subr.bf16.mxu0 0
        %8438 = vmatpush2.bf16.msra.mxu0 0
        %8439 = vmatprep.subr.bf16.mxu0 0
        %8440 = vmatpush2.bf16.msra.mxu0 0
        %8441 = vmatprep.subr.bf16.mxu0 0
        %8442 = vmatpush2.bf16.msra.mxu0 0
        %8443 = vmatprep.mubr.bf16.mxu0 0
        %8444 = vmatmul.mubr.bf16.gmra.mxu0 %v8409
        %v8445 = vpop.f32.mrf.mxu0
        %v8446 = vadd.f32 0.0, %v8445
        %v8447 = vpop.f32.mrf.mxu0
        %v8448 = vadd.f32 0.0, %v8447
        %v8449 = vpop.f32.mrf.mxu0
        %v8450 = vpop.f32.mrf.mxu0
        %8451 = vdwg.mxu0
        %v8452 = vpack.c.bf16 %v8446, %v8446
        %v8453 = vpack.c.bf16 %v8448, %v8448
        %s8454 = scalar_lea.vmem %s16, 1024
        %v8455 = vld [vmem:[%s8454] sm:$0xff]
        %v8456 = vld [vmem:[%s8454 + $0x8] sm:$0xff]
        %v8457 = vld [vmem:[%s8454 + $0x10] sm:$0xff]
        %v8458 = vld [vmem:[%s8454 + $0x18] sm:$0xff]
        %v8459 = vld [vmem:[%s8454 + $0x20] sm:$0xff]
        %v8460 = vld [vmem:[%s8454 + $0x28] sm:$0xff]
        %v8461 = vld [vmem:[%s8454 + $0x30] sm:$0xff]
        %v8462 = vld [vmem:[%s8454 + $0x38] sm:$0xff]
        %v8463 = vld [vmem:[%s8454 + $0x40] sm:$0xff]
        %v8464 = vld [vmem:[%s8454 + $0x48] sm:$0xff]
        %v8465 = vld [vmem:[%s8454 + $0x50] sm:$0xff]
        %v8466 = vld [vmem:[%s8454 + $0x58] sm:$0xff]
        %v8467 = vld [vmem:[%s8454 + $0x60] sm:$0xff]
        %v8468 = vld [vmem:[%s8454 + $0x68] sm:$0xff]
        %v8469 = vld [vmem:[%s8454 + $0x70] sm:$0xff]
        %v8470 = vld [vmem:[%s8454 + $0x78] sm:$0xff]
        %v8471 = vld [vmem:[%s8454 + $0x80] sm:$0xff]
        %v8472 = vld [vmem:[%s8454 + $0x88] sm:$0xff]
        %v8473 = vld [vmem:[%s8454 + $0x90] sm:$0xff]
        %v8474 = vld [vmem:[%s8454 + $0x98] sm:$0xff]
        %v8475 = vld [vmem:[%s8454 + $0xa0] sm:$0xff]
        %v8476 = vld [vmem:[%s8454 + $0xa8] sm:$0xff]
        %v8477 = vld [vmem:[%s8454 + $0xb0] sm:$0xff]
        %v8478 = vld [vmem:[%s8454 + $0xb8] sm:$0xff]
        %v8479 = vld [vmem:[%s8454 + $0xc0] sm:$0xff]
        %v8480 = vld [vmem:[%s8454 + $0xc8] sm:$0xff]
        %v8481 = vld [vmem:[%s8454 + $0xd0] sm:$0xff]
        %v8482 = vld [vmem:[%s8454 + $0xd8] sm:$0xff]
        %v8483 = vld [vmem:[%s8454 + $0xe0] sm:$0xff]
        %v8484 = vld [vmem:[%s8454 + $0xe8] sm:$0xff]
        %v8485 = vld [vmem:[%s8454 + $0xf0] sm:$0xff]
        %v8486 = vld [vmem:[%s8454 + $0xf8] sm:$0xff]
        %v8519 = vunpack.c.l.b16 %v8455
        %v8520 = vunpack.c.h.b16 %v8455
        %v8521 = vunpack.c.l.b16 %v8456
        %v8522 = vunpack.c.h.b16 %v8456
        %v8523 = vunpack.c.l.b16 %v8457
        %v8524 = vunpack.c.h.b16 %v8457
        %v8525 = vunpack.c.l.b16 %v8458
        %v8526 = vunpack.c.h.b16 %v8458
        %v8527 = vunpack.c.l.b16 %v8459
        %v8528 = vunpack.c.h.b16 %v8459
        %v8529 = vunpack.c.l.b16 %v8460
        %v8530 = vunpack.c.h.b16 %v8460
        %v8531 = vunpack.c.l.b16 %v8461
        %v8532 = vunpack.c.h.b16 %v8461
        %v8533 = vunpack.c.l.b16 %v8462
        %v8534 = vunpack.c.h.b16 %v8462
        %v8535 = vunpack.c.l.b16 %v8463
        %v8536 = vunpack.c.h.b16 %v8463
        %v8537 = vunpack.c.l.b16 %v8464
        %v8538 = vunpack.c.h.b16 %v8464
        %v8539 = vunpack.c.l.b16 %v8465
        %v8540 = vunpack.c.h.b16 %v8465
        %v8541 = vunpack.c.l.b16 %v8466
        %v8542 = vunpack.c.h.b16 %v8466
        %v8543 = vunpack.c.l.b16 %v8467
        %v8544 = vunpack.c.h.b16 %v8467
        %v8545 = vunpack.c.l.b16 %v8468
        %v8546 = vunpack.c.h.b16 %v8468
        %v8547 = vunpack.c.l.b16 %v8469
        %v8548 = vunpack.c.h.b16 %v8469
        %v8549 = vunpack.c.l.b16 %v8470
        %v8550 = vunpack.c.h.b16 %v8470
        %v8551 = vunpack.c.l.b16 %v8471
        %v8552 = vunpack.c.h.b16 %v8471
        %v8553 = vunpack.c.l.b16 %v8472
        %v8554 = vunpack.c.h.b16 %v8472
        %v8555 = vunpack.c.l.b16 %v8473
        %v8556 = vunpack.c.h.b16 %v8473
        %v8557 = vunpack.c.l.b16 %v8474
        %v8558 = vunpack.c.h.b16 %v8474
        %v8559 = vunpack.c.l.b16 %v8475
        %v8560 = vunpack.c.h.b16 %v8475
        %v8561 = vunpack.c.l.b16 %v8476
        %v8562 = vunpack.c.h.b16 %v8476
        %v8563 = vunpack.c.l.b16 %v8477
        %v8564 = vunpack.c.h.b16 %v8477
        %v8565 = vunpack.c.l.b16 %v8478
        %v8566 = vunpack.c.h.b16 %v8478
        %v8567 = vunpack.c.l.b16 %v8479
        %v8568 = vunpack.c.h.b16 %v8479
        %v8569 = vunpack.c.l.b16 %v8480
        %v8570 = vunpack.c.h.b16 %v8480
        %v8571 = vunpack.c.l.b16 %v8481
        %v8572 = vunpack.c.h.b16 %v8481
        %v8573 = vunpack.c.l.b16 %v8482
        %v8574 = vunpack.c.h.b16 %v8482
        %v8575 = vunpack.c.l.b16 %v8483
        %v8576 = vunpack.c.h.b16 %v8483
        %v8577 = vunpack.c.l.b16 %v8484
        %v8578 = vunpack.c.h.b16 %v8484
        %v8579 = vunpack.c.l.b16 %v8485
        %v8580 = vunpack.c.h.b16 %v8485
        %v8581 = vunpack.c.l.b16 %v8486
        %v8582 = vunpack.c.h.b16 %v8486
        %v8583 = vpack.c.b16 %v8521, %v8519
        %v8584 = vpack.c.b16 %v8522, %v8520
        %v8585 = vpack.c.b16 %v8525, %v8523
        %v8586 = vpack.c.b16 %v8526, %v8524
        %v8587 = vpack.c.b16 %v8529, %v8527
        %v8588 = vpack.c.b16 %v8530, %v8528
        %v8589 = vpack.c.b16 %v8533, %v8531
        %v8590 = vpack.c.b16 %v8534, %v8532
        %v8591 = vpack.c.b16 %v8537, %v8535
        %v8592 = vpack.c.b16 %v8538, %v8536
        %v8593 = vpack.c.b16 %v8541, %v8539
        %v8594 = vpack.c.b16 %v8542, %v8540
        %v8595 = vpack.c.b16 %v8545, %v8543
        %v8596 = vpack.c.b16 %v8546, %v8544
        %v8597 = vpack.c.b16 %v8549, %v8547
        %v8598 = vpack.c.b16 %v8550, %v8548
        %v8599 = vpack.c.b16 %v8553, %v8551
        %v8600 = vpack.c.b16 %v8554, %v8552
        %v8601 = vpack.c.b16 %v8557, %v8555
        %v8602 = vpack.c.b16 %v8558, %v8556
        %v8603 = vpack.c.b16 %v8561, %v8559
        %v8604 = vpack.c.b16 %v8562, %v8560
        %v8605 = vpack.c.b16 %v8565, %v8563
        %v8606 = vpack.c.b16 %v8566, %v8564
        %v8607 = vpack.c.b16 %v8569, %v8567
        %v8608 = vpack.c.b16 %v8570, %v8568
        %v8609 = vpack.c.b16 %v8573, %v8571
        %v8610 = vpack.c.b16 %v8574, %v8572
        %v8611 = vpack.c.b16 %v8577, %v8575
        %v8612 = vpack.c.b16 %v8578, %v8576
        %v8613 = vpack.c.b16 %v8581, %v8579
        %v8614 = vpack.c.b16 %v8582, %v8580
        %8647 = vmatprep.subr.bf16.mxu0 %v8598
        %8648 = vmatpush1.bf16.msra.mxu0 %v8597
        %8649 = vmatprep.subr.bf16.mxu0 %v8596
        %8650 = vmatpush1.bf16.msra.mxu0 %v8595
        %8651 = vmatprep.subr.bf16.mxu0 %v8594
        %8652 = vmatpush1.bf16.msra.mxu0 %v8593
        %8653 = vmatprep.subr.bf16.mxu0 %v8592
        %8654 = vmatpush1.bf16.msra.mxu0 %v8591
        %8655 = vmatprep.subr.bf16.mxu0 %v8590
        %8656 = vmatpush1.bf16.msra.mxu0 %v8589
        %8657 = vmatprep.subr.bf16.mxu0 %v8588
        %8658 = vmatpush1.bf16.msra.mxu0 %v8587
        %8659 = vmatprep.subr.bf16.mxu0 %v8586
        %8660 = vmatpush1.bf16.msra.mxu0 %v8585
        %8661 = vmatprep.subr.bf16.mxu0 %v8584
        %8662 = vmatpush1.bf16.msra.mxu0 %v8583
        %8663 = vmatprep.subr.bf16.mxu0 %v8614
        %8664 = vmatpush2.bf16.msra.mxu0 %v8613
        %8665 = vmatprep.subr.bf16.mxu0 %v8612
        %8666 = vmatpush2.bf16.msra.mxu0 %v8611
        %8667 = vmatprep.subr.bf16.mxu0 %v8610
        %8668 = vmatpush2.bf16.msra.mxu0 %v8609
        %8669 = vmatprep.subr.bf16.mxu0 %v8608
        %8670 = vmatpush2.bf16.msra.mxu0 %v8607
        %8671 = vmatprep.subr.bf16.mxu0 %v8606
        %8672 = vmatpush2.bf16.msra.mxu0 %v8605
        %8673 = vmatprep.subr.bf16.mxu0 %v8604
        %8674 = vmatpush2.bf16.msra.mxu0 %v8603
        %8675 = vmatprep.subr.bf16.mxu0 %v8602
        %8676 = vmatpush2.bf16.msra.mxu0 %v8601
        %8677 = vmatprep.subr.bf16.mxu0 %v8600
        %8678 = vmatpush2.bf16.msra.mxu0 %v8599
        %8679 = vmatprep.mubr.bf16.mxu0 %v8453
        %8680 = vmatmul.mubr.bf16.gmra.mxu0 %v8452
        %v8681 = vpop.f32.mrf.mxu0
        %v8682 = vadd.f32 0.0, %v8681
        %v8683 = vpop.f32.mrf.mxu0
        %v8684 = vadd.f32 0.0, %v8683
        %v8685 = vpop.f32.mrf.mxu0
        %v8686 = vpop.f32.mrf.mxu0
        %8687 = vdwg.mxu0
        %v8688 = vadd.f32 %v8404, %v8682
        %v8689 = vadd.f32 %v8405, %v8684
        %s8690 = scalar_lea.vmem %s15, 10
        %v8691 = vld [vmem:[%s8690] sm:$0x3]
        %v8693 = vsel %vm5768, %v8691, 0
        %8695 = vmatprep.subr.bf16.mxu0 0
        %8696 = vmatpush1.bf16.msra.mxu0 0
        %8697 = vmatprep.subr.bf16.mxu0 0
        %8698 = vmatpush1.bf16.msra.mxu0 0
        %8699 = vmatprep.subr.bf16.mxu0 0
        %8700 = vmatpush1.bf16.msra.mxu0 0
        %8701 = vmatprep.subr.bf16.mxu0 0
        %8702 = vmatpush1.bf16.msra.mxu0 0
        %8703 = vmatprep.subr.bf16.mxu0 0
        %8704 = vmatpush1.bf16.msra.mxu0 0
        %8705 = vmatprep.subr.bf16.mxu0 0
        %8706 = vmatpush1.bf16.msra.mxu0 0
        %8707 = vmatprep.subr.bf16.mxu0 0
        %8708 = vmatpush1.bf16.msra.mxu0 0
        %8709 = vmatprep.subr.bf16.mxu0 %v7278
        %8710 = vmatpush1.bf16.msra.mxu0 %v7275
        %8711 = vmatprep.subr.bf16.mxu0 0
        %8712 = vmatpush2.bf16.msra.mxu0 0
        %8713 = vmatprep.subr.bf16.mxu0 0
        %8714 = vmatpush2.bf16.msra.mxu0 0
        %8715 = vmatprep.subr.bf16.mxu0 0
        %8716 = vmatpush2.bf16.msra.mxu0 0
        %8717 = vmatprep.subr.bf16.mxu0 0
        %8718 = vmatpush2.bf16.msra.mxu0 0
        %8719 = vmatprep.subr.bf16.mxu0 0
        %8720 = vmatpush2.bf16.msra.mxu0 0
        %8721 = vmatprep.subr.bf16.mxu0 0
        %8722 = vmatpush2.bf16.msra.mxu0 0
        %8723 = vmatprep.subr.bf16.mxu0 0
        %8724 = vmatpush2.bf16.msra.mxu0 0
        %8725 = vmatprep.subr.bf16.mxu0 0
        %8726 = vmatpush2.bf16.msra.mxu0 0
        %8727 = vmatprep.mubr.bf16.mxu0 0
        %8728 = vmatmul.mubr.bf16.gmra.mxu0 %v8693
        %v8729 = vpop.f32.mrf.mxu0
        %v8730 = vadd.f32 0.0, %v8729
        %v8731 = vpop.f32.mrf.mxu0
        %v8732 = vadd.f32 0.0, %v8731
        %v8733 = vpop.f32.mrf.mxu0
        %v8734 = vpop.f32.mrf.mxu0
        %8735 = vdwg.mxu0
        %v8736 = vpack.c.bf16 %v8730, %v8730
        %v8737 = vpack.c.bf16 %v8732, %v8732
        %s8738 = scalar_lea.vmem %s16, 1280
        %v8739 = vld [vmem:[%s8738] sm:$0xff]
        %v8740 = vld [vmem:[%s8738 + $0x8] sm:$0xff]
        %v8741 = vld [vmem:[%s8738 + $0x10] sm:$0xff]
        %v8742 = vld [vmem:[%s8738 + $0x18] sm:$0xff]
        %v8743 = vld [vmem:[%s8738 + $0x20] sm:$0xff]
        %v8744 = vld [vmem:[%s8738 + $0x28] sm:$0xff]
        %v8745 = vld [vmem:[%s8738 + $0x30] sm:$0xff]
        %v8746 = vld [vmem:[%s8738 + $0x38] sm:$0xff]
        %v8747 = vld [vmem:[%s8738 + $0x40] sm:$0xff]
        %v8748 = vld [vmem:[%s8738 + $0x48] sm:$0xff]
        %v8749 = vld [vmem:[%s8738 + $0x50] sm:$0xff]
        %v8750 = vld [vmem:[%s8738 + $0x58] sm:$0xff]
        %v8751 = vld [vmem:[%s8738 + $0x60] sm:$0xff]
        %v8752 = vld [vmem:[%s8738 + $0x68] sm:$0xff]
        %v8753 = vld [vmem:[%s8738 + $0x70] sm:$0xff]
        %v8754 = vld [vmem:[%s8738 + $0x78] sm:$0xff]
        %v8755 = vld [vmem:[%s8738 + $0x80] sm:$0xff]
        %v8756 = vld [vmem:[%s8738 + $0x88] sm:$0xff]
        %v8757 = vld [vmem:[%s8738 + $0x90] sm:$0xff]
        %v8758 = vld [vmem:[%s8738 + $0x98] sm:$0xff]
        %v8759 = vld [vmem:[%s8738 + $0xa0] sm:$0xff]
        %v8760 = vld [vmem:[%s8738 + $0xa8] sm:$0xff]
        %v8761 = vld [vmem:[%s8738 + $0xb0] sm:$0xff]
        %v8762 = vld [vmem:[%s8738 + $0xb8] sm:$0xff]
        %v8763 = vld [vmem:[%s8738 + $0xc0] sm:$0xff]
        %v8764 = vld [vmem:[%s8738 + $0xc8] sm:$0xff]
        %v8765 = vld [vmem:[%s8738 + $0xd0] sm:$0xff]
        %v8766 = vld [vmem:[%s8738 + $0xd8] sm:$0xff]
        %v8767 = vld [vmem:[%s8738 + $0xe0] sm:$0xff]
        %v8768 = vld [vmem:[%s8738 + $0xe8] sm:$0xff]
        %v8769 = vld [vmem:[%s8738 + $0xf0] sm:$0xff]
        %v8770 = vld [vmem:[%s8738 + $0xf8] sm:$0xff]
        %v8803 = vunpack.c.l.b16 %v8739
        %v8804 = vunpack.c.h.b16 %v8739
        %v8805 = vunpack.c.l.b16 %v8740
        %v8806 = vunpack.c.h.b16 %v8740
        %v8807 = vunpack.c.l.b16 %v8741
        %v8808 = vunpack.c.h.b16 %v8741
        %v8809 = vunpack.c.l.b16 %v8742
        %v8810 = vunpack.c.h.b16 %v8742
        %v8811 = vunpack.c.l.b16 %v8743
        %v8812 = vunpack.c.h.b16 %v8743
        %v8813 = vunpack.c.l.b16 %v8744
        %v8814 = vunpack.c.h.b16 %v8744
        %v8815 = vunpack.c.l.b16 %v8745
        %v8816 = vunpack.c.h.b16 %v8745
        %v8817 = vunpack.c.l.b16 %v8746
        %v8818 = vunpack.c.h.b16 %v8746
        %v8819 = vunpack.c.l.b16 %v8747
        %v8820 = vunpack.c.h.b16 %v8747
        %v8821 = vunpack.c.l.b16 %v8748
        %v8822 = vunpack.c.h.b16 %v8748
        %v8823 = vunpack.c.l.b16 %v8749
        %v8824 = vunpack.c.h.b16 %v8749
        %v8825 = vunpack.c.l.b16 %v8750
        %v8826 = vunpack.c.h.b16 %v8750
        %v8827 = vunpack.c.l.b16 %v8751
        %v8828 = vunpack.c.h.b16 %v8751
        %v8829 = vunpack.c.l.b16 %v8752
        %v8830 = vunpack.c.h.b16 %v8752
        %v8831 = vunpack.c.l.b16 %v8753
        %v8832 = vunpack.c.h.b16 %v8753
        %v8833 = vunpack.c.l.b16 %v8754
        %v8834 = vunpack.c.h.b16 %v8754
        %v8835 = vunpack.c.l.b16 %v8755
        %v8836 = vunpack.c.h.b16 %v8755
        %v8837 = vunpack.c.l.b16 %v8756
        %v8838 = vunpack.c.h.b16 %v8756
        %v8839 = vunpack.c.l.b16 %v8757
        %v8840 = vunpack.c.h.b16 %v8757
        %v8841 = vunpack.c.l.b16 %v8758
        %v8842 = vunpack.c.h.b16 %v8758
        %v8843 = vunpack.c.l.b16 %v8759
        %v8844 = vunpack.c.h.b16 %v8759
        %v8845 = vunpack.c.l.b16 %v8760
        %v8846 = vunpack.c.h.b16 %v8760
        %v8847 = vunpack.c.l.b16 %v8761
        %v8848 = vunpack.c.h.b16 %v8761
        %v8849 = vunpack.c.l.b16 %v8762
        %v8850 = vunpack.c.h.b16 %v8762
        %v8851 = vunpack.c.l.b16 %v8763
        %v8852 = vunpack.c.h.b16 %v8763
        %v8853 = vunpack.c.l.b16 %v8764
        %v8854 = vunpack.c.h.b16 %v8764
        %v8855 = vunpack.c.l.b16 %v8765
        %v8856 = vunpack.c.h.b16 %v8765
        %v8857 = vunpack.c.l.b16 %v8766
        %v8858 = vunpack.c.h.b16 %v8766
        %v8859 = vunpack.c.l.b16 %v8767
        %v8860 = vunpack.c.h.b16 %v8767
        %v8861 = vunpack.c.l.b16 %v8768
        %v8862 = vunpack.c.h.b16 %v8768
        %v8863 = vunpack.c.l.b16 %v8769
        %v8864 = vunpack.c.h.b16 %v8769
        %v8865 = vunpack.c.l.b16 %v8770
        %v8866 = vunpack.c.h.b16 %v8770
        %v8867 = vpack.c.b16 %v8805, %v8803
        %v8868 = vpack.c.b16 %v8806, %v8804
        %v8869 = vpack.c.b16 %v8809, %v8807
        %v8870 = vpack.c.b16 %v8810, %v8808
        %v8871 = vpack.c.b16 %v8813, %v8811
        %v8872 = vpack.c.b16 %v8814, %v8812
        %v8873 = vpack.c.b16 %v8817, %v8815
        %v8874 = vpack.c.b16 %v8818, %v8816
        %v8875 = vpack.c.b16 %v8821, %v8819
        %v8876 = vpack.c.b16 %v8822, %v8820
        %v8877 = vpack.c.b16 %v8825, %v8823
        %v8878 = vpack.c.b16 %v8826, %v8824
        %v8879 = vpack.c.b16 %v8829, %v8827
        %v8880 = vpack.c.b16 %v8830, %v8828
        %v8881 = vpack.c.b16 %v8833, %v8831
        %v8882 = vpack.c.b16 %v8834, %v8832
        %v8883 = vpack.c.b16 %v8837, %v8835
        %v8884 = vpack.c.b16 %v8838, %v8836
        %v8885 = vpack.c.b16 %v8841, %v8839
        %v8886 = vpack.c.b16 %v8842, %v8840
        %v8887 = vpack.c.b16 %v8845, %v8843
        %v8888 = vpack.c.b16 %v8846, %v8844
        %v8889 = vpack.c.b16 %v8849, %v8847
        %v8890 = vpack.c.b16 %v8850, %v8848
        %v8891 = vpack.c.b16 %v8853, %v8851
        %v8892 = vpack.c.b16 %v8854, %v8852
        %v8893 = vpack.c.b16 %v8857, %v8855
        %v8894 = vpack.c.b16 %v8858, %v8856
        %v8895 = vpack.c.b16 %v8861, %v8859
        %v8896 = vpack.c.b16 %v8862, %v8860
        %v8897 = vpack.c.b16 %v8865, %v8863
        %v8898 = vpack.c.b16 %v8866, %v8864
        %8931 = vmatprep.subr.bf16.mxu0 %v8882
        %8932 = vmatpush1.bf16.msra.mxu0 %v8881
        %8933 = vmatprep.subr.bf16.mxu0 %v8880
        %8934 = vmatpush1.bf16.msra.mxu0 %v8879
        %8935 = vmatprep.subr.bf16.mxu0 %v8878
        %8936 = vmatpush1.bf16.msra.mxu0 %v8877
        %8937 = vmatprep.subr.bf16.mxu0 %v8876
        %8938 = vmatpush1.bf16.msra.mxu0 %v8875
        %8939 = vmatprep.subr.bf16.mxu0 %v8874
        %8940 = vmatpush1.bf16.msra.mxu0 %v8873
        %8941 = vmatprep.subr.bf16.mxu0 %v8872
        %8942 = vmatpush1.bf16.msra.mxu0 %v8871
        %8943 = vmatprep.subr.bf16.mxu0 %v8870
        %8944 = vmatpush1.bf16.msra.mxu0 %v8869
        %8945 = vmatprep.subr.bf16.mxu0 %v8868
        %8946 = vmatpush1.bf16.msra.mxu0 %v8867
        %8947 = vmatprep.subr.bf16.mxu0 %v8898
        %8948 = vmatpush2.bf16.msra.mxu0 %v8897
        %8949 = vmatprep.subr.bf16.mxu0 %v8896
        %8950 = vmatpush2.bf16.msra.mxu0 %v8895
        %8951 = vmatprep.subr.bf16.mxu0 %v8894
        %8952 = vmatpush2.bf16.msra.mxu0 %v8893
        %8953 = vmatprep.subr.bf16.mxu0 %v8892
        %8954 = vmatpush2.bf16.msra.mxu0 %v8891
        %8955 = vmatprep.subr.bf16.mxu0 %v8890
        %8956 = vmatpush2.bf16.msra.mxu0 %v8889
        %8957 = vmatprep.subr.bf16.mxu0 %v8888
        %8958 = vmatpush2.bf16.msra.mxu0 %v8887
        %8959 = vmatprep.subr.bf16.mxu0 %v8886
        %8960 = vmatpush2.bf16.msra.mxu0 %v8885
        %8961 = vmatprep.subr.bf16.mxu0 %v8884
        %8962 = vmatpush2.bf16.msra.mxu0 %v8883
        %8963 = vmatprep.mubr.bf16.mxu0 %v8737
        %8964 = vmatmul.mubr.bf16.gmra.mxu0 %v8736
        %v8965 = vpop.f32.mrf.mxu0
        %v8966 = vadd.f32 0.0, %v8965
        %v8967 = vpop.f32.mrf.mxu0
        %v8968 = vadd.f32 0.0, %v8967
        %v8969 = vpop.f32.mrf.mxu0
        %v8970 = vpop.f32.mrf.mxu0
        %8971 = vdwg.mxu0
        %v8972 = vadd.f32 %v8688, %v8966
        %v8973 = vadd.f32 %v8689, %v8968
        %s8974 = scalar_lea.vmem %s15, 12
        %v8975 = vld [vmem:[%s8974] sm:$0x3]
        %v8977 = vsel %vm5768, %v8975, 0
        %8979 = vmatprep.subr.bf16.mxu0 0
        %8980 = vmatpush1.bf16.msra.mxu0 0
        %8981 = vmatprep.subr.bf16.mxu0 0
        %8982 = vmatpush1.bf16.msra.mxu0 0
        %8983 = vmatprep.subr.bf16.mxu0 0
        %8984 = vmatpush1.bf16.msra.mxu0 0
        %8985 = vmatprep.subr.bf16.mxu0 0
        %8986 = vmatpush1.bf16.msra.mxu0 0
        %8987 = vmatprep.subr.bf16.mxu0 0
        %8988 = vmatpush1.bf16.msra.mxu0 0
        %8989 = vmatprep.subr.bf16.mxu0 0
        %8990 = vmatpush1.bf16.msra.mxu0 0
        %8991 = vmatprep.subr.bf16.mxu0 0
        %8992 = vmatpush1.bf16.msra.mxu0 0
        %8993 = vmatprep.subr.bf16.mxu0 %v7278
        %8994 = vmatpush1.bf16.msra.mxu0 %v7275
        %8995 = vmatprep.subr.bf16.mxu0 0
        %8996 = vmatpush2.bf16.msra.mxu0 0
        %8997 = vmatprep.subr.bf16.mxu0 0
        %8998 = vmatpush2.bf16.msra.mxu0 0
        %8999 = vmatprep.subr.bf16.mxu0 0
        %9000 = vmatpush2.bf16.msra.mxu0 0
        %9001 = vmatprep.subr.bf16.mxu0 0
        %9002 = vmatpush2.bf16.msra.mxu0 0
        %9003 = vmatprep.subr.bf16.mxu0 0
        %9004 = vmatpush2.bf16.msra.mxu0 0
        %9005 = vmatprep.subr.bf16.mxu0 0
        %9006 = vmatpush2.bf16.msra.mxu0 0
        %9007 = vmatprep.subr.bf16.mxu0 0
        %9008 = vmatpush2.bf16.msra.mxu0 0
        %9009 = vmatprep.subr.bf16.mxu0 0
        %9010 = vmatpush2.bf16.msra.mxu0 0
        %9011 = vmatprep.mubr.bf16.mxu0 0
        %9012 = vmatmul.mubr.bf16.gmra.mxu0 %v8977
        %v9013 = vpop.f32.mrf.mxu0
        %v9014 = vadd.f32 0.0, %v9013
        %v9015 = vpop.f32.mrf.mxu0
        %v9016 = vadd.f32 0.0, %v9015
        %v9017 = vpop.f32.mrf.mxu0
        %v9018 = vpop.f32.mrf.mxu0
        %9019 = vdwg.mxu0
        %v9020 = vpack.c.bf16 %v9014, %v9014
        %v9021 = vpack.c.bf16 %v9016, %v9016
        %s9022 = scalar_lea.vmem %s16, 1536
        %v9023 = vld [vmem:[%s9022] sm:$0xff]
        %v9024 = vld [vmem:[%s9022 + $0x8] sm:$0xff]
        %v9025 = vld [vmem:[%s9022 + $0x10] sm:$0xff]
        %v9026 = vld [vmem:[%s9022 + $0x18] sm:$0xff]
        %v9027 = vld [vmem:[%s9022 + $0x20] sm:$0xff]
        %v9028 = vld [vmem:[%s9022 + $0x28] sm:$0xff]
        %v9029 = vld [vmem:[%s9022 + $0x30] sm:$0xff]
        %v9030 = vld [vmem:[%s9022 + $0x38] sm:$0xff]
        %v9031 = vld [vmem:[%s9022 + $0x40] sm:$0xff]
        %v9032 = vld [vmem:[%s9022 + $0x48] sm:$0xff]
        %v9033 = vld [vmem:[%s9022 + $0x50] sm:$0xff]
        %v9034 = vld [vmem:[%s9022 + $0x58] sm:$0xff]
        %v9035 = vld [vmem:[%s9022 + $0x60] sm:$0xff]
        %v9036 = vld [vmem:[%s9022 + $0x68] sm:$0xff]
        %v9037 = vld [vmem:[%s9022 + $0x70] sm:$0xff]
        %v9038 = vld [vmem:[%s9022 + $0x78] sm:$0xff]
        %v9039 = vld [vmem:[%s9022 + $0x80] sm:$0xff]
        %v9040 = vld [vmem:[%s9022 + $0x88] sm:$0xff]
        %v9041 = vld [vmem:[%s9022 + $0x90] sm:$0xff]
        %v9042 = vld [vmem:[%s9022 + $0x98] sm:$0xff]
        %v9043 = vld [vmem:[%s9022 + $0xa0] sm:$0xff]
        %v9044 = vld [vmem:[%s9022 + $0xa8] sm:$0xff]
        %v9045 = vld [vmem:[%s9022 + $0xb0] sm:$0xff]
        %v9046 = vld [vmem:[%s9022 + $0xb8] sm:$0xff]
        %v9047 = vld [vmem:[%s9022 + $0xc0] sm:$0xff]
        %v9048 = vld [vmem:[%s9022 + $0xc8] sm:$0xff]
        %v9049 = vld [vmem:[%s9022 + $0xd0] sm:$0xff]
        %v9050 = vld [vmem:[%s9022 + $0xd8] sm:$0xff]
        %v9051 = vld [vmem:[%s9022 + $0xe0] sm:$0xff]
        %v9052 = vld [vmem:[%s9022 + $0xe8] sm:$0xff]
        %v9053 = vld [vmem:[%s9022 + $0xf0] sm:$0xff]
        %v9054 = vld [vmem:[%s9022 + $0xf8] sm:$0xff]
        %v9087 = vunpack.c.l.b16 %v9023
        %v9088 = vunpack.c.h.b16 %v9023
        %v9089 = vunpack.c.l.b16 %v9024
        %v9090 = vunpack.c.h.b16 %v9024
        %v9091 = vunpack.c.l.b16 %v9025
        %v9092 = vunpack.c.h.b16 %v9025
        %v9093 = vunpack.c.l.b16 %v9026
        %v9094 = vunpack.c.h.b16 %v9026
        %v9095 = vunpack.c.l.b16 %v9027
        %v9096 = vunpack.c.h.b16 %v9027
        %v9097 = vunpack.c.l.b16 %v9028
        %v9098 = vunpack.c.h.b16 %v9028
        %v9099 = vunpack.c.l.b16 %v9029
        %v9100 = vunpack.c.h.b16 %v9029
        %v9101 = vunpack.c.l.b16 %v9030
        %v9102 = vunpack.c.h.b16 %v9030
        %v9103 = vunpack.c.l.b16 %v9031
        %v9104 = vunpack.c.h.b16 %v9031
        %v9105 = vunpack.c.l.b16 %v9032
        %v9106 = vunpack.c.h.b16 %v9032
        %v9107 = vunpack.c.l.b16 %v9033
        %v9108 = vunpack.c.h.b16 %v9033
        %v9109 = vunpack.c.l.b16 %v9034
        %v9110 = vunpack.c.h.b16 %v9034
        %v9111 = vunpack.c.l.b16 %v9035
        %v9112 = vunpack.c.h.b16 %v9035
        %v9113 = vunpack.c.l.b16 %v9036
        %v9114 = vunpack.c.h.b16 %v9036
        %v9115 = vunpack.c.l.b16 %v9037
        %v9116 = vunpack.c.h.b16 %v9037
        %v9117 = vunpack.c.l.b16 %v9038
        %v9118 = vunpack.c.h.b16 %v9038
        %v9119 = vunpack.c.l.b16 %v9039
        %v9120 = vunpack.c.h.b16 %v9039
        %v9121 = vunpack.c.l.b16 %v9040
        %v9122 = vunpack.c.h.b16 %v9040
        %v9123 = vunpack.c.l.b16 %v9041
        %v9124 = vunpack.c.h.b16 %v9041
        %v9125 = vunpack.c.l.b16 %v9042
        %v9126 = vunpack.c.h.b16 %v9042
        %v9127 = vunpack.c.l.b16 %v9043
        %v9128 = vunpack.c.h.b16 %v9043
        %v9129 = vunpack.c.l.b16 %v9044
        %v9130 = vunpack.c.h.b16 %v9044
        %v9131 = vunpack.c.l.b16 %v9045
        %v9132 = vunpack.c.h.b16 %v9045
        %v9133 = vunpack.c.l.b16 %v9046
        %v9134 = vunpack.c.h.b16 %v9046
        %v9135 = vunpack.c.l.b16 %v9047
        %v9136 = vunpack.c.h.b16 %v9047
        %v9137 = vunpack.c.l.b16 %v9048
        %v9138 = vunpack.c.h.b16 %v9048
        %v9139 = vunpack.c.l.b16 %v9049
        %v9140 = vunpack.c.h.b16 %v9049
        %v9141 = vunpack.c.l.b16 %v9050
        %v9142 = vunpack.c.h.b16 %v9050
        %v9143 = vunpack.c.l.b16 %v9051
        %v9144 = vunpack.c.h.b16 %v9051
        %v9145 = vunpack.c.l.b16 %v9052
        %v9146 = vunpack.c.h.b16 %v9052
        %v9147 = vunpack.c.l.b16 %v9053
        %v9148 = vunpack.c.h.b16 %v9053
        %v9149 = vunpack.c.l.b16 %v9054
        %v9150 = vunpack.c.h.b16 %v9054
        %v9151 = vpack.c.b16 %v9089, %v9087
        %v9152 = vpack.c.b16 %v9090, %v9088
        %v9153 = vpack.c.b16 %v9093, %v9091
        %v9154 = vpack.c.b16 %v9094, %v9092
        %v9155 = vpack.c.b16 %v9097, %v9095
        %v9156 = vpack.c.b16 %v9098, %v9096
        %v9157 = vpack.c.b16 %v9101, %v9099
        %v9158 = vpack.c.b16 %v9102, %v9100
        %v9159 = vpack.c.b16 %v9105, %v9103
        %v9160 = vpack.c.b16 %v9106, %v9104
        %v9161 = vpack.c.b16 %v9109, %v9107
        %v9162 = vpack.c.b16 %v9110, %v9108
        %v9163 = vpack.c.b16 %v9113, %v9111
        %v9164 = vpack.c.b16 %v9114, %v9112
        %v9165 = vpack.c.b16 %v9117, %v9115
        %v9166 = vpack.c.b16 %v9118, %v9116
        %v9167 = vpack.c.b16 %v9121, %v9119
        %v9168 = vpack.c.b16 %v9122, %v9120
        %v9169 = vpack.c.b16 %v9125, %v9123
        %v9170 = vpack.c.b16 %v9126, %v9124
        %v9171 = vpack.c.b16 %v9129, %v9127
        %v9172 = vpack.c.b16 %v9130, %v9128
        %v9173 = vpack.c.b16 %v9133, %v9131
        %v9174 = vpack.c.b16 %v9134, %v9132
        %v9175 = vpack.c.b16 %v9137, %v9135
        %v9176 = vpack.c.b16 %v9138, %v9136
        %v9177 = vpack.c.b16 %v9141, %v9139
        %v9178 = vpack.c.b16 %v9142, %v9140
        %v9179 = vpack.c.b16 %v9145, %v9143
        %v9180 = vpack.c.b16 %v9146, %v9144
        %v9181 = vpack.c.b16 %v9149, %v9147
        %v9182 = vpack.c.b16 %v9150, %v9148
        %9215 = vmatprep.subr.bf16.mxu0 %v9166
        %9216 = vmatpush1.bf16.msra.mxu0 %v9165
        %9217 = vmatprep.subr.bf16.mxu0 %v9164
        %9218 = vmatpush1.bf16.msra.mxu0 %v9163
        %9219 = vmatprep.subr.bf16.mxu0 %v9162
        %9220 = vmatpush1.bf16.msra.mxu0 %v9161
        %9221 = vmatprep.subr.bf16.mxu0 %v9160
        %9222 = vmatpush1.bf16.msra.mxu0 %v9159
        %9223 = vmatprep.subr.bf16.mxu0 %v9158
        %9224 = vmatpush1.bf16.msra.mxu0 %v9157
        %9225 = vmatprep.subr.bf16.mxu0 %v9156
        %9226 = vmatpush1.bf16.msra.mxu0 %v9155
        %9227 = vmatprep.subr.bf16.mxu0 %v9154
        %9228 = vmatpush1.bf16.msra.mxu0 %v9153
        %9229 = vmatprep.subr.bf16.mxu0 %v9152
        %9230 = vmatpush1.bf16.msra.mxu0 %v9151
        %9231 = vmatprep.subr.bf16.mxu0 %v9182
        %9232 = vmatpush2.bf16.msra.mxu0 %v9181
        %9233 = vmatprep.subr.bf16.mxu0 %v9180
        %9234 = vmatpush2.bf16.msra.mxu0 %v9179
        %9235 = vmatprep.subr.bf16.mxu0 %v9178
        %9236 = vmatpush2.bf16.msra.mxu0 %v9177
        %9237 = vmatprep.subr.bf16.mxu0 %v9176
        %9238 = vmatpush2.bf16.msra.mxu0 %v9175
        %9239 = vmatprep.subr.bf16.mxu0 %v9174
        %9240 = vmatpush2.bf16.msra.mxu0 %v9173
        %9241 = vmatprep.subr.bf16.mxu0 %v9172
        %9242 = vmatpush2.bf16.msra.mxu0 %v9171
        %9243 = vmatprep.subr.bf16.mxu0 %v9170
        %9244 = vmatpush2.bf16.msra.mxu0 %v9169
        %9245 = vmatprep.subr.bf16.mxu0 %v9168
        %9246 = vmatpush2.bf16.msra.mxu0 %v9167
        %9247 = vmatprep.mubr.bf16.mxu0 %v9021
        %9248 = vmatmul.mubr.bf16.gmra.mxu0 %v9020
        %v9249 = vpop.f32.mrf.mxu0
        %v9250 = vadd.f32 0.0, %v9249
        %v9251 = vpop.f32.mrf.mxu0
        %v9252 = vadd.f32 0.0, %v9251
        %v9253 = vpop.f32.mrf.mxu0
        %v9254 = vpop.f32.mrf.mxu0
        %9255 = vdwg.mxu0
        %v9256 = vadd.f32 %v8972, %v9250
        %v9257 = vadd.f32 %v8973, %v9252
        %s9258 = scalar_lea.vmem %s15, 14
        %v9259 = vld [vmem:[%s9258] sm:$0x3]
        %v9261 = vsel %vm5768, %v9259, 0
        %9263 = vmatprep.subr.bf16.mxu0 0
        %9264 = vmatpush1.bf16.msra.mxu0 0
        %9265 = vmatprep.subr.bf16.mxu0 0
        %9266 = vmatpush1.bf16.msra.mxu0 0
        %9267 = vmatprep.subr.bf16.mxu0 0
        %9268 = vmatpush1.bf16.msra.mxu0 0
        %9269 = vmatprep.subr.bf16.mxu0 0
        %9270 = vmatpush1.bf16.msra.mxu0 0
        %9271 = vmatprep.subr.bf16.mxu0 0
        %9272 = vmatpush1.bf16.msra.mxu0 0
        %9273 = vmatprep.subr.bf16.mxu0 0
        %9274 = vmatpush1.bf16.msra.mxu0 0
        %9275 = vmatprep.subr.bf16.mxu0 0
        %9276 = vmatpush1.bf16.msra.mxu0 0
        %9277 = vmatprep.subr.bf16.mxu0 %v7278
        %9278 = vmatpush1.bf16.msra.mxu0 %v7275
        %9279 = vmatprep.subr.bf16.mxu0 0
        %9280 = vmatpush2.bf16.msra.mxu0 0
        %9281 = vmatprep.subr.bf16.mxu0 0
        %9282 = vmatpush2.bf16.msra.mxu0 0
        %9283 = vmatprep.subr.bf16.mxu0 0
        %9284 = vmatpush2.bf16.msra.mxu0 0
        %9285 = vmatprep.subr.bf16.mxu0 0
        %9286 = vmatpush2.bf16.msra.mxu0 0
        %9287 = vmatprep.subr.bf16.mxu0 0
        %9288 = vmatpush2.bf16.msra.mxu0 0
        %9289 = vmatprep.subr.bf16.mxu0 0
        %9290 = vmatpush2.bf16.msra.mxu0 0
        %9291 = vmatprep.subr.bf16.mxu0 0
        %9292 = vmatpush2.bf16.msra.mxu0 0
        %9293 = vmatprep.subr.bf16.mxu0 0
        %9294 = vmatpush2.bf16.msra.mxu0 0
        %9295 = vmatprep.mubr.bf16.mxu0 0
        %9296 = vmatmul.mubr.bf16.gmra.mxu0 %v9261
        %v9297 = vpop.f32.mrf.mxu0
        %v9298 = vadd.f32 0.0, %v9297
        %v9299 = vpop.f32.mrf.mxu0
        %v9300 = vadd.f32 0.0, %v9299
        %v9301 = vpop.f32.mrf.mxu0
        %v9302 = vpop.f32.mrf.mxu0
        %9303 = vdwg.mxu0
        %v9304 = vpack.c.bf16 %v9298, %v9298
        %v9305 = vpack.c.bf16 %v9300, %v9300
        %s9306 = scalar_lea.vmem %s16, 1792
        %v9307 = vld [vmem:[%s9306] sm:$0xff]
        %v9308 = vld [vmem:[%s9306 + $0x8] sm:$0xff]
        %v9309 = vld [vmem:[%s9306 + $0x10] sm:$0xff]
        %v9310 = vld [vmem:[%s9306 + $0x18] sm:$0xff]
        %v9311 = vld [vmem:[%s9306 + $0x20] sm:$0xff]
        %v9312 = vld [vmem:[%s9306 + $0x28] sm:$0xff]
        %v9313 = vld [vmem:[%s9306 + $0x30] sm:$0xff]
        %v9314 = vld [vmem:[%s9306 + $0x38] sm:$0xff]
        %v9315 = vld [vmem:[%s9306 + $0x40] sm:$0xff]
        %v9316 = vld [vmem:[%s9306 + $0x48] sm:$0xff]
        %v9317 = vld [vmem:[%s9306 + $0x50] sm:$0xff]
        %v9318 = vld [vmem:[%s9306 + $0x58] sm:$0xff]
        %v9319 = vld [vmem:[%s9306 + $0x60] sm:$0xff]
        %v9320 = vld [vmem:[%s9306 + $0x68] sm:$0xff]
        %v9321 = vld [vmem:[%s9306 + $0x70] sm:$0xff]
        %v9322 = vld [vmem:[%s9306 + $0x78] sm:$0xff]
        %v9323 = vld [vmem:[%s9306 + $0x80] sm:$0xff]
        %v9324 = vld [vmem:[%s9306 + $0x88] sm:$0xff]
        %v9325 = vld [vmem:[%s9306 + $0x90] sm:$0xff]
        %v9326 = vld [vmem:[%s9306 + $0x98] sm:$0xff]
        %v9327 = vld [vmem:[%s9306 + $0xa0] sm:$0xff]
        %v9328 = vld [vmem:[%s9306 + $0xa8] sm:$0xff]
        %v9329 = vld [vmem:[%s9306 + $0xb0] sm:$0xff]
        %v9330 = vld [vmem:[%s9306 + $0xb8] sm:$0xff]
        %v9331 = vld [vmem:[%s9306 + $0xc0] sm:$0xff]
        %v9332 = vld [vmem:[%s9306 + $0xc8] sm:$0xff]
        %v9333 = vld [vmem:[%s9306 + $0xd0] sm:$0xff]
        %v9334 = vld [vmem:[%s9306 + $0xd8] sm:$0xff]
        %v9335 = vld [vmem:[%s9306 + $0xe0] sm:$0xff]
        %v9336 = vld [vmem:[%s9306 + $0xe8] sm:$0xff]
        %v9337 = vld [vmem:[%s9306 + $0xf0] sm:$0xff]
        %v9338 = vld [vmem:[%s9306 + $0xf8] sm:$0xff]
        %v9371 = vunpack.c.l.b16 %v9307
        %v9372 = vunpack.c.h.b16 %v9307
        %v9373 = vunpack.c.l.b16 %v9308
        %v9374 = vunpack.c.h.b16 %v9308
        %v9375 = vunpack.c.l.b16 %v9309
        %v9376 = vunpack.c.h.b16 %v9309
        %v9377 = vunpack.c.l.b16 %v9310
        %v9378 = vunpack.c.h.b16 %v9310
        %v9379 = vunpack.c.l.b16 %v9311
        %v9380 = vunpack.c.h.b16 %v9311
        %v9381 = vunpack.c.l.b16 %v9312
        %v9382 = vunpack.c.h.b16 %v9312
        %v9383 = vunpack.c.l.b16 %v9313
        %v9384 = vunpack.c.h.b16 %v9313
        %v9385 = vunpack.c.l.b16 %v9314
        %v9386 = vunpack.c.h.b16 %v9314
        %v9387 = vunpack.c.l.b16 %v9315
        %v9388 = vunpack.c.h.b16 %v9315
        %v9389 = vunpack.c.l.b16 %v9316
        %v9390 = vunpack.c.h.b16 %v9316
        %v9391 = vunpack.c.l.b16 %v9317
        %v9392 = vunpack.c.h.b16 %v9317
        %v9393 = vunpack.c.l.b16 %v9318
        %v9394 = vunpack.c.h.b16 %v9318
        %v9395 = vunpack.c.l.b16 %v9319
        %v9396 = vunpack.c.h.b16 %v9319
        %v9397 = vunpack.c.l.b16 %v9320
        %v9398 = vunpack.c.h.b16 %v9320
        %v9399 = vunpack.c.l.b16 %v9321
        %v9400 = vunpack.c.h.b16 %v9321
        %v9401 = vunpack.c.l.b16 %v9322
        %v9402 = vunpack.c.h.b16 %v9322
        %v9403 = vunpack.c.l.b16 %v9323
        %v9404 = vunpack.c.h.b16 %v9323
        %v9405 = vunpack.c.l.b16 %v9324
        %v9406 = vunpack.c.h.b16 %v9324
        %v9407 = vunpack.c.l.b16 %v9325
        %v9408 = vunpack.c.h.b16 %v9325
        %v9409 = vunpack.c.l.b16 %v9326
        %v9410 = vunpack.c.h.b16 %v9326
        %v9411 = vunpack.c.l.b16 %v9327
        %v9412 = vunpack.c.h.b16 %v9327
        %v9413 = vunpack.c.l.b16 %v9328
        %v9414 = vunpack.c.h.b16 %v9328
        %v9415 = vunpack.c.l.b16 %v9329
        %v9416 = vunpack.c.h.b16 %v9329
        %v9417 = vunpack.c.l.b16 %v9330
        %v9418 = vunpack.c.h.b16 %v9330
        %v9419 = vunpack.c.l.b16 %v9331
        %v9420 = vunpack.c.h.b16 %v9331
        %v9421 = vunpack.c.l.b16 %v9332
        %v9422 = vunpack.c.h.b16 %v9332
        %v9423 = vunpack.c.l.b16 %v9333
        %v9424 = vunpack.c.h.b16 %v9333
        %v9425 = vunpack.c.l.b16 %v9334
        %v9426 = vunpack.c.h.b16 %v9334
        %v9427 = vunpack.c.l.b16 %v9335
        %v9428 = vunpack.c.h.b16 %v9335
        %v9429 = vunpack.c.l.b16 %v9336
        %v9430 = vunpack.c.h.b16 %v9336
        %v9431 = vunpack.c.l.b16 %v9337
        %v9432 = vunpack.c.h.b16 %v9337
        %v9433 = vunpack.c.l.b16 %v9338
        %v9434 = vunpack.c.h.b16 %v9338
        %v9435 = vpack.c.b16 %v9373, %v9371
        %v9436 = vpack.c.b16 %v9374, %v9372
        %v9437 = vpack.c.b16 %v9377, %v9375
        %v9438 = vpack.c.b16 %v9378, %v9376
        %v9439 = vpack.c.b16 %v9381, %v9379
        %v9440 = vpack.c.b16 %v9382, %v9380
        %v9441 = vpack.c.b16 %v9385, %v9383
        %v9442 = vpack.c.b16 %v9386, %v9384
        %v9443 = vpack.c.b16 %v9389, %v9387
        %v9444 = vpack.c.b16 %v9390, %v9388
        %v9445 = vpack.c.b16 %v9393, %v9391
        %v9446 = vpack.c.b16 %v9394, %v9392
        %v9447 = vpack.c.b16 %v9397, %v9395
        %v9448 = vpack.c.b16 %v9398, %v9396
        %v9449 = vpack.c.b16 %v9401, %v9399
        %v9450 = vpack.c.b16 %v9402, %v9400
        %v9451 = vpack.c.b16 %v9405, %v9403
        %v9452 = vpack.c.b16 %v9406, %v9404
        %v9453 = vpack.c.b16 %v9409, %v9407
        %v9454 = vpack.c.b16 %v9410, %v9408
        %v9455 = vpack.c.b16 %v9413, %v9411
        %v9456 = vpack.c.b16 %v9414, %v9412
        %v9457 = vpack.c.b16 %v9417, %v9415
        %v9458 = vpack.c.b16 %v9418, %v9416
        %v9459 = vpack.c.b16 %v9421, %v9419
        %v9460 = vpack.c.b16 %v9422, %v9420
        %v9461 = vpack.c.b16 %v9425, %v9423
        %v9462 = vpack.c.b16 %v9426, %v9424
        %v9463 = vpack.c.b16 %v9429, %v9427
        %v9464 = vpack.c.b16 %v9430, %v9428
        %v9465 = vpack.c.b16 %v9433, %v9431
        %v9466 = vpack.c.b16 %v9434, %v9432
        %9499 = vmatprep.subr.bf16.mxu0 %v9450
        %9500 = vmatpush1.bf16.msra.mxu0 %v9449
        %9501 = vmatprep.subr.bf16.mxu0 %v9448
        %9502 = vmatpush1.bf16.msra.mxu0 %v9447
        %9503 = vmatprep.subr.bf16.mxu0 %v9446
        %9504 = vmatpush1.bf16.msra.mxu0 %v9445
        %9505 = vmatprep.subr.bf16.mxu0 %v9444
        %9506 = vmatpush1.bf16.msra.mxu0 %v9443
        %9507 = vmatprep.subr.bf16.mxu0 %v9442
        %9508 = vmatpush1.bf16.msra.mxu0 %v9441
        %9509 = vmatprep.subr.bf16.mxu0 %v9440
        %9510 = vmatpush1.bf16.msra.mxu0 %v9439
        %9511 = vmatprep.subr.bf16.mxu0 %v9438
        %9512 = vmatpush1.bf16.msra.mxu0 %v9437
        %9513 = vmatprep.subr.bf16.mxu0 %v9436
        %9514 = vmatpush1.bf16.msra.mxu0 %v9435
        %9515 = vmatprep.subr.bf16.mxu0 %v9466
        %9516 = vmatpush2.bf16.msra.mxu0 %v9465
        %9517 = vmatprep.subr.bf16.mxu0 %v9464
        %9518 = vmatpush2.bf16.msra.mxu0 %v9463
        %9519 = vmatprep.subr.bf16.mxu0 %v9462
        %9520 = vmatpush2.bf16.msra.mxu0 %v9461
        %9521 = vmatprep.subr.bf16.mxu0 %v9460
        %9522 = vmatpush2.bf16.msra.mxu0 %v9459
        %9523 = vmatprep.subr.bf16.mxu0 %v9458
        %9524 = vmatpush2.bf16.msra.mxu0 %v9457
        %9525 = vmatprep.subr.bf16.mxu0 %v9456
        %9526 = vmatpush2.bf16.msra.mxu0 %v9455
        %9527 = vmatprep.subr.bf16.mxu0 %v9454
        %9528 = vmatpush2.bf16.msra.mxu0 %v9453
        %9529 = vmatprep.subr.bf16.mxu0 %v9452
        %9530 = vmatpush2.bf16.msra.mxu0 %v9451
        %9531 = vmatprep.mubr.bf16.mxu0 %v9305
        %9532 = vmatmul.mubr.bf16.gmra.mxu0 %v9304
        %v9533 = vpop.f32.mrf.mxu0
        %v9534 = vadd.f32 0.0, %v9533
        %v9535 = vpop.f32.mrf.mxu0
        %v9536 = vadd.f32 0.0, %v9535
        %v9537 = vpop.f32.mrf.mxu0
        %v9538 = vpop.f32.mrf.mxu0
        %9539 = vdwg.mxu0
        %v9540 = vadd.f32 %v9256, %v9534
        %v9541 = vadd.f32 %v9257, %v9536
        %s9542 = scalar_lea.vmem %s15, 16
        %v9543 = vld [vmem:[%s9542] sm:$0x3]
        %v9545 = vsel %vm5768, %v9543, 0
        %9547 = vmatprep.subr.bf16.mxu0 0
        %9548 = vmatpush1.bf16.msra.mxu0 0
        %9549 = vmatprep.subr.bf16.mxu0 0
        %9550 = vmatpush1.bf16.msra.mxu0 0
        %9551 = vmatprep.subr.bf16.mxu0 0
        %9552 = vmatpush1.bf16.msra.mxu0 0
        %9553 = vmatprep.subr.bf16.mxu0 0
        %9554 = vmatpush1.bf16.msra.mxu0 0
        %9555 = vmatprep.subr.bf16.mxu0 0
        %9556 = vmatpush1.bf16.msra.mxu0 0
        %9557 = vmatprep.subr.bf16.mxu0 0
        %9558 = vmatpush1.bf16.msra.mxu0 0
        %9559 = vmatprep.subr.bf16.mxu0 0
        %9560 = vmatpush1.bf16.msra.mxu0 0
        %9561 = vmatprep.subr.bf16.mxu0 %v7278
        %9562 = vmatpush1.bf16.msra.mxu0 %v7275
        %9563 = vmatprep.subr.bf16.mxu0 0
        %9564 = vmatpush2.bf16.msra.mxu0 0
        %9565 = vmatprep.subr.bf16.mxu0 0
        %9566 = vmatpush2.bf16.msra.mxu0 0
        %9567 = vmatprep.subr.bf16.mxu0 0
        %9568 = vmatpush2.bf16.msra.mxu0 0
        %9569 = vmatprep.subr.bf16.mxu0 0
        %9570 = vmatpush2.bf16.msra.mxu0 0
        %9571 = vmatprep.subr.bf16.mxu0 0
        %9572 = vmatpush2.bf16.msra.mxu0 0
        %9573 = vmatprep.subr.bf16.mxu0 0
        %9574 = vmatpush2.bf16.msra.mxu0 0
        %9575 = vmatprep.subr.bf16.mxu0 0
        %9576 = vmatpush2.bf16.msra.mxu0 0
        %9577 = vmatprep.subr.bf16.mxu0 0
        %9578 = vmatpush2.bf16.msra.mxu0 0
        %9579 = vmatprep.mubr.bf16.mxu0 0
        %9580 = vmatmul.mubr.bf16.gmra.mxu0 %v9545
        %v9581 = vpop.f32.mrf.mxu0
        %v9582 = vadd.f32 0.0, %v9581
        %v9583 = vpop.f32.mrf.mxu0
        %v9584 = vadd.f32 0.0, %v9583
        %v9585 = vpop.f32.mrf.mxu0
        %v9586 = vpop.f32.mrf.mxu0
        %9587 = vdwg.mxu0
        %v9588 = vpack.c.bf16 %v9582, %v9582
        %v9589 = vpack.c.bf16 %v9584, %v9584
        %s9590 = scalar_lea.vmem %s16, 2048
        %v9591 = vld [vmem:[%s9590] sm:$0xff]
        %v9592 = vld [vmem:[%s9590 + $0x8] sm:$0xff]
        %v9593 = vld [vmem:[%s9590 + $0x10] sm:$0xff]
        %v9594 = vld [vmem:[%s9590 + $0x18] sm:$0xff]
        %v9595 = vld [vmem:[%s9590 + $0x20] sm:$0xff]
        %v9596 = vld [vmem:[%s9590 + $0x28] sm:$0xff]
        %v9597 = vld [vmem:[%s9590 + $0x30] sm:$0xff]
        %v9598 = vld [vmem:[%s9590 + $0x38] sm:$0xff]
        %v9599 = vld [vmem:[%s9590 + $0x40] sm:$0xff]
        %v9600 = vld [vmem:[%s9590 + $0x48] sm:$0xff]
        %v9601 = vld [vmem:[%s9590 + $0x50] sm:$0xff]
        %v9602 = vld [vmem:[%s9590 + $0x58] sm:$0xff]
        %v9603 = vld [vmem:[%s9590 + $0x60] sm:$0xff]
        %v9604 = vld [vmem:[%s9590 + $0x68] sm:$0xff]
        %v9605 = vld [vmem:[%s9590 + $0x70] sm:$0xff]
        %v9606 = vld [vmem:[%s9590 + $0x78] sm:$0xff]
        %v9607 = vld [vmem:[%s9590 + $0x80] sm:$0xff]
        %v9608 = vld [vmem:[%s9590 + $0x88] sm:$0xff]
        %v9609 = vld [vmem:[%s9590 + $0x90] sm:$0xff]
        %v9610 = vld [vmem:[%s9590 + $0x98] sm:$0xff]
        %v9611 = vld [vmem:[%s9590 + $0xa0] sm:$0xff]
        %v9612 = vld [vmem:[%s9590 + $0xa8] sm:$0xff]
        %v9613 = vld [vmem:[%s9590 + $0xb0] sm:$0xff]
        %v9614 = vld [vmem:[%s9590 + $0xb8] sm:$0xff]
        %v9615 = vld [vmem:[%s9590 + $0xc0] sm:$0xff]
        %v9616 = vld [vmem:[%s9590 + $0xc8] sm:$0xff]
        %v9617 = vld [vmem:[%s9590 + $0xd0] sm:$0xff]
        %v9618 = vld [vmem:[%s9590 + $0xd8] sm:$0xff]
        %v9619 = vld [vmem:[%s9590 + $0xe0] sm:$0xff]
        %v9620 = vld [vmem:[%s9590 + $0xe8] sm:$0xff]
        %v9621 = vld [vmem:[%s9590 + $0xf0] sm:$0xff]
        %v9622 = vld [vmem:[%s9590 + $0xf8] sm:$0xff]
        %v9655 = vunpack.c.l.b16 %v9591
        %v9656 = vunpack.c.h.b16 %v9591
        %v9657 = vunpack.c.l.b16 %v9592
        %v9658 = vunpack.c.h.b16 %v9592
        %v9659 = vunpack.c.l.b16 %v9593
        %v9660 = vunpack.c.h.b16 %v9593
        %v9661 = vunpack.c.l.b16 %v9594
        %v9662 = vunpack.c.h.b16 %v9594
        %v9663 = vunpack.c.l.b16 %v9595
        %v9664 = vunpack.c.h.b16 %v9595
        %v9665 = vunpack.c.l.b16 %v9596
        %v9666 = vunpack.c.h.b16 %v9596
        %v9667 = vunpack.c.l.b16 %v9597
        %v9668 = vunpack.c.h.b16 %v9597
        %v9669 = vunpack.c.l.b16 %v9598
        %v9670 = vunpack.c.h.b16 %v9598
        %v9671 = vunpack.c.l.b16 %v9599
        %v9672 = vunpack.c.h.b16 %v9599
        %v9673 = vunpack.c.l.b16 %v9600
        %v9674 = vunpack.c.h.b16 %v9600
        %v9675 = vunpack.c.l.b16 %v9601
        %v9676 = vunpack.c.h.b16 %v9601
        %v9677 = vunpack.c.l.b16 %v9602
        %v9678 = vunpack.c.h.b16 %v9602
        %v9679 = vunpack.c.l.b16 %v9603
        %v9680 = vunpack.c.h.b16 %v9603
        %v9681 = vunpack.c.l.b16 %v9604
        %v9682 = vunpack.c.h.b16 %v9604
        %v9683 = vunpack.c.l.b16 %v9605
        %v9684 = vunpack.c.h.b16 %v9605
        %v9685 = vunpack.c.l.b16 %v9606
        %v9686 = vunpack.c.h.b16 %v9606
        %v9687 = vunpack.c.l.b16 %v9607
        %v9688 = vunpack.c.h.b16 %v9607
        %v9689 = vunpack.c.l.b16 %v9608
        %v9690 = vunpack.c.h.b16 %v9608
        %v9691 = vunpack.c.l.b16 %v9609
        %v9692 = vunpack.c.h.b16 %v9609
        %v9693 = vunpack.c.l.b16 %v9610
        %v9694 = vunpack.c.h.b16 %v9610
        %v9695 = vunpack.c.l.b16 %v9611
        %v9696 = vunpack.c.h.b16 %v9611
        %v9697 = vunpack.c.l.b16 %v9612
        %v9698 = vunpack.c.h.b16 %v9612
        %v9699 = vunpack.c.l.b16 %v9613
        %v9700 = vunpack.c.h.b16 %v9613
        %v9701 = vunpack.c.l.b16 %v9614
        %v9702 = vunpack.c.h.b16 %v9614
        %v9703 = vunpack.c.l.b16 %v9615
        %v9704 = vunpack.c.h.b16 %v9615
        %v9705 = vunpack.c.l.b16 %v9616
        %v9706 = vunpack.c.h.b16 %v9616
        %v9707 = vunpack.c.l.b16 %v9617
        %v9708 = vunpack.c.h.b16 %v9617
        %v9709 = vunpack.c.l.b16 %v9618
        %v9710 = vunpack.c.h.b16 %v9618
        %v9711 = vunpack.c.l.b16 %v9619
        %v9712 = vunpack.c.h.b16 %v9619
        %v9713 = vunpack.c.l.b16 %v9620
        %v9714 = vunpack.c.h.b16 %v9620
        %v9715 = vunpack.c.l.b16 %v9621
        %v9716 = vunpack.c.h.b16 %v9621
        %v9717 = vunpack.c.l.b16 %v9622
        %v9718 = vunpack.c.h.b16 %v9622
        %v9719 = vpack.c.b16 %v9657, %v9655
        %v9720 = vpack.c.b16 %v9658, %v9656
        %v9721 = vpack.c.b16 %v9661, %v9659
        %v9722 = vpack.c.b16 %v9662, %v9660
        %v9723 = vpack.c.b16 %v9665, %v9663
        %v9724 = vpack.c.b16 %v9666, %v9664
        %v9725 = vpack.c.b16 %v9669, %v9667
        %v9726 = vpack.c.b16 %v9670, %v9668
        %v9727 = vpack.c.b16 %v9673, %v9671
        %v9728 = vpack.c.b16 %v9674, %v9672
        %v9729 = vpack.c.b16 %v9677, %v9675
        %v9730 = vpack.c.b16 %v9678, %v9676
        %v9731 = vpack.c.b16 %v9681, %v9679
        %v9732 = vpack.c.b16 %v9682, %v9680
        %v9733 = vpack.c.b16 %v9685, %v9683
        %v9734 = vpack.c.b16 %v9686, %v9684
        %v9735 = vpack.c.b16 %v9689, %v9687
        %v9736 = vpack.c.b16 %v9690, %v9688
        %v9737 = vpack.c.b16 %v9693, %v9691
        %v9738 = vpack.c.b16 %v9694, %v9692
        %v9739 = vpack.c.b16 %v9697, %v9695
        %v9740 = vpack.c.b16 %v9698, %v9696
        %v9741 = vpack.c.b16 %v9701, %v9699
        %v9742 = vpack.c.b16 %v9702, %v9700
        %v9743 = vpack.c.b16 %v9705, %v9703
        %v9744 = vpack.c.b16 %v9706, %v9704
        %v9745 = vpack.c.b16 %v9709, %v9707
        %v9746 = vpack.c.b16 %v9710, %v9708
        %v9747 = vpack.c.b16 %v9713, %v9711
        %v9748 = vpack.c.b16 %v9714, %v9712
        %v9749 = vpack.c.b16 %v9717, %v9715
        %v9750 = vpack.c.b16 %v9718, %v9716
        %9783 = vmatprep.subr.bf16.mxu0 %v9734
        %9784 = vmatpush1.bf16.msra.mxu0 %v9733
        %9785 = vmatprep.subr.bf16.mxu0 %v9732
        %9786 = vmatpush1.bf16.msra.mxu0 %v9731
        %9787 = vmatprep.subr.bf16.mxu0 %v9730
        %9788 = vmatpush1.bf16.msra.mxu0 %v9729
        %9789 = vmatprep.subr.bf16.mxu0 %v9728
        %9790 = vmatpush1.bf16.msra.mxu0 %v9727
        %9791 = vmatprep.subr.bf16.mxu0 %v9726
        %9792 = vmatpush1.bf16.msra.mxu0 %v9725
        %9793 = vmatprep.subr.bf16.mxu0 %v9724
        %9794 = vmatpush1.bf16.msra.mxu0 %v9723
        %9795 = vmatprep.subr.bf16.mxu0 %v9722
        %9796 = vmatpush1.bf16.msra.mxu0 %v9721
        %9797 = vmatprep.subr.bf16.mxu0 %v9720
        %9798 = vmatpush1.bf16.msra.mxu0 %v9719
        %9799 = vmatprep.subr.bf16.mxu0 %v9750
        %9800 = vmatpush2.bf16.msra.mxu0 %v9749
        %9801 = vmatprep.subr.bf16.mxu0 %v9748
        %9802 = vmatpush2.bf16.msra.mxu0 %v9747
        %9803 = vmatprep.subr.bf16.mxu0 %v9746
        %9804 = vmatpush2.bf16.msra.mxu0 %v9745
        %9805 = vmatprep.subr.bf16.mxu0 %v9744
        %9806 = vmatpush2.bf16.msra.mxu0 %v9743
        %9807 = vmatprep.subr.bf16.mxu0 %v9742
        %9808 = vmatpush2.bf16.msra.mxu0 %v9741
        %9809 = vmatprep.subr.bf16.mxu0 %v9740
        %9810 = vmatpush2.bf16.msra.mxu0 %v9739
        %9811 = vmatprep.subr.bf16.mxu0 %v9738
        %9812 = vmatpush2.bf16.msra.mxu0 %v9737
        %9813 = vmatprep.subr.bf16.mxu0 %v9736
        %9814 = vmatpush2.bf16.msra.mxu0 %v9735
        %9815 = vmatprep.mubr.bf16.mxu0 %v9589
        %9816 = vmatmul.mubr.bf16.gmra.mxu0 %v9588
        %v9817 = vpop.f32.mrf.mxu0
        %v9818 = vadd.f32 0.0, %v9817
        %v9819 = vpop.f32.mrf.mxu0
        %v9820 = vadd.f32 0.0, %v9819
        %v9821 = vpop.f32.mrf.mxu0
        %v9822 = vpop.f32.mrf.mxu0
        %9823 = vdwg.mxu0
        %v9824 = vadd.f32 %v9540, %v9818
        %v9825 = vadd.f32 %v9541, %v9820
        %v9826 = vld [vmem:[%s17] sm:$0x3]
        %v9828 = vlaneseq
        %v9829 = vshrl.u32 %v9828, 7
        %v9830 = vsub.s32 0, %v9829
        %v9831 = vrot.slane %v9826, %v9830
        %v9832 = vlaneseq
        %v9833 = vshrl.u32 %v9832, 7
        %v9834 = vsub.s32 1, %v9833
        %v9835 = vrot.slane %v9826, %v9834
        %v9838 = vadd.f32 %v9824, %v9831
        %v9839 = vadd.f32 %v9825, %v9835
        %v9840 = vmax.f32 %v9838, 0.0
        %v9841 = vmax.f32 %v9839, 0.0
        %v9842 = vpack.c.bf16 %v9840, %v9840
        %v9843 = vpack.c.bf16 %v9841, %v9841
        %v9844 = vld [vmem:[#allocation18] sm:$0xff]
        %v9845 = vld [vmem:[#allocation18 + $0x8] sm:$0xff]
        %v9846 = vld [vmem:[#allocation18 + $0x10] sm:$0x77]
        %v9847 = vld [vmem:[%s19] sm:$0xff]
        %v9848 = vld [vmem:[%s19 + $0x8] sm:$0xff]
        %v9849 = vld [vmem:[%s19 + $0x10] sm:$0x1f]
        %9851 = vset.pattern.permute.xlu0 0
        %9852 = vperm.xlu0 %9851, %v9847
        %v9853 = vpop.permute.xlu0 %9852
        %9856 = vset.pattern.permute.xlu0 0
        %9857 = vperm.xlu0 %9856, %v9848
        %v9858 = vpop.permute.xlu0 %9857
        %9861 = vset.pattern.permute.xlu0 0
        %9862 = vperm.xlu0 %9861, %v9849
        %v9863 = vpop.permute.xlu0 %9862
        %v9868 = vunpack.c.l.b16 %v9844
        %v9869 = vunpack.c.h.b16 %v9844
        %v9870 = vunpack.c.l.b16 %v9845
        %v9871 = vunpack.c.h.b16 %v9845
        %v9872 = vunpack.c.l.b16 %v9846
        %v9873 = vunpack.c.h.b16 %v9846
        %v9874 = vpack.c.b16 %v9870, %v9868
        %v9875 = vpack.c.b16 %v9871, %v9869
        %v9876 = vpack.c.b16 %v9872, %v9872
        %v9877 = vpack.c.b16 %v9873, %v9873
        %9882 = vmatprep.subr.bf16.mxu0 0
        %9883 = vmatpush1.bf16.xpose.msra.mxu0 0
        %9884 = vmatprep.subr.bf16.mxu0 0
        %9885 = vmatpush1.bf16.xpose.msra.mxu0 0
        %9886 = vmatprep.subr.bf16.mxu0 0
        %9887 = vmatpush1.bf16.xpose.msra.mxu0 0
        %9888 = vmatprep.subr.bf16.mxu0 0
        %9889 = vmatpush1.bf16.xpose.msra.mxu0 0
        %9890 = vmatprep.subr.bf16.mxu0 0
        %9891 = vmatpush1.bf16.xpose.msra.mxu0 0
        %9892 = vmatprep.subr.bf16.mxu0 0
        %9893 = vmatpush1.bf16.xpose.msra.mxu0 0
        %9894 = vmatprep.subr.bf16.mxu0 0
        %9895 = vmatpush1.bf16.xpose.msra.mxu0 0
        %9896 = vmatprep.subr.bf16.mxu0 %v9843
        %9897 = vmatpush1.bf16.xpose.msra.mxu0 %v9842
        %9898 = vmatprep.subr.bf16.mxu0 0
        %9899 = vmatpush2.bf16.xpose.msra.mxu0 0
        %9900 = vmatprep.subr.bf16.mxu0 0
        %9901 = vmatpush2.bf16.xpose.msra.mxu0 0
        %9902 = vmatprep.subr.bf16.mxu0 0
        %9903 = vmatpush2.bf16.xpose.msra.mxu0 0
        %9904 = vmatprep.subr.bf16.mxu0 0
        %9905 = vmatpush2.bf16.xpose.msra.mxu0 0
        %9906 = vmatprep.subr.bf16.mxu0 0
        %9907 = vmatpush2.bf16.xpose.msra.mxu0 0
        %9908 = vmatprep.subr.bf16.mxu0 0
        %9909 = vmatpush2.bf16.xpose.msra.mxu0 0
        %9910 = vmatprep.subr.bf16.mxu0 0
        %9911 = vmatpush2.bf16.xpose.msra.mxu0 0
        %9912 = vmatprep.subr.bf16.mxu0 0
        %9913 = vmatpush2.bf16.xpose.msra.mxu0 0
        %9914 = vmatprep.mubr.bf16.mxu0 %v9875
        %9915 = vmatmul.mubr.bf16.gmra.mxu0 %v9874
        %v9916 = vpop.f32.mrf.mxu0
        %v9917 = vadd.f32 %v9853, %v9916
        %v9918 = vpop.f32.mrf.mxu0
        %v9919 = vpop.f32.mrf.mxu0
        %v9920 = vadd.f32 %v9858, %v9919
        %v9921 = vpop.f32.mrf.mxu0
        %9922 = vmatprep.mubr.bf16.mxu0 %v9877
        %9923 = vmatmul.mubr.bf16.gmra.mxu0 %v9876
        %v9924 = vpop.f32.mrf.mxu0
        %v9925 = vadd.f32 %v9863, %v9924
        %v9926 = vpop.f32.mrf.mxu0
        %v9927 = vpop.f32.mrf.mxu0
        %v9928 = vpop.f32.mrf.mxu0
        %9929 = vdwg.mxu0
        %v9930 = vpack.c.bf16 %v9920, %v9917
        %v9931 = vpack.c.bf16 %v9925, %v9925
        %v9932 = vld [vmem:[#allocation19] sm:$0xff]
        %v9933 = vld [vmem:[#allocation19 + $0x8] sm:$0xff]
        %v9936 = vcombine.high %v9932, %v9932
        %v9938 = vunpack.c.l.s4 1983009808
        %v9939 = vunpack.c.0.s8 %v9938
        %v9940 = vlaneseq
        %v9941 = vshrl.u32 %v9940, 7
        %v9942 = vsub.s32 %v9939, %v9941
        %v9943 = vrot.slane %v9932, %v9942
        %v9945 = vunpack.c.l.s4 1983009808
        %v9946 = vunpack.c.0.s8 %v9945
        %v9947 = vlaneseq
        %v9948 = vshrl.u32 %v9947, 7
        %v9949 = vsub.s32 %v9946, %v9948
        %v9950 = vrot.slane %v9936, %v9949
        %v9951 = vcombine.high %v9943, %v9943
        %v9952 = vcombine.high %v9950, %v9950
        %v9953 = vcombine.high %v9933, %v9933
        %v9955 = vunpack.c.l.s4 1983009808
        %v9956 = vunpack.c.0.s8 %v9955
        %v9957 = vlaneseq
        %v9958 = vshrl.u32 %v9957, 7
        %v9959 = vsub.s32 %v9956, %v9958
        %v9960 = vrot.slane %v9933, %v9959
        %v9962 = vunpack.c.l.s4 1983009808
        %v9963 = vunpack.c.0.s8 %v9962
        %v9964 = vlaneseq
        %v9965 = vshrl.u32 %v9964, 7
        %v9966 = vsub.s32 %v9963, %v9965
        %v9967 = vrot.slane %v9953, %v9966
        %v9968 = vcombine.high %v9960, %v9960
        %v9969 = vcombine.high %v9967, %v9967
        %v9971 = vsel %vm5768, %v9930, 0
        %v9974 = vsel %vm5768, %v9931, 0
        %v9977 = vsel %vm5772, %v9943, 0
        %v9980 = vsel %vm5772, %v9951, 0
        %v9983 = vsel %vm5772, %v9950, 0
        %v9986 = vsel %vm5772, %v9952, 0
        %v9989 = vsel %vm5772, %v9960, 0
        %v9992 = vsel %vm5772, %v9968, 0
        %v9995 = vsel %vm5772, %v9967, 0
        %v9998 = vsel %vm5772, %v9969, 0
        %10000 = vmatprep.subr.bf16.mxu0 0
        %10001 = vmatpush1.bf16.msra.mxu0 0
        %10002 = vmatprep.subr.bf16.mxu0 0
        %10003 = vmatpush1.bf16.msra.mxu0 0
        %10004 = vmatprep.subr.bf16.mxu0 0
        %10005 = vmatpush1.bf16.msra.mxu0 0
        %10006 = vmatprep.subr.bf16.mxu0 0
        %10007 = vmatpush1.bf16.msra.mxu0 0
        %10008 = vmatprep.subr.bf16.mxu0 0
        %10009 = vmatpush1.bf16.msra.mxu0 0
        %10010 = vmatprep.subr.bf16.mxu0 0
        %10011 = vmatpush1.bf16.msra.mxu0 0
        %10012 = vmatprep.subr.bf16.mxu0 0
        %10013 = vmatpush1.bf16.msra.mxu0 0
        %10014 = vmatprep.subr.bf16.mxu0 %v9980
        %10015 = vmatpush1.bf16.msra.mxu0 %v9977
        %10016 = vmatprep.subr.bf16.mxu0 0
        %10017 = vmatpush2.bf16.msra.mxu0 0
        %10018 = vmatprep.subr.bf16.mxu0 0
        %10019 = vmatpush2.bf16.msra.mxu0 0
        %10020 = vmatprep.subr.bf16.mxu0 0
        %10021 = vmatpush2.bf16.msra.mxu0 0
        %10022 = vmatprep.subr.bf16.mxu0 0
        %10023 = vmatpush2.bf16.msra.mxu0 0
        %10024 = vmatprep.subr.bf16.mxu0 0
        %10025 = vmatpush2.bf16.msra.mxu0 0
        %10026 = vmatprep.subr.bf16.mxu0 0
        %10027 = vmatpush2.bf16.msra.mxu0 0
        %10028 = vmatprep.subr.bf16.mxu0 0
        %10029 = vmatpush2.bf16.msra.mxu0 0
        %10030 = vmatprep.subr.bf16.mxu0 0
        %10031 = vmatpush2.bf16.msra.mxu0 0
        %10032 = vmatprep.mubr.bf16.mxu0 0
        %10033 = vmatmul.mubr.bf16.gmra.mxu0 %v9971
        %v10034 = vpop.f32.mrf.mxu0
        %v10035 = vadd.f32 0.0, %v10034
        %v10036 = vpop.f32.mrf.mxu0
        %v10037 = vadd.f32 0.0, %v10036
        %v10038 = vpop.f32.mrf.mxu0
        %v10039 = vadd.f32 0.0, %v10038
        %v10040 = vpop.f32.mrf.mxu0
        %v10041 = vadd.f32 0.0, %v10040
        %10042 = vmatprep.mubr.bf16.mxu0 0
        %10043 = vmatmul.mubr.bf16.gmra.mxu0 %v9974
        %v10044 = vpop.f32.mrf.mxu0
        %v10045 = vadd.f32 0.0, %v10044
        %v10046 = vpop.f32.mrf.mxu0
        %v10047 = vadd.f32 0.0, %v10046
        %v10048 = vpop.f32.mrf.mxu0
        %v10049 = vpop.f32.mrf.mxu0
        %10050 = vdwg.mxu0
        %10051 = vmatprep.subr.bf16.mxu0 0
        %10052 = vmatpush1.bf16.msra.mxu0 0
        %10053 = vmatprep.subr.bf16.mxu0 0
        %10054 = vmatpush1.bf16.msra.mxu0 0
        %10055 = vmatprep.subr.bf16.mxu0 0
        %10056 = vmatpush1.bf16.msra.mxu0 0
        %10057 = vmatprep.subr.bf16.mxu0 0
        %10058 = vmatpush1.bf16.msra.mxu0 0
        %10059 = vmatprep.subr.bf16.mxu0 0
        %10060 = vmatpush1.bf16.msra.mxu0 0
        %10061 = vmatprep.subr.bf16.mxu0 0
        %10062 = vmatpush1.bf16.msra.mxu0 0
        %10063 = vmatprep.subr.bf16.mxu0 0
        %10064 = vmatpush1.bf16.msra.mxu0 0
        %10065 = vmatprep.subr.bf16.mxu0 %v9986
        %10066 = vmatpush1.bf16.msra.mxu0 %v9983
        %10067 = vmatprep.subr.bf16.mxu0 0
        %10068 = vmatpush2.bf16.msra.mxu0 0
        %10069 = vmatprep.subr.bf16.mxu0 0
        %10070 = vmatpush2.bf16.msra.mxu0 0
        %10071 = vmatprep.subr.bf16.mxu0 0
        %10072 = vmatpush2.bf16.msra.mxu0 0
        %10073 = vmatprep.subr.bf16.mxu0 0
        %10074 = vmatpush2.bf16.msra.mxu0 0
        %10075 = vmatprep.subr.bf16.mxu0 0
        %10076 = vmatpush2.bf16.msra.mxu0 0
        %10077 = vmatprep.subr.bf16.mxu0 0
        %10078 = vmatpush2.bf16.msra.mxu0 0
        %10079 = vmatprep.subr.bf16.mxu0 0
        %10080 = vmatpush2.bf16.msra.mxu0 0
        %10081 = vmatprep.subr.bf16.mxu0 0
        %10082 = vmatpush2.bf16.msra.mxu0 0
        %10083 = vmatprep.mubr.bf16.mxu0 0
        %10084 = vmatmul.mubr.bf16.gmra.mxu0 %v9971
        %v10085 = vpop.f32.mrf.mxu0
        %v10086 = vadd.f32 0.0, %v10085
        %v10087 = vpop.f32.mrf.mxu0
        %v10088 = vadd.f32 0.0, %v10087
        %v10089 = vpop.f32.mrf.mxu0
        %v10090 = vadd.f32 0.0, %v10089
        %v10091 = vpop.f32.mrf.mxu0
        %v10092 = vadd.f32 0.0, %v10091
        %10093 = vmatprep.mubr.bf16.mxu0 0
        %10094 = vmatmul.mubr.bf16.gmra.mxu0 %v9974
        %v10095 = vpop.f32.mrf.mxu0
        %v10096 = vadd.f32 0.0, %v10095
        %v10097 = vpop.f32.mrf.mxu0
        %v10098 = vadd.f32 0.0, %v10097
        %v10099 = vpop.f32.mrf.mxu0
        %v10100 = vpop.f32.mrf.mxu0
        %10101 = vdwg.mxu0
        %10102 = vmatprep.subr.bf16.mxu0 0
        %10103 = vmatpush1.bf16.msra.mxu0 0
        %10104 = vmatprep.subr.bf16.mxu0 0
        %10105 = vmatpush1.bf16.msra.mxu0 0
        %10106 = vmatprep.subr.bf16.mxu0 0
        %10107 = vmatpush1.bf16.msra.mxu0 0
        %10108 = vmatprep.subr.bf16.mxu0 0
        %10109 = vmatpush1.bf16.msra.mxu0 0
        %10110 = vmatprep.subr.bf16.mxu0 0
        %10111 = vmatpush1.bf16.msra.mxu0 0
        %10112 = vmatprep.subr.bf16.mxu0 0
        %10113 = vmatpush1.bf16.msra.mxu0 0
        %10114 = vmatprep.subr.bf16.mxu0 0
        %10115 = vmatpush1.bf16.msra.mxu0 0
        %10116 = vmatprep.subr.bf16.mxu0 %v9992
        %10117 = vmatpush1.bf16.msra.mxu0 %v9989
        %10118 = vmatprep.subr.bf16.mxu0 0
        %10119 = vmatpush2.bf16.msra.mxu0 0
        %10120 = vmatprep.subr.bf16.mxu0 0
        %10121 = vmatpush2.bf16.msra.mxu0 0
        %10122 = vmatprep.subr.bf16.mxu0 0
        %10123 = vmatpush2.bf16.msra.mxu0 0
        %10124 = vmatprep.subr.bf16.mxu0 0
        %10125 = vmatpush2.bf16.msra.mxu0 0
        %10126 = vmatprep.subr.bf16.mxu0 0
        %10127 = vmatpush2.bf16.msra.mxu0 0
        %10128 = vmatprep.subr.bf16.mxu0 0
        %10129 = vmatpush2.bf16.msra.mxu0 0
        %10130 = vmatprep.subr.bf16.mxu0 0
        %10131 = vmatpush2.bf16.msra.mxu0 0
        %10132 = vmatprep.subr.bf16.mxu0 0
        %10133 = vmatpush2.bf16.msra.mxu0 0
        %10134 = vmatprep.mubr.bf16.mxu0 0
        %10135 = vmatmul.mubr.bf16.gmra.mxu0 %v9971
        %v10136 = vpop.f32.mrf.mxu0
        %v10137 = vadd.f32 0.0, %v10136
        %v10138 = vpop.f32.mrf.mxu0
        %v10139 = vadd.f32 0.0, %v10138
        %v10140 = vpop.f32.mrf.mxu0
        %v10141 = vadd.f32 0.0, %v10140
        %v10142 = vpop.f32.mrf.mxu0
        %v10143 = vadd.f32 0.0, %v10142
        %10144 = vmatprep.mubr.bf16.mxu0 0
        %10145 = vmatmul.mubr.bf16.gmra.mxu0 %v9974
        %v10146 = vpop.f32.mrf.mxu0
        %v10147 = vadd.f32 0.0, %v10146
        %v10148 = vpop.f32.mrf.mxu0
        %v10149 = vadd.f32 0.0, %v10148
        %v10150 = vpop.f32.mrf.mxu0
        %v10151 = vpop.f32.mrf.mxu0
        %10152 = vdwg.mxu0
        %10153 = vmatprep.subr.bf16.mxu0 0
        %10154 = vmatpush1.bf16.msra.mxu0 0
        %10155 = vmatprep.subr.bf16.mxu0 0
        %10156 = vmatpush1.bf16.msra.mxu0 0
        %10157 = vmatprep.subr.bf16.mxu0 0
        %10158 = vmatpush1.bf16.msra.mxu0 0
        %10159 = vmatprep.subr.bf16.mxu0 0
        %10160 = vmatpush1.bf16.msra.mxu0 0
        %10161 = vmatprep.subr.bf16.mxu0 0
        %10162 = vmatpush1.bf16.msra.mxu0 0
        %10163 = vmatprep.subr.bf16.mxu0 0
        %10164 = vmatpush1.bf16.msra.mxu0 0
        %10165 = vmatprep.subr.bf16.mxu0 0
        %10166 = vmatpush1.bf16.msra.mxu0 0
        %10167 = vmatprep.subr.bf16.mxu0 %v9998
        %10168 = vmatpush1.bf16.msra.mxu0 %v9995
        %10169 = vmatprep.subr.bf16.mxu0 0
        %10170 = vmatpush2.bf16.msra.mxu0 0
        %10171 = vmatprep.subr.bf16.mxu0 0
        %10172 = vmatpush2.bf16.msra.mxu0 0
        %10173 = vmatprep.subr.bf16.mxu0 0
        %10174 = vmatpush2.bf16.msra.mxu0 0
        %10175 = vmatprep.subr.bf16.mxu0 0
        %10176 = vmatpush2.bf16.msra.mxu0 0
        %10177 = vmatprep.subr.bf16.mxu0 0
        %10178 = vmatpush2.bf16.msra.mxu0 0
        %10179 = vmatprep.subr.bf16.mxu0 0
        %10180 = vmatpush2.bf16.msra.mxu0 0
        %10181 = vmatprep.subr.bf16.mxu0 0
        %10182 = vmatpush2.bf16.msra.mxu0 0
        %10183 = vmatprep.subr.bf16.mxu0 0
        %10184 = vmatpush2.bf16.msra.mxu0 0
        %10185 = vmatprep.mubr.bf16.mxu0 0
        %10186 = vmatmul.mubr.bf16.gmra.mxu0 %v9971
        %v10187 = vpop.f32.mrf.mxu0
        %v10188 = vadd.f32 0.0, %v10187
        %v10189 = vpop.f32.mrf.mxu0
        %v10190 = vadd.f32 0.0, %v10189
        %v10191 = vpop.f32.mrf.mxu0
        %v10192 = vadd.f32 0.0, %v10191
        %v10193 = vpop.f32.mrf.mxu0
        %v10194 = vadd.f32 0.0, %v10193
        %10195 = vmatprep.mubr.bf16.mxu0 0
        %10196 = vmatmul.mubr.bf16.gmra.mxu0 %v9974
        %v10197 = vpop.f32.mrf.mxu0
        %v10198 = vadd.f32 0.0, %v10197
        %v10199 = vpop.f32.mrf.mxu0
        %v10200 = vadd.f32 0.0, %v10199
        %v10201 = vpop.f32.mrf.mxu0
        %v10202 = vpop.f32.mrf.mxu0
        %10203 = vdwg.mxu0
        %10204 = vst [vmem:[%s825] sm:$0xff] %v10035
        %10205 = vst [vmem:[%s825 + $0x8] sm:$0xff] %v10037
        %10206 = vst [vmem:[%s825 + $0x10] sm:$0xff] %v10086
        %10207 = vst [vmem:[%s825 + $0x18] sm:$0xff] %v10088
        %10208 = vst [vmem:[%s825 + $0x20] sm:$0xff] %v10137
        %10209 = vst [vmem:[%s825 + $0x28] sm:$0xff] %v10139
        %10210 = vst [vmem:[%s825 + $0x30] sm:$0xff] %v10188
        %10211 = vst [vmem:[%s825 + $0x38] sm:$0xff] %v10190
        %10212 = vst [vmem:[%s825 + $0x40] sm:$0xff] %v10039
        %10213 = vst [vmem:[%s825 + $0x48] sm:$0xff] %v10041
        %10214 = vst [vmem:[%s825 + $0x50] sm:$0xff] %v10090
        %10215 = vst [vmem:[%s825 + $0x58] sm:$0xff] %v10092
        %10216 = vst [vmem:[%s825 + $0x60] sm:$0xff] %v10141
        %10217 = vst [vmem:[%s825 + $0x68] sm:$0xff] %v10143
        %10218 = vst [vmem:[%s825 + $0x70] sm:$0xff] %v10192
        %10219 = vst [vmem:[%s825 + $0x78] sm:$0xff] %v10194
        %10220 = vst [vmem:[%s825 + $0x80] sm:$0x1f] %v10045
        %10221 = vst [vmem:[%s825 + $0x88] sm:$0x1f] %v10047
        %10222 = vst [vmem:[%s825 + $0x90] sm:$0x1f] %v10096
        %10223 = vst [vmem:[%s825 + $0x98] sm:$0x1f] %v10098
        %10224 = vst [vmem:[%s825 + $0xa0] sm:$0x1f] %v10147
        %10225 = vst [vmem:[%s825 + $0xa8] sm:$0x1f] %v10149
        %10226 = vst [vmem:[%s825 + $0xb0] sm:$0x1f] %v10198
        %10227 = vst [vmem:[%s825 + $0xb8] sm:$0x1f] %v10200
        %p10228 = scmp.lt.s32.totalorder %s39, 1
        %s10229 = scalar_select %p10228, %s39, 1
        %s10230 = smul.addr %s10229, 24
        %s10231 = smul.addr %s10230, 8
        %s10232 = scalar_lea.vmem %s21, %s10231
        // Predicated region
        $region153: #{forward.1} parent=103 // pred_check
          %p10233 = pneg %p503
        $region154: #{forward.1} parent=103 // pred_check_branch
          %10235 = sbr.rel (%p10233) target = $region156
        $region155: #{forward.1} parent=103 // pred_region
          _
        $region156: #{forward.1} parent=103 // pred_fallthru
          _
      $region104: #{forward.1} parent=5 // pred_fallthru
        _
      %p10236 = scmp.le.s32.totalorder 2, %s34
      // Predicated region
      $region157: #{forward.1} parent=5 // pred_check
        %p10237 = pneg %p10236
      $region158: #{forward.1} parent=5 // pred_check_branch
        %10239 = sbr.rel (%p10237) target = $region160
      $region159: #{forward.1} parent=5 // pred_region
        %s10240 = ssub.s32 %s34, 2
        // Predicated region
        $region161: #{forward.1} parent=159 // pred_check
          %p10241 = pneg %p509
        $region162: #{forward.1} parent=159 // pred_check_branch
          %10243 = sbr.rel (%p10241) target = $region164
        $region163: #{forward.1} parent=159 // pred_region
          %p10244 = scmp.lt.s32.totalorder %s40, 1
          %s10245 = scalar_select %p10244, %s40, 1
          %s10246 = smul.addr %s10245, 24
          %s10247 = smul.addr %s10246, 8
          %s10248 = scalar_lea.vmem %s21, %s10247
        $region164: #{forward.1} parent=159 // pred_fallthru
          _
      $region160: #{forward.1} parent=5 // pred_fallthru
        _
    $region6: #{forward.1} parent=1 // loop_footer
      %s38 = sadd.s32 1, %s34
    $region7: #{forward.1} parent=1 // loop_footer_branch
      %33 = sbr.rel target = $region3
    $region8: #{forward.1} parent=1 // loop_exit
      _
    %10249 = vsyncpa [#allocation3], 1
    %s10250 = scalar_lea.sflag [#allocation3], 1
    %10251 = vsyncpa %s10250, 1
    %10252 = vsyncpa [#allocation5], 1
    %10253 = vsyncpa [#allocation8], 1
    %10254 = vsyncpa [#allocation11], 1
    %10255 = vsyncpa [#allocation14], 1
    %10256 = vsyncpa [#allocation17], 1
    %10257 = vsyncpa [#allocation20], 1

</llo_original>
